<compile_context>
chip_gen: v7x
topology: tpu7x:2x2x1
jax: 0.10.0
libtpu: 0.0.40
codegen_flags: <defaults>
</compile_context>

<pallas_src>
import re

import numpy as np
import jax
import jax.numpy as jnp
from jax import lax
from jax.experimental import pallas as pl
from jax.experimental.pallas import tpu as pltpu

F32 = jnp.float32
BF16 = jnp.bfloat16
BN_EPS = 1e-5
C = 68            # Fullnet internal width
MAXN = 384        # widest padded feature dim (315 -> 384)
SLAB_KS = (128, 256, 384)


def pad_to(n, m=128):
  return ((n + m - 1) // m) * m


def pick_ew_dtype():
  """bf16 elementwise on v6e/v7x, f32 on older chips (no bf16 VPU/EUP)."""
  kind = jax.devices()[0].device_kind
  m = re.search(r"(\d+)", kind)
  ver = int(m.group(1)) if m else 0
  return BF16 if ver >= 6 else F32


# ---------------------------------------------------------------------------
# Deterministic parameter construction (PyTorch-default-style init) +
# consolidation into kernel slabs.
# ---------------------------------------------------------------------------
class ParamBuilder:

  def __init__(self, key):
    self.key = key
    self.raw = []                                  # for the pure-JAX reference
    self.plan = []                                 # per-Linear kernel metadata
    self.slab_parts = {k: [] for k in SLAB_KS}     # bf16 weight blocks per K
    self.slab_cols = {k: 0 for k in SLAB_KS}
    self.bias_rows = []                            # f32 rows, width MAXN
    self._fold_scale = None                        # pending BN scale fold

  def _k(self):
    self.key, k = jax.random.split(self.key)
    return k

  def linear(self, fan_in, fan_out, bias=True):
    bound = 1.0 / np.sqrt(fan_in)
    w = jax.random.uniform(self._k(), (fan_in, fan_out), F32, -bound, bound)
    b = (jax.random.uniform(self._k(), (fan_out,), F32, -bound, bound)
         if bias else None)
    self.raw.append(("linear", w, b))

    # Fold pending eval-mode BatchNorm scale into this Linear's weight rows.
    # Valid because shift == 0 and scale > 0 (ReLU(s*x) == s*ReLU(x)).
    w_fold = w if self._fold_scale is None else w * self._fold_scale[:, None]
    self._fold_scale = None

    k_pad, n_pad = pad_to(fan_in), pad_to(fan_out)
    block = jnp.zeros((k_pad, n_pad), BF16).at[:fan_in, :fan_out].set(
        w_fold.astype(BF16))
    col = self.slab_cols[k_pad]
    self.slab_parts[k_pad].append(block)
    self.slab_cols[k_pad] += n_pad

    brow = None
    if bias:
      brow = len(self.bias_rows)
      self.bias_rows.append(jnp.zeros((MAXN,), F32).at[:fan_out].set(b))

    self.plan.append((SLAB_KS.index(k_pad), col, n_pad, brow))

  def batchnorm(self, feats):
    # PyTorch eval defaults: gamma=1, beta=0, running_mean=0, running_var=1.
    gamma = jnp.ones((feats,), F32)
    beta = jnp.zeros((feats,), F32)
    mean = jnp.zeros((feats,), F32)
    var = jnp.ones((feats,), F32)
    scale = gamma / jnp.sqrt(var + BN_EPS)
    shift = beta - mean * scale                    # == 0 with defaults
    self.raw.append(("bn", scale, shift))
    self._fold_scale = scale                       # folded into next Linear

  def finalize(self):
    def cat(k):
      parts = self.slab_parts[k]
      return (jnp.concatenate(parts, axis=1) if parts
              else jnp.zeros((k, 128), BF16))

    w128, w256, w384 = cat(128), cat(256), cat(384)
    n_rows = len(self.bias_rows)
    n_rows_pad = ((n_rows + 7) // 8) * 8
    bias_slab = jnp.zeros((n_rows_pad, MAXN), F32)
    bias_slab = bias_slab.at[:n_rows, :].set(jnp.stack(self.bias_rows))
    return (w128, w256, w384, bias_slab), tuple(self.plan)


def build_params(in_features, out_features, key):
  pb = ParamBuilder(key)

  def block(dims):
    i, h1, h2, h3, o = dims
    pb.batchnorm(i)
    pb.linear(i, h1)
    pb.linear(h1, h2)
    pb.linear(h2, h3)
    pb.linear(h3, o)

  def se(c, red):
    pb.linear(c, c // red, bias=False)
    pb.linear(c // red, c, bias=False)

  pb.linear(in_features, C)                       # self.input
  block((C, 113, 281, 83, C)); se(C, 8)           # block1 + se1
  block((C, 138, 283, 128, C)); se(C, 8)          # block2 + se2
  block((C, 160, 315, 139, C)); se(C, 8)          # block3 + se3
  block((C, 120, 231, 107, C)); se(C, 8)          # block4 + se4
  block((C, 99, 151, 139, out_features))          # block5
  slabs, plan = pb.finalize()
  return pb.raw, slabs, plan


# ---------------------------------------------------------------------------
# Pallas kernel: whole Fullnet forward on one batch tile (two row halves).
# ---------------------------------------------------------------------------
def make_kernel(plan, out_features, tile_b, ew_dtype):
  half = tile_b // 2

  def kernel(x_ref, w128_ref, w256_ref, w384_ref, bias_ref, out_ref):
    slabs = (w128_ref, w256_ref, w384_ref)

    def mm_in(h):
      return h if h.dtype == BF16 else h.astype(BF16)

    def forward(x):
      it = iter(plan)

      def linear(h, relu, out_dtype=ew_dtype):
        sid, col, n_pad, brow = next(it)
        w = slabs[sid][:, col:col + n_pad]
        y = jnp.dot(mm_in(h), w, preferred_element_type=jnp.float32)
        if brow is not None:
          y = y + bias_ref[brow:brow + 1, :n_pad]
        if relu:
          y = jnp.maximum(y, 0.0)
        return y.astype(out_dtype)

      def blk(h, final=False):
        # BatchNorm scale already folded into the first Linear's weights
        # (shift == 0 with eval defaults): only the ReLU of 'short' remains.
        h = jnp.maximum(h, 0.0)
        h = linear(h, True)
        h = linear(h, True)
        h = linear(h, True)
        # Dropout(0.5) is identity in eval mode.
        return linear(h, False, out_dtype=F32 if final else ew_dtype)

      def se(h):
        y = linear(h, True)                        # C -> C//8, ReLU, no bias
        sid, col, n_pad, _ = next(it)              # C//8 -> C, sigmoid, no bias
        w = slabs[sid][:, col:col + n_pad]
        g = jax.nn.sigmoid(
            jnp.dot(mm_in(y), w, preferred_element_type=jnp.float32))
        return h * g.astype(ew_dtype)

      x = linear(x, False)                         # self.input
      # Residual chain as a running sum: d_{k+1} = x_k + (d1 + ... + d_k).
      d = x
      acc = x
      for _ in range(4):                           # blocks/SE 1..4
        x = se(blk(d))
        d = x + acc
        acc = acc + d
      logits = blk(d, final=True)                  # block5 (f32 logits)

      # Softmax(dim=1), masking the padded output columns.
      col_ids = lax.broadcasted_iota(jnp.int32, logits.shape, 1)
      logits = jnp.where(col_ids < out_features, logits, -1e30)
      m = jnp.max(logits, axis=1, keepdims=True)
      e = jnp.exp(logits - m)
      denom = jnp.sum(e, axis=1, keepdims=True)
      r = pl.reciprocal(denom, approx=True)        # EUP
      r = r * (2.0 - denom * r)                    # one Newton step
      return e * r

    # Two independent row halves -> ILP across the serial matmul chain.
    x_all = x_ref[...]
    for p in range(2):
      r0 = p * half
      out_ref[r0:r0 + half, :] = forward(
          x_all[r0:r0 + half, :]).astype(out_ref.dtype)

  return kernel


def make_fullnet(plan, in_features, out_features, ew_dtype):
  fin_p = pad_to(in_features)
  out_p = pad_to(out_features)

  @jax.jit
  def fwd(x, w128, w256, w384, bias_slab):
    b = x.shape[0]
    b16 = max(16, ((b + 15) // 16) * 16)
    if b16 <= 128:
      tile_b, b_pad = b16, b16                     # single small tile
    else:
      tile_b = 128                                 # >=2 grid steps (megacore)
      b_pad = ((b + 127) // 128) * 128

    # bf16 input tile: halves the streamed bytes; first matmul casts anyway.
    xp = jnp.zeros((b_pad, fin_p), BF16).at[:b, :in_features].set(
        x.astype(BF16))

    kernel = make_kernel(plan, out_features, tile_b, ew_dtype)
    out = pl.pallas_call(
        kernel,
        out_shape=jax.ShapeDtypeStruct((b_pad, out_p), F32),
        grid_spec=pltpu.PrefetchScalarGridSpec(
            num_scalar_prefetch=0,
            grid=(b_pad // tile_b,),
            in_specs=[
                pl.BlockSpec((tile_b, fin_p), lambda i: (i, 0)),
                pl.BlockSpec(w128.shape, lambda i: (0, 0)),
                pl.BlockSpec(w256.shape, lambda i: (0, 0)),
                pl.BlockSpec(w384.shape, lambda i: (0, 0)),
                pl.BlockSpec(bias_slab.shape, lambda i: (0, 0)),
            ],
            out_specs=pl.BlockSpec((tile_b, out_p), lambda i: (i, 0)),
        ),
        compiler_params=pltpu.CompilerParams(
            dimension_semantics=("parallel",),
            vmem_limit_bytes=32 * 1024 * 1024,
        ),
    )(xp, w128, w256, w384, bias_slab)
    return out[:b, :out_features]

  return fwd


# ---------------------------------------------------------------------------
# Pure-JAX reference (unpadded).  Mirrors the kernel's precision choices
# (bf16 matmul operands, f32 accumulation, ew_dtype elementwise) so the
# correctness check isolates kernel/layout bugs from dtype noise.
# ---------------------------------------------------------------------------
def ref_forward(x, raw, ew_dtype):
  it = iter(raw)

  def mm(h, w):
    return jnp.dot(h.astype(BF16), w.astype(BF16),
                   preferred_element_type=jnp.float32)

  def linear(h, relu, out_dtype=ew_dtype):
    _, w, b_ = next(it)
    y = mm(h, w)
    if b_ is not None:
      y = y + b_.reshape(1, -1)
    if relu:
      y = jnp.maximum(y, 0.0)
    return y.astype(out_dtype)

  def blk(h, final=False):
    _, scale, shift = next(it)                     # BatchNorm1d (eval)
    h = jnp.maximum(h * scale + shift, 0.0).astype(ew_dtype)
    h = linear(h, True)
    h = linear(h, True)
    h = linear(h, True)
    return linear(h, False, out_dtype=F32 if final else ew_dtype)

  def se(h):
    _, w1, _ = next(it)
    _, w2, _ = next(it)
    y = jnp.maximum(mm(h, w1), 0.0).astype(ew_dtype)
    return h * jax.nn.sigmoid(mm(y, w2)).astype(ew_dtype)

  x = x.astype(BF16)
  x = linear(x, False)
  # Running sum reproduces d_{k+1} = x_k + d1 + ... + d_k exactly.
  d = x
  acc = x
  for _ in range(4):
    x = se(blk(d))
    d = x + acc
    acc = acc + d
  logits = blk(d, final=True)
  return jax.nn.softmax(logits, axis=1)


if __name__ == "__main__":
  in_features, out_features = 32, 10
  batch = 16

  root = jax.random.PRNGKey(0)
  kp, kx = jax.random.split(root)
  raw_params, slabs, plan = build_params(in_features, out_features, kp)
  x = jax.random.normal(kx, (batch, in_features), F32)

  ew_dtype = pick_ew_dtype()
  fullnet = make_fullnet(plan, in_features, out_features, ew_dtype)
  out = jax.block_until_ready(fullnet(x, *slabs))

  ref = ref_forward(x, raw_params, ew_dtype)
  np.testing.assert_allclose(np.asarray(out), np.asarray(ref),
                             rtol=2e-2, atol=2e-3)
  # Sanity: each row is (approximately) a probability distribution.
  np.testing.assert_allclose(np.asarray(out).sum(axis=1), np.ones(batch),
                             rtol=5e-4, atol=5e-4)
  print("KERNEL_OK")
</pallas_src>

<mosaic_0001>
module attributes {stable_mosaic.version = 11 : i64} {
  func.func @kernel(%arg0: i32, %arg1: memref<16x128xbf16, #tpu.memory_space<vmem>>, %arg2: memref<128x3328xbf16, #tpu.memory_space<vmem>>, %arg3: memref<256x1408xbf16, #tpu.memory_space<vmem>>, %arg4: memref<384x512xbf16, #tpu.memory_space<vmem>>, %arg5: memref<24x384xf32, #tpu.memory_space<vmem>>, %arg6: memref<16x128xf32, #tpu.memory_space<vmem>>) attributes {dimension_semantics = [#tpu.dimension_semantics<parallel>], iteration_bounds = array<i64: 1>, scalar_prefetch = 0 : i64, scratch_operands = 0 : i64, tpu.core_type = #tpu.core_type<tc>, window_params = [{transform_indices = @transform_0, window_bounds = array<i64: 16, 128>}, {pipeline_mode = #tpu.pipeline_mode<synchronous>, transform_indices = @transform_1, window_bounds = array<i64: 128, 3328>}, {pipeline_mode = #tpu.pipeline_mode<synchronous>, transform_indices = @transform_2, window_bounds = array<i64: 256, 1408>}, {pipeline_mode = #tpu.pipeline_mode<synchronous>, transform_indices = @transform_3, window_bounds = array<i64: 384, 512>}, {pipeline_mode = #tpu.pipeline_mode<synchronous>, transform_indices = @transform_4, window_bounds = array<i64: 24, 384>}, {transform_indices = @transform_5, window_bounds = array<i64: 16, 128>}]} {
    %c0 = arith.constant 0 : index
    %c0_0 = arith.constant 0 : index
    %0 = vector.load %arg1[%c0, %c0_0] : memref<16x128xbf16, #tpu.memory_space<vmem>>, vector<16x128xbf16>
    %1 = vector.extract_strided_slice %0 {offsets = [0, 0], sizes = [8, 128], strides = [1, 1]} : vector<16x128xbf16> to vector<8x128xbf16>
    %c0_1 = arith.constant 0 : index
    %c0_2 = arith.constant 0 : index
    %2 = vector.load %arg2[%c0_1, %c0_2] : memref<128x3328xbf16, #tpu.memory_space<vmem>>, vector<128x128xbf16>
    %cst = arith.constant dense<0.000000e+00> : vector<8x128xf32>
    %3 = tpu.matmul %1, %2, %cst {dimension_numbers = #tpu.dot_dimension_numbers<[1], [0], [0], [1], [0, 0, 1, 1], [], []>} : vector<8x128xbf16>, vector<128x128xbf16>, vector<8x128xf32> -> vector<8x128xf32>
    %c0_3 = arith.constant 0 : index
    %c0_4 = arith.constant 0 : index
    %4 = vector.load %arg5[%c0_3, %c0_4] : memref<24x384xf32, #tpu.memory_space<vmem>>, vector<1x128xf32>
    %5 = vector.broadcast %4 : vector<1x128xf32> to vector<8x128xf32>
    %6 = arith.addf %3, %5 : vector<8x128xf32>
    %cst_5 = arith.constant 0.000000e+00 : f32
    %7 = vector.broadcast %cst_5 : f32 to vector<8x128xf32>
    %8 = arith.maximumf %6, %7 : vector<8x128xf32>
    %c0_6 = arith.constant 0 : index
    %c128 = arith.constant 128 : index
    %9 = vector.load %arg2[%c0_6, %c128] : memref<128x3328xbf16, #tpu.memory_space<vmem>>, vector<128x128xbf16>
    %10 = arith.truncf %8 : vector<8x128xf32> to vector<8x128xbf16>
    %cst_7 = arith.constant dense<0.000000e+00> : vector<8x128xf32>
    %11 = tpu.matmul %10, %9, %cst_7 {dimension_numbers = #tpu.dot_dimension_numbers<[1], [0], [0], [1], [0, 0, 1, 1], [], []>} : vector<8x128xbf16>, vector<128x128xbf16>, vector<8x128xf32> -> vector<8x128xf32>
    %c1 = arith.constant 1 : index
    %c0_8 = arith.constant 0 : index
    %12 = vector.load %arg5[%c1, %c0_8] : memref<24x384xf32, #tpu.memory_space<vmem>>, vector<1x128xf32>
    %13 = vector.broadcast %12 : vector<1x128xf32> to vector<8x128xf32>
    %14 = arith.addf %11, %13 : vector<8x128xf32>
    %cst_9 = arith.constant 0.000000e+00 : f32
    %15 = vector.broadcast %cst_9 : f32 to vector<8x128xf32>
    %16 = arith.maximumf %14, %15 : vector<8x128xf32>
    %c0_10 = arith.constant 0 : index
    %c256 = arith.constant 256 : index
    %17 = vector.load %arg2[%c0_10, %c256] : memref<128x3328xbf16, #tpu.memory_space<vmem>>, vector<128x384xbf16>
    %18 = arith.truncf %16 : vector<8x128xf32> to vector<8x128xbf16>
    %cst_11 = arith.constant dense<0.000000e+00> : vector<8x384xf32>
    %19 = tpu.matmul %18, %17, %cst_11 {dimension_numbers = #tpu.dot_dimension_numbers<[1], [0], [0], [1], [0, 0, 1, 1], [], []>} : vector<8x128xbf16>, vector<128x384xbf16>, vector<8x384xf32> -> vector<8x384xf32>
    %c2 = arith.constant 2 : index
    %c0_12 = arith.constant 0 : index
    %20 = vector.load %arg5[%c2, %c0_12] : memref<24x384xf32, #tpu.memory_space<vmem>>, vector<1x384xf32>
    %21 = vector.broadcast %20 : vector<1x384xf32> to vector<8x384xf32>
    %22 = arith.addf %19, %21 : vector<8x384xf32>
    %cst_13 = arith.constant 0.000000e+00 : f32
    %23 = vector.broadcast %cst_13 : f32 to vector<8x384xf32>
    %24 = arith.maximumf %22, %23 : vector<8x384xf32>
    %c0_14 = arith.constant 0 : index
    %c0_15 = arith.constant 0 : index
    %25 = vector.load %arg4[%c0_14, %c0_15] : memref<384x512xbf16, #tpu.memory_space<vmem>>, vector<384x128xbf16>
    %26 = arith.truncf %24 : vector<8x384xf32> to vector<8x384xbf16>
    %cst_16 = arith.constant dense<0.000000e+00> : vector<8x128xf32>
    %27 = tpu.matmul %26, %25, %cst_16 {dimension_numbers = #tpu.dot_dimension_numbers<[1], [0], [0], [1], [0, 0, 1, 1], [], []>} : vector<8x384xbf16>, vector<384x128xbf16>, vector<8x128xf32> -> vector<8x128xf32>
    %c3 = arith.constant 3 : index
    %c0_17 = arith.constant 0 : index
    %28 = vector.load %arg5[%c3, %c0_17] : memref<24x384xf32, #tpu.memory_space<vmem>>, vector<1x128xf32>
    %29 = vector.broadcast %28 : vector<1x128xf32> to vector<8x128xf32>
    %30 = arith.addf %27, %29 : vector<8x128xf32>
    %cst_18 = arith.constant 0.000000e+00 : f32
    %31 = vector.broadcast %cst_18 : f32 to vector<8x128xf32>
    %32 = arith.maximumf %30, %31 : vector<8x128xf32>
    %c0_19 = arith.constant 0 : index
    %c640 = arith.constant 640 : index
    %33 = vector.load %arg2[%c0_19, %c640] : memref<128x3328xbf16, #tpu.memory_space<vmem>>, vector<128x128xbf16>
    %34 = arith.truncf %32 : vector<8x128xf32> to vector<8x128xbf16>
    %cst_20 = arith.constant dense<0.000000e+00> : vector<8x128xf32>
    %35 = tpu.matmul %34, %33, %cst_20 {dimension_numbers = #tpu.dot_dimension_numbers<[1], [0], [0], [1], [0, 0, 1, 1], [], []>} : vector<8x128xbf16>, vector<128x128xbf16>, vector<8x128xf32> -> vector<8x128xf32>
    %c4 = arith.constant 4 : index
    %c0_21 = arith.constant 0 : index
    %36 = vector.load %arg5[%c4, %c0_21] : memref<24x384xf32, #tpu.memory_space<vmem>>, vector<1x128xf32>
    %37 = vector.broadcast %36 : vector<1x128xf32> to vector<8x128xf32>
    %38 = arith.addf %35, %37 : vector<8x128xf32>
    %c0_22 = arith.constant 0 : index
    %c768 = arith.constant 768 : index
    %39 = vector.load %arg2[%c0_22, %c768] : memref<128x3328xbf16, #tpu.memory_space<vmem>>, vector<128x128xbf16>
    %40 = arith.truncf %38 : vector<8x128xf32> to vector<8x128xbf16>
    %cst_23 = arith.constant dense<0.000000e+00> : vector<8x128xf32>
    %41 = tpu.matmul %40, %39, %cst_23 {dimension_numbers = #tpu.dot_dimension_numbers<[1], [0], [0], [1], [0, 0, 1, 1], [], []>} : vector<8x128xbf16>, vector<128x128xbf16>, vector<8x128xf32> -> vector<8x128xf32>
    %cst_24 = arith.constant 0.000000e+00 : f32
    %42 = vector.broadcast %cst_24 : f32 to vector<8x128xf32>
    %43 = arith.maximumf %41, %42 : vector<8x128xf32>
    %c0_25 = arith.constant 0 : index
    %c896 = arith.constant 896 : index
    %44 = vector.load %arg2[%c0_25, %c896] : memref<128x3328xbf16, #tpu.memory_space<vmem>>, vector<128x128xbf16>
    %45 = arith.truncf %43 : vector<8x128xf32> to vector<8x128xbf16>
    %cst_26 = arith.constant dense<0.000000e+00> : vector<8x128xf32>
    %46 = tpu.matmul %45, %44, %cst_26 {dimension_numbers = #tpu.dot_dimension_numbers<[1], [0], [0], [1], [0, 0, 1, 1], [], []>} : vector<8x128xbf16>, vector<128x128xbf16>, vector<8x128xf32> -> vector<8x128xf32>
    %47 = arith.negf %46 : vector<8x128xf32>
    %48 = math.exp %47 : vector<8x128xf32>
    %cst_27 = arith.constant 1.000000e+00 : f32
    %49 = vector.broadcast %cst_27 : f32 to vector<8x128xf32>
    %50 = arith.addf %49, %48 : vector<8x128xf32>
    %51 = arith.divf %49, %50 : vector<8x128xf32>
    %52 = arith.mulf %38, %51 : vector<8x128xf32>
    %53 = arith.addf %52, %6 : vector<8x128xf32>
    %54 = arith.addf %6, %53 : vector<8x128xf32>
    %cst_28 = arith.constant 0.000000e+00 : f32
    %55 = vector.broadcast %cst_28 : f32 to vector<8x128xf32>
    %56 = arith.maximumf %53, %55 : vector<8x128xf32>
    %c0_29 = arith.constant 0 : index
    %c1024 = arith.constant 1024 : index
    %57 = vector.load %arg2[%c0_29, %c1024] : memref<128x3328xbf16, #tpu.memory_space<vmem>>, vector<128x256xbf16>
    %58 = arith.truncf %56 : vector<8x128xf32> to vector<8x128xbf16>
    %cst_30 = arith.constant dense<0.000000e+00> : vector<8x256xf32>
    %59 = tpu.matmul %58, %57, %cst_30 {dimension_numbers = #tpu.dot_dimension_numbers<[1], [0], [0], [1], [0, 0, 1, 1], [], []>} : vector<8x128xbf16>, vector<128x256xbf16>, vector<8x256xf32> -> vector<8x256xf32>
    %c5 = arith.constant 5 : index
    %c0_31 = arith.constant 0 : index
    %60 = vector.load %arg5[%c5, %c0_31] : memref<24x384xf32, #tpu.memory_space<vmem>>, vector<1x256xf32>
    %61 = vector.broadcast %60 : vector<1x256xf32> to vector<8x256xf32>
    %62 = arith.addf %59, %61 : vector<8x256xf32>
    %cst_32 = arith.constant 0.000000e+00 : f32
    %63 = vector.broadcast %cst_32 : f32 to vector<8x256xf32>
    %64 = arith.maximumf %62, %63 : vector<8x256xf32>
    %c0_33 = arith.constant 0 : index
    %c0_34 = arith.constant 0 : index
    %65 = vector.load %arg3[%c0_33, %c0_34] : memref<256x1408xbf16, #tpu.memory_space<vmem>>, vector<256x384xbf16>
    %66 = arith.truncf %64 : vector<8x256xf32> to vector<8x256xbf16>
    %cst_35 = arith.constant dense<0.000000e+00> : vector<8x384xf32>
    %67 = tpu.matmul %66, %65, %cst_35 {dimension_numbers = #tpu.dot_dimension_numbers<[1], [0], [0], [1], [0, 0, 1, 1], [], []>} : vector<8x256xbf16>, vector<256x384xbf16>, vector<8x384xf32> -> vector<8x384xf32>
    %c6 = arith.constant 6 : index
    %c0_36 = arith.constant 0 : index
    %68 = vector.load %arg5[%c6, %c0_36] : memref<24x384xf32, #tpu.memory_space<vmem>>, vector<1x384xf32>
    %69 = vector.broadcast %68 : vector<1x384xf32> to vector<8x384xf32>
    %70 = arith.addf %67, %69 : vector<8x384xf32>
    %cst_37 = arith.constant 0.000000e+00 : f32
    %71 = vector.broadcast %cst_37 : f32 to vector<8x384xf32>
    %72 = arith.maximumf %70, %71 : vector<8x384xf32>
    %c0_38 = arith.constant 0 : index
    %c128_39 = arith.constant 128 : index
    %73 = vector.load %arg4[%c0_38, %c128_39] : memref<384x512xbf16, #tpu.memory_space<vmem>>, vector<384x128xbf16>
    %74 = arith.truncf %72 : vector<8x384xf32> to vector<8x384xbf16>
    %cst_40 = arith.constant dense<0.000000e+00> : vector<8x128xf32>
    %75 = tpu.matmul %74, %73, %cst_40 {dimension_numbers = #tpu.dot_dimension_numbers<[1], [0], [0], [1], [0, 0, 1, 1], [], []>} : vector<8x384xbf16>, vector<384x128xbf16>, vector<8x128xf32> -> vector<8x128xf32>
    %c7 = arith.constant 7 : index
    %c0_41 = arith.constant 0 : index
    %76 = vector.load %arg5[%c7, %c0_41] : memref<24x384xf32, #tpu.memory_space<vmem>>, vector<1x128xf32>
    %77 = vector.broadcast %76 : vector<1x128xf32> to vector<8x128xf32>
    %78 = arith.addf %75, %77 : vector<8x128xf32>
    %cst_42 = arith.constant 0.000000e+00 : f32
    %79 = vector.broadcast %cst_42 : f32 to vector<8x128xf32>
    %80 = arith.maximumf %78, %79 : vector<8x128xf32>
    %c0_43 = arith.constant 0 : index
    %c1280 = arith.constant 1280 : index
    %81 = vector.load %arg2[%c0_43, %c1280] : memref<128x3328xbf16, #tpu.memory_space<vmem>>, vector<128x128xbf16>
    %82 = arith.truncf %80 : vector<8x128xf32> to vector<8x128xbf16>
    %cst_44 = arith.constant dense<0.000000e+00> : vector<8x128xf32>
    %83 = tpu.matmul %82, %81, %cst_44 {dimension_numbers = #tpu.dot_dimension_numbers<[1], [0], [0], [1], [0, 0, 1, 1], [], []>} : vector<8x128xbf16>, vector<128x128xbf16>, vector<8x128xf32> -> vector<8x128xf32>
    %c8 = arith.constant 8 : index
    %c0_45 = arith.constant 0 : index
    %84 = vector.load %arg5[%c8, %c0_45] : memref<24x384xf32, #tpu.memory_space<vmem>>, vector<1x128xf32>
    %85 = vector.broadcast %84 : vector<1x128xf32> to vector<8x128xf32>
    %86 = arith.addf %83, %85 : vector<8x128xf32>
    %c0_46 = arith.constant 0 : index
    %c1408 = arith.constant 1408 : index
    %87 = vector.load %arg2[%c0_46, %c1408] : memref<128x3328xbf16, #tpu.memory_space<vmem>>, vector<128x128xbf16>
    %88 = arith.truncf %86 : vector<8x128xf32> to vector<8x128xbf16>
    %cst_47 = arith.constant dense<0.000000e+00> : vector<8x128xf32>
    %89 = tpu.matmul %88, %87, %cst_47 {dimension_numbers = #tpu.dot_dimension_numbers<[1], [0], [0], [1], [0, 0, 1, 1], [], []>} : vector<8x128xbf16>, vector<128x128xbf16>, vector<8x128xf32> -> vector<8x128xf32>
    %cst_48 = arith.constant 0.000000e+00 : f32
    %90 = vector.broadcast %cst_48 : f32 to vector<8x128xf32>
    %91 = arith.maximumf %89, %90 : vector<8x128xf32>
    %c0_49 = arith.constant 0 : index
    %c1536 = arith.constant 1536 : index
    %92 = vector.load %arg2[%c0_49, %c1536] : memref<128x3328xbf16, #tpu.memory_space<vmem>>, vector<128x128xbf16>
    %93 = arith.truncf %91 : vector<8x128xf32> to vector<8x128xbf16>
    %cst_50 = arith.constant dense<0.000000e+00> : vector<8x128xf32>
    %94 = tpu.matmul %93, %92, %cst_50 {dimension_numbers = #tpu.dot_dimension_numbers<[1], [0], [0], [1], [0, 0, 1, 1], [], []>} : vector<8x128xbf16>, vector<128x128xbf16>, vector<8x128xf32> -> vector<8x128xf32>
    %95 = arith.negf %94 : vector<8x128xf32>
    %96 = math.exp %95 : vector<8x128xf32>
    %cst_51 = arith.constant 1.000000e+00 : f32
    %97 = vector.broadcast %cst_51 : f32 to vector<8x128xf32>
    %98 = arith.addf %97, %96 : vector<8x128xf32>
    %99 = arith.divf %97, %98 : vector<8x128xf32>
    %100 = arith.mulf %86, %99 : vector<8x128xf32>
    %101 = arith.addf %100, %54 : vector<8x128xf32>
    %102 = arith.addf %54, %101 : vector<8x128xf32>
    %cst_52 = arith.constant 0.000000e+00 : f32
    %103 = vector.broadcast %cst_52 : f32 to vector<8x128xf32>
    %104 = arith.maximumf %101, %103 : vector<8x128xf32>
    %c0_53 = arith.constant 0 : index
    %c1664 = arith.constant 1664 : index
    %105 = vector.load %arg2[%c0_53, %c1664] : memref<128x3328xbf16, #tpu.memory_space<vmem>>, vector<128x256xbf16>
    %106 = arith.truncf %104 : vector<8x128xf32> to vector<8x128xbf16>
    %cst_54 = arith.constant dense<0.000000e+00> : vector<8x256xf32>
    %107 = tpu.matmul %106, %105, %cst_54 {dimension_numbers = #tpu.dot_dimension_numbers<[1], [0], [0], [1], [0, 0, 1, 1], [], []>} : vector<8x128xbf16>, vector<128x256xbf16>, vector<8x256xf32> -> vector<8x256xf32>
    %c9 = arith.constant 9 : index
    %c0_55 = arith.constant 0 : index
    %108 = vector.load %arg5[%c9, %c0_55] : memref<24x384xf32, #tpu.memory_space<vmem>>, vector<1x256xf32>
    %109 = vector.broadcast %108 : vector<1x256xf32> to vector<8x256xf32>
    %110 = arith.addf %107, %109 : vector<8x256xf32>
    %cst_56 = arith.constant 0.000000e+00 : f32
    %111 = vector.broadcast %cst_56 : f32 to vector<8x256xf32>
    %112 = arith.maximumf %110, %111 : vector<8x256xf32>
    %c0_57 = arith.constant 0 : index
    %c384 = arith.constant 384 : index
    %113 = vector.load %arg3[%c0_57, %c384] : memref<256x1408xbf16, #tpu.memory_space<vmem>>, vector<256x384xbf16>
    %114 = arith.truncf %112 : vector<8x256xf32> to vector<8x256xbf16>
    %cst_58 = arith.constant dense<0.000000e+00> : vector<8x384xf32>
    %115 = tpu.matmul %114, %113, %cst_58 {dimension_numbers = #tpu.dot_dimension_numbers<[1], [0], [0], [1], [0, 0, 1, 1], [], []>} : vector<8x256xbf16>, vector<256x384xbf16>, vector<8x384xf32> -> vector<8x384xf32>
    %c10 = arith.constant 10 : index
    %c0_59 = arith.constant 0 : index
    %116 = vector.load %arg5[%c10, %c0_59] : memref<24x384xf32, #tpu.memory_space<vmem>>, vector<1x384xf32>
    %117 = vector.broadcast %116 : vector<1x384xf32> to vector<8x384xf32>
    %118 = arith.addf %115, %117 : vector<8x384xf32>
    %cst_60 = arith.constant 0.000000e+00 : f32
    %119 = vector.broadcast %cst_60 : f32 to vector<8x384xf32>
    %120 = arith.maximumf %118, %119 : vector<8x384xf32>
    %c0_61 = arith.constant 0 : index
    %c256_62 = arith.constant 256 : index
    %121 = vector.load %arg4[%c0_61, %c256_62] : memref<384x512xbf16, #tpu.memory_space<vmem>>, vector<384x256xbf16>
    %122 = arith.truncf %120 : vector<8x384xf32> to vector<8x384xbf16>
    %cst_63 = arith.constant dense<0.000000e+00> : vector<8x256xf32>
    %123 = tpu.matmul %122, %121, %cst_63 {dimension_numbers = #tpu.dot_dimension_numbers<[1], [0], [0], [1], [0, 0, 1, 1], [], []>} : vector<8x384xbf16>, vector<384x256xbf16>, vector<8x256xf32> -> vector<8x256xf32>
    %c11 = arith.constant 11 : index
    %c0_64 = arith.constant 0 : index
    %124 = vector.load %arg5[%c11, %c0_64] : memref<24x384xf32, #tpu.memory_space<vmem>>, vector<1x256xf32>
    %125 = vector.broadcast %124 : vector<1x256xf32> to vector<8x256xf32>
    %126 = arith.addf %123, %125 : vector<8x256xf32>
    %cst_65 = arith.constant 0.000000e+00 : f32
    %127 = vector.broadcast %cst_65 : f32 to vector<8x256xf32>
    %128 = arith.maximumf %126, %127 : vector<8x256xf32>
    %c0_66 = arith.constant 0 : index
    %c768_67 = arith.constant 768 : index
    %129 = vector.load %arg3[%c0_66, %c768_67] : memref<256x1408xbf16, #tpu.memory_space<vmem>>, vector<256x128xbf16>
    %130 = arith.truncf %128 : vector<8x256xf32> to vector<8x256xbf16>
    %cst_68 = arith.constant dense<0.000000e+00> : vector<8x128xf32>
    %131 = tpu.matmul %130, %129, %cst_68 {dimension_numbers = #tpu.dot_dimension_numbers<[1], [0], [0], [1], [0, 0, 1, 1], [], []>} : vector<8x256xbf16>, vector<256x128xbf16>, vector<8x128xf32> -> vector<8x128xf32>
    %c12 = arith.constant 12 : index
    %c0_69 = arith.constant 0 : index
    %132 = vector.load %arg5[%c12, %c0_69] : memref<24x384xf32, #tpu.memory_space<vmem>>, vector<1x128xf32>
    %133 = vector.broadcast %132 : vector<1x128xf32> to vector<8x128xf32>
    %134 = arith.addf %131, %133 : vector<8x128xf32>
    %c0_70 = arith.constant 0 : index
    %c1920 = arith.constant 1920 : index
    %135 = vector.load %arg2[%c0_70, %c1920] : memref<128x3328xbf16, #tpu.memory_space<vmem>>, vector<128x128xbf16>
    %136 = arith.truncf %134 : vector<8x128xf32> to vector<8x128xbf16>
    %cst_71 = arith.constant dense<0.000000e+00> : vector<8x128xf32>
    %137 = tpu.matmul %136, %135, %cst_71 {dimension_numbers = #tpu.dot_dimension_numbers<[1], [0], [0], [1], [0, 0, 1, 1], [], []>} : vector<8x128xbf16>, vector<128x128xbf16>, vector<8x128xf32> -> vector<8x128xf32>
    %cst_72 = arith.constant 0.000000e+00 : f32
    %138 = vector.broadcast %cst_72 : f32 to vector<8x128xf32>
    %139 = arith.maximumf %137, %138 : vector<8x128xf32>
    %c0_73 = arith.constant 0 : index
    %c2048 = arith.constant 2048 : index
    %140 = vector.load %arg2[%c0_73, %c2048] : memref<128x3328xbf16, #tpu.memory_space<vmem>>, vector<128x128xbf16>
    %141 = arith.truncf %139 : vector<8x128xf32> to vector<8x128xbf16>
    %cst_74 = arith.constant dense<0.000000e+00> : vector<8x128xf32>
    %142 = tpu.matmul %141, %140, %cst_74 {dimension_numbers = #tpu.dot_dimension_numbers<[1], [0], [0], [1], [0, 0, 1, 1], [], []>} : vector<8x128xbf16>, vector<128x128xbf16>, vector<8x128xf32> -> vector<8x128xf32>
    %143 = arith.negf %142 : vector<8x128xf32>
    %144 = math.exp %143 : vector<8x128xf32>
    %cst_75 = arith.constant 1.000000e+00 : f32
    %145 = vector.broadcast %cst_75 : f32 to vector<8x128xf32>
    %146 = arith.addf %145, %144 : vector<8x128xf32>
    %147 = arith.divf %145, %146 : vector<8x128xf32>
    %148 = arith.mulf %134, %147 : vector<8x128xf32>
    %149 = arith.addf %148, %102 : vector<8x128xf32>
    %150 = arith.addf %102, %149 : vector<8x128xf32>
    %cst_76 = arith.constant 0.000000e+00 : f32
    %151 = vector.broadcast %cst_76 : f32 to vector<8x128xf32>
    %152 = arith.maximumf %149, %151 : vector<8x128xf32>
    %c0_77 = arith.constant 0 : index
    %c2176 = arith.constant 2176 : index
    %153 = vector.load %arg2[%c0_77, %c2176] : memref<128x3328xbf16, #tpu.memory_space<vmem>>, vector<128x128xbf16>
    %154 = arith.truncf %152 : vector<8x128xf32> to vector<8x128xbf16>
    %cst_78 = arith.constant dense<0.000000e+00> : vector<8x128xf32>
    %155 = tpu.matmul %154, %153, %cst_78 {dimension_numbers = #tpu.dot_dimension_numbers<[1], [0], [0], [1], [0, 0, 1, 1], [], []>} : vector<8x128xbf16>, vector<128x128xbf16>, vector<8x128xf32> -> vector<8x128xf32>
    %c13 = arith.constant 13 : index
    %c0_79 = arith.constant 0 : index
    %156 = vector.load %arg5[%c13, %c0_79] : memref<24x384xf32, #tpu.memory_space<vmem>>, vector<1x128xf32>
    %157 = vector.broadcast %156 : vector<1x128xf32> to vector<8x128xf32>
    %158 = arith.addf %155, %157 : vector<8x128xf32>
    %cst_80 = arith.constant 0.000000e+00 : f32
    %159 = vector.broadcast %cst_80 : f32 to vector<8x128xf32>
    %160 = arith.maximumf %158, %159 : vector<8x128xf32>
    %c0_81 = arith.constant 0 : index
    %c2304 = arith.constant 2304 : index
    %161 = vector.load %arg2[%c0_81, %c2304] : memref<128x3328xbf16, #tpu.memory_space<vmem>>, vector<128x256xbf16>
    %162 = arith.truncf %160 : vector<8x128xf32> to vector<8x128xbf16>
    %cst_82 = arith.constant dense<0.000000e+00> : vector<8x256xf32>
    %163 = tpu.matmul %162, %161, %cst_82 {dimension_numbers = #tpu.dot_dimension_numbers<[1], [0], [0], [1], [0, 0, 1, 1], [], []>} : vector<8x128xbf16>, vector<128x256xbf16>, vector<8x256xf32> -> vector<8x256xf32>
    %c14 = arith.constant 14 : index
    %c0_83 = arith.constant 0 : index
    %164 = vector.load %arg5[%c14, %c0_83] : memref<24x384xf32, #tpu.memory_space<vmem>>, vector<1x256xf32>
    %165 = vector.broadcast %164 : vector<1x256xf32> to vector<8x256xf32>
    %166 = arith.addf %163, %165 : vector<8x256xf32>
    %cst_84 = arith.constant 0.000000e+00 : f32
    %167 = vector.broadcast %cst_84 : f32 to vector<8x256xf32>
    %168 = arith.maximumf %166, %167 : vector<8x256xf32>
    %c0_85 = arith.constant 0 : index
    %c896_86 = arith.constant 896 : index
    %169 = vector.load %arg3[%c0_85, %c896_86] : memref<256x1408xbf16, #tpu.memory_space<vmem>>, vector<256x128xbf16>
    %170 = arith.truncf %168 : vector<8x256xf32> to vector<8x256xbf16>
    %cst_87 = arith.constant dense<0.000000e+00> : vector<8x128xf32>
    %171 = tpu.matmul %170, %169, %cst_87 {dimension_numbers = #tpu.dot_dimension_numbers<[1], [0], [0], [1], [0, 0, 1, 1], [], []>} : vector<8x256xbf16>, vector<256x128xbf16>, vector<8x128xf32> -> vector<8x128xf32>
    %c15 = arith.constant 15 : index
    %c0_88 = arith.constant 0 : index
    %172 = vector.load %arg5[%c15, %c0_88] : memref<24x384xf32, #tpu.memory_space<vmem>>, vector<1x128xf32>
    %173 = vector.broadcast %172 : vector<1x128xf32> to vector<8x128xf32>
    %174 = arith.addf %171, %173 : vector<8x128xf32>
    %cst_89 = arith.constant 0.000000e+00 : f32
    %175 = vector.broadcast %cst_89 : f32 to vector<8x128xf32>
    %176 = arith.maximumf %174, %175 : vector<8x128xf32>
    %c0_90 = arith.constant 0 : index
    %c2560 = arith.constant 2560 : index
    %177 = vector.load %arg2[%c0_90, %c2560] : memref<128x3328xbf16, #tpu.memory_space<vmem>>, vector<128x128xbf16>
    %178 = arith.truncf %176 : vector<8x128xf32> to vector<8x128xbf16>
    %cst_91 = arith.constant dense<0.000000e+00> : vector<8x128xf32>
    %179 = tpu.matmul %178, %177, %cst_91 {dimension_numbers = #tpu.dot_dimension_numbers<[1], [0], [0], [1], [0, 0, 1, 1], [], []>} : vector<8x128xbf16>, vector<128x128xbf16>, vector<8x128xf32> -> vector<8x128xf32>
    %c16 = arith.constant 16 : index
    %c0_92 = arith.constant 0 : index
    %180 = vector.load %arg5[%c16, %c0_92] : memref<24x384xf32, #tpu.memory_space<vmem>>, vector<1x128xf32>
    %181 = vector.broadcast %180 : vector<1x128xf32> to vector<8x128xf32>
    %182 = arith.addf %179, %181 : vector<8x128xf32>
    %c0_93 = arith.constant 0 : index
    %c2688 = arith.constant 2688 : index
    %183 = vector.load %arg2[%c0_93, %c2688] : memref<128x3328xbf16, #tpu.memory_space<vmem>>, vector<128x128xbf16>
    %184 = arith.truncf %182 : vector<8x128xf32> to vector<8x128xbf16>
    %cst_94 = arith.constant dense<0.000000e+00> : vector<8x128xf32>
    %185 = tpu.matmul %184, %183, %cst_94 {dimension_numbers = #tpu.dot_dimension_numbers<[1], [0], [0], [1], [0, 0, 1, 1], [], []>} : vector<8x128xbf16>, vector<128x128xbf16>, vector<8x128xf32> -> vector<8x128xf32>
    %cst_95 = arith.constant 0.000000e+00 : f32
    %186 = vector.broadcast %cst_95 : f32 to vector<8x128xf32>
    %187 = arith.maximumf %185, %186 : vector<8x128xf32>
    %c0_96 = arith.constant 0 : index
    %c2816 = arith.constant 2816 : index
    %188 = vector.load %arg2[%c0_96, %c2816] : memref<128x3328xbf16, #tpu.memory_space<vmem>>, vector<128x128xbf16>
    %189 = arith.truncf %187 : vector<8x128xf32> to vector<8x128xbf16>
    %cst_97 = arith.constant dense<0.000000e+00> : vector<8x128xf32>
    %190 = tpu.matmul %189, %188, %cst_97 {dimension_numbers = #tpu.dot_dimension_numbers<[1], [0], [0], [1], [0, 0, 1, 1], [], []>} : vector<8x128xbf16>, vector<128x128xbf16>, vector<8x128xf32> -> vector<8x128xf32>
    %191 = arith.negf %190 : vector<8x128xf32>
    %192 = math.exp %191 : vector<8x128xf32>
    %cst_98 = arith.constant 1.000000e+00 : f32
    %193 = vector.broadcast %cst_98 : f32 to vector<8x128xf32>
    %194 = arith.addf %193, %192 : vector<8x128xf32>
    %195 = arith.divf %193, %194 : vector<8x128xf32>
    %196 = arith.mulf %182, %195 : vector<8x128xf32>
    %197 = arith.addf %196, %150 : vector<8x128xf32>
    %cst_99 = arith.constant 0.000000e+00 : f32
    %198 = vector.broadcast %cst_99 : f32 to vector<8x128xf32>
    %199 = arith.maximumf %197, %198 : vector<8x128xf32>
    %c0_100 = arith.constant 0 : index
    %c2944 = arith.constant 2944 : index
    %200 = vector.load %arg2[%c0_100, %c2944] : memref<128x3328xbf16, #tpu.memory_space<vmem>>, vector<128x128xbf16>
    %201 = arith.truncf %199 : vector<8x128xf32> to vector<8x128xbf16>
    %cst_101 = arith.constant dense<0.000000e+00> : vector<8x128xf32>
    %202 = tpu.matmul %201, %200, %cst_101 {dimension_numbers = #tpu.dot_dimension_numbers<[1], [0], [0], [1], [0, 0, 1, 1], [], []>} : vector<8x128xbf16>, vector<128x128xbf16>, vector<8x128xf32> -> vector<8x128xf32>
    %c17 = arith.constant 17 : index
    %c0_102 = arith.constant 0 : index
    %203 = vector.load %arg5[%c17, %c0_102] : memref<24x384xf32, #tpu.memory_space<vmem>>, vector<1x128xf32>
    %204 = vector.broadcast %203 : vector<1x128xf32> to vector<8x128xf32>
    %205 = arith.addf %202, %204 : vector<8x128xf32>
    %cst_103 = arith.constant 0.000000e+00 : f32
    %206 = vector.broadcast %cst_103 : f32 to vector<8x128xf32>
    %207 = arith.maximumf %205, %206 : vector<8x128xf32>
    %c0_104 = arith.constant 0 : index
    %c3072 = arith.constant 3072 : index
    %208 = vector.load %arg2[%c0_104, %c3072] : memref<128x3328xbf16, #tpu.memory_space<vmem>>, vector<128x256xbf16>
    %209 = arith.truncf %207 : vector<8x128xf32> to vector<8x128xbf16>
    %cst_105 = arith.constant dense<0.000000e+00> : vector<8x256xf32>
    %210 = tpu.matmul %209, %208, %cst_105 {dimension_numbers = #tpu.dot_dimension_numbers<[1], [0], [0], [1], [0, 0, 1, 1], [], []>} : vector<8x128xbf16>, vector<128x256xbf16>, vector<8x256xf32> -> vector<8x256xf32>
    %c18 = arith.constant 18 : index
    %c0_106 = arith.constant 0 : index
    %211 = vector.load %arg5[%c18, %c0_106] : memref<24x384xf32, #tpu.memory_space<vmem>>, vector<1x256xf32>
    %212 = vector.broadcast %211 : vector<1x256xf32> to vector<8x256xf32>
    %213 = arith.addf %210, %212 : vector<8x256xf32>
    %cst_107 = arith.constant 0.000000e+00 : f32
    %214 = vector.broadcast %cst_107 : f32 to vector<8x256xf32>
    %215 = arith.maximumf %213, %214 : vector<8x256xf32>
    %c0_108 = arith.constant 0 : index
    %c1024_109 = arith.constant 1024 : index
    %216 = vector.load %arg3[%c0_108, %c1024_109] : memref<256x1408xbf16, #tpu.memory_space<vmem>>, vector<256x256xbf16>
    %217 = arith.truncf %215 : vector<8x256xf32> to vector<8x256xbf16>
    %cst_110 = arith.constant dense<0.000000e+00> : vector<8x256xf32>
    %218 = tpu.matmul %217, %216, %cst_110 {dimension_numbers = #tpu.dot_dimension_numbers<[1], [0], [0], [1], [0, 0, 1, 1], [], []>} : vector<8x256xbf16>, vector<256x256xbf16>, vector<8x256xf32> -> vector<8x256xf32>
    %c19 = arith.constant 19 : index
    %c0_111 = arith.constant 0 : index
    %219 = vector.load %arg5[%c19, %c0_111] : memref<24x384xf32, #tpu.memory_space<vmem>>, vector<1x256xf32>
    %220 = vector.broadcast %219 : vector<1x256xf32> to vector<8x256xf32>
    %221 = arith.addf %218, %220 : vector<8x256xf32>
    %cst_112 = arith.constant 0.000000e+00 : f32
    %222 = vector.broadcast %cst_112 : f32 to vector<8x256xf32>
    %223 = arith.maximumf %221, %222 : vector<8x256xf32>
    %c0_113 = arith.constant 0 : index
    %c1280_114 = arith.constant 1280 : index
    %224 = vector.load %arg3[%c0_113, %c1280_114] : memref<256x1408xbf16, #tpu.memory_space<vmem>>, vector<256x128xbf16>
    %225 = arith.truncf %223 : vector<8x256xf32> to vector<8x256xbf16>
    %cst_115 = arith.constant dense<0.000000e+00> : vector<8x128xf32>
    %226 = tpu.matmul %225, %224, %cst_115 {dimension_numbers = #tpu.dot_dimension_numbers<[1], [0], [0], [1], [0, 0, 1, 1], [], []>} : vector<8x256xbf16>, vector<256x128xbf16>, vector<8x128xf32> -> vector<8x128xf32>
    %c20 = arith.constant 20 : index
    %c0_116 = arith.constant 0 : index
    %227 = vector.load %arg5[%c20, %c0_116] : memref<24x384xf32, #tpu.memory_space<vmem>>, vector<1x128xf32>
    %228 = vector.broadcast %227 : vector<1x128xf32> to vector<8x128xf32>
    %229 = arith.addf %226, %228 : vector<8x128xf32>
    %230 = tpu.iota {dimensions = array<i32: 1>} : vector<8x128xi32>
    %c10_i32 = arith.constant 10 : i32
    %231 = vector.broadcast %c10_i32 : i32 to vector<8x128xi32>
    %232 = arith.cmpi slt, %230, %231 : vector<8x128xi32>
    %cst_117 = arith.constant -1.000000e+30 : f32
    %233 = vector.broadcast %cst_117 : f32 to vector<8x128xf32>
    %234 = arith.select %232, %229, %233 : vector<8x128xi1>, vector<8x128xf32>
    %cst_118 = arith.constant dense<0xFF800000> : vector<8xf32>
    %235 = vector.multi_reduction <maximumf>, %234, %cst_118 [1] : vector<8x128xf32> to vector<8xf32>
    %236 = vector.shape_cast %235 : vector<8xf32> to vector<8x1xf32>
    %237 = vector.broadcast %236 : vector<8x1xf32> to vector<8x128xf32>
    %238 = arith.subf %234, %237 : vector<8x128xf32>
    %239 = math.exp %238 : vector<8x128xf32>
    %cst_119 = arith.constant dense<0.000000e+00> : vector<8xf32>
    %240 = vector.multi_reduction <add>, %239, %cst_119 [1] : vector<8x128xf32> to vector<8xf32>
    %241 = vector.shape_cast %240 : vector<8xf32> to vector<8x1xf32>
    %242 = tpu.reciprocal %241 {approx = true} : vector<8x1xf32> -> vector<8x1xf32>
    %243 = arith.mulf %241, %242 : vector<8x1xf32>
    %cst_120 = arith.constant 2.000000e+00 : f32
    %244 = vector.broadcast %cst_120 : f32 to vector<8x1xf32>
    %245 = arith.subf %244, %243 : vector<8x1xf32>
    %246 = arith.mulf %242, %245 : vector<8x1xf32>
    %247 = vector.broadcast %246 : vector<8x1xf32> to vector<8x128xf32>
    %248 = arith.mulf %239, %247 : vector<8x128xf32>
    %c0_121 = arith.constant 0 : index
    %c0_122 = arith.constant 0 : index
    %249 = vector.load %arg6[%c0_121, %c0_122] : memref<16x128xf32, #tpu.memory_space<vmem>>, vector<8x128xf32>
    tpu.vector_store %arg6[%c0_121, %c0_122], %248 {strides = array<i32>} : memref<16x128xf32, #tpu.memory_space<vmem>>, vector<8x128xf32>,
    %250 = vector.extract_strided_slice %0 {offsets = [8, 0], sizes = [8, 128], strides = [1, 1]} : vector<16x128xbf16> to vector<8x128xbf16>
    %c0_123 = arith.constant 0 : index
    %c0_124 = arith.constant 0 : index
    %251 = vector.load %arg2[%c0_123, %c0_124] : memref<128x3328xbf16, #tpu.memory_space<vmem>>, vector<128x128xbf16>
    %cst_125 = arith.constant dense<0.000000e+00> : vector<8x128xf32>
    %252 = tpu.matmul %250, %251, %cst_125 {dimension_numbers = #tpu.dot_dimension_numbers<[1], [0], [0], [1], [0, 0, 1, 1], [], []>} : vector<8x128xbf16>, vector<128x128xbf16>, vector<8x128xf32> -> vector<8x128xf32>
    %c0_126 = arith.constant 0 : index
    %c0_127 = arith.constant 0 : index
    %253 = vector.load %arg5[%c0_126, %c0_127] : memref<24x384xf32, #tpu.memory_space<vmem>>, vector<1x128xf32>
    %254 = vector.broadcast %253 : vector<1x128xf32> to vector<8x128xf32>
    %255 = arith.addf %252, %254 : vector<8x128xf32>
    %cst_128 = arith.constant 0.000000e+00 : f32
    %256 = vector.broadcast %cst_128 : f32 to vector<8x128xf32>
    %257 = arith.maximumf %255, %256 : vector<8x128xf32>
    %c0_129 = arith.constant 0 : index
    %c128_130 = arith.constant 128 : index
    %258 = vector.load %arg2[%c0_129, %c128_130] : memref<128x3328xbf16, #tpu.memory_space<vmem>>, vector<128x128xbf16>
    %259 = arith.truncf %257 : vector<8x128xf32> to vector<8x128xbf16>
    %cst_131 = arith.constant dense<0.000000e+00> : vector<8x128xf32>
    %260 = tpu.matmul %259, %258, %cst_131 {dimension_numbers = #tpu.dot_dimension_numbers<[1], [0], [0], [1], [0, 0, 1, 1], [], []>} : vector<8x128xbf16>, vector<128x128xbf16>, vector<8x128xf32> -> vector<8x128xf32>
    %c1_132 = arith.constant 1 : index
    %c0_133 = arith.constant 0 : index
    %261 = vector.load %arg5[%c1_132, %c0_133] : memref<24x384xf32, #tpu.memory_space<vmem>>, vector<1x128xf32>
    %262 = vector.broadcast %261 : vector<1x128xf32> to vector<8x128xf32>
    %263 = arith.addf %260, %262 : vector<8x128xf32>
    %cst_134 = arith.constant 0.000000e+00 : f32
    %264 = vector.broadcast %cst_134 : f32 to vector<8x128xf32>
    %265 = arith.maximumf %263, %264 : vector<8x128xf32>
    %c0_135 = arith.constant 0 : index
    %c256_136 = arith.constant 256 : index
    %266 = vector.load %arg2[%c0_135, %c256_136] : memref<128x3328xbf16, #tpu.memory_space<vmem>>, vector<128x384xbf16>
    %267 = arith.truncf %265 : vector<8x128xf32> to vector<8x128xbf16>
    %cst_137 = arith.constant dense<0.000000e+00> : vector<8x384xf32>
    %268 = tpu.matmul %267, %266, %cst_137 {dimension_numbers = #tpu.dot_dimension_numbers<[1], [0], [0], [1], [0, 0, 1, 1], [], []>} : vector<8x128xbf16>, vector<128x384xbf16>, vector<8x384xf32> -> vector<8x384xf32>
    %c2_138 = arith.constant 2 : index
    %c0_139 = arith.constant 0 : index
    %269 = vector.load %arg5[%c2_138, %c0_139] : memref<24x384xf32, #tpu.memory_space<vmem>>, vector<1x384xf32>
    %270 = vector.broadcast %269 : vector<1x384xf32> to vector<8x384xf32>
    %271 = arith.addf %268, %270 : vector<8x384xf32>
    %cst_140 = arith.constant 0.000000e+00 : f32
    %272 = vector.broadcast %cst_140 : f32 to vector<8x384xf32>
    %273 = arith.maximumf %271, %272 : vector<8x384xf32>
    %c0_141 = arith.constant 0 : index
    %c0_142 = arith.constant 0 : index
    %274 = vector.load %arg4[%c0_141, %c0_142] : memref<384x512xbf16, #tpu.memory_space<vmem>>, vector<384x128xbf16>
    %275 = arith.truncf %273 : vector<8x384xf32> to vector<8x384xbf16>
    %cst_143 = arith.constant dense<0.000000e+00> : vector<8x128xf32>
    %276 = tpu.matmul %275, %274, %cst_143 {dimension_numbers = #tpu.dot_dimension_numbers<[1], [0], [0], [1], [0, 0, 1, 1], [], []>} : vector<8x384xbf16>, vector<384x128xbf16>, vector<8x128xf32> -> vector<8x128xf32>
    %c3_144 = arith.constant 3 : index
    %c0_145 = arith.constant 0 : index
    %277 = vector.load %arg5[%c3_144, %c0_145] : memref<24x384xf32, #tpu.memory_space<vmem>>, vector<1x128xf32>
    %278 = vector.broadcast %277 : vector<1x128xf32> to vector<8x128xf32>
    %279 = arith.addf %276, %278 : vector<8x128xf32>
    %cst_146 = arith.constant 0.000000e+00 : f32
    %280 = vector.broadcast %cst_146 : f32 to vector<8x128xf32>
    %281 = arith.maximumf %279, %280 : vector<8x128xf32>
    %c0_147 = arith.constant 0 : index
    %c640_148 = arith.constant 640 : index
    %282 = vector.load %arg2[%c0_147, %c640_148] : memref<128x3328xbf16, #tpu.memory_space<vmem>>, vector<128x128xbf16>
    %283 = arith.truncf %281 : vector<8x128xf32> to vector<8x128xbf16>
    %cst_149 = arith.constant dense<0.000000e+00> : vector<8x128xf32>
    %284 = tpu.matmul %283, %282, %cst_149 {dimension_numbers = #tpu.dot_dimension_numbers<[1], [0], [0], [1], [0, 0, 1, 1], [], []>} : vector<8x128xbf16>, vector<128x128xbf16>, vector<8x128xf32> -> vector<8x128xf32>
    %c4_150 = arith.constant 4 : index
    %c0_151 = arith.constant 0 : index
    %285 = vector.load %arg5[%c4_150, %c0_151] : memref<24x384xf32, #tpu.memory_space<vmem>>, vector<1x128xf32>
    %286 = vector.broadcast %285 : vector<1x128xf32> to vector<8x128xf32>
    %287 = arith.addf %284, %286 : vector<8x128xf32>
    %c0_152 = arith.constant 0 : index
    %c768_153 = arith.constant 768 : index
    %288 = vector.load %arg2[%c0_152, %c768_153] : memref<128x3328xbf16, #tpu.memory_space<vmem>>, vector<128x128xbf16>
    %289 = arith.truncf %287 : vector<8x128xf32> to vector<8x128xbf16>
    %cst_154 = arith.constant dense<0.000000e+00> : vector<8x128xf32>
    %290 = tpu.matmul %289, %288, %cst_154 {dimension_numbers = #tpu.dot_dimension_numbers<[1], [0], [0], [1], [0, 0, 1, 1], [], []>} : vector<8x128xbf16>, vector<128x128xbf16>, vector<8x128xf32> -> vector<8x128xf32>
    %cst_155 = arith.constant 0.000000e+00 : f32
    %291 = vector.broadcast %cst_155 : f32 to vector<8x128xf32>
    %292 = arith.maximumf %290, %291 : vector<8x128xf32>
    %c0_156 = arith.constant 0 : index
    %c896_157 = arith.constant 896 : index
    %293 = vector.load %arg2[%c0_156, %c896_157] : memref<128x3328xbf16, #tpu.memory_space<vmem>>, vector<128x128xbf16>
    %294 = arith.truncf %292 : vector<8x128xf32> to vector<8x128xbf16>
    %cst_158 = arith.constant dense<0.000000e+00> : vector<8x128xf32>
    %295 = tpu.matmul %294, %293, %cst_158 {dimension_numbers = #tpu.dot_dimension_numbers<[1], [0], [0], [1], [0, 0, 1, 1], [], []>} : vector<8x128xbf16>, vector<128x128xbf16>, vector<8x128xf32> -> vector<8x128xf32>
    %296 = arith.negf %295 : vector<8x128xf32>
    %297 = math.exp %296 : vector<8x128xf32>
    %cst_159 = arith.constant 1.000000e+00 : f32
    %298 = vector.broadcast %cst_159 : f32 to vector<8x128xf32>
    %299 = arith.addf %298, %297 : vector<8x128xf32>
    %300 = arith.divf %298, %299 : vector<8x128xf32>
    %301 = arith.mulf %287, %300 : vector<8x128xf32>
    %302 = arith.addf %301, %255 : vector<8x128xf32>
    %303 = arith.addf %255, %302 : vector<8x128xf32>
    %cst_160 = arith.constant 0.000000e+00 : f32
    %304 = vector.broadcast %cst_160 : f32 to vector<8x128xf32>
    %305 = arith.maximumf %302, %304 : vector<8x128xf32>
    %c0_161 = arith.constant 0 : index
    %c1024_162 = arith.constant 1024 : index
    %306 = vector.load %arg2[%c0_161, %c1024_162] : memref<128x3328xbf16, #tpu.memory_space<vmem>>, vector<128x256xbf16>
    %307 = arith.truncf %305 : vector<8x128xf32> to vector<8x128xbf16>
    %cst_163 = arith.constant dense<0.000000e+00> : vector<8x256xf32>
    %308 = tpu.matmul %307, %306, %cst_163 {dimension_numbers = #tpu.dot_dimension_numbers<[1], [0], [0], [1], [0, 0, 1, 1], [], []>} : vector<8x128xbf16>, vector<128x256xbf16>, vector<8x256xf32> -> vector<8x256xf32>
    %c5_164 = arith.constant 5 : index
    %c0_165 = arith.constant 0 : index
    %309 = vector.load %arg5[%c5_164, %c0_165] : memref<24x384xf32, #tpu.memory_space<vmem>>, vector<1x256xf32>
    %310 = vector.broadcast %309 : vector<1x256xf32> to vector<8x256xf32>
    %311 = arith.addf %308, %310 : vector<8x256xf32>
    %cst_166 = arith.constant 0.000000e+00 : f32
    %312 = vector.broadcast %cst_166 : f32 to vector<8x256xf32>
    %313 = arith.maximumf %311, %312 : vector<8x256xf32>
    %c0_167 = arith.constant 0 : index
    %c0_168 = arith.constant 0 : index
    %314 = vector.load %arg3[%c0_167, %c0_168] : memref<256x1408xbf16, #tpu.memory_space<vmem>>, vector<256x384xbf16>
    %315 = arith.truncf %313 : vector<8x256xf32> to vector<8x256xbf16>
    %cst_169 = arith.constant dense<0.000000e+00> : vector<8x384xf32>
    %316 = tpu.matmul %315, %314, %cst_169 {dimension_numbers = #tpu.dot_dimension_numbers<[1], [0], [0], [1], [0, 0, 1, 1], [], []>} : vector<8x256xbf16>, vector<256x384xbf16>, vector<8x384xf32> -> vector<8x384xf32>
    %c6_170 = arith.constant 6 : index
    %c0_171 = arith.constant 0 : index
    %317 = vector.load %arg5[%c6_170, %c0_171] : memref<24x384xf32, #tpu.memory_space<vmem>>, vector<1x384xf32>
    %318 = vector.broadcast %317 : vector<1x384xf32> to vector<8x384xf32>
    %319 = arith.addf %316, %318 : vector<8x384xf32>
    %cst_172 = arith.constant 0.000000e+00 : f32
    %320 = vector.broadcast %cst_172 : f32 to vector<8x384xf32>
    %321 = arith.maximumf %319, %320 : vector<8x384xf32>
    %c0_173 = arith.constant 0 : index
    %c128_174 = arith.constant 128 : index
    %322 = vector.load %arg4[%c0_173, %c128_174] : memref<384x512xbf16, #tpu.memory_space<vmem>>, vector<384x128xbf16>
    %323 = arith.truncf %321 : vector<8x384xf32> to vector<8x384xbf16>
    %cst_175 = arith.constant dense<0.000000e+00> : vector<8x128xf32>
    %324 = tpu.matmul %323, %322, %cst_175 {dimension_numbers = #tpu.dot_dimension_numbers<[1], [0], [0], [1], [0, 0, 1, 1], [], []>} : vector<8x384xbf16>, vector<384x128xbf16>, vector<8x128xf32> -> vector<8x128xf32>
    %c7_176 = arith.constant 7 : index
    %c0_177 = arith.constant 0 : index
    %325 = vector.load %arg5[%c7_176, %c0_177] : memref<24x384xf32, #tpu.memory_space<vmem>>, vector<1x128xf32>
    %326 = vector.broadcast %325 : vector<1x128xf32> to vector<8x128xf32>
    %327 = arith.addf %324, %326 : vector<8x128xf32>
    %cst_178 = arith.constant 0.000000e+00 : f32
    %328 = vector.broadcast %cst_178 : f32 to vector<8x128xf32>
    %329 = arith.maximumf %327, %328 : vector<8x128xf32>
    %c0_179 = arith.constant 0 : index
    %c1280_180 = arith.constant 1280 : index
    %330 = vector.load %arg2[%c0_179, %c1280_180] : memref<128x3328xbf16, #tpu.memory_space<vmem>>, vector<128x128xbf16>
    %331 = arith.truncf %329 : vector<8x128xf32> to vector<8x128xbf16>
    %cst_181 = arith.constant dense<0.000000e+00> : vector<8x128xf32>
    %332 = tpu.matmul %331, %330, %cst_181 {dimension_numbers = #tpu.dot_dimension_numbers<[1], [0], [0], [1], [0, 0, 1, 1], [], []>} : vector<8x128xbf16>, vector<128x128xbf16>, vector<8x128xf32> -> vector<8x128xf32>
    %c8_182 = arith.constant 8 : index
    %c0_183 = arith.constant 0 : index
    %333 = vector.load %arg5[%c8_182, %c0_183] : memref<24x384xf32, #tpu.memory_space<vmem>>, vector<1x128xf32>
    %334 = vector.broadcast %333 : vector<1x128xf32> to vector<8x128xf32>
    %335 = arith.addf %332, %334 : vector<8x128xf32>
    %c0_184 = arith.constant 0 : index
    %c1408_185 = arith.constant 1408 : index
    %336 = vector.load %arg2[%c0_184, %c1408_185] : memref<128x3328xbf16, #tpu.memory_space<vmem>>, vector<128x128xbf16>
    %337 = arith.truncf %335 : vector<8x128xf32> to vector<8x128xbf16>
    %cst_186 = arith.constant dense<0.000000e+00> : vector<8x128xf32>
    %338 = tpu.matmul %337, %336, %cst_186 {dimension_numbers = #tpu.dot_dimension_numbers<[1], [0], [0], [1], [0, 0, 1, 1], [], []>} : vector<8x128xbf16>, vector<128x128xbf16>, vector<8x128xf32> -> vector<8x128xf32>
    %cst_187 = arith.constant 0.000000e+00 : f32
    %339 = vector.broadcast %cst_187 : f32 to vector<8x128xf32>
    %340 = arith.maximumf %338, %339 : vector<8x128xf32>
    %c0_188 = arith.constant 0 : index
    %c1536_189 = arith.constant 1536 : index
    %341 = vector.load %arg2[%c0_188, %c1536_189] : memref<128x3328xbf16, #tpu.memory_space<vmem>>, vector<128x128xbf16>
    %342 = arith.truncf %340 : vector<8x128xf32> to vector<8x128xbf16>
    %cst_190 = arith.constant dense<0.000000e+00> : vector<8x128xf32>
    %343 = tpu.matmul %342, %341, %cst_190 {dimension_numbers = #tpu.dot_dimension_numbers<[1], [0], [0], [1], [0, 0, 1, 1], [], []>} : vector<8x128xbf16>, vector<128x128xbf16>, vector<8x128xf32> -> vector<8x128xf32>
    %344 = arith.negf %343 : vector<8x128xf32>
    %345 = math.exp %344 : vector<8x128xf32>
    %cst_191 = arith.constant 1.000000e+00 : f32
    %346 = vector.broadcast %cst_191 : f32 to vector<8x128xf32>
    %347 = arith.addf %346, %345 : vector<8x128xf32>
    %348 = arith.divf %346, %347 : vector<8x128xf32>
    %349 = arith.mulf %335, %348 : vector<8x128xf32>
    %350 = arith.addf %349, %303 : vector<8x128xf32>
    %351 = arith.addf %303, %350 : vector<8x128xf32>
    %cst_192 = arith.constant 0.000000e+00 : f32
    %352 = vector.broadcast %cst_192 : f32 to vector<8x128xf32>
    %353 = arith.maximumf %350, %352 : vector<8x128xf32>
    %c0_193 = arith.constant 0 : index
    %c1664_194 = arith.constant 1664 : index
    %354 = vector.load %arg2[%c0_193, %c1664_194] : memref<128x3328xbf16, #tpu.memory_space<vmem>>, vector<128x256xbf16>
    %355 = arith.truncf %353 : vector<8x128xf32> to vector<8x128xbf16>
    %cst_195 = arith.constant dense<0.000000e+00> : vector<8x256xf32>
    %356 = tpu.matmul %355, %354, %cst_195 {dimension_numbers = #tpu.dot_dimension_numbers<[1], [0], [0], [1], [0, 0, 1, 1], [], []>} : vector<8x128xbf16>, vector<128x256xbf16>, vector<8x256xf32> -> vector<8x256xf32>
    %c9_196 = arith.constant 9 : index
    %c0_197 = arith.constant 0 : index
    %357 = vector.load %arg5[%c9_196, %c0_197] : memref<24x384xf32, #tpu.memory_space<vmem>>, vector<1x256xf32>
    %358 = vector.broadcast %357 : vector<1x256xf32> to vector<8x256xf32>
    %359 = arith.addf %356, %358 : vector<8x256xf32>
    %cst_198 = arith.constant 0.000000e+00 : f32
    %360 = vector.broadcast %cst_198 : f32 to vector<8x256xf32>
    %361 = arith.maximumf %359, %360 : vector<8x256xf32>
    %c0_199 = arith.constant 0 : index
    %c384_200 = arith.constant 384 : index
    %362 = vector.load %arg3[%c0_199, %c384_200] : memref<256x1408xbf16, #tpu.memory_space<vmem>>, vector<256x384xbf16>
    %363 = arith.truncf %361 : vector<8x256xf32> to vector<8x256xbf16>
    %cst_201 = arith.constant dense<0.000000e+00> : vector<8x384xf32>
    %364 = tpu.matmul %363, %362, %cst_201 {dimension_numbers = #tpu.dot_dimension_numbers<[1], [0], [0], [1], [0, 0, 1, 1], [], []>} : vector<8x256xbf16>, vector<256x384xbf16>, vector<8x384xf32> -> vector<8x384xf32>
    %c10_202 = arith.constant 10 : index
    %c0_203 = arith.constant 0 : index
    %365 = vector.load %arg5[%c10_202, %c0_203] : memref<24x384xf32, #tpu.memory_space<vmem>>, vector<1x384xf32>
    %366 = vector.broadcast %365 : vector<1x384xf32> to vector<8x384xf32>
    %367 = arith.addf %364, %366 : vector<8x384xf32>
    %cst_204 = arith.constant 0.000000e+00 : f32
    %368 = vector.broadcast %cst_204 : f32 to vector<8x384xf32>
    %369 = arith.maximumf %367, %368 : vector<8x384xf32>
    %c0_205 = arith.constant 0 : index
    %c256_206 = arith.constant 256 : index
    %370 = vector.load %arg4[%c0_205, %c256_206] : memref<384x512xbf16, #tpu.memory_space<vmem>>, vector<384x256xbf16>
    %371 = arith.truncf %369 : vector<8x384xf32> to vector<8x384xbf16>
    %cst_207 = arith.constant dense<0.000000e+00> : vector<8x256xf32>
    %372 = tpu.matmul %371, %370, %cst_207 {dimension_numbers = #tpu.dot_dimension_numbers<[1], [0], [0], [1], [0, 0, 1, 1], [], []>} : vector<8x384xbf16>, vector<384x256xbf16>, vector<8x256xf32> -> vector<8x256xf32>
    %c11_208 = arith.constant 11 : index
    %c0_209 = arith.constant 0 : index
    %373 = vector.load %arg5[%c11_208, %c0_209] : memref<24x384xf32, #tpu.memory_space<vmem>>, vector<1x256xf32>
    %374 = vector.broadcast %373 : vector<1x256xf32> to vector<8x256xf32>
    %375 = arith.addf %372, %374 : vector<8x256xf32>
    %cst_210 = arith.constant 0.000000e+00 : f32
    %376 = vector.broadcast %cst_210 : f32 to vector<8x256xf32>
    %377 = arith.maximumf %375, %376 : vector<8x256xf32>
    %c0_211 = arith.constant 0 : index
    %c768_212 = arith.constant 768 : index
    %378 = vector.load %arg3[%c0_211, %c768_212] : memref<256x1408xbf16, #tpu.memory_space<vmem>>, vector<256x128xbf16>
    %379 = arith.truncf %377 : vector<8x256xf32> to vector<8x256xbf16>
    %cst_213 = arith.constant dense<0.000000e+00> : vector<8x128xf32>
    %380 = tpu.matmul %379, %378, %cst_213 {dimension_numbers = #tpu.dot_dimension_numbers<[1], [0], [0], [1], [0, 0, 1, 1], [], []>} : vector<8x256xbf16>, vector<256x128xbf16>, vector<8x128xf32> -> vector<8x128xf32>
    %c12_214 = arith.constant 12 : index
    %c0_215 = arith.constant 0 : index
    %381 = vector.load %arg5[%c12_214, %c0_215] : memref<24x384xf32, #tpu.memory_space<vmem>>, vector<1x128xf32>
    %382 = vector.broadcast %381 : vector<1x128xf32> to vector<8x128xf32>
    %383 = arith.addf %380, %382 : vector<8x128xf32>
    %c0_216 = arith.constant 0 : index
    %c1920_217 = arith.constant 1920 : index
    %384 = vector.load %arg2[%c0_216, %c1920_217] : memref<128x3328xbf16, #tpu.memory_space<vmem>>, vector<128x128xbf16>
    %385 = arith.truncf %383 : vector<8x128xf32> to vector<8x128xbf16>
    %cst_218 = arith.constant dense<0.000000e+00> : vector<8x128xf32>
    %386 = tpu.matmul %385, %384, %cst_218 {dimension_numbers = #tpu.dot_dimension_numbers<[1], [0], [0], [1], [0, 0, 1, 1], [], []>} : vector<8x128xbf16>, vector<128x128xbf16>, vector<8x128xf32> -> vector<8x128xf32>
    %cst_219 = arith.constant 0.000000e+00 : f32
    %387 = vector.broadcast %cst_219 : f32 to vector<8x128xf32>
    %388 = arith.maximumf %386, %387 : vector<8x128xf32>
    %c0_220 = arith.constant 0 : index
    %c2048_221 = arith.constant 2048 : index
    %389 = vector.load %arg2[%c0_220, %c2048_221] : memref<128x3328xbf16, #tpu.memory_space<vmem>>, vector<128x128xbf16>
    %390 = arith.truncf %388 : vector<8x128xf32> to vector<8x128xbf16>
    %cst_222 = arith.constant dense<0.000000e+00> : vector<8x128xf32>
    %391 = tpu.matmul %390, %389, %cst_222 {dimension_numbers = #tpu.dot_dimension_numbers<[1], [0], [0], [1], [0, 0, 1, 1], [], []>} : vector<8x128xbf16>, vector<128x128xbf16>, vector<8x128xf32> -> vector<8x128xf32>
    %392 = arith.negf %391 : vector<8x128xf32>
    %393 = math.exp %392 : vector<8x128xf32>
    %cst_223 = arith.constant 1.000000e+00 : f32
    %394 = vector.broadcast %cst_223 : f32 to vector<8x128xf32>
    %395 = arith.addf %394, %393 : vector<8x128xf32>
    %396 = arith.divf %394, %395 : vector<8x128xf32>
    %397 = arith.mulf %383, %396 : vector<8x128xf32>
    %398 = arith.addf %397, %351 : vector<8x128xf32>
    %399 = arith.addf %351, %398 : vector<8x128xf32>
    %cst_224 = arith.constant 0.000000e+00 : f32
    %400 = vector.broadcast %cst_224 : f32 to vector<8x128xf32>
    %401 = arith.maximumf %398, %400 : vector<8x128xf32>
    %c0_225 = arith.constant 0 : index
    %c2176_226 = arith.constant 2176 : index
    %402 = vector.load %arg2[%c0_225, %c2176_226] : memref<128x3328xbf16, #tpu.memory_space<vmem>>, vector<128x128xbf16>
    %403 = arith.truncf %401 : vector<8x128xf32> to vector<8x128xbf16>
    %cst_227 = arith.constant dense<0.000000e+00> : vector<8x128xf32>
    %404 = tpu.matmul %403, %402, %cst_227 {dimension_numbers = #tpu.dot_dimension_numbers<[1], [0], [0], [1], [0, 0, 1, 1], [], []>} : vector<8x128xbf16>, vector<128x128xbf16>, vector<8x128xf32> -> vector<8x128xf32>
    %c13_228 = arith.constant 13 : index
    %c0_229 = arith.constant 0 : index
    %405 = vector.load %arg5[%c13_228, %c0_229] : memref<24x384xf32, #tpu.memory_space<vmem>>, vector<1x128xf32>
    %406 = vector.broadcast %405 : vector<1x128xf32> to vector<8x128xf32>
    %407 = arith.addf %404, %406 : vector<8x128xf32>
    %cst_230 = arith.constant 0.000000e+00 : f32
    %408 = vector.broadcast %cst_230 : f32 to vector<8x128xf32>
    %409 = arith.maximumf %407, %408 : vector<8x128xf32>
    %c0_231 = arith.constant 0 : index
    %c2304_232 = arith.constant 2304 : index
    %410 = vector.load %arg2[%c0_231, %c2304_232] : memref<128x3328xbf16, #tpu.memory_space<vmem>>, vector<128x256xbf16>
    %411 = arith.truncf %409 : vector<8x128xf32> to vector<8x128xbf16>
    %cst_233 = arith.constant dense<0.000000e+00> : vector<8x256xf32>
    %412 = tpu.matmul %411, %410, %cst_233 {dimension_numbers = #tpu.dot_dimension_numbers<[1], [0], [0], [1], [0, 0, 1, 1], [], []>} : vector<8x128xbf16>, vector<128x256xbf16>, vector<8x256xf32> -> vector<8x256xf32>
    %c14_234 = arith.constant 14 : index
    %c0_235 = arith.constant 0 : index
    %413 = vector.load %arg5[%c14_234, %c0_235] : memref<24x384xf32, #tpu.memory_space<vmem>>, vector<1x256xf32>
    %414 = vector.broadcast %413 : vector<1x256xf32> to vector<8x256xf32>
    %415 = arith.addf %412, %414 : vector<8x256xf32>
    %cst_236 = arith.constant 0.000000e+00 : f32
    %416 = vector.broadcast %cst_236 : f32 to vector<8x256xf32>
    %417 = arith.maximumf %415, %416 : vector<8x256xf32>
    %c0_237 = arith.constant 0 : index
    %c896_238 = arith.constant 896 : index
    %418 = vector.load %arg3[%c0_237, %c896_238] : memref<256x1408xbf16, #tpu.memory_space<vmem>>, vector<256x128xbf16>
    %419 = arith.truncf %417 : vector<8x256xf32> to vector<8x256xbf16>
    %cst_239 = arith.constant dense<0.000000e+00> : vector<8x128xf32>
    %420 = tpu.matmul %419, %418, %cst_239 {dimension_numbers = #tpu.dot_dimension_numbers<[1], [0], [0], [1], [0, 0, 1, 1], [], []>} : vector<8x256xbf16>, vector<256x128xbf16>, vector<8x128xf32> -> vector<8x128xf32>
    %c15_240 = arith.constant 15 : index
    %c0_241 = arith.constant 0 : index
    %421 = vector.load %arg5[%c15_240, %c0_241] : memref<24x384xf32, #tpu.memory_space<vmem>>, vector<1x128xf32>
    %422 = vector.broadcast %421 : vector<1x128xf32> to vector<8x128xf32>
    %423 = arith.addf %420, %422 : vector<8x128xf32>
    %cst_242 = arith.constant 0.000000e+00 : f32
    %424 = vector.broadcast %cst_242 : f32 to vector<8x128xf32>
    %425 = arith.maximumf %423, %424 : vector<8x128xf32>
    %c0_243 = arith.constant 0 : index
    %c2560_244 = arith.constant 2560 : index
    %426 = vector.load %arg2[%c0_243, %c2560_244] : memref<128x3328xbf16, #tpu.memory_space<vmem>>, vector<128x128xbf16>
    %427 = arith.truncf %425 : vector<8x128xf32> to vector<8x128xbf16>
    %cst_245 = arith.constant dense<0.000000e+00> : vector<8x128xf32>
    %428 = tpu.matmul %427, %426, %cst_245 {dimension_numbers = #tpu.dot_dimension_numbers<[1], [0], [0], [1], [0, 0, 1, 1], [], []>} : vector<8x128xbf16>, vector<128x128xbf16>, vector<8x128xf32> -> vector<8x128xf32>
    %c16_246 = arith.constant 16 : index
    %c0_247 = arith.constant 0 : index
    %429 = vector.load %arg5[%c16_246, %c0_247] : memref<24x384xf32, #tpu.memory_space<vmem>>, vector<1x128xf32>
    %430 = vector.broadcast %429 : vector<1x128xf32> to vector<8x128xf32>
    %431 = arith.addf %428, %430 : vector<8x128xf32>
    %c0_248 = arith.constant 0 : index
    %c2688_249 = arith.constant 2688 : index
    %432 = vector.load %arg2[%c0_248, %c2688_249] : memref<128x3328xbf16, #tpu.memory_space<vmem>>, vector<128x128xbf16>
    %433 = arith.truncf %431 : vector<8x128xf32> to vector<8x128xbf16>
    %cst_250 = arith.constant dense<0.000000e+00> : vector<8x128xf32>
    %434 = tpu.matmul %433, %432, %cst_250 {dimension_numbers = #tpu.dot_dimension_numbers<[1], [0], [0], [1], [0, 0, 1, 1], [], []>} : vector<8x128xbf16>, vector<128x128xbf16>, vector<8x128xf32> -> vector<8x128xf32>
    %cst_251 = arith.constant 0.000000e+00 : f32
    %435 = vector.broadcast %cst_251 : f32 to vector<8x128xf32>
    %436 = arith.maximumf %434, %435 : vector<8x128xf32>
    %c0_252 = arith.constant 0 : index
    %c2816_253 = arith.constant 2816 : index
    %437 = vector.load %arg2[%c0_252, %c2816_253] : memref<128x3328xbf16, #tpu.memory_space<vmem>>, vector<128x128xbf16>
    %438 = arith.truncf %436 : vector<8x128xf32> to vector<8x128xbf16>
    %cst_254 = arith.constant dense<0.000000e+00> : vector<8x128xf32>
    %439 = tpu.matmul %438, %437, %cst_254 {dimension_numbers = #tpu.dot_dimension_numbers<[1], [0], [0], [1], [0, 0, 1, 1], [], []>} : vector<8x128xbf16>, vector<128x128xbf16>, vector<8x128xf32> -> vector<8x128xf32>
    %440 = arith.negf %439 : vector<8x128xf32>
    %441 = math.exp %440 : vector<8x128xf32>
    %cst_255 = arith.constant 1.000000e+00 : f32
    %442 = vector.broadcast %cst_255 : f32 to vector<8x128xf32>
    %443 = arith.addf %442, %441 : vector<8x128xf32>
    %444 = arith.divf %442, %443 : vector<8x128xf32>
    %445 = arith.mulf %431, %444 : vector<8x128xf32>
    %446 = arith.addf %445, %399 : vector<8x128xf32>
    %cst_256 = arith.constant 0.000000e+00 : f32
    %447 = vector.broadcast %cst_256 : f32 to vector<8x128xf32>
    %448 = arith.maximumf %446, %447 : vector<8x128xf32>
    %c0_257 = arith.constant 0 : index
    %c2944_258 = arith.constant 2944 : index
    %449 = vector.load %arg2[%c0_257, %c2944_258] : memref<128x3328xbf16, #tpu.memory_space<vmem>>, vector<128x128xbf16>
    %450 = arith.truncf %448 : vector<8x128xf32> to vector<8x128xbf16>
    %cst_259 = arith.constant dense<0.000000e+00> : vector<8x128xf32>
    %451 = tpu.matmul %450, %449, %cst_259 {dimension_numbers = #tpu.dot_dimension_numbers<[1], [0], [0], [1], [0, 0, 1, 1], [], []>} : vector<8x128xbf16>, vector<128x128xbf16>, vector<8x128xf32> -> vector<8x128xf32>
    %c17_260 = arith.constant 17 : index
    %c0_261 = arith.constant 0 : index
    %452 = vector.load %arg5[%c17_260, %c0_261] : memref<24x384xf32, #tpu.memory_space<vmem>>, vector<1x128xf32>
    %453 = vector.broadcast %452 : vector<1x128xf32> to vector<8x128xf32>
    %454 = arith.addf %451, %453 : vector<8x128xf32>
    %cst_262 = arith.constant 0.000000e+00 : f32
    %455 = vector.broadcast %cst_262 : f32 to vector<8x128xf32>
    %456 = arith.maximumf %454, %455 : vector<8x128xf32>
    %c0_263 = arith.constant 0 : index
    %c3072_264 = arith.constant 3072 : index
    %457 = vector.load %arg2[%c0_263, %c3072_264] : memref<128x3328xbf16, #tpu.memory_space<vmem>>, vector<128x256xbf16>
    %458 = arith.truncf %456 : vector<8x128xf32> to vector<8x128xbf16>
    %cst_265 = arith.constant dense<0.000000e+00> : vector<8x256xf32>
    %459 = tpu.matmul %458, %457, %cst_265 {dimension_numbers = #tpu.dot_dimension_numbers<[1], [0], [0], [1], [0, 0, 1, 1], [], []>} : vector<8x128xbf16>, vector<128x256xbf16>, vector<8x256xf32> -> vector<8x256xf32>
    %c18_266 = arith.constant 18 : index
    %c0_267 = arith.constant 0 : index
    %460 = vector.load %arg5[%c18_266, %c0_267] : memref<24x384xf32, #tpu.memory_space<vmem>>, vector<1x256xf32>
    %461 = vector.broadcast %460 : vector<1x256xf32> to vector<8x256xf32>
    %462 = arith.addf %459, %461 : vector<8x256xf32>
    %cst_268 = arith.constant 0.000000e+00 : f32
    %463 = vector.broadcast %cst_268 : f32 to vector<8x256xf32>
    %464 = arith.maximumf %462, %463 : vector<8x256xf32>
    %c0_269 = arith.constant 0 : index
    %c1024_270 = arith.constant 1024 : index
    %465 = vector.load %arg3[%c0_269, %c1024_270] : memref<256x1408xbf16, #tpu.memory_space<vmem>>, vector<256x256xbf16>
    %466 = arith.truncf %464 : vector<8x256xf32> to vector<8x256xbf16>
    %cst_271 = arith.constant dense<0.000000e+00> : vector<8x256xf32>
    %467 = tpu.matmul %466, %465, %cst_271 {dimension_numbers = #tpu.dot_dimension_numbers<[1], [0], [0], [1], [0, 0, 1, 1], [], []>} : vector<8x256xbf16>, vector<256x256xbf16>, vector<8x256xf32> -> vector<8x256xf32>
    %c19_272 = arith.constant 19 : index
    %c0_273 = arith.constant 0 : index
    %468 = vector.load %arg5[%c19_272, %c0_273] : memref<24x384xf32, #tpu.memory_space<vmem>>, vector<1x256xf32>
    %469 = vector.broadcast %468 : vector<1x256xf32> to vector<8x256xf32>
    %470 = arith.addf %467, %469 : vector<8x256xf32>
    %cst_274 = arith.constant 0.000000e+00 : f32
    %471 = vector.broadcast %cst_274 : f32 to vector<8x256xf32>
    %472 = arith.maximumf %470, %471 : vector<8x256xf32>
    %c0_275 = arith.constant 0 : index
    %c1280_276 = arith.constant 1280 : index
    %473 = vector.load %arg3[%c0_275, %c1280_276] : memref<256x1408xbf16, #tpu.memory_space<vmem>>, vector<256x128xbf16>
    %474 = arith.truncf %472 : vector<8x256xf32> to vector<8x256xbf16>
    %cst_277 = arith.constant dense<0.000000e+00> : vector<8x128xf32>
    %475 = tpu.matmul %474, %473, %cst_277 {dimension_numbers = #tpu.dot_dimension_numbers<[1], [0], [0], [1], [0, 0, 1, 1], [], []>} : vector<8x256xbf16>, vector<256x128xbf16>, vector<8x128xf32> -> vector<8x128xf32>
    %c20_278 = arith.constant 20 : index
    %c0_279 = arith.constant 0 : index
    %476 = vector.load %arg5[%c20_278, %c0_279] : memref<24x384xf32, #tpu.memory_space<vmem>>, vector<1x128xf32>
    %477 = vector.broadcast %476 : vector<1x128xf32> to vector<8x128xf32>
    %478 = arith.addf %475, %477 : vector<8x128xf32>
    %479 = tpu.iota {dimensions = array<i32: 1>} : vector<8x128xi32>
    %c10_i32_280 = arith.constant 10 : i32
    %480 = vector.broadcast %c10_i32_280 : i32 to vector<8x128xi32>
    %481 = arith.cmpi slt, %479, %480 : vector<8x128xi32>
    %cst_281 = arith.constant -1.000000e+30 : f32
    %482 = vector.broadcast %cst_281 : f32 to vector<8x128xf32>
    %483 = arith.select %481, %478, %482 : vector<8x128xi1>, vector<8x128xf32>
    %cst_282 = arith.constant dense<0xFF800000> : vector<8xf32>
    %484 = vector.multi_reduction <maximumf>, %483, %cst_282 [1] : vector<8x128xf32> to vector<8xf32>
    %485 = vector.shape_cast %484 : vector<8xf32> to vector<8x1xf32>
    %486 = vector.broadcast %485 : vector<8x1xf32> to vector<8x128xf32>
    %487 = arith.subf %483, %486 : vector<8x128xf32>
    %488 = math.exp %487 : vector<8x128xf32>
    %cst_283 = arith.constant dense<0.000000e+00> : vector<8xf32>
    %489 = vector.multi_reduction <add>, %488, %cst_283 [1] : vector<8x128xf32> to vector<8xf32>
    %490 = vector.shape_cast %489 : vector<8xf32> to vector<8x1xf32>
    %491 = tpu.reciprocal %490 {approx = true} : vector<8x1xf32> -> vector<8x1xf32>
    %492 = arith.mulf %490, %491 : vector<8x1xf32>
    %cst_284 = arith.constant 2.000000e+00 : f32
    %493 = vector.broadcast %cst_284 : f32 to vector<8x1xf32>
    %494 = arith.subf %493, %492 : vector<8x1xf32>
    %495 = arith.mulf %491, %494 : vector<8x1xf32>
    %496 = vector.broadcast %495 : vector<8x1xf32> to vector<8x128xf32>
    %497 = arith.mulf %488, %496 : vector<8x128xf32>
    %c8_285 = arith.constant 8 : index
    %c0_286 = arith.constant 0 : index
    %498 = vector.load %arg6[%c8_285, %c0_286] : memref<16x128xf32, #tpu.memory_space<vmem>>, vector<8x128xf32>
    tpu.vector_store %arg6[%c8_285, %c0_286], %497 {strides = array<i32>} : memref<16x128xf32, #tpu.memory_space<vmem>>, vector<8x128xf32>,
    return
  }
  func.func @transform_0(%arg0: i32) -> (i32, i32) {
    %c0_i32 = arith.constant 0 : i32
    %c0_i32_0 = arith.constant 0 : i32
    return %arg0, %c0_i32 : i32, i32
  }
  func.func @transform_1(%arg0: i32) -> (i32, i32) {
    %c0_i32 = arith.constant 0 : i32
    %c0_i32_0 = arith.constant 0 : i32
    %c0_i32_1 = arith.constant 0 : i32
    return %c0_i32, %c0_i32_0 : i32, i32
  }
  func.func @transform_2(%arg0: i32) -> (i32, i32) {
    %c0_i32 = arith.constant 0 : i32
    %c0_i32_0 = arith.constant 0 : i32
    %c0_i32_1 = arith.constant 0 : i32
    return %c0_i32, %c0_i32_0 : i32, i32
  }
  func.func @transform_3(%arg0: i32) -> (i32, i32) {
    %c0_i32 = arith.constant 0 : i32
    %c0_i32_0 = arith.constant 0 : i32
    %c0_i32_1 = arith.constant 0 : i32
    return %c0_i32, %c0_i32_0 : i32, i32
  }
  func.func @transform_4(%arg0: i32) -> (i32, i32) {
    %c0_i32 = arith.constant 0 : i32
    %c0_i32_0 = arith.constant 0 : i32
    %c0_i32_1 = arith.constant 0 : i32
    return %c0_i32, %c0_i32_0 : i32, i32
  }
  func.func @transform_5(%arg0: i32) -> (i32, i32) {
    %c0_i32 = arith.constant 0 : i32
    %c0_i32_0 = arith.constant 0 : i32
    return %arg0, %c0_i32 : i32, i32
  }
}

</mosaic_0001>

<llo_original>
// kernel: fwd.1
$region0: #{fwd.1}
  #allocation0 [shape = 'u32[]', space=smem, size = 0x4, offset = 0x4, fixed_abs, tag = 'smem constant byte address 0x4 - core index']
  #allocation1 [shape = 'u32[144,128]{1,0:T(1,128)}', space=vmem, size = 0x12000, scoped, tag = 'internal scratch']
  %s0 = inlined_call_operand.vmem [shape: bf16[16,128], index: 0, kind: input, shape index: {}]
  %s1 = inlined_call_operand.hbm [shape: bf16[128,3328], index: 1, kind: input, shape index: {}]
  %s2 = inlined_call_operand.hbm [shape: bf16[256,1408], index: 2, kind: input, shape index: {}]
  %s3 = inlined_call_operand.hbm [shape: bf16[384,512], index: 3, kind: input, shape index: {}]
  %s4 = inlined_call_operand.hbm [shape: f32[24,384], index: 4, kind: input, shape index: {}]
  %s5 = inlined_call_operand.hbm [shape: f32[16,128], index: 5, kind: output, shape index: {}]
  %s6 = sld [smem:[#allocation0]]
  $region46: #{fwd.1} parent=0
    _
  %s8 = ssub.s32 1, %s6
  %s9 = scalar_select 0, %s8, %s6
  $region1: #{fwd.1} parent=0
    #allocation2 [shape = 'u8[851968]{0}', space=vmem, size = 0xd0000, scoped, tag = 'input window, operand 1, single buffered']
    #allocation3 [shape = 's32[1]{0}', space=sflag, size = 0x4, scoped, tag = 'scoped memory for fwd.1']
    #allocation4 [shape = 's32[1]{0}', space=sflag, size = 0x4, scoped, tag = 'scoped memory for fwd.1']
    #allocation5 [shape = 'u8[720896]{0}', space=vmem, size = 0xb0000, scoped, tag = 'input window, operand 2, single buffered']
    #allocation6 [shape = 's32[1]{0}', space=sflag, size = 0x4, scoped, tag = 'scoped memory for fwd.1']
    #allocation7 [shape = 'u8[393216]{0}', space=vmem, size = 0x60000, scoped, tag = 'input window, operand 3, single buffered']
    #allocation8 [shape = 'u8[36864]{0}', space=vmem, size = 0x9000, scoped, tag = 'input window, operand 4, single buffered']
    #allocation9 [shape = 's32[1]{0}', space=sflag, size = 0x4, scoped, tag = 'scoped memory for fwd.1']
    #allocation10 [shape = 'u8[8192]{0}', space=vmem, size = 0x2000, scoped, tag = 'output window, operand 0, single buffered']
    %10 = vsyncpa [#allocation3], 0
    %11 = vsyncpa [#allocation6], 0
    %12 = vsyncpa [#allocation9], 0
    %13 = vsyncpa [#allocation4], 0
    // Predicated region
    $region2: #{fwd.1} parent=1 // pred_check
      _
    $region3: #{fwd.1} parent=1 // pred_check_branch
      %15 = sbr.rel (0) target = $region5
    $region4: #{fwd.1} parent=1 // pred_region
      _
    $region5: #{fwd.1} parent=1 // pred_fallthru
      _
    // Predicated region
    $region6: #{fwd.1} parent=1 // pred_check
      _
    $region7: #{fwd.1} parent=1 // pred_check_branch
      %17 = sbr.rel (0) target = $region9
    $region8: #{fwd.1} parent=1 // pred_region
      %s19 = ssub.s32 26624, 26624
      %20 = vsyncadd [#allocation3], %s19
      %s21 = sshll.u32 [#allocation2], 4
      %s22 = int_to_ptr.vmem [resolvable:$true] %s21
      %27 = dma.hbm_to_vmem [thread:$0]  %s1, 26624, %s22, [#allocation3], 1664, 1664, 104
    $region9: #{fwd.1} parent=1 // pred_fallthru
      _
    // Predicated region
    $region10: #{fwd.1} parent=1 // pred_check
      _
    $region11: #{fwd.1} parent=1 // pred_check_branch
      %29 = sbr.rel (0) target = $region13
    $region12: #{fwd.1} parent=1 // pred_region
      %s31 = ssub.s32 22528, 22528
      %32 = vsyncadd [#allocation6], %s31
      %s33 = sshll.u32 [#allocation5], 4
      %s34 = int_to_ptr.vmem [resolvable:$true] %s33
      %39 = dma.hbm_to_vmem [thread:$0]  %s2, 22528, %s34, [#allocation6], 704, 704, 44
    $region13: #{fwd.1} parent=1 // pred_fallthru
      _
    // Predicated region
    $region14: #{fwd.1} parent=1 // pred_check
      _
    $region15: #{fwd.1} parent=1 // pred_check_branch
      %41 = sbr.rel (0) target = $region17
    $region16: #{fwd.1} parent=1 // pred_region
      %s43 = ssub.s32 12288, 12288
      %44 = vsyncadd [#allocation6], %s43
      %s45 = sshll.u32 [#allocation7], 4
      %s46 = int_to_ptr.vmem [resolvable:$true] %s45
      %51 = dma.hbm_to_vmem [thread:$0]  %s3, 12288, %s46, [#allocation6], 256, 256, 16
    $region17: #{fwd.1} parent=1 // pred_fallthru
      _
    // Predicated region
    $region18: #{fwd.1} parent=1 // pred_check
      _
    $region19: #{fwd.1} parent=1 // pred_check_branch
      %53 = sbr.rel (0) target = $region21
    $region20: #{fwd.1} parent=1 // pred_region
      %s55 = ssub.s32 1152, 1152
      %56 = vsyncadd [#allocation9], %s55
      %s57 = sshll.u32 [#allocation8], 4
      %s58 = int_to_ptr.vmem [resolvable:$true] %s57
      %63 = dma.hbm_to_vmem [thread:$0]  %s4, 1152, %s58, [#allocation9], 384, 384, 24
    $region21: #{fwd.1} parent=1 // pred_fallthru
      _
    // Predicated region
    $region22: #{fwd.1} parent=1 // pred_check
      _
    $region23: #{fwd.1} parent=1 // pred_check_branch
      %65 = sbr.rel (0) target = $region25
    $region24: #{fwd.1} parent=1 // pred_region
      %66 = dma.done [#allocation3], 26624
    $region25: #{fwd.1} parent=1 // pred_fallthru
      _
    // Predicated region
    $region26: #{fwd.1} parent=1 // pred_check
      _
    $region27: #{fwd.1} parent=1 // pred_check_branch
      %68 = sbr.rel (0) target = $region29
    $region28: #{fwd.1} parent=1 // pred_region
      %69 = dma.done [#allocation6], 22528
    $region29: #{fwd.1} parent=1 // pred_fallthru
      _
    // Predicated region
    $region30: #{fwd.1} parent=1 // pred_check
      _
    $region31: #{fwd.1} parent=1 // pred_check_branch
      %71 = sbr.rel (0) target = $region33
    $region32: #{fwd.1} parent=1 // pred_region
      %72 = dma.done [#allocation6], 12288
    $region33: #{fwd.1} parent=1 // pred_fallthru
      _
    // Predicated region
    $region34: #{fwd.1} parent=1 // pred_check
      _
    $region35: #{fwd.1} parent=1 // pred_check_branch
      %74 = sbr.rel (0) target = $region37
    $region36: #{fwd.1} parent=1 // pred_region
      %75 = dma.done [#allocation9], 1152
    $region37: #{fwd.1} parent=1 // pred_fallthru
      _
    %v77 = vld [vmem:[%s0] sm:$0xf]
    %v78 = vld [vmem:[%s0 + $0x4] sm:$0xf]
    %v79 = vld [vmem:[#allocation2] sm:$0xf]
    %v80 = vld [vmem:[#allocation2 + $0x68] sm:$0xf]
    %v81 = vld [vmem:[#allocation2 + $0xd0] sm:$0xf]
    %v82 = vld [vmem:[#allocation2 + $0x138] sm:$0xf]
    %v83 = vld [vmem:[#allocation2 + $0x1a0] sm:$0xf]
    %v84 = vld [vmem:[#allocation2 + $0x208] sm:$0xf]
    %v85 = vld [vmem:[#allocation2 + $0x270] sm:$0xf]
    %v86 = vld [vmem:[#allocation2 + $0x2d8] sm:$0xf]
    %v87 = vld [vmem:[#allocation2 + $0x340] sm:$0xf]
    %v88 = vld [vmem:[#allocation2 + $0x3a8] sm:$0xf]
    %v89 = vld [vmem:[#allocation2 + $0x410] sm:$0xf]
    %v90 = vld [vmem:[#allocation2 + $0x478] sm:$0xf]
    %v91 = vld [vmem:[#allocation2 + $0x4e0] sm:$0xf]
    %v92 = vld [vmem:[#allocation2 + $0x548] sm:$0xf]
    %v93 = vld [vmem:[#allocation2 + $0x5b0] sm:$0xf]
    %v94 = vld [vmem:[#allocation2 + $0x618] sm:$0xf]
    %v95 = vld [vmem:[#allocation8] ss:$0 sm:$0xff]
    %v112 = vunpack.c.l.b16 %v79
    %v113 = vunpack.c.l.b16 %v80
    %v114 = vunpack.c.l.b16 %v81
    %v115 = vunpack.c.l.b16 %v82
    %v116 = vunpack.c.l.b16 %v83
    %v117 = vunpack.c.l.b16 %v84
    %v118 = vunpack.c.l.b16 %v85
    %v119 = vunpack.c.l.b16 %v86
    %v120 = vunpack.c.l.b16 %v87
    %v121 = vunpack.c.l.b16 %v88
    %v122 = vunpack.c.l.b16 %v89
    %v123 = vunpack.c.l.b16 %v90
    %v124 = vunpack.c.l.b16 %v91
    %v125 = vunpack.c.l.b16 %v92
    %v126 = vunpack.c.l.b16 %v93
    %v127 = vunpack.c.l.b16 %v94
    %v128 = vpack.c.b16 %v113, %v112
    %v129 = vpack.c.b16 %v115, %v114
    %v130 = vpack.c.b16 %v117, %v116
    %v131 = vpack.c.b16 %v119, %v118
    %v132 = vpack.c.b16 %v121, %v120
    %v133 = vpack.c.b16 %v123, %v122
    %v134 = vpack.c.b16 %v125, %v124
    %v135 = vpack.c.b16 %v127, %v126
    %144 = vmatprep.subr.bf16.mxu0 0
    %145 = vmatpush1.bf16.msra.mxu0 %v128
    %146 = vmatprep.subr.bf16.mxu0 0
    %147 = vmatpush1.bf16.msra.mxu0 %v129
    %148 = vmatprep.subr.bf16.mxu0 0
    %149 = vmatpush1.bf16.msra.mxu0 %v130
    %150 = vmatprep.subr.bf16.mxu0 0
    %151 = vmatpush1.bf16.msra.mxu0 %v131
    %152 = vmatprep.subr.bf16.mxu0 0
    %153 = vmatpush1.bf16.msra.mxu0 %v132
    %154 = vmatprep.subr.bf16.mxu0 0
    %155 = vmatpush1.bf16.msra.mxu0 %v133
    %156 = vmatprep.subr.bf16.mxu0 0
    %157 = vmatpush1.bf16.msra.mxu0 %v134
    %158 = vmatprep.subr.bf16.mxu0 0
    %159 = vmatpush1.bf16.msra.mxu0 %v135
    %160 = vmatprep.subr.bf16.mxu0 0
    %161 = vmatpush1.bf16.msra.mxu0 0
    %162 = vmatprep.subr.bf16.mxu0 0
    %163 = vmatpush1.bf16.msra.mxu0 0
    %164 = vmatprep.subr.bf16.mxu0 0
    %165 = vmatpush1.bf16.msra.mxu0 0
    %166 = vmatprep.subr.bf16.mxu0 0
    %167 = vmatpush1.bf16.msra.mxu0 0
    %168 = vmatprep.subr.bf16.mxu0 0
    %169 = vmatpush1.bf16.msra.mxu0 0
    %170 = vmatprep.subr.bf16.mxu0 0
    %171 = vmatpush1.bf16.msra.mxu0 0
    %172 = vmatprep.subr.bf16.mxu0 0
    %173 = vmatpush1.bf16.msra.mxu0 0
    %174 = vmatprep.subr.bf16.mxu0 0
    %175 = vmatpush1.bf16.msra.mxu0 0
    %176 = vmatprep.mubr.bf16.mxu0 0
    %177 = vmatmul.mubr.bf16.gmra.mrb[0].mxu0 %v77
    %v178 = vpop.f32.mrb[0].mxu0
    %v179 = vadd.f32 %v95, %v178
    %v180 = vpop.f32.mrb[0].mxu0
    %v181 = vpop.f32.mrb[0].mxu0
    %v182 = vpop.f32.mrb[0].mxu0
    %183 = vdwg.mxu0
    %v184 = vmax.f32 %v179, 0.0
    %v185 = vld [vmem:[#allocation2 + $0x4] sm:$0xf]
    %v186 = vld [vmem:[#allocation2 + $0x6c] sm:$0xf]
    %v187 = vld [vmem:[#allocation2 + $0xd4] sm:$0xf]
    %v188 = vld [vmem:[#allocation2 + $0x13c] sm:$0xf]
    %v189 = vld [vmem:[#allocation2 + $0x1a4] sm:$0xf]
    %v190 = vld [vmem:[#allocation2 + $0x20c] sm:$0xf]
    %v191 = vld [vmem:[#allocation2 + $0x274] sm:$0xf]
    %v192 = vld [vmem:[#allocation2 + $0x2dc] sm:$0xf]
    %v193 = vld [vmem:[#allocation2 + $0x344] sm:$0xf]
    %v194 = vld [vmem:[#allocation2 + $0x3ac] sm:$0xf]
    %v195 = vld [vmem:[#allocation2 + $0x414] sm:$0xf]
    %v196 = vld [vmem:[#allocation2 + $0x47c] sm:$0xf]
    %v197 = vld [vmem:[#allocation2 + $0x4e4] sm:$0xf]
    %v198 = vld [vmem:[#allocation2 + $0x54c] sm:$0xf]
    %v199 = vld [vmem:[#allocation2 + $0x5b4] sm:$0xf]
    %v200 = vld [vmem:[#allocation2 + $0x61c] sm:$0xf]
    %v201 = vpack.c.bf16 %v184, %v184
    %v202 = vld [vmem:[#allocation8 + $0x1] ss:$0 sm:$0xff]
    %v219 = vunpack.c.l.b16 %v185
    %v220 = vunpack.c.l.b16 %v186
    %v221 = vunpack.c.l.b16 %v187
    %v222 = vunpack.c.l.b16 %v188
    %v223 = vunpack.c.l.b16 %v189
    %v224 = vunpack.c.l.b16 %v190
    %v225 = vunpack.c.l.b16 %v191
    %v226 = vunpack.c.l.b16 %v192
    %v227 = vunpack.c.l.b16 %v193
    %v228 = vunpack.c.l.b16 %v194
    %v229 = vunpack.c.l.b16 %v195
    %v230 = vunpack.c.l.b16 %v196
    %v231 = vunpack.c.l.b16 %v197
    %v232 = vunpack.c.l.b16 %v198
    %v233 = vunpack.c.l.b16 %v199
    %v234 = vunpack.c.l.b16 %v200
    %v235 = vpack.c.b16 %v220, %v219
    %v236 = vpack.c.b16 %v222, %v221
    %v237 = vpack.c.b16 %v224, %v223
    %v238 = vpack.c.b16 %v226, %v225
    %v239 = vpack.c.b16 %v228, %v227
    %v240 = vpack.c.b16 %v230, %v229
    %v241 = vpack.c.b16 %v232, %v231
    %v242 = vpack.c.b16 %v234, %v233
    %251 = vmatprep.subr.bf16.mxu0 0
    %252 = vmatpush1.bf16.msra.mxu0 %v235
    %253 = vmatprep.subr.bf16.mxu0 0
    %254 = vmatpush1.bf16.msra.mxu0 %v236
    %255 = vmatprep.subr.bf16.mxu0 0
    %256 = vmatpush1.bf16.msra.mxu0 %v237
    %257 = vmatprep.subr.bf16.mxu0 0
    %258 = vmatpush1.bf16.msra.mxu0 %v238
    %259 = vmatprep.subr.bf16.mxu0 0
    %260 = vmatpush1.bf16.msra.mxu0 %v239
    %261 = vmatprep.subr.bf16.mxu0 0
    %262 = vmatpush1.bf16.msra.mxu0 %v240
    %263 = vmatprep.subr.bf16.mxu0 0
    %264 = vmatpush1.bf16.msra.mxu0 %v241
    %265 = vmatprep.subr.bf16.mxu0 0
    %266 = vmatpush1.bf16.msra.mxu0 %v242
    %267 = vmatprep.subr.bf16.mxu0 0
    %268 = vmatpush1.bf16.msra.mxu0 0
    %269 = vmatprep.subr.bf16.mxu0 0
    %270 = vmatpush1.bf16.msra.mxu0 0
    %271 = vmatprep.subr.bf16.mxu0 0
    %272 = vmatpush1.bf16.msra.mxu0 0
    %273 = vmatprep.subr.bf16.mxu0 0
    %274 = vmatpush1.bf16.msra.mxu0 0
    %275 = vmatprep.subr.bf16.mxu0 0
    %276 = vmatpush1.bf16.msra.mxu0 0
    %277 = vmatprep.subr.bf16.mxu0 0
    %278 = vmatpush1.bf16.msra.mxu0 0
    %279 = vmatprep.subr.bf16.mxu0 0
    %280 = vmatpush1.bf16.msra.mxu0 0
    %281 = vmatprep.subr.bf16.mxu0 0
    %282 = vmatpush1.bf16.msra.mxu0 0
    %283 = vmatprep.mubr.bf16.mxu0 0
    %284 = vmatmul.mubr.bf16.gmra.mrb[0].mxu0 %v201
    %v285 = vpop.f32.mrb[0].mxu0
    %v286 = vadd.f32 %v202, %v285
    %v287 = vpop.f32.mrb[0].mxu0
    %v288 = vpop.f32.mrb[0].mxu0
    %v289 = vpop.f32.mrb[0].mxu0
    %290 = vdwg.mxu0
    %v291 = vmax.f32 %v286, 0.0
    %v292 = vld [vmem:[#allocation2 + $0x8] sm:$0xff]
    %v293 = vld [vmem:[#allocation2 + $0x10] sm:$0xf]
    %v294 = vld [vmem:[#allocation2 + $0x70] sm:$0xff]
    %v295 = vld [vmem:[#allocation2 + $0x78] sm:$0xf]
    %v296 = vld [vmem:[#allocation2 + $0xd8] sm:$0xff]
    %v297 = vld [vmem:[#allocation2 + $0xe0] sm:$0xf]
    %v298 = vld [vmem:[#allocation2 + $0x140] sm:$0xff]
    %v299 = vld [vmem:[#allocation2 + $0x148] sm:$0xf]
    %v300 = vld [vmem:[#allocation2 + $0x1a8] sm:$0xff]
    %v301 = vld [vmem:[#allocation2 + $0x1b0] sm:$0xf]
    %v302 = vld [vmem:[#allocation2 + $0x210] sm:$0xff]
    %v303 = vld [vmem:[#allocation2 + $0x218] sm:$0xf]
    %v304 = vld [vmem:[#allocation2 + $0x278] sm:$0xff]
    %v305 = vld [vmem:[#allocation2 + $0x280] sm:$0xf]
    %v306 = vld [vmem:[#allocation2 + $0x2e0] sm:$0xff]
    %v307 = vld [vmem:[#allocation2 + $0x2e8] sm:$0xf]
    %v308 = vld [vmem:[#allocation2 + $0x348] sm:$0xff]
    %v309 = vld [vmem:[#allocation2 + $0x350] sm:$0xf]
    %v310 = vld [vmem:[#allocation2 + $0x3b0] sm:$0xff]
    %v311 = vld [vmem:[#allocation2 + $0x3b8] sm:$0xf]
    %v312 = vld [vmem:[#allocation2 + $0x418] sm:$0xff]
    %v313 = vld [vmem:[#allocation2 + $0x420] sm:$0xf]
    %v314 = vld [vmem:[#allocation2 + $0x480] sm:$0xff]
    %v315 = vld [vmem:[#allocation2 + $0x488] sm:$0xf]
    %v316 = vld [vmem:[#allocation2 + $0x4e8] sm:$0xff]
    %v317 = vld [vmem:[#allocation2 + $0x4f0] sm:$0xf]
    %v318 = vld [vmem:[#allocation2 + $0x550] sm:$0xff]
    %v319 = vld [vmem:[#allocation2 + $0x558] sm:$0xf]
    %v320 = vld [vmem:[#allocation2 + $0x5b8] sm:$0xff]
    %v321 = vld [vmem:[#allocation2 + $0x5c0] sm:$0xf]
    %v322 = vld [vmem:[#allocation2 + $0x620] sm:$0xff]
    %v323 = vld [vmem:[#allocation2 + $0x628] sm:$0xf]
    %v324 = vpack.c.bf16 %v291, %v291
    %s325 = scalar_lea.vmem [#allocation8], 2
    %v326 = vld [vmem:[%s325] ss:$8 sm:$0x7]
    %v328 = vlaneseq
    %v329 = vshrl.u32 %v328, 7
    %v330 = vsub.s32 0, %v329
    %v331 = vrot.slane %v326, %v330
    %v332 = vlaneseq
    %v333 = vshrl.u32 %v332, 7
    %v334 = vsub.s32 1, %v333
    %v335 = vrot.slane %v326, %v334
    %v336 = vlaneseq
    %v337 = vshrl.u32 %v336, 7
    %v338 = vsub.s32 2, %v337
    %v339 = vrot.slane %v326, %v338
    %v375 = vunpack.c.l.b16 %v292
    %v376 = vunpack.c.h.b16 %v292
    %v377 = vunpack.c.l.b16 %v293
    %v378 = vunpack.c.l.b16 %v294
    %v379 = vunpack.c.h.b16 %v294
    %v380 = vunpack.c.l.b16 %v295
    %v381 = vunpack.c.l.b16 %v296
    %v382 = vunpack.c.h.b16 %v296
    %v383 = vunpack.c.l.b16 %v297
    %v384 = vunpack.c.l.b16 %v298
    %v385 = vunpack.c.h.b16 %v298
    %v386 = vunpack.c.l.b16 %v299
    %v387 = vunpack.c.l.b16 %v300
    %v388 = vunpack.c.h.b16 %v300
    %v389 = vunpack.c.l.b16 %v301
    %v390 = vunpack.c.l.b16 %v302
    %v391 = vunpack.c.h.b16 %v302
    %v392 = vunpack.c.l.b16 %v303
    %v393 = vunpack.c.l.b16 %v304
    %v394 = vunpack.c.h.b16 %v304
    %v395 = vunpack.c.l.b16 %v305
    %v396 = vunpack.c.l.b16 %v306
    %v397 = vunpack.c.h.b16 %v306
    %v398 = vunpack.c.l.b16 %v307
    %v399 = vunpack.c.l.b16 %v308
    %v400 = vunpack.c.h.b16 %v308
    %v401 = vunpack.c.l.b16 %v309
    %v402 = vunpack.c.l.b16 %v310
    %v403 = vunpack.c.h.b16 %v310
    %v404 = vunpack.c.l.b16 %v311
    %v405 = vunpack.c.l.b16 %v312
    %v406 = vunpack.c.h.b16 %v312
    %v407 = vunpack.c.l.b16 %v313
    %v408 = vunpack.c.l.b16 %v314
    %v409 = vunpack.c.h.b16 %v314
    %v410 = vunpack.c.l.b16 %v315
    %v411 = vunpack.c.l.b16 %v316
    %v412 = vunpack.c.h.b16 %v316
    %v413 = vunpack.c.l.b16 %v317
    %v414 = vunpack.c.l.b16 %v318
    %v415 = vunpack.c.h.b16 %v318
    %v416 = vunpack.c.l.b16 %v319
    %v417 = vunpack.c.l.b16 %v320
    %v418 = vunpack.c.h.b16 %v320
    %v419 = vunpack.c.l.b16 %v321
    %v420 = vunpack.c.l.b16 %v322
    %v421 = vunpack.c.h.b16 %v322
    %v422 = vunpack.c.l.b16 %v323
    %v423 = vpack.c.b16 %v378, %v375
    %v424 = vpack.c.b16 %v379, %v376
    %v425 = vpack.c.b16 %v380, %v377
    %v426 = vpack.c.b16 %v384, %v381
    %v427 = vpack.c.b16 %v385, %v382
    %v428 = vpack.c.b16 %v386, %v383
    %v429 = vpack.c.b16 %v390, %v387
    %v430 = vpack.c.b16 %v391, %v388
    %v431 = vpack.c.b16 %v392, %v389
    %v432 = vpack.c.b16 %v396, %v393
    %v433 = vpack.c.b16 %v397, %v394
    %v434 = vpack.c.b16 %v398, %v395
    %v435 = vpack.c.b16 %v402, %v399
    %v436 = vpack.c.b16 %v403, %v400
    %v437 = vpack.c.b16 %v404, %v401
    %v438 = vpack.c.b16 %v408, %v405
    %v439 = vpack.c.b16 %v409, %v406
    %v440 = vpack.c.b16 %v410, %v407
    %v441 = vpack.c.b16 %v414, %v411
    %v442 = vpack.c.b16 %v415, %v412
    %v443 = vpack.c.b16 %v416, %v413
    %v444 = vpack.c.b16 %v420, %v417
    %v445 = vpack.c.b16 %v421, %v418
    %v446 = vpack.c.b16 %v422, %v419
    %471 = vmatprep.subr.bf16.mxu0 %v424
    %472 = vmatpush1.bf16.msra.mxu0 %v423
    %473 = vmatprep.subr.bf16.mxu0 %v427
    %474 = vmatpush1.bf16.msra.mxu0 %v426
    %475 = vmatprep.subr.bf16.mxu0 %v430
    %476 = vmatpush1.bf16.msra.mxu0 %v429
    %477 = vmatprep.subr.bf16.mxu0 %v433
    %478 = vmatpush1.bf16.msra.mxu0 %v432
    %479 = vmatprep.subr.bf16.mxu0 %v436
    %480 = vmatpush1.bf16.msra.mxu0 %v435
    %481 = vmatprep.subr.bf16.mxu0 %v439
    %482 = vmatpush1.bf16.msra.mxu0 %v438
    %483 = vmatprep.subr.bf16.mxu0 %v442
    %484 = vmatpush1.bf16.msra.mxu0 %v441
    %485 = vmatprep.subr.bf16.mxu0 %v445
    %486 = vmatpush1.bf16.msra.mxu0 %v444
    %487 = vmatprep.subr.bf16.mxu0 0
    %488 = vmatpush1.bf16.msra.mxu0 0
    %489 = vmatprep.subr.bf16.mxu0 0
    %490 = vmatpush1.bf16.msra.mxu0 0
    %491 = vmatprep.subr.bf16.mxu0 0
    %492 = vmatpush1.bf16.msra.mxu0 0
    %493 = vmatprep.subr.bf16.mxu0 0
    %494 = vmatpush1.bf16.msra.mxu0 0
    %495 = vmatprep.subr.bf16.mxu0 0
    %496 = vmatpush1.bf16.msra.mxu0 0
    %497 = vmatprep.subr.bf16.mxu0 0
    %498 = vmatpush1.bf16.msra.mxu0 0
    %499 = vmatprep.subr.bf16.mxu0 0
    %500 = vmatpush1.bf16.msra.mxu0 0
    %501 = vmatprep.subr.bf16.mxu0 0
    %502 = vmatpush1.bf16.msra.mxu0 0
    %503 = vmatprep.mubr.bf16.mxu0 0
    %504 = vmatmul.mubr.bf16.gmra.mrb[0].mxu0 %v324
    %v505 = vpop.f32.mrb[0].mxu0
    %v506 = vadd.f32 %v331, %v505
    %v507 = vpop.f32.mrb[0].mxu0
    %v508 = vadd.f32 %v335, %v507
    %v509 = vpop.f32.mrb[0].mxu0
    %v510 = vpop.f32.mrb[0].mxu0
    %511 = vdwg.mxu0
    %512 = vmatprep.subr.bf16.mxu0 0
    %513 = vmatpush1.bf16.msra.mxu0 %v425
    %514 = vmatprep.subr.bf16.mxu0 0
    %515 = vmatpush1.bf16.msra.mxu0 %v428
    %516 = vmatprep.subr.bf16.mxu0 0
    %517 = vmatpush1.bf16.msra.mxu0 %v431
    %518 = vmatprep.subr.bf16.mxu0 0
    %519 = vmatpush1.bf16.msra.mxu0 %v434
    %520 = vmatprep.subr.bf16.mxu0 0
    %521 = vmatpush1.bf16.msra.mxu0 %v437
    %522 = vmatprep.subr.bf16.mxu0 0
    %523 = vmatpush1.bf16.msra.mxu0 %v440
    %524 = vmatprep.subr.bf16.mxu0 0
    %525 = vmatpush1.bf16.msra.mxu0 %v443
    %526 = vmatprep.subr.bf16.mxu0 0
    %527 = vmatpush1.bf16.msra.mxu0 %v446
    %528 = vmatprep.subr.bf16.mxu0 0
    %529 = vmatpush1.bf16.msra.mxu0 0
    %530 = vmatprep.subr.bf16.mxu0 0
    %531 = vmatpush1.bf16.msra.mxu0 0
    %532 = vmatprep.subr.bf16.mxu0 0
    %533 = vmatpush1.bf16.msra.mxu0 0
    %534 = vmatprep.subr.bf16.mxu0 0
    %535 = vmatpush1.bf16.msra.mxu0 0
    %536 = vmatprep.subr.bf16.mxu0 0
    %537 = vmatpush1.bf16.msra.mxu0 0
    %538 = vmatprep.subr.bf16.mxu0 0
    %539 = vmatpush1.bf16.msra.mxu0 0
    %540 = vmatprep.subr.bf16.mxu0 0
    %541 = vmatpush1.bf16.msra.mxu0 0
    %542 = vmatprep.subr.bf16.mxu0 0
    %543 = vmatpush1.bf16.msra.mxu0 0
    %544 = vmatprep.mubr.bf16.mxu0 0
    %545 = vmatmul.mubr.bf16.gmra.mrb[0].mxu0 %v324
    %v546 = vpop.f32.mrb[0].mxu0
    %v547 = vadd.f32 %v339, %v546
    %v548 = vpop.f32.mrb[0].mxu0
    %v549 = vpop.f32.mrb[0].mxu0
    %v550 = vpop.f32.mrb[0].mxu0
    %551 = vdwg.mxu0
    %v552 = vmax.f32 %v506, 0.0
    %v553 = vmax.f32 %v508, 0.0
    %v554 = vmax.f32 %v547, 0.0
    %v555 = vld [vmem:[#allocation7] sm:$0xf]
    %v556 = vld [vmem:[#allocation7 + $0x10] sm:$0xf]
    %v557 = vld [vmem:[#allocation7 + $0x20] sm:$0xf]
    %v558 = vld [vmem:[#allocation7 + $0x30] sm:$0xf]
    %v559 = vld [vmem:[#allocation7 + $0x40] sm:$0xf]
    %v560 = vld [vmem:[#allocation7 + $0x50] sm:$0xf]
    %v561 = vld [vmem:[#allocation7 + $0x60] sm:$0xf]
    %v562 = vld [vmem:[#allocation7 + $0x70] sm:$0xf]
    %v563 = vld [vmem:[#allocation7 + $0x80] sm:$0xf]
    %v564 = vld [vmem:[#allocation7 + $0x90] sm:$0xf]
    %v565 = vld [vmem:[#allocation7 + $0xa0] sm:$0xf]
    %v566 = vld [vmem:[#allocation7 + $0xb0] sm:$0xf]
    %v567 = vld [vmem:[#allocation7 + $0xc0] sm:$0xf]
    %v568 = vld [vmem:[#allocation7 + $0xd0] sm:$0xf]
    %v569 = vld [vmem:[#allocation7 + $0xe0] sm:$0xf]
    %v570 = vld [vmem:[#allocation7 + $0xf0] sm:$0xf]
    %v571 = vld [vmem:[#allocation7 + $0x100] sm:$0xf]
    %v572 = vld [vmem:[#allocation7 + $0x110] sm:$0xf]
    %v573 = vld [vmem:[#allocation7 + $0x120] sm:$0xf]
    %v574 = vld [vmem:[#allocation7 + $0x130] sm:$0xf]
    %v575 = vld [vmem:[#allocation7 + $0x140] sm:$0xf]
    %v576 = vld [vmem:[#allocation7 + $0x150] sm:$0xf]
    %v577 = vld [vmem:[#allocation7 + $0x160] sm:$0xf]
    %v578 = vld [vmem:[#allocation7 + $0x170] sm:$0xf]
    %v579 = vld [vmem:[#allocation7 + $0x180] sm:$0xf]
    %v580 = vld [vmem:[#allocation7 + $0x190] sm:$0xf]
    %v581 = vld [vmem:[#allocation7 + $0x1a0] sm:$0xf]
    %v582 = vld [vmem:[#allocation7 + $0x1b0] sm:$0xf]
    %v583 = vld [vmem:[#allocation7 + $0x1c0] sm:$0xf]
    %v584 = vld [vmem:[#allocation7 + $0x1d0] sm:$0xf]
    %v585 = vld [vmem:[#allocation7 + $0x1e0] sm:$0xf]
    %v586 = vld [vmem:[#allocation7 + $0x1f0] sm:$0xf]
    %v587 = vld [vmem:[#allocation7 + $0x200] sm:$0xf]
    %v588 = vld [vmem:[#allocation7 + $0x210] sm:$0xf]
    %v589 = vld [vmem:[#allocation7 + $0x220] sm:$0xf]
    %v590 = vld [vmem:[#allocation7 + $0x230] sm:$0xf]
    %v591 = vld [vmem:[#allocation7 + $0x240] sm:$0xf]
    %v592 = vld [vmem:[#allocation7 + $0x250] sm:$0xf]
    %v593 = vld [vmem:[#allocation7 + $0x260] sm:$0xf]
    %v594 = vld [vmem:[#allocation7 + $0x270] sm:$0xf]
    %v595 = vld [vmem:[#allocation7 + $0x280] sm:$0xf]
    %v596 = vld [vmem:[#allocation7 + $0x290] sm:$0xf]
    %v597 = vld [vmem:[#allocation7 + $0x2a0] sm:$0xf]
    %v598 = vld [vmem:[#allocation7 + $0x2b0] sm:$0xf]
    %v599 = vld [vmem:[#allocation7 + $0x2c0] sm:$0xf]
    %v600 = vld [vmem:[#allocation7 + $0x2d0] sm:$0xf]
    %v601 = vld [vmem:[#allocation7 + $0x2e0] sm:$0xf]
    %v602 = vld [vmem:[#allocation7 + $0x2f0] sm:$0xf]
    %v603 = vpack.c.bf16 %v552, %v552
    %v604 = vpack.c.bf16 %v553, %v553
    %v605 = vpack.c.bf16 %v554, %v554
    %v606 = vld [vmem:[#allocation8 + $0x3] ss:$0 sm:$0xff]
    %v655 = vunpack.c.l.b16 %v555
    %v656 = vunpack.c.l.b16 %v556
    %v657 = vunpack.c.l.b16 %v557
    %v658 = vunpack.c.l.b16 %v558
    %v659 = vunpack.c.l.b16 %v559
    %v660 = vunpack.c.l.b16 %v560
    %v661 = vunpack.c.l.b16 %v561
    %v662 = vunpack.c.l.b16 %v562
    %v663 = vunpack.c.l.b16 %v563
    %v664 = vunpack.c.l.b16 %v564
    %v665 = vunpack.c.l.b16 %v565
    %v666 = vunpack.c.l.b16 %v566
    %v667 = vunpack.c.l.b16 %v567
    %v668 = vunpack.c.l.b16 %v568
    %v669 = vunpack.c.l.b16 %v569
    %v670 = vunpack.c.l.b16 %v570
    %v671 = vunpack.c.l.b16 %v571
    %v672 = vunpack.c.l.b16 %v572
    %v673 = vunpack.c.l.b16 %v573
    %v674 = vunpack.c.l.b16 %v574
    %v675 = vunpack.c.l.b16 %v575
    %v676 = vunpack.c.l.b16 %v576
    %v677 = vunpack.c.l.b16 %v577
    %v678 = vunpack.c.l.b16 %v578
    %v679 = vunpack.c.l.b16 %v579
    %v680 = vunpack.c.l.b16 %v580
    %v681 = vunpack.c.l.b16 %v581
    %v682 = vunpack.c.l.b16 %v582
    %v683 = vunpack.c.l.b16 %v583
    %v684 = vunpack.c.l.b16 %v584
    %v685 = vunpack.c.l.b16 %v585
    %v686 = vunpack.c.l.b16 %v586
    %v687 = vunpack.c.l.b16 %v587
    %v688 = vunpack.c.l.b16 %v588
    %v689 = vunpack.c.l.b16 %v589
    %v690 = vunpack.c.l.b16 %v590
    %v691 = vunpack.c.l.b16 %v591
    %v692 = vunpack.c.l.b16 %v592
    %v693 = vunpack.c.l.b16 %v593
    %v694 = vunpack.c.l.b16 %v594
    %v695 = vunpack.c.l.b16 %v595
    %v696 = vunpack.c.l.b16 %v596
    %v697 = vunpack.c.l.b16 %v597
    %v698 = vunpack.c.l.b16 %v598
    %v699 = vunpack.c.l.b16 %v599
    %v700 = vunpack.c.l.b16 %v600
    %v701 = vunpack.c.l.b16 %v601
    %v702 = vunpack.c.l.b16 %v602
    %v703 = vpack.c.b16 %v656, %v655
    %v704 = vpack.c.b16 %v658, %v657
    %v705 = vpack.c.b16 %v660, %v659
    %v706 = vpack.c.b16 %v662, %v661
    %v707 = vpack.c.b16 %v664, %v663
    %v708 = vpack.c.b16 %v666, %v665
    %v709 = vpack.c.b16 %v668, %v667
    %v710 = vpack.c.b16 %v670, %v669
    %v711 = vpack.c.b16 %v672, %v671
    %v712 = vpack.c.b16 %v674, %v673
    %v713 = vpack.c.b16 %v676, %v675
    %v714 = vpack.c.b16 %v678, %v677
    %v715 = vpack.c.b16 %v680, %v679
    %v716 = vpack.c.b16 %v682, %v681
    %v717 = vpack.c.b16 %v684, %v683
    %v718 = vpack.c.b16 %v686, %v685
    %v719 = vpack.c.b16 %v688, %v687
    %v720 = vpack.c.b16 %v690, %v689
    %v721 = vpack.c.b16 %v692, %v691
    %v722 = vpack.c.b16 %v694, %v693
    %v723 = vpack.c.b16 %v696, %v695
    %v724 = vpack.c.b16 %v698, %v697
    %v725 = vpack.c.b16 %v700, %v699
    %v726 = vpack.c.b16 %v702, %v701
    %751 = vmatprep.subr.bf16.mxu0 0
    %752 = vmatpush1.bf16.msra.mxu0 %v703
    %753 = vmatprep.subr.bf16.mxu0 0
    %754 = vmatpush1.bf16.msra.mxu0 %v704
    %755 = vmatprep.subr.bf16.mxu0 0
    %756 = vmatpush1.bf16.msra.mxu0 %v705
    %757 = vmatprep.subr.bf16.mxu0 0
    %758 = vmatpush1.bf16.msra.mxu0 %v706
    %759 = vmatprep.subr.bf16.mxu0 0
    %760 = vmatpush1.bf16.msra.mxu0 %v707
    %761 = vmatprep.subr.bf16.mxu0 0
    %762 = vmatpush1.bf16.msra.mxu0 %v708
    %763 = vmatprep.subr.bf16.mxu0 0
    %764 = vmatpush1.bf16.msra.mxu0 %v709
    %765 = vmatprep.subr.bf16.mxu0 0
    %766 = vmatpush1.bf16.msra.mxu0 %v710
    %767 = vmatprep.subr.bf16.mxu0 0
    %768 = vmatpush1.bf16.msra.mxu0 %v711
    %769 = vmatprep.subr.bf16.mxu0 0
    %770 = vmatpush1.bf16.msra.mxu0 %v712
    %771 = vmatprep.subr.bf16.mxu0 0
    %772 = vmatpush1.bf16.msra.mxu0 %v713
    %773 = vmatprep.subr.bf16.mxu0 0
    %774 = vmatpush1.bf16.msra.mxu0 %v714
    %775 = vmatprep.subr.bf16.mxu0 0
    %776 = vmatpush1.bf16.msra.mxu0 %v715
    %777 = vmatprep.subr.bf16.mxu0 0
    %778 = vmatpush1.bf16.msra.mxu0 %v716
    %779 = vmatprep.subr.bf16.mxu0 0
    %780 = vmatpush1.bf16.msra.mxu0 %v717
    %781 = vmatprep.subr.bf16.mxu0 0
    %782 = vmatpush1.bf16.msra.mxu0 %v718
    %783 = vmatprep.mubr.bf16.mxu0 %v604
    %784 = vmatmul.mubr.bf16.gmra.mrb[0].mxu0 %v603
    %v785 = vpop.f32.mrb[0].mxu0
    %v786 = vadd.f32 %v606, %v785
    %v787 = vpop.f32.mrb[0].mxu0
    %v788 = vpop.f32.mrb[0].mxu0
    %v789 = vpop.f32.mrb[0].mxu0
    %790 = vdwg.mxu0
    %791 = vmatprep.subr.bf16.mxu0 0
    %792 = vmatpush1.bf16.msra.mxu0 %v719
    %793 = vmatprep.subr.bf16.mxu0 0
    %794 = vmatpush1.bf16.msra.mxu0 %v720
    %795 = vmatprep.subr.bf16.mxu0 0
    %796 = vmatpush1.bf16.msra.mxu0 %v721
    %797 = vmatprep.subr.bf16.mxu0 0
    %798 = vmatpush1.bf16.msra.mxu0 %v722
    %799 = vmatprep.subr.bf16.mxu0 0
    %800 = vmatpush1.bf16.msra.mxu0 %v723
    %801 = vmatprep.subr.bf16.mxu0 0
    %802 = vmatpush1.bf16.msra.mxu0 %v724
    %803 = vmatprep.subr.bf16.mxu0 0
    %804 = vmatpush1.bf16.msra.mxu0 %v725
    %805 = vmatprep.subr.bf16.mxu0 0
    %806 = vmatpush1.bf16.msra.mxu0 %v726
    %807 = vmatprep.subr.bf16.mxu0 0
    %808 = vmatpush1.bf16.msra.mxu0 0
    %809 = vmatprep.subr.bf16.mxu0 0
    %810 = vmatpush1.bf16.msra.mxu0 0
    %811 = vmatprep.subr.bf16.mxu0 0
    %812 = vmatpush1.bf16.msra.mxu0 0
    %813 = vmatprep.subr.bf16.mxu0 0
    %814 = vmatpush1.bf16.msra.mxu0 0
    %815 = vmatprep.subr.bf16.mxu0 0
    %816 = vmatpush1.bf16.msra.mxu0 0
    %817 = vmatprep.subr.bf16.mxu0 0
    %818 = vmatpush1.bf16.msra.mxu0 0
    %819 = vmatprep.subr.bf16.mxu0 0
    %820 = vmatpush1.bf16.msra.mxu0 0
    %821 = vmatprep.subr.bf16.mxu0 0
    %822 = vmatpush1.bf16.msra.mxu0 0
    %823 = vmatprep.mubr.bf16.mxu0 0
    %824 = vmatmul.mubr.bf16.gmra.mrb[0].mxu0 %v605
    %v825 = vpop.f32.mrb[0].mxu0
    %v826 = vadd.f32 %v786, %v825
    %v827 = vpop.f32.mrb[0].mxu0
    %v828 = vpop.f32.mrb[0].mxu0
    %v829 = vpop.f32.mrb[0].mxu0
    %830 = vdwg.mxu0
    %v831 = vmax.f32 %v826, 0.0
    %v832 = vld [vmem:[#allocation2 + $0x14] sm:$0xf]
    %v833 = vld [vmem:[#allocation2 + $0x7c] sm:$0xf]
    %v834 = vld [vmem:[#allocation2 + $0xe4] sm:$0xf]
    %v835 = vld [vmem:[#allocation2 + $0x14c] sm:$0xf]
    %v836 = vld [vmem:[#allocation2 + $0x1b4] sm:$0xf]
    %v837 = vld [vmem:[#allocation2 + $0x21c] sm:$0xf]
    %v838 = vld [vmem:[#allocation2 + $0x284] sm:$0xf]
    %v839 = vld [vmem:[#allocation2 + $0x2ec] sm:$0xf]
    %v840 = vld [vmem:[#allocation2 + $0x354] sm:$0xf]
    %v841 = vld [vmem:[#allocation2 + $0x3bc] sm:$0xf]
    %v842 = vld [vmem:[#allocation2 + $0x424] sm:$0xf]
    %v843 = vld [vmem:[#allocation2 + $0x48c] sm:$0xf]
    %v844 = vld [vmem:[#allocation2 + $0x4f4] sm:$0xf]
    %v845 = vld [vmem:[#allocation2 + $0x55c] sm:$0xf]
    %v846 = vld [vmem:[#allocation2 + $0x5c4] sm:$0xf]
    %v847 = vld [vmem:[#allocation2 + $0x62c] sm:$0xf]
    %v848 = vpack.c.bf16 %v831, %v831
    %v849 = vld [vmem:[#allocation8 + $0x4] ss:$0 sm:$0xff]
    %v866 = vunpack.c.l.b16 %v832
    %v867 = vunpack.c.l.b16 %v833
    %v868 = vunpack.c.l.b16 %v834
    %v869 = vunpack.c.l.b16 %v835
    %v870 = vunpack.c.l.b16 %v836
    %v871 = vunpack.c.l.b16 %v837
    %v872 = vunpack.c.l.b16 %v838
    %v873 = vunpack.c.l.b16 %v839
    %v874 = vunpack.c.l.b16 %v840
    %v875 = vunpack.c.l.b16 %v841
    %v876 = vunpack.c.l.b16 %v842
    %v877 = vunpack.c.l.b16 %v843
    %v878 = vunpack.c.l.b16 %v844
    %v879 = vunpack.c.l.b16 %v845
    %v880 = vunpack.c.l.b16 %v846
    %v881 = vunpack.c.l.b16 %v847
    %v882 = vpack.c.b16 %v867, %v866
    %v883 = vpack.c.b16 %v869, %v868
    %v884 = vpack.c.b16 %v871, %v870
    %v885 = vpack.c.b16 %v873, %v872
    %v886 = vpack.c.b16 %v875, %v874
    %v887 = vpack.c.b16 %v877, %v876
    %v888 = vpack.c.b16 %v879, %v878
    %v889 = vpack.c.b16 %v881, %v880
    %898 = vmatprep.subr.bf16.mxu0 0
    %899 = vmatpush1.bf16.msra.mxu0 %v882
    %900 = vmatprep.subr.bf16.mxu0 0
    %901 = vmatpush1.bf16.msra.mxu0 %v883
    %902 = vmatprep.subr.bf16.mxu0 0
    %903 = vmatpush1.bf16.msra.mxu0 %v884
    %904 = vmatprep.subr.bf16.mxu0 0
    %905 = vmatpush1.bf16.msra.mxu0 %v885
    %906 = vmatprep.subr.bf16.mxu0 0
    %907 = vmatpush1.bf16.msra.mxu0 %v886
    %908 = vmatprep.subr.bf16.mxu0 0
    %909 = vmatpush1.bf16.msra.mxu0 %v887
    %910 = vmatprep.subr.bf16.mxu0 0
    %911 = vmatpush1.bf16.msra.mxu0 %v888
    %912 = vmatprep.subr.bf16.mxu0 0
    %913 = vmatpush1.bf16.msra.mxu0 %v889
    %914 = vmatprep.subr.bf16.mxu0 0
    %915 = vmatpush1.bf16.msra.mxu0 0
    %916 = vmatprep.subr.bf16.mxu0 0
    %917 = vmatpush1.bf16.msra.mxu0 0
    %918 = vmatprep.subr.bf16.mxu0 0
    %919 = vmatpush1.bf16.msra.mxu0 0
    %920 = vmatprep.subr.bf16.mxu0 0
    %921 = vmatpush1.bf16.msra.mxu0 0
    %922 = vmatprep.subr.bf16.mxu0 0
    %923 = vmatpush1.bf16.msra.mxu0 0
    %924 = vmatprep.subr.bf16.mxu0 0
    %925 = vmatpush1.bf16.msra.mxu0 0
    %926 = vmatprep.subr.bf16.mxu0 0
    %927 = vmatpush1.bf16.msra.mxu0 0
    %928 = vmatprep.subr.bf16.mxu0 0
    %929 = vmatpush1.bf16.msra.mxu0 0
    %930 = vmatprep.mubr.bf16.mxu0 0
    %931 = vmatmul.mubr.bf16.gmra.mrb[0].mxu0 %v848
    %v932 = vpop.f32.mrb[0].mxu0
    %v933 = vadd.f32 %v849, %v932
    %v934 = vpop.f32.mrb[0].mxu0
    %v935 = vpop.f32.mrb[0].mxu0
    %v936 = vpop.f32.mrb[0].mxu0
    %937 = vdwg.mxu0
    %v938 = vld [vmem:[#allocation2 + $0x18] sm:$0xf]
    %v939 = vld [vmem:[#allocation2 + $0x80] sm:$0xf]
    %v940 = vld [vmem:[#allocation2 + $0xe8] sm:$0xf]
    %v941 = vld [vmem:[#allocation2 + $0x150] sm:$0xf]
    %v942 = vld [vmem:[#allocation2 + $0x1b8] sm:$0xf]
    %v943 = vld [vmem:[#allocation2 + $0x220] sm:$0xf]
    %v944 = vld [vmem:[#allocation2 + $0x288] sm:$0xf]
    %v945 = vld [vmem:[#allocation2 + $0x2f0] sm:$0xf]
    %v946 = vld [vmem:[#allocation2 + $0x358] sm:$0xf]
    %v947 = vld [vmem:[#allocation2 + $0x3c0] sm:$0xf]
    %v948 = vld [vmem:[#allocation2 + $0x428] sm:$0xf]
    %v949 = vld [vmem:[#allocation2 + $0x490] sm:$0xf]
    %v950 = vld [vmem:[#allocation2 + $0x4f8] sm:$0xf]
    %v951 = vld [vmem:[#allocation2 + $0x560] sm:$0xf]
    %v952 = vld [vmem:[#allocation2 + $0x5c8] sm:$0xf]
    %v953 = vld [vmem:[#allocation2 + $0x630] sm:$0xf]
    %v954 = vpack.c.bf16 %v933, %v933
    %v971 = vunpack.c.l.b16 %v938
    %v972 = vunpack.c.l.b16 %v939
    %v973 = vunpack.c.l.b16 %v940
    %v974 = vunpack.c.l.b16 %v941
    %v975 = vunpack.c.l.b16 %v942
    %v976 = vunpack.c.l.b16 %v943
    %v977 = vunpack.c.l.b16 %v944
    %v978 = vunpack.c.l.b16 %v945
    %v979 = vunpack.c.l.b16 %v946
    %v980 = vunpack.c.l.b16 %v947
    %v981 = vunpack.c.l.b16 %v948
    %v982 = vunpack.c.l.b16 %v949
    %v983 = vunpack.c.l.b16 %v950
    %v984 = vunpack.c.l.b16 %v951
    %v985 = vunpack.c.l.b16 %v952
    %v986 = vunpack.c.l.b16 %v953
    %v987 = vpack.c.b16 %v972, %v971
    %v988 = vpack.c.b16 %v974, %v973
    %v989 = vpack.c.b16 %v976, %v975
    %v990 = vpack.c.b16 %v978, %v977
    %v991 = vpack.c.b16 %v980, %v979
    %v992 = vpack.c.b16 %v982, %v981
    %v993 = vpack.c.b16 %v984, %v983
    %v994 = vpack.c.b16 %v986, %v985
    %1003 = vmatprep.subr.bf16.mxu0 0
    %1004 = vmatpush1.bf16.msra.mxu0 %v987
    %1005 = vmatprep.subr.bf16.mxu0 0
    %1006 = vmatpush1.bf16.msra.mxu0 %v988
    %1007 = vmatprep.subr.bf16.mxu0 0
    %1008 = vmatpush1.bf16.msra.mxu0 %v989
    %1009 = vmatprep.subr.bf16.mxu0 0
    %1010 = vmatpush1.bf16.msra.mxu0 %v990
    %1011 = vmatprep.subr.bf16.mxu0 0
    %1012 = vmatpush1.bf16.msra.mxu0 %v991
    %1013 = vmatprep.subr.bf16.mxu0 0
    %1014 = vmatpush1.bf16.msra.mxu0 %v992
    %1015 = vmatprep.subr.bf16.mxu0 0
    %1016 = vmatpush1.bf16.msra.mxu0 %v993
    %1017 = vmatprep.subr.bf16.mxu0 0
    %1018 = vmatpush1.bf16.msra.mxu0 %v994
    %1019 = vmatprep.subr.bf16.mxu0 0
    %1020 = vmatpush1.bf16.msra.mxu0 0
    %1021 = vmatprep.subr.bf16.mxu0 0
    %1022 = vmatpush1.bf16.msra.mxu0 0
    %1023 = vmatprep.subr.bf16.mxu0 0
    %1024 = vmatpush1.bf16.msra.mxu0 0
    %1025 = vmatprep.subr.bf16.mxu0 0
    %1026 = vmatpush1.bf16.msra.mxu0 0
    %1027 = vmatprep.subr.bf16.mxu0 0
    %1028 = vmatpush1.bf16.msra.mxu0 0
    %1029 = vmatprep.subr.bf16.mxu0 0
    %1030 = vmatpush1.bf16.msra.mxu0 0
    %1031 = vmatprep.subr.bf16.mxu0 0
    %1032 = vmatpush1.bf16.msra.mxu0 0
    %1033 = vmatprep.subr.bf16.mxu0 0
    %1034 = vmatpush1.bf16.msra.mxu0 0
    %1035 = vmatprep.mubr.bf16.mxu0 0
    %1036 = vmatmul.mubr.bf16.gmra.mrb[0].mxu0 %v954
    %v1037 = vpop.f32.mrb[0].mxu0
    %v1038 = vadd.f32 0.0, %v1037
    %v1039 = vpop.f32.mrb[0].mxu0
    %v1040 = vpop.f32.mrb[0].mxu0
    %v1041 = vpop.f32.mrb[0].mxu0
    %1042 = vdwg.mxu0
    %v1043 = vmax.f32 %v1038, 0.0
    %v1044 = vld [vmem:[#allocation2 + $0x1c] sm:$0xf]
    %v1045 = vld [vmem:[#allocation2 + $0x84] sm:$0xf]
    %v1046 = vld [vmem:[#allocation2 + $0xec] sm:$0xf]
    %v1047 = vld [vmem:[#allocation2 + $0x154] sm:$0xf]
    %v1048 = vld [vmem:[#allocation2 + $0x1bc] sm:$0xf]
    %v1049 = vld [vmem:[#allocation2 + $0x224] sm:$0xf]
    %v1050 = vld [vmem:[#allocation2 + $0x28c] sm:$0xf]
    %v1051 = vld [vmem:[#allocation2 + $0x2f4] sm:$0xf]
    %v1052 = vld [vmem:[#allocation2 + $0x35c] sm:$0xf]
    %v1053 = vld [vmem:[#allocation2 + $0x3c4] sm:$0xf]
    %v1054 = vld [vmem:[#allocation2 + $0x42c] sm:$0xf]
    %v1055 = vld [vmem:[#allocation2 + $0x494] sm:$0xf]
    %v1056 = vld [vmem:[#allocation2 + $0x4fc] sm:$0xf]
    %v1057 = vld [vmem:[#allocation2 + $0x564] sm:$0xf]
    %v1058 = vld [vmem:[#allocation2 + $0x5cc] sm:$0xf]
    %v1059 = vld [vmem:[#allocation2 + $0x634] sm:$0xf]
    %v1060 = vpack.c.bf16 %v1043, %v1043
    %v1077 = vunpack.c.l.b16 %v1044
    %v1078 = vunpack.c.l.b16 %v1045
    %v1079 = vunpack.c.l.b16 %v1046
    %v1080 = vunpack.c.l.b16 %v1047
    %v1081 = vunpack.c.l.b16 %v1048
    %v1082 = vunpack.c.l.b16 %v1049
    %v1083 = vunpack.c.l.b16 %v1050
    %v1084 = vunpack.c.l.b16 %v1051
    %v1085 = vunpack.c.l.b16 %v1052
    %v1086 = vunpack.c.l.b16 %v1053
    %v1087 = vunpack.c.l.b16 %v1054
    %v1088 = vunpack.c.l.b16 %v1055
    %v1089 = vunpack.c.l.b16 %v1056
    %v1090 = vunpack.c.l.b16 %v1057
    %v1091 = vunpack.c.l.b16 %v1058
    %v1092 = vunpack.c.l.b16 %v1059
    %v1093 = vpack.c.b16 %v1078, %v1077
    %v1094 = vpack.c.b16 %v1080, %v1079
    %v1095 = vpack.c.b16 %v1082, %v1081
    %v1096 = vpack.c.b16 %v1084, %v1083
    %v1097 = vpack.c.b16 %v1086, %v1085
    %v1098 = vpack.c.b16 %v1088, %v1087
    %v1099 = vpack.c.b16 %v1090, %v1089
    %v1100 = vpack.c.b16 %v1092, %v1091
    %1109 = vmatprep.subr.bf16.mxu0 0
    %1110 = vmatpush1.bf16.msra.mxu0 %v1093
    %1111 = vmatprep.subr.bf16.mxu0 0
    %1112 = vmatpush1.bf16.msra.mxu0 %v1094
    %1113 = vmatprep.subr.bf16.mxu0 0
    %1114 = vmatpush1.bf16.msra.mxu0 %v1095
    %1115 = vmatprep.subr.bf16.mxu0 0
    %1116 = vmatpush1.bf16.msra.mxu0 %v1096
    %1117 = vmatprep.subr.bf16.mxu0 0
    %1118 = vmatpush1.bf16.msra.mxu0 %v1097
    %1119 = vmatprep.subr.bf16.mxu0 0
    %1120 = vmatpush1.bf16.msra.mxu0 %v1098
    %1121 = vmatprep.subr.bf16.mxu0 0
    %1122 = vmatpush1.bf16.msra.mxu0 %v1099
    %1123 = vmatprep.subr.bf16.mxu0 0
    %1124 = vmatpush1.bf16.msra.mxu0 %v1100
    %1125 = vmatprep.subr.bf16.mxu0 0
    %1126 = vmatpush1.bf16.msra.mxu0 0
    %1127 = vmatprep.subr.bf16.mxu0 0
    %1128 = vmatpush1.bf16.msra.mxu0 0
    %1129 = vmatprep.subr.bf16.mxu0 0
    %1130 = vmatpush1.bf16.msra.mxu0 0
    %1131 = vmatprep.subr.bf16.mxu0 0
    %1132 = vmatpush1.bf16.msra.mxu0 0
    %1133 = vmatprep.subr.bf16.mxu0 0
    %1134 = vmatpush1.bf16.msra.mxu0 0
    %1135 = vmatprep.subr.bf16.mxu0 0
    %1136 = vmatpush1.bf16.msra.mxu0 0
    %1137 = vmatprep.subr.bf16.mxu0 0
    %1138 = vmatpush1.bf16.msra.mxu0 0
    %1139 = vmatprep.subr.bf16.mxu0 0
    %1140 = vmatpush1.bf16.msra.mxu0 0
    %1141 = vmatprep.mubr.bf16.mxu0 0
    %1142 = vmatmul.mubr.bf16.gmra.mrb[0].mxu0 %v1060
    %v1143 = vpop.f32.mrb[0].mxu0
    %v1144 = vadd.f32 0.0, %v1143
    %v1145 = vpop.f32.mrb[0].mxu0
    %v1146 = vpop.f32.mrb[0].mxu0
    %v1147 = vpop.f32.mrb[0].mxu0
    %1148 = vdwg.mxu0
    %v1149 = vxor.u32 %v1144, 2147483648
    %v1150 = vmul.f32 %v1149, 1.442695
    %v1151 = vpow.pop %v1150
    %v1152 = vadd.f32 %v1151, 1.0
    %v1153 = vrcp.pop %v1152
    %v1154 = vmul.f32 1.0, %v1153
    %v1155 = vmul.f32 %v933, %v1154
    %v1156 = vadd.f32 %v1155, %v179
    %v1157 = vadd.f32 %v179, %v1156
    %v1158 = vmax.f32 %v1156, 0.0
    %v1159 = vld [vmem:[#allocation2 + $0x20] sm:$0xff]
    %v1160 = vld [vmem:[#allocation2 + $0x88] sm:$0xff]
    %v1161 = vld [vmem:[#allocation2 + $0xf0] sm:$0xff]
    %v1162 = vld [vmem:[#allocation2 + $0x158] sm:$0xff]
    %v1163 = vld [vmem:[#allocation2 + $0x1c0] sm:$0xff]
    %v1164 = vld [vmem:[#allocation2 + $0x228] sm:$0xff]
    %v1165 = vld [vmem:[#allocation2 + $0x290] sm:$0xff]
    %v1166 = vld [vmem:[#allocation2 + $0x2f8] sm:$0xff]
    %v1167 = vld [vmem:[#allocation2 + $0x360] sm:$0xff]
    %v1168 = vld [vmem:[#allocation2 + $0x3c8] sm:$0xff]
    %v1169 = vld [vmem:[#allocation2 + $0x430] sm:$0xff]
    %v1170 = vld [vmem:[#allocation2 + $0x498] sm:$0xff]
    %v1171 = vld [vmem:[#allocation2 + $0x500] sm:$0xff]
    %v1172 = vld [vmem:[#allocation2 + $0x568] sm:$0xff]
    %v1173 = vld [vmem:[#allocation2 + $0x5d0] sm:$0xff]
    %v1174 = vld [vmem:[#allocation2 + $0x638] sm:$0xff]
    %v1175 = vpack.c.bf16 %v1158, %v1158
    %s1176 = scalar_lea.vmem [#allocation8], 5
    %v1177 = vld [vmem:[%s1176] ss:$8 sm:$0x3]
    %v1179 = vlaneseq
    %v1180 = vshrl.u32 %v1179, 7
    %v1181 = vsub.s32 0, %v1180
    %v1182 = vrot.slane %v1177, %v1181
    %v1183 = vlaneseq
    %v1184 = vshrl.u32 %v1183, 7
    %v1185 = vsub.s32 1, %v1184
    %v1186 = vrot.slane %v1177, %v1185
    %v1205 = vunpack.c.l.b16 %v1159
    %v1206 = vunpack.c.h.b16 %v1159
    %v1207 = vunpack.c.l.b16 %v1160
    %v1208 = vunpack.c.h.b16 %v1160
    %v1209 = vunpack.c.l.b16 %v1161
    %v1210 = vunpack.c.h.b16 %v1161
    %v1211 = vunpack.c.l.b16 %v1162
    %v1212 = vunpack.c.h.b16 %v1162
    %v1213 = vunpack.c.l.b16 %v1163
    %v1214 = vunpack.c.h.b16 %v1163
    %v1215 = vunpack.c.l.b16 %v1164
    %v1216 = vunpack.c.h.b16 %v1164
    %v1217 = vunpack.c.l.b16 %v1165
    %v1218 = vunpack.c.h.b16 %v1165
    %v1219 = vunpack.c.l.b16 %v1166
    %v1220 = vunpack.c.h.b16 %v1166
    %v1221 = vunpack.c.l.b16 %v1167
    %v1222 = vunpack.c.h.b16 %v1167
    %v1223 = vunpack.c.l.b16 %v1168
    %v1224 = vunpack.c.h.b16 %v1168
    %v1225 = vunpack.c.l.b16 %v1169
    %v1226 = vunpack.c.h.b16 %v1169
    %v1227 = vunpack.c.l.b16 %v1170
    %v1228 = vunpack.c.h.b16 %v1170
    %v1229 = vunpack.c.l.b16 %v1171
    %v1230 = vunpack.c.h.b16 %v1171
    %v1231 = vunpack.c.l.b16 %v1172
    %v1232 = vunpack.c.h.b16 %v1172
    %v1233 = vunpack.c.l.b16 %v1173
    %v1234 = vunpack.c.h.b16 %v1173
    %v1235 = vunpack.c.l.b16 %v1174
    %v1236 = vunpack.c.h.b16 %v1174
    %v1237 = vpack.c.b16 %v1207, %v1205
    %v1238 = vpack.c.b16 %v1208, %v1206
    %v1239 = vpack.c.b16 %v1211, %v1209
    %v1240 = vpack.c.b16 %v1212, %v1210
    %v1241 = vpack.c.b16 %v1215, %v1213
    %v1242 = vpack.c.b16 %v1216, %v1214
    %v1243 = vpack.c.b16 %v1219, %v1217
    %v1244 = vpack.c.b16 %v1220, %v1218
    %v1245 = vpack.c.b16 %v1223, %v1221
    %v1246 = vpack.c.b16 %v1224, %v1222
    %v1247 = vpack.c.b16 %v1227, %v1225
    %v1248 = vpack.c.b16 %v1228, %v1226
    %v1249 = vpack.c.b16 %v1231, %v1229
    %v1250 = vpack.c.b16 %v1232, %v1230
    %v1251 = vpack.c.b16 %v1235, %v1233
    %v1252 = vpack.c.b16 %v1236, %v1234
    %1269 = vmatprep.subr.bf16.mxu0 %v1238
    %1270 = vmatpush1.bf16.msra.mxu0 %v1237
    %1271 = vmatprep.subr.bf16.mxu0 %v1240
    %1272 = vmatpush1.bf16.msra.mxu0 %v1239
    %1273 = vmatprep.subr.bf16.mxu0 %v1242
    %1274 = vmatpush1.bf16.msra.mxu0 %v1241
    %1275 = vmatprep.subr.bf16.mxu0 %v1244
    %1276 = vmatpush1.bf16.msra.mxu0 %v1243
    %1277 = vmatprep.subr.bf16.mxu0 %v1246
    %1278 = vmatpush1.bf16.msra.mxu0 %v1245
    %1279 = vmatprep.subr.bf16.mxu0 %v1248
    %1280 = vmatpush1.bf16.msra.mxu0 %v1247
    %1281 = vmatprep.subr.bf16.mxu0 %v1250
    %1282 = vmatpush1.bf16.msra.mxu0 %v1249
    %1283 = vmatprep.subr.bf16.mxu0 %v1252
    %1284 = vmatpush1.bf16.msra.mxu0 %v1251
    %1285 = vmatprep.subr.bf16.mxu0 0
    %1286 = vmatpush1.bf16.msra.mxu0 0
    %1287 = vmatprep.subr.bf16.mxu0 0
    %1288 = vmatpush1.bf16.msra.mxu0 0
    %1289 = vmatprep.subr.bf16.mxu0 0
    %1290 = vmatpush1.bf16.msra.mxu0 0
    %1291 = vmatprep.subr.bf16.mxu0 0
    %1292 = vmatpush1.bf16.msra.mxu0 0
    %1293 = vmatprep.subr.bf16.mxu0 0
    %1294 = vmatpush1.bf16.msra.mxu0 0
    %1295 = vmatprep.subr.bf16.mxu0 0
    %1296 = vmatpush1.bf16.msra.mxu0 0
    %1297 = vmatprep.subr.bf16.mxu0 0
    %1298 = vmatpush1.bf16.msra.mxu0 0
    %1299 = vmatprep.subr.bf16.mxu0 0
    %1300 = vmatpush1.bf16.msra.mxu0 0
    %1301 = vmatprep.mubr.bf16.mxu0 0
    %1302 = vmatmul.mubr.bf16.gmra.mrb[0].mxu0 %v1175
    %v1303 = vpop.f32.mrb[0].mxu0
    %v1304 = vadd.f32 %v1182, %v1303
    %v1305 = vpop.f32.mrb[0].mxu0
    %v1306 = vadd.f32 %v1186, %v1305
    %v1307 = vpop.f32.mrb[0].mxu0
    %v1308 = vpop.f32.mrb[0].mxu0
    %1309 = vdwg.mxu0
    %v1310 = vmax.f32 %v1304, 0.0
    %v1311 = vmax.f32 %v1306, 0.0
    %v1312 = vld [vmem:[#allocation5] sm:$0xff]
    %v1313 = vld [vmem:[#allocation5 + $0x8] sm:$0xf]
    %v1314 = vld [vmem:[#allocation5 + $0x2c] sm:$0xff]
    %v1315 = vld [vmem:[#allocation5 + $0x34] sm:$0xf]
    %v1316 = vld [vmem:[#allocation5 + $0x58] sm:$0xff]
    %v1317 = vld [vmem:[#allocation5 + $0x60] sm:$0xf]
    %v1318 = vld [vmem:[#allocation5 + $0x84] sm:$0xff]
    %v1319 = vld [vmem:[#allocation5 + $0x8c] sm:$0xf]
    %v1320 = vld [vmem:[#allocation5 + $0xb0] sm:$0xff]
    %v1321 = vld [vmem:[#allocation5 + $0xb8] sm:$0xf]
    %v1322 = vld [vmem:[#allocation5 + $0xdc] sm:$0xff]
    %v1323 = vld [vmem:[#allocation5 + $0xe4] sm:$0xf]
    %v1324 = vld [vmem:[#allocation5 + $0x108] sm:$0xff]
    %v1325 = vld [vmem:[#allocation5 + $0x110] sm:$0xf]
    %v1326 = vld [vmem:[#allocation5 + $0x134] sm:$0xff]
    %v1327 = vld [vmem:[#allocation5 + $0x13c] sm:$0xf]
    %v1328 = vld [vmem:[#allocation5 + $0x160] sm:$0xff]
    %v1329 = vld [vmem:[#allocation5 + $0x168] sm:$0xf]
    %v1330 = vld [vmem:[#allocation5 + $0x18c] sm:$0xff]
    %v1331 = vld [vmem:[#allocation5 + $0x194] sm:$0xf]
    %v1332 = vld [vmem:[#allocation5 + $0x1b8] sm:$0xff]
    %v1333 = vld [vmem:[#allocation5 + $0x1c0] sm:$0xf]
    %v1334 = vld [vmem:[#allocation5 + $0x1e4] sm:$0xff]
    %v1335 = vld [vmem:[#allocation5 + $0x1ec] sm:$0xf]
    %v1336 = vld [vmem:[#allocation5 + $0x210] sm:$0xff]
    %v1337 = vld [vmem:[#allocation5 + $0x218] sm:$0xf]
    %v1338 = vld [vmem:[#allocation5 + $0x23c] sm:$0xff]
    %v1339 = vld [vmem:[#allocation5 + $0x244] sm:$0xf]
    %v1340 = vld [vmem:[#allocation5 + $0x268] sm:$0xff]
    %v1341 = vld [vmem:[#allocation5 + $0x270] sm:$0xf]
    %v1342 = vld [vmem:[#allocation5 + $0x294] sm:$0xff]
    %v1343 = vld [vmem:[#allocation5 + $0x29c] sm:$0xf]
    %v1344 = vld [vmem:[#allocation5 + $0x2c0] sm:$0xff]
    %v1345 = vld [vmem:[#allocation5 + $0x2c8] sm:$0xf]
    %v1346 = vld [vmem:[#allocation5 + $0x2ec] sm:$0xff]
    %v1347 = vld [vmem:[#allocation5 + $0x2f4] sm:$0xf]
    %v1348 = vld [vmem:[#allocation5 + $0x318] sm:$0xff]
    %v1349 = vld [vmem:[#allocation5 + $0x320] sm:$0xf]
    %v1350 = vld [vmem:[#allocation5 + $0x344] sm:$0xff]
    %v1351 = vld [vmem:[#allocation5 + $0x34c] sm:$0xf]
    %v1352 = vld [vmem:[#allocation5 + $0x370] sm:$0xff]
    %v1353 = vld [vmem:[#allocation5 + $0x378] sm:$0xf]
    %v1354 = vld [vmem:[#allocation5 + $0x39c] sm:$0xff]
    %v1355 = vld [vmem:[#allocation5 + $0x3a4] sm:$0xf]
    %v1356 = vld [vmem:[#allocation5 + $0x3c8] sm:$0xff]
    %v1357 = vld [vmem:[#allocation5 + $0x3d0] sm:$0xf]
    %v1358 = vld [vmem:[#allocation5 + $0x3f4] sm:$0xff]
    %v1359 = vld [vmem:[#allocation5 + $0x3fc] sm:$0xf]
    %v1360 = vld [vmem:[#allocation5 + $0x420] sm:$0xff]
    %v1361 = vld [vmem:[#allocation5 + $0x428] sm:$0xf]
    %v1362 = vld [vmem:[#allocation5 + $0x44c] sm:$0xff]
    %v1363 = vld [vmem:[#allocation5 + $0x454] sm:$0xf]
    %v1364 = vld [vmem:[#allocation5 + $0x478] sm:$0xff]
    %v1365 = vld [vmem:[#allocation5 + $0x480] sm:$0xf]
    %v1366 = vld [vmem:[#allocation5 + $0x4a4] sm:$0xff]
    %v1367 = vld [vmem:[#allocation5 + $0x4ac] sm:$0xf]
    %v1368 = vld [vmem:[#allocation5 + $0x4d0] sm:$0xff]
    %v1369 = vld [vmem:[#allocation5 + $0x4d8] sm:$0xf]
    %v1370 = vld [vmem:[#allocation5 + $0x4fc] sm:$0xff]
    %v1371 = vld [vmem:[#allocation5 + $0x504] sm:$0xf]
    %v1372 = vld [vmem:[#allocation5 + $0x528] sm:$0xff]
    %v1373 = vld [vmem:[#allocation5 + $0x530] sm:$0xf]
    %v1374 = vld [vmem:[#allocation5 + $0x554] sm:$0xff]
    %v1375 = vld [vmem:[#allocation5 + $0x55c] sm:$0xf]
    %v1376 = vpack.c.bf16 %v1310, %v1310
    %v1377 = vpack.c.bf16 %v1311, %v1311
    %s1378 = scalar_lea.vmem [#allocation8], 6
    %v1379 = vld [vmem:[%s1378] ss:$8 sm:$0x7]
    %v1381 = vlaneseq
    %v1382 = vshrl.u32 %v1381, 7
    %v1383 = vsub.s32 0, %v1382
    %v1384 = vrot.slane %v1379, %v1383
    %v1385 = vlaneseq
    %v1386 = vshrl.u32 %v1385, 7
    %v1387 = vsub.s32 1, %v1386
    %v1388 = vrot.slane %v1379, %v1387
    %v1389 = vlaneseq
    %v1390 = vshrl.u32 %v1389, 7
    %v1391 = vsub.s32 2, %v1390
    %v1392 = vrot.slane %v1379, %v1391
    %v1460 = vunpack.c.l.b16 %v1312
    %v1461 = vunpack.c.h.b16 %v1312
    %v1462 = vunpack.c.l.b16 %v1313
    %v1463 = vunpack.c.l.b16 %v1314
    %v1464 = vunpack.c.h.b16 %v1314
    %v1465 = vunpack.c.l.b16 %v1315
    %v1466 = vunpack.c.l.b16 %v1316
    %v1467 = vunpack.c.h.b16 %v1316
    %v1468 = vunpack.c.l.b16 %v1317
    %v1469 = vunpack.c.l.b16 %v1318
    %v1470 = vunpack.c.h.b16 %v1318
    %v1471 = vunpack.c.l.b16 %v1319
    %v1472 = vunpack.c.l.b16 %v1320
    %v1473 = vunpack.c.h.b16 %v1320
    %v1474 = vunpack.c.l.b16 %v1321
    %v1475 = vunpack.c.l.b16 %v1322
    %v1476 = vunpack.c.h.b16 %v1322
    %v1477 = vunpack.c.l.b16 %v1323
    %v1478 = vunpack.c.l.b16 %v1324
    %v1479 = vunpack.c.h.b16 %v1324
    %v1480 = vunpack.c.l.b16 %v1325
    %v1481 = vunpack.c.l.b16 %v1326
    %v1482 = vunpack.c.h.b16 %v1326
    %v1483 = vunpack.c.l.b16 %v1327
    %v1484 = vunpack.c.l.b16 %v1328
    %v1485 = vunpack.c.h.b16 %v1328
    %v1486 = vunpack.c.l.b16 %v1329
    %v1487 = vunpack.c.l.b16 %v1330
    %v1488 = vunpack.c.h.b16 %v1330
    %v1489 = vunpack.c.l.b16 %v1331
    %v1490 = vunpack.c.l.b16 %v1332
    %v1491 = vunpack.c.h.b16 %v1332
    %v1492 = vunpack.c.l.b16 %v1333
    %v1493 = vunpack.c.l.b16 %v1334
    %v1494 = vunpack.c.h.b16 %v1334
    %v1495 = vunpack.c.l.b16 %v1335
    %v1496 = vunpack.c.l.b16 %v1336
    %v1497 = vunpack.c.h.b16 %v1336
    %v1498 = vunpack.c.l.b16 %v1337
    %v1499 = vunpack.c.l.b16 %v1338
    %v1500 = vunpack.c.h.b16 %v1338
    %v1501 = vunpack.c.l.b16 %v1339
    %v1502 = vunpack.c.l.b16 %v1340
    %v1503 = vunpack.c.h.b16 %v1340
    %v1504 = vunpack.c.l.b16 %v1341
    %v1505 = vunpack.c.l.b16 %v1342
    %v1506 = vunpack.c.h.b16 %v1342
    %v1507 = vunpack.c.l.b16 %v1343
    %v1508 = vunpack.c.l.b16 %v1344
    %v1509 = vunpack.c.h.b16 %v1344
    %v1510 = vunpack.c.l.b16 %v1345
    %v1511 = vunpack.c.l.b16 %v1346
    %v1512 = vunpack.c.h.b16 %v1346
    %v1513 = vunpack.c.l.b16 %v1347
    %v1514 = vunpack.c.l.b16 %v1348
    %v1515 = vunpack.c.h.b16 %v1348
    %v1516 = vunpack.c.l.b16 %v1349
    %v1517 = vunpack.c.l.b16 %v1350
    %v1518 = vunpack.c.h.b16 %v1350
    %v1519 = vunpack.c.l.b16 %v1351
    %v1520 = vunpack.c.l.b16 %v1352
    %v1521 = vunpack.c.h.b16 %v1352
    %v1522 = vunpack.c.l.b16 %v1353
    %v1523 = vunpack.c.l.b16 %v1354
    %v1524 = vunpack.c.h.b16 %v1354
    %v1525 = vunpack.c.l.b16 %v1355
    %v1526 = vunpack.c.l.b16 %v1356
    %v1527 = vunpack.c.h.b16 %v1356
    %v1528 = vunpack.c.l.b16 %v1357
    %v1529 = vunpack.c.l.b16 %v1358
    %v1530 = vunpack.c.h.b16 %v1358
    %v1531 = vunpack.c.l.b16 %v1359
    %v1532 = vunpack.c.l.b16 %v1360
    %v1533 = vunpack.c.h.b16 %v1360
    %v1534 = vunpack.c.l.b16 %v1361
    %v1535 = vunpack.c.l.b16 %v1362
    %v1536 = vunpack.c.h.b16 %v1362
    %v1537 = vunpack.c.l.b16 %v1363
    %v1538 = vunpack.c.l.b16 %v1364
    %v1539 = vunpack.c.h.b16 %v1364
    %v1540 = vunpack.c.l.b16 %v1365
    %v1541 = vunpack.c.l.b16 %v1366
    %v1542 = vunpack.c.h.b16 %v1366
    %v1543 = vunpack.c.l.b16 %v1367
    %v1544 = vunpack.c.l.b16 %v1368
    %v1545 = vunpack.c.h.b16 %v1368
    %v1546 = vunpack.c.l.b16 %v1369
    %v1547 = vunpack.c.l.b16 %v1370
    %v1548 = vunpack.c.h.b16 %v1370
    %v1549 = vunpack.c.l.b16 %v1371
    %v1550 = vunpack.c.l.b16 %v1372
    %v1551 = vunpack.c.h.b16 %v1372
    %v1552 = vunpack.c.l.b16 %v1373
    %v1553 = vunpack.c.l.b16 %v1374
    %v1554 = vunpack.c.h.b16 %v1374
    %v1555 = vunpack.c.l.b16 %v1375
    %v1556 = vpack.c.b16 %v1463, %v1460
    %v1557 = vpack.c.b16 %v1464, %v1461
    %v1558 = vpack.c.b16 %v1465, %v1462
    %v1559 = vpack.c.b16 %v1469, %v1466
    %v1560 = vpack.c.b16 %v1470, %v1467
    %v1561 = vpack.c.b16 %v1471, %v1468
    %v1562 = vpack.c.b16 %v1475, %v1472
    %v1563 = vpack.c.b16 %v1476, %v1473
    %v1564 = vpack.c.b16 %v1477, %v1474
    %v1565 = vpack.c.b16 %v1481, %v1478
    %v1566 = vpack.c.b16 %v1482, %v1479
    %v1567 = vpack.c.b16 %v1483, %v1480
    %v1568 = vpack.c.b16 %v1487, %v1484
    %v1569 = vpack.c.b16 %v1488, %v1485
    %v1570 = vpack.c.b16 %v1489, %v1486
    %v1571 = vpack.c.b16 %v1493, %v1490
    %v1572 = vpack.c.b16 %v1494, %v1491
    %v1573 = vpack.c.b16 %v1495, %v1492
    %v1574 = vpack.c.b16 %v1499, %v1496
    %v1575 = vpack.c.b16 %v1500, %v1497
    %v1576 = vpack.c.b16 %v1501, %v1498
    %v1577 = vpack.c.b16 %v1505, %v1502
    %v1578 = vpack.c.b16 %v1506, %v1503
    %v1579 = vpack.c.b16 %v1507, %v1504
    %v1580 = vpack.c.b16 %v1511, %v1508
    %v1581 = vpack.c.b16 %v1512, %v1509
    %v1582 = vpack.c.b16 %v1513, %v1510
    %v1583 = vpack.c.b16 %v1517, %v1514
    %v1584 = vpack.c.b16 %v1518, %v1515
    %v1585 = vpack.c.b16 %v1519, %v1516
    %v1586 = vpack.c.b16 %v1523, %v1520
    %v1587 = vpack.c.b16 %v1524, %v1521
    %v1588 = vpack.c.b16 %v1525, %v1522
    %v1589 = vpack.c.b16 %v1529, %v1526
    %v1590 = vpack.c.b16 %v1530, %v1527
    %v1591 = vpack.c.b16 %v1531, %v1528
    %v1592 = vpack.c.b16 %v1535, %v1532
    %v1593 = vpack.c.b16 %v1536, %v1533
    %v1594 = vpack.c.b16 %v1537, %v1534
    %v1595 = vpack.c.b16 %v1541, %v1538
    %v1596 = vpack.c.b16 %v1542, %v1539
    %v1597 = vpack.c.b16 %v1543, %v1540
    %v1598 = vpack.c.b16 %v1547, %v1544
    %v1599 = vpack.c.b16 %v1548, %v1545
    %v1600 = vpack.c.b16 %v1549, %v1546
    %v1601 = vpack.c.b16 %v1553, %v1550
    %v1602 = vpack.c.b16 %v1554, %v1551
    %v1603 = vpack.c.b16 %v1555, %v1552
    %1652 = vmatprep.subr.bf16.mxu0 %v1557
    %1653 = vmatpush1.bf16.msra.mxu0 %v1556
    %1654 = vmatprep.subr.bf16.mxu0 %v1560
    %1655 = vmatpush1.bf16.msra.mxu0 %v1559
    %1656 = vmatprep.subr.bf16.mxu0 %v1563
    %1657 = vmatpush1.bf16.msra.mxu0 %v1562
    %1658 = vmatprep.subr.bf16.mxu0 %v1566
    %1659 = vmatpush1.bf16.msra.mxu0 %v1565
    %1660 = vmatprep.subr.bf16.mxu0 %v1569
    %1661 = vmatpush1.bf16.msra.mxu0 %v1568
    %1662 = vmatprep.subr.bf16.mxu0 %v1572
    %1663 = vmatpush1.bf16.msra.mxu0 %v1571
    %1664 = vmatprep.subr.bf16.mxu0 %v1575
    %1665 = vmatpush1.bf16.msra.mxu0 %v1574
    %1666 = vmatprep.subr.bf16.mxu0 %v1578
    %1667 = vmatpush1.bf16.msra.mxu0 %v1577
    %1668 = vmatprep.subr.bf16.mxu0 %v1581
    %1669 = vmatpush1.bf16.msra.mxu0 %v1580
    %1670 = vmatprep.subr.bf16.mxu0 %v1584
    %1671 = vmatpush1.bf16.msra.mxu0 %v1583
    %1672 = vmatprep.subr.bf16.mxu0 %v1587
    %1673 = vmatpush1.bf16.msra.mxu0 %v1586
    %1674 = vmatprep.subr.bf16.mxu0 %v1590
    %1675 = vmatpush1.bf16.msra.mxu0 %v1589
    %1676 = vmatprep.subr.bf16.mxu0 %v1593
    %1677 = vmatpush1.bf16.msra.mxu0 %v1592
    %1678 = vmatprep.subr.bf16.mxu0 %v1596
    %1679 = vmatpush1.bf16.msra.mxu0 %v1595
    %1680 = vmatprep.subr.bf16.mxu0 %v1599
    %1681 = vmatpush1.bf16.msra.mxu0 %v1598
    %1682 = vmatprep.subr.bf16.mxu0 %v1602
    %1683 = vmatpush1.bf16.msra.mxu0 %v1601
    %1684 = vmatprep.mubr.bf16.mxu0 %v1377
    %1685 = vmatmul.mubr.bf16.gmra.mrb[0].mxu0 %v1376
    %v1686 = vpop.f32.mrb[0].mxu0
    %v1687 = vadd.f32 %v1384, %v1686
    %v1688 = vpop.f32.mrb[0].mxu0
    %v1689 = vadd.f32 %v1388, %v1688
    %v1690 = vpop.f32.mrb[0].mxu0
    %v1691 = vpop.f32.mrb[0].mxu0
    %1692 = vdwg.mxu0
    %1693 = vmatprep.subr.bf16.mxu0 0
    %1694 = vmatpush1.bf16.msra.mxu0 %v1558
    %1695 = vmatprep.subr.bf16.mxu0 0
    %1696 = vmatpush1.bf16.msra.mxu0 %v1561
    %1697 = vmatprep.subr.bf16.mxu0 0
    %1698 = vmatpush1.bf16.msra.mxu0 %v1564
    %1699 = vmatprep.subr.bf16.mxu0 0
    %1700 = vmatpush1.bf16.msra.mxu0 %v1567
    %1701 = vmatprep.subr.bf16.mxu0 0
    %1702 = vmatpush1.bf16.msra.mxu0 %v1570
    %1703 = vmatprep.subr.bf16.mxu0 0
    %1704 = vmatpush1.bf16.msra.mxu0 %v1573
    %1705 = vmatprep.subr.bf16.mxu0 0
    %1706 = vmatpush1.bf16.msra.mxu0 %v1576
    %1707 = vmatprep.subr.bf16.mxu0 0
    %1708 = vmatpush1.bf16.msra.mxu0 %v1579
    %1709 = vmatprep.subr.bf16.mxu0 0
    %1710 = vmatpush1.bf16.msra.mxu0 %v1582
    %1711 = vmatprep.subr.bf16.mxu0 0
    %1712 = vmatpush1.bf16.msra.mxu0 %v1585
    %1713 = vmatprep.subr.bf16.mxu0 0
    %1714 = vmatpush1.bf16.msra.mxu0 %v1588
    %1715 = vmatprep.subr.bf16.mxu0 0
    %1716 = vmatpush1.bf16.msra.mxu0 %v1591
    %1717 = vmatprep.subr.bf16.mxu0 0
    %1718 = vmatpush1.bf16.msra.mxu0 %v1594
    %1719 = vmatprep.subr.bf16.mxu0 0
    %1720 = vmatpush1.bf16.msra.mxu0 %v1597
    %1721 = vmatprep.subr.bf16.mxu0 0
    %1722 = vmatpush1.bf16.msra.mxu0 %v1600
    %1723 = vmatprep.subr.bf16.mxu0 0
    %1724 = vmatpush1.bf16.msra.mxu0 %v1603
    %1725 = vmatprep.mubr.bf16.mxu0 %v1377
    %1726 = vmatmul.mubr.bf16.gmra.mrb[0].mxu0 %v1376
    %v1727 = vpop.f32.mrb[0].mxu0
    %v1728 = vadd.f32 %v1392, %v1727
    %v1729 = vpop.f32.mrb[0].mxu0
    %v1730 = vpop.f32.mrb[0].mxu0
    %v1731 = vpop.f32.mrb[0].mxu0
    %1732 = vdwg.mxu0
    %v1733 = vmax.f32 %v1687, 0.0
    %v1734 = vmax.f32 %v1689, 0.0
    %v1735 = vmax.f32 %v1728, 0.0
    %v1736 = vld [vmem:[#allocation7 + $0x4] sm:$0xf]
    %v1737 = vld [vmem:[#allocation7 + $0x14] sm:$0xf]
    %v1738 = vld [vmem:[#allocation7 + $0x24] sm:$0xf]
    %v1739 = vld [vmem:[#allocation7 + $0x34] sm:$0xf]
    %v1740 = vld [vmem:[#allocation7 + $0x44] sm:$0xf]
    %v1741 = vld [vmem:[#allocation7 + $0x54] sm:$0xf]
    %v1742 = vld [vmem:[#allocation7 + $0x64] sm:$0xf]
    %v1743 = vld [vmem:[#allocation7 + $0x74] sm:$0xf]
    %v1744 = vld [vmem:[#allocation7 + $0x84] sm:$0xf]
    %v1745 = vld [vmem:[#allocation7 + $0x94] sm:$0xf]
    %v1746 = vld [vmem:[#allocation7 + $0xa4] sm:$0xf]
    %v1747 = vld [vmem:[#allocation7 + $0xb4] sm:$0xf]
    %v1748 = vld [vmem:[#allocation7 + $0xc4] sm:$0xf]
    %v1749 = vld [vmem:[#allocation7 + $0xd4] sm:$0xf]
    %v1750 = vld [vmem:[#allocation7 + $0xe4] sm:$0xf]
    %v1751 = vld [vmem:[#allocation7 + $0xf4] sm:$0xf]
    %v1752 = vld [vmem:[#allocation7 + $0x104] sm:$0xf]
    %v1753 = vld [vmem:[#allocation7 + $0x114] sm:$0xf]
    %v1754 = vld [vmem:[#allocation7 + $0x124] sm:$0xf]
    %v1755 = vld [vmem:[#allocation7 + $0x134] sm:$0xf]
    %v1756 = vld [vmem:[#allocation7 + $0x144] sm:$0xf]
    %v1757 = vld [vmem:[#allocation7 + $0x154] sm:$0xf]
    %v1758 = vld [vmem:[#allocation7 + $0x164] sm:$0xf]
    %v1759 = vld [vmem:[#allocation7 + $0x174] sm:$0xf]
    %v1760 = vld [vmem:[#allocation7 + $0x184] sm:$0xf]
    %v1761 = vld [vmem:[#allocation7 + $0x194] sm:$0xf]
    %v1762 = vld [vmem:[#allocation7 + $0x1a4] sm:$0xf]
    %v1763 = vld [vmem:[#allocation7 + $0x1b4] sm:$0xf]
    %v1764 = vld [vmem:[#allocation7 + $0x1c4] sm:$0xf]
    %v1765 = vld [vmem:[#allocation7 + $0x1d4] sm:$0xf]
    %v1766 = vld [vmem:[#allocation7 + $0x1e4] sm:$0xf]
    %v1767 = vld [vmem:[#allocation7 + $0x1f4] sm:$0xf]
    %v1768 = vld [vmem:[#allocation7 + $0x204] sm:$0xf]
    %v1769 = vld [vmem:[#allocation7 + $0x214] sm:$0xf]
    %v1770 = vld [vmem:[#allocation7 + $0x224] sm:$0xf]
    %v1771 = vld [vmem:[#allocation7 + $0x234] sm:$0xf]
    %v1772 = vld [vmem:[#allocation7 + $0x244] sm:$0xf]
    %v1773 = vld [vmem:[#allocation7 + $0x254] sm:$0xf]
    %v1774 = vld [vmem:[#allocation7 + $0x264] sm:$0xf]
    %v1775 = vld [vmem:[#allocation7 + $0x274] sm:$0xf]
    %v1776 = vld [vmem:[#allocation7 + $0x284] sm:$0xf]
    %v1777 = vld [vmem:[#allocation7 + $0x294] sm:$0xf]
    %v1778 = vld [vmem:[#allocation7 + $0x2a4] sm:$0xf]
    %v1779 = vld [vmem:[#allocation7 + $0x2b4] sm:$0xf]
    %v1780 = vld [vmem:[#allocation7 + $0x2c4] sm:$0xf]
    %v1781 = vld [vmem:[#allocation7 + $0x2d4] sm:$0xf]
    %v1782 = vld [vmem:[#allocation7 + $0x2e4] sm:$0xf]
    %v1783 = vld [vmem:[#allocation7 + $0x2f4] sm:$0xf]
    %v1784 = vpack.c.bf16 %v1733, %v1733
    %v1785 = vpack.c.bf16 %v1734, %v1734
    %v1786 = vpack.c.bf16 %v1735, %v1735
    %v1787 = vld [vmem:[#allocation8 + $0x7] ss:$0 sm:$0xff]
    %v1836 = vunpack.c.l.b16 %v1736
    %v1837 = vunpack.c.l.b16 %v1737
    %v1838 = vunpack.c.l.b16 %v1738
    %v1839 = vunpack.c.l.b16 %v1739
    %v1840 = vunpack.c.l.b16 %v1740
    %v1841 = vunpack.c.l.b16 %v1741
    %v1842 = vunpack.c.l.b16 %v1742
    %v1843 = vunpack.c.l.b16 %v1743
    %v1844 = vunpack.c.l.b16 %v1744
    %v1845 = vunpack.c.l.b16 %v1745
    %v1846 = vunpack.c.l.b16 %v1746
    %v1847 = vunpack.c.l.b16 %v1747
    %v1848 = vunpack.c.l.b16 %v1748
    %v1849 = vunpack.c.l.b16 %v1749
    %v1850 = vunpack.c.l.b16 %v1750
    %v1851 = vunpack.c.l.b16 %v1751
    %v1852 = vunpack.c.l.b16 %v1752
    %v1853 = vunpack.c.l.b16 %v1753
    %v1854 = vunpack.c.l.b16 %v1754
    %v1855 = vunpack.c.l.b16 %v1755
    %v1856 = vunpack.c.l.b16 %v1756
    %v1857 = vunpack.c.l.b16 %v1757
    %v1858 = vunpack.c.l.b16 %v1758
    %v1859 = vunpack.c.l.b16 %v1759
    %v1860 = vunpack.c.l.b16 %v1760
    %v1861 = vunpack.c.l.b16 %v1761
    %v1862 = vunpack.c.l.b16 %v1762
    %v1863 = vunpack.c.l.b16 %v1763
    %v1864 = vunpack.c.l.b16 %v1764
    %v1865 = vunpack.c.l.b16 %v1765
    %v1866 = vunpack.c.l.b16 %v1766
    %v1867 = vunpack.c.l.b16 %v1767
    %v1868 = vunpack.c.l.b16 %v1768
    %v1869 = vunpack.c.l.b16 %v1769
    %v1870 = vunpack.c.l.b16 %v1770
    %v1871 = vunpack.c.l.b16 %v1771
    %v1872 = vunpack.c.l.b16 %v1772
    %v1873 = vunpack.c.l.b16 %v1773
    %v1874 = vunpack.c.l.b16 %v1774
    %v1875 = vunpack.c.l.b16 %v1775
    %v1876 = vunpack.c.l.b16 %v1776
    %v1877 = vunpack.c.l.b16 %v1777
    %v1878 = vunpack.c.l.b16 %v1778
    %v1879 = vunpack.c.l.b16 %v1779
    %v1880 = vunpack.c.l.b16 %v1780
    %v1881 = vunpack.c.l.b16 %v1781
    %v1882 = vunpack.c.l.b16 %v1782
    %v1883 = vunpack.c.l.b16 %v1783
    %v1884 = vpack.c.b16 %v1837, %v1836
    %v1885 = vpack.c.b16 %v1839, %v1838
    %v1886 = vpack.c.b16 %v1841, %v1840
    %v1887 = vpack.c.b16 %v1843, %v1842
    %v1888 = vpack.c.b16 %v1845, %v1844
    %v1889 = vpack.c.b16 %v1847, %v1846
    %v1890 = vpack.c.b16 %v1849, %v1848
    %v1891 = vpack.c.b16 %v1851, %v1850
    %v1892 = vpack.c.b16 %v1853, %v1852
    %v1893 = vpack.c.b16 %v1855, %v1854
    %v1894 = vpack.c.b16 %v1857, %v1856
    %v1895 = vpack.c.b16 %v1859, %v1858
    %v1896 = vpack.c.b16 %v1861, %v1860
    %v1897 = vpack.c.b16 %v1863, %v1862
    %v1898 = vpack.c.b16 %v1865, %v1864
    %v1899 = vpack.c.b16 %v1867, %v1866
    %v1900 = vpack.c.b16 %v1869, %v1868
    %v1901 = vpack.c.b16 %v1871, %v1870
    %v1902 = vpack.c.b16 %v1873, %v1872
    %v1903 = vpack.c.b16 %v1875, %v1874
    %v1904 = vpack.c.b16 %v1877, %v1876
    %v1905 = vpack.c.b16 %v1879, %v1878
    %v1906 = vpack.c.b16 %v1881, %v1880
    %v1907 = vpack.c.b16 %v1883, %v1882
    %1932 = vmatprep.subr.bf16.mxu0 0
    %1933 = vmatpush1.bf16.msra.mxu0 %v1884
    %1934 = vmatprep.subr.bf16.mxu0 0
    %1935 = vmatpush1.bf16.msra.mxu0 %v1885
    %1936 = vmatprep.subr.bf16.mxu0 0
    %1937 = vmatpush1.bf16.msra.mxu0 %v1886
    %1938 = vmatprep.subr.bf16.mxu0 0
    %1939 = vmatpush1.bf16.msra.mxu0 %v1887
    %1940 = vmatprep.subr.bf16.mxu0 0
    %1941 = vmatpush1.bf16.msra.mxu0 %v1888
    %1942 = vmatprep.subr.bf16.mxu0 0
    %1943 = vmatpush1.bf16.msra.mxu0 %v1889
    %1944 = vmatprep.subr.bf16.mxu0 0
    %1945 = vmatpush1.bf16.msra.mxu0 %v1890
    %1946 = vmatprep.subr.bf16.mxu0 0
    %1947 = vmatpush1.bf16.msra.mxu0 %v1891
    %1948 = vmatprep.subr.bf16.mxu0 0
    %1949 = vmatpush1.bf16.msra.mxu0 %v1892
    %1950 = vmatprep.subr.bf16.mxu0 0
    %1951 = vmatpush1.bf16.msra.mxu0 %v1893
    %1952 = vmatprep.subr.bf16.mxu0 0
    %1953 = vmatpush1.bf16.msra.mxu0 %v1894
    %1954 = vmatprep.subr.bf16.mxu0 0
    %1955 = vmatpush1.bf16.msra.mxu0 %v1895
    %1956 = vmatprep.subr.bf16.mxu0 0
    %1957 = vmatpush1.bf16.msra.mxu0 %v1896
    %1958 = vmatprep.subr.bf16.mxu0 0
    %1959 = vmatpush1.bf16.msra.mxu0 %v1897
    %1960 = vmatprep.subr.bf16.mxu0 0
    %1961 = vmatpush1.bf16.msra.mxu0 %v1898
    %1962 = vmatprep.subr.bf16.mxu0 0
    %1963 = vmatpush1.bf16.msra.mxu0 %v1899
    %1964 = vmatprep.mubr.bf16.mxu0 %v1785
    %1965 = vmatmul.mubr.bf16.gmra.mrb[0].mxu0 %v1784
    %v1966 = vpop.f32.mrb[0].mxu0
    %v1967 = vadd.f32 %v1787, %v1966
    %v1968 = vpop.f32.mrb[0].mxu0
    %v1969 = vpop.f32.mrb[0].mxu0
    %v1970 = vpop.f32.mrb[0].mxu0
    %1971 = vdwg.mxu0
    %1972 = vmatprep.subr.bf16.mxu0 0
    %1973 = vmatpush1.bf16.msra.mxu0 %v1900
    %1974 = vmatprep.subr.bf16.mxu0 0
    %1975 = vmatpush1.bf16.msra.mxu0 %v1901
    %1976 = vmatprep.subr.bf16.mxu0 0
    %1977 = vmatpush1.bf16.msra.mxu0 %v1902
    %1978 = vmatprep.subr.bf16.mxu0 0
    %1979 = vmatpush1.bf16.msra.mxu0 %v1903
    %1980 = vmatprep.subr.bf16.mxu0 0
    %1981 = vmatpush1.bf16.msra.mxu0 %v1904
    %1982 = vmatprep.subr.bf16.mxu0 0
    %1983 = vmatpush1.bf16.msra.mxu0 %v1905
    %1984 = vmatprep.subr.bf16.mxu0 0
    %1985 = vmatpush1.bf16.msra.mxu0 %v1906
    %1986 = vmatprep.subr.bf16.mxu0 0
    %1987 = vmatpush1.bf16.msra.mxu0 %v1907
    %1988 = vmatprep.subr.bf16.mxu0 0
    %1989 = vmatpush1.bf16.msra.mxu0 0
    %1990 = vmatprep.subr.bf16.mxu0 0
    %1991 = vmatpush1.bf16.msra.mxu0 0
    %1992 = vmatprep.subr.bf16.mxu0 0
    %1993 = vmatpush1.bf16.msra.mxu0 0
    %1994 = vmatprep.subr.bf16.mxu0 0
    %1995 = vmatpush1.bf16.msra.mxu0 0
    %1996 = vmatprep.subr.bf16.mxu0 0
    %1997 = vmatpush1.bf16.msra.mxu0 0
    %1998 = vmatprep.subr.bf16.mxu0 0
    %1999 = vmatpush1.bf16.msra.mxu0 0
    %2000 = vmatprep.subr.bf16.mxu0 0
    %2001 = vmatpush1.bf16.msra.mxu0 0
    %2002 = vmatprep.subr.bf16.mxu0 0
    %2003 = vmatpush1.bf16.msra.mxu0 0
    %2004 = vmatprep.mubr.bf16.mxu0 0
    %2005 = vmatmul.mubr.bf16.gmra.mrb[0].mxu0 %v1786
    %v2006 = vpop.f32.mrb[0].mxu0
    %v2007 = vadd.f32 %v1967, %v2006
    %v2008 = vpop.f32.mrb[0].mxu0
    %v2009 = vpop.f32.mrb[0].mxu0
    %v2010 = vpop.f32.mrb[0].mxu0
    %2011 = vdwg.mxu0
    %v2012 = vmax.f32 %v2007, 0.0
    %v2013 = vld [vmem:[#allocation2 + $0x28] sm:$0xf]
    %v2014 = vld [vmem:[#allocation2 + $0x90] sm:$0xf]
    %v2015 = vld [vmem:[#allocation2 + $0xf8] sm:$0xf]
    %v2016 = vld [vmem:[#allocation2 + $0x160] sm:$0xf]
    %v2017 = vld [vmem:[#allocation2 + $0x1c8] sm:$0xf]
    %v2018 = vld [vmem:[#allocation2 + $0x230] sm:$0xf]
    %v2019 = vld [vmem:[#allocation2 + $0x298] sm:$0xf]
    %v2020 = vld [vmem:[#allocation2 + $0x300] sm:$0xf]
    %v2021 = vld [vmem:[#allocation2 + $0x368] sm:$0xf]
    %v2022 = vld [vmem:[#allocation2 + $0x3d0] sm:$0xf]
    %v2023 = vld [vmem:[#allocation2 + $0x438] sm:$0xf]
    %v2024 = vld [vmem:[#allocation2 + $0x4a0] sm:$0xf]
    %v2025 = vld [vmem:[#allocation2 + $0x508] sm:$0xf]
    %v2026 = vld [vmem:[#allocation2 + $0x570] sm:$0xf]
    %v2027 = vld [vmem:[#allocation2 + $0x5d8] sm:$0xf]
    %v2028 = vld [vmem:[#allocation2 + $0x640] sm:$0xf]
    %v2029 = vpack.c.bf16 %v2012, %v2012
    %v2030 = vld [vmem:[#allocation8 + $0x18] ss:$0 sm:$0xff]
    %v2047 = vunpack.c.l.b16 %v2013
    %v2048 = vunpack.c.l.b16 %v2014
    %v2049 = vunpack.c.l.b16 %v2015
    %v2050 = vunpack.c.l.b16 %v2016
    %v2051 = vunpack.c.l.b16 %v2017
    %v2052 = vunpack.c.l.b16 %v2018
    %v2053 = vunpack.c.l.b16 %v2019
    %v2054 = vunpack.c.l.b16 %v2020
    %v2055 = vunpack.c.l.b16 %v2021
    %v2056 = vunpack.c.l.b16 %v2022
    %v2057 = vunpack.c.l.b16 %v2023
    %v2058 = vunpack.c.l.b16 %v2024
    %v2059 = vunpack.c.l.b16 %v2025
    %v2060 = vunpack.c.l.b16 %v2026
    %v2061 = vunpack.c.l.b16 %v2027
    %v2062 = vunpack.c.l.b16 %v2028
    %v2063 = vpack.c.b16 %v2048, %v2047
    %v2064 = vpack.c.b16 %v2050, %v2049
    %v2065 = vpack.c.b16 %v2052, %v2051
    %v2066 = vpack.c.b16 %v2054, %v2053
    %v2067 = vpack.c.b16 %v2056, %v2055
    %v2068 = vpack.c.b16 %v2058, %v2057
    %v2069 = vpack.c.b16 %v2060, %v2059
    %v2070 = vpack.c.b16 %v2062, %v2061
    %2079 = vmatprep.subr.bf16.mxu0 0
    %2080 = vmatpush1.bf16.msra.mxu0 %v2063
    %2081 = vmatprep.subr.bf16.mxu0 0
    %2082 = vmatpush1.bf16.msra.mxu0 %v2064
    %2083 = vmatprep.subr.bf16.mxu0 0
    %2084 = vmatpush1.bf16.msra.mxu0 %v2065
    %2085 = vmatprep.subr.bf16.mxu0 0
    %2086 = vmatpush1.bf16.msra.mxu0 %v2066
    %2087 = vmatprep.subr.bf16.mxu0 0
    %2088 = vmatpush1.bf16.msra.mxu0 %v2067
    %2089 = vmatprep.subr.bf16.mxu0 0
    %2090 = vmatpush1.bf16.msra.mxu0 %v2068
    %2091 = vmatprep.subr.bf16.mxu0 0
    %2092 = vmatpush1.bf16.msra.mxu0 %v2069
    %2093 = vmatprep.subr.bf16.mxu0 0
    %2094 = vmatpush1.bf16.msra.mxu0 %v2070
    %2095 = vmatprep.subr.bf16.mxu0 0
    %2096 = vmatpush1.bf16.msra.mxu0 0
    %2097 = vmatprep.subr.bf16.mxu0 0
    %2098 = vmatpush1.bf16.msra.mxu0 0
    %2099 = vmatprep.subr.bf16.mxu0 0
    %2100 = vmatpush1.bf16.msra.mxu0 0
    %2101 = vmatprep.subr.bf16.mxu0 0
    %2102 = vmatpush1.bf16.msra.mxu0 0
    %2103 = vmatprep.subr.bf16.mxu0 0
    %2104 = vmatpush1.bf16.msra.mxu0 0
    %2105 = vmatprep.subr.bf16.mxu0 0
    %2106 = vmatpush1.bf16.msra.mxu0 0
    %2107 = vmatprep.subr.bf16.mxu0 0
    %2108 = vmatpush1.bf16.msra.mxu0 0
    %2109 = vmatprep.subr.bf16.mxu0 0
    %2110 = vmatpush1.bf16.msra.mxu0 0
    %2111 = vmatprep.mubr.bf16.mxu0 0
    %2112 = vmatmul.mubr.bf16.gmra.mrb[0].mxu0 %v2029
    %v2113 = vpop.f32.mrb[0].mxu0
    %v2114 = vadd.f32 %v2030, %v2113
    %v2115 = vpop.f32.mrb[0].mxu0
    %v2116 = vpop.f32.mrb[0].mxu0
    %v2117 = vpop.f32.mrb[0].mxu0
    %2118 = vdwg.mxu0
    %v2119 = vld [vmem:[#allocation2 + $0x2c] sm:$0xf]
    %v2120 = vld [vmem:[#allocation2 + $0x94] sm:$0xf]
    %v2121 = vld [vmem:[#allocation2 + $0xfc] sm:$0xf]
    %v2122 = vld [vmem:[#allocation2 + $0x164] sm:$0xf]
    %v2123 = vld [vmem:[#allocation2 + $0x1cc] sm:$0xf]
    %v2124 = vld [vmem:[#allocation2 + $0x234] sm:$0xf]
    %v2125 = vld [vmem:[#allocation2 + $0x29c] sm:$0xf]
    %v2126 = vld [vmem:[#allocation2 + $0x304] sm:$0xf]
    %v2127 = vld [vmem:[#allocation2 + $0x36c] sm:$0xf]
    %v2128 = vld [vmem:[#allocation2 + $0x3d4] sm:$0xf]
    %v2129 = vld [vmem:[#allocation2 + $0x43c] sm:$0xf]
    %v2130 = vld [vmem:[#allocation2 + $0x4a4] sm:$0xf]
    %v2131 = vld [vmem:[#allocation2 + $0x50c] sm:$0xf]
    %v2132 = vld [vmem:[#allocation2 + $0x574] sm:$0xf]
    %v2133 = vld [vmem:[#allocation2 + $0x5dc] sm:$0xf]
    %v2134 = vld [vmem:[#allocation2 + $0x644] sm:$0xf]
    %v2135 = vpack.c.bf16 %v2114, %v2114
    %v2152 = vunpack.c.l.b16 %v2119
    %v2153 = vunpack.c.l.b16 %v2120
    %v2154 = vunpack.c.l.b16 %v2121
    %v2155 = vunpack.c.l.b16 %v2122
    %v2156 = vunpack.c.l.b16 %v2123
    %v2157 = vunpack.c.l.b16 %v2124
    %v2158 = vunpack.c.l.b16 %v2125
    %v2159 = vunpack.c.l.b16 %v2126
    %v2160 = vunpack.c.l.b16 %v2127
    %v2161 = vunpack.c.l.b16 %v2128
    %v2162 = vunpack.c.l.b16 %v2129
    %v2163 = vunpack.c.l.b16 %v2130
    %v2164 = vunpack.c.l.b16 %v2131
    %v2165 = vunpack.c.l.b16 %v2132
    %v2166 = vunpack.c.l.b16 %v2133
    %v2167 = vunpack.c.l.b16 %v2134
    %v2168 = vpack.c.b16 %v2153, %v2152
    %v2169 = vpack.c.b16 %v2155, %v2154
    %v2170 = vpack.c.b16 %v2157, %v2156
    %v2171 = vpack.c.b16 %v2159, %v2158
    %v2172 = vpack.c.b16 %v2161, %v2160
    %v2173 = vpack.c.b16 %v2163, %v2162
    %v2174 = vpack.c.b16 %v2165, %v2164
    %v2175 = vpack.c.b16 %v2167, %v2166
    %2184 = vmatprep.subr.bf16.mxu0 0
    %2185 = vmatpush1.bf16.msra.mxu0 %v2168
    %2186 = vmatprep.subr.bf16.mxu0 0
    %2187 = vmatpush1.bf16.msra.mxu0 %v2169
    %2188 = vmatprep.subr.bf16.mxu0 0
    %2189 = vmatpush1.bf16.msra.mxu0 %v2170
    %2190 = vmatprep.subr.bf16.mxu0 0
    %2191 = vmatpush1.bf16.msra.mxu0 %v2171
    %2192 = vmatprep.subr.bf16.mxu0 0
    %2193 = vmatpush1.bf16.msra.mxu0 %v2172
    %2194 = vmatprep.subr.bf16.mxu0 0
    %2195 = vmatpush1.bf16.msra.mxu0 %v2173
    %2196 = vmatprep.subr.bf16.mxu0 0
    %2197 = vmatpush1.bf16.msra.mxu0 %v2174
    %2198 = vmatprep.subr.bf16.mxu0 0
    %2199 = vmatpush1.bf16.msra.mxu0 %v2175
    %2200 = vmatprep.subr.bf16.mxu0 0
    %2201 = vmatpush1.bf16.msra.mxu0 0
    %2202 = vmatprep.subr.bf16.mxu0 0
    %2203 = vmatpush1.bf16.msra.mxu0 0
    %2204 = vmatprep.subr.bf16.mxu0 0
    %2205 = vmatpush1.bf16.msra.mxu0 0
    %2206 = vmatprep.subr.bf16.mxu0 0
    %2207 = vmatpush1.bf16.msra.mxu0 0
    %2208 = vmatprep.subr.bf16.mxu0 0
    %2209 = vmatpush1.bf16.msra.mxu0 0
    %2210 = vmatprep.subr.bf16.mxu0 0
    %2211 = vmatpush1.bf16.msra.mxu0 0
    %2212 = vmatprep.subr.bf16.mxu0 0
    %2213 = vmatpush1.bf16.msra.mxu0 0
    %2214 = vmatprep.subr.bf16.mxu0 0
    %2215 = vmatpush1.bf16.msra.mxu0 0
    %2216 = vmatprep.mubr.bf16.mxu0 0
    %2217 = vmatmul.mubr.bf16.gmra.mrb[0].mxu0 %v2135
    %v2218 = vpop.f32.mrb[0].mxu0
    %v2219 = vadd.f32 0.0, %v2218
    %v2220 = vpop.f32.mrb[0].mxu0
    %v2221 = vpop.f32.mrb[0].mxu0
    %v2222 = vpop.f32.mrb[0].mxu0
    %2223 = vdwg.mxu0
    %v2224 = vmax.f32 %v2219, 0.0
    %v2225 = vld [vmem:[#allocation2 + $0x30] sm:$0xf]
    %v2226 = vld [vmem:[#allocation2 + $0x98] sm:$0xf]
    %v2227 = vld [vmem:[#allocation2 + $0x100] sm:$0xf]
    %v2228 = vld [vmem:[#allocation2 + $0x168] sm:$0xf]
    %v2229 = vld [vmem:[#allocation2 + $0x1d0] sm:$0xf]
    %v2230 = vld [vmem:[#allocation2 + $0x238] sm:$0xf]
    %v2231 = vld [vmem:[#allocation2 + $0x2a0] sm:$0xf]
    %v2232 = vld [vmem:[#allocation2 + $0x308] sm:$0xf]
    %v2233 = vld [vmem:[#allocation2 + $0x370] sm:$0xf]
    %v2234 = vld [vmem:[#allocation2 + $0x3d8] sm:$0xf]
    %v2235 = vld [vmem:[#allocation2 + $0x440] sm:$0xf]
    %v2236 = vld [vmem:[#allocation2 + $0x4a8] sm:$0xf]
    %v2237 = vld [vmem:[#allocation2 + $0x510] sm:$0xf]
    %v2238 = vld [vmem:[#allocation2 + $0x578] sm:$0xf]
    %v2239 = vld [vmem:[#allocation2 + $0x5e0] sm:$0xf]
    %v2240 = vld [vmem:[#allocation2 + $0x648] sm:$0xf]
    %v2241 = vpack.c.bf16 %v2224, %v2224
    %v2258 = vunpack.c.l.b16 %v2225
    %v2259 = vunpack.c.l.b16 %v2226
    %v2260 = vunpack.c.l.b16 %v2227
    %v2261 = vunpack.c.l.b16 %v2228
    %v2262 = vunpack.c.l.b16 %v2229
    %v2263 = vunpack.c.l.b16 %v2230
    %v2264 = vunpack.c.l.b16 %v2231
    %v2265 = vunpack.c.l.b16 %v2232
    %v2266 = vunpack.c.l.b16 %v2233
    %v2267 = vunpack.c.l.b16 %v2234
    %v2268 = vunpack.c.l.b16 %v2235
    %v2269 = vunpack.c.l.b16 %v2236
    %v2270 = vunpack.c.l.b16 %v2237
    %v2271 = vunpack.c.l.b16 %v2238
    %v2272 = vunpack.c.l.b16 %v2239
    %v2273 = vunpack.c.l.b16 %v2240
    %v2274 = vpack.c.b16 %v2259, %v2258
    %v2275 = vpack.c.b16 %v2261, %v2260
    %v2276 = vpack.c.b16 %v2263, %v2262
    %v2277 = vpack.c.b16 %v2265, %v2264
    %v2278 = vpack.c.b16 %v2267, %v2266
    %v2279 = vpack.c.b16 %v2269, %v2268
    %v2280 = vpack.c.b16 %v2271, %v2270
    %v2281 = vpack.c.b16 %v2273, %v2272
    %2290 = vmatprep.subr.bf16.mxu0 0
    %2291 = vmatpush1.bf16.msra.mxu0 %v2274
    %2292 = vmatprep.subr.bf16.mxu0 0
    %2293 = vmatpush1.bf16.msra.mxu0 %v2275
    %2294 = vmatprep.subr.bf16.mxu0 0
    %2295 = vmatpush1.bf16.msra.mxu0 %v2276
    %2296 = vmatprep.subr.bf16.mxu0 0
    %2297 = vmatpush1.bf16.msra.mxu0 %v2277
    %2298 = vmatprep.subr.bf16.mxu0 0
    %2299 = vmatpush1.bf16.msra.mxu0 %v2278
    %2300 = vmatprep.subr.bf16.mxu0 0
    %2301 = vmatpush1.bf16.msra.mxu0 %v2279
    %2302 = vmatprep.subr.bf16.mxu0 0
    %2303 = vmatpush1.bf16.msra.mxu0 %v2280
    %2304 = vmatprep.subr.bf16.mxu0 0
    %2305 = vmatpush1.bf16.msra.mxu0 %v2281
    %2306 = vmatprep.subr.bf16.mxu0 0
    %2307 = vmatpush1.bf16.msra.mxu0 0
    %2308 = vmatprep.subr.bf16.mxu0 0
    %2309 = vmatpush1.bf16.msra.mxu0 0
    %2310 = vmatprep.subr.bf16.mxu0 0
    %2311 = vmatpush1.bf16.msra.mxu0 0
    %2312 = vmatprep.subr.bf16.mxu0 0
    %2313 = vmatpush1.bf16.msra.mxu0 0
    %2314 = vmatprep.subr.bf16.mxu0 0
    %2315 = vmatpush1.bf16.msra.mxu0 0
    %2316 = vmatprep.subr.bf16.mxu0 0
    %2317 = vmatpush1.bf16.msra.mxu0 0
    %2318 = vmatprep.subr.bf16.mxu0 0
    %2319 = vmatpush1.bf16.msra.mxu0 0
    %2320 = vmatprep.subr.bf16.mxu0 0
    %2321 = vmatpush1.bf16.msra.mxu0 0
    %2322 = vmatprep.mubr.bf16.mxu0 0
    %2323 = vmatmul.mubr.bf16.gmra.mrb[0].mxu0 %v2241
    %v2324 = vpop.f32.mrb[0].mxu0
    %v2325 = vadd.f32 0.0, %v2324
    %v2326 = vpop.f32.mrb[0].mxu0
    %v2327 = vpop.f32.mrb[0].mxu0
    %v2328 = vpop.f32.mrb[0].mxu0
    %2329 = vdwg.mxu0
    %v2330 = vxor.u32 %v2325, 2147483648
    %v2331 = vmul.f32 %v2330, 1.442695
    %v2332 = vpow.pop %v2331
    %v2333 = vadd.f32 %v2332, 1.0
    %v2334 = vrcp.pop %v2333
    %v2335 = vmul.f32 1.0, %v2334
    %v2336 = vmul.f32 %v2114, %v2335
    %v2337 = vadd.f32 %v2336, %v1157
    %v2338 = vadd.f32 %v1157, %v2337
    %v2339 = vmax.f32 %v2337, 0.0
    %v2340 = vld [vmem:[#allocation2 + $0x34] sm:$0xff]
    %v2341 = vld [vmem:[#allocation2 + $0x9c] sm:$0xff]
    %v2342 = vld [vmem:[#allocation2 + $0x104] sm:$0xff]
    %v2343 = vld [vmem:[#allocation2 + $0x16c] sm:$0xff]
    %v2344 = vld [vmem:[#allocation2 + $0x1d4] sm:$0xff]
    %v2345 = vld [vmem:[#allocation2 + $0x23c] sm:$0xff]
    %v2346 = vld [vmem:[#allocation2 + $0x2a4] sm:$0xff]
    %v2347 = vld [vmem:[#allocation2 + $0x30c] sm:$0xff]
    %v2348 = vld [vmem:[#allocation2 + $0x374] sm:$0xff]
    %v2349 = vld [vmem:[#allocation2 + $0x3dc] sm:$0xff]
    %v2350 = vld [vmem:[#allocation2 + $0x444] sm:$0xff]
    %v2351 = vld [vmem:[#allocation2 + $0x4ac] sm:$0xff]
    %v2352 = vld [vmem:[#allocation2 + $0x514] sm:$0xff]
    %v2353 = vld [vmem:[#allocation2 + $0x57c] sm:$0xff]
    %v2354 = vld [vmem:[#allocation2 + $0x5e4] sm:$0xff]
    %v2355 = vld [vmem:[#allocation2 + $0x64c] sm:$0xff]
    %v2356 = vpack.c.bf16 %v2339, %v2339
    %s2357 = scalar_lea.vmem [#allocation8], 25
    %v2358 = vld [vmem:[%s2357] ss:$8 sm:$0x3]
    %v2360 = vlaneseq
    %v2361 = vshrl.u32 %v2360, 7
    %v2362 = vsub.s32 0, %v2361
    %v2363 = vrot.slane %v2358, %v2362
    %v2364 = vlaneseq
    %v2365 = vshrl.u32 %v2364, 7
    %v2366 = vsub.s32 1, %v2365
    %v2367 = vrot.slane %v2358, %v2366
    %v2386 = vunpack.c.l.b16 %v2340
    %v2387 = vunpack.c.h.b16 %v2340
    %v2388 = vunpack.c.l.b16 %v2341
    %v2389 = vunpack.c.h.b16 %v2341
    %v2390 = vunpack.c.l.b16 %v2342
    %v2391 = vunpack.c.h.b16 %v2342
    %v2392 = vunpack.c.l.b16 %v2343
    %v2393 = vunpack.c.h.b16 %v2343
    %v2394 = vunpack.c.l.b16 %v2344
    %v2395 = vunpack.c.h.b16 %v2344
    %v2396 = vunpack.c.l.b16 %v2345
    %v2397 = vunpack.c.h.b16 %v2345
    %v2398 = vunpack.c.l.b16 %v2346
    %v2399 = vunpack.c.h.b16 %v2346
    %v2400 = vunpack.c.l.b16 %v2347
    %v2401 = vunpack.c.h.b16 %v2347
    %v2402 = vunpack.c.l.b16 %v2348
    %v2403 = vunpack.c.h.b16 %v2348
    %v2404 = vunpack.c.l.b16 %v2349
    %v2405 = vunpack.c.h.b16 %v2349
    %v2406 = vunpack.c.l.b16 %v2350
    %v2407 = vunpack.c.h.b16 %v2350
    %v2408 = vunpack.c.l.b16 %v2351
    %v2409 = vunpack.c.h.b16 %v2351
    %v2410 = vunpack.c.l.b16 %v2352
    %v2411 = vunpack.c.h.b16 %v2352
    %v2412 = vunpack.c.l.b16 %v2353
    %v2413 = vunpack.c.h.b16 %v2353
    %v2414 = vunpack.c.l.b16 %v2354
    %v2415 = vunpack.c.h.b16 %v2354
    %v2416 = vunpack.c.l.b16 %v2355
    %v2417 = vunpack.c.h.b16 %v2355
    %v2418 = vpack.c.b16 %v2388, %v2386
    %v2419 = vpack.c.b16 %v2389, %v2387
    %v2420 = vpack.c.b16 %v2392, %v2390
    %v2421 = vpack.c.b16 %v2393, %v2391
    %v2422 = vpack.c.b16 %v2396, %v2394
    %v2423 = vpack.c.b16 %v2397, %v2395
    %v2424 = vpack.c.b16 %v2400, %v2398
    %v2425 = vpack.c.b16 %v2401, %v2399
    %v2426 = vpack.c.b16 %v2404, %v2402
    %v2427 = vpack.c.b16 %v2405, %v2403
    %v2428 = vpack.c.b16 %v2408, %v2406
    %v2429 = vpack.c.b16 %v2409, %v2407
    %v2430 = vpack.c.b16 %v2412, %v2410
    %v2431 = vpack.c.b16 %v2413, %v2411
    %v2432 = vpack.c.b16 %v2416, %v2414
    %v2433 = vpack.c.b16 %v2417, %v2415
    %2450 = vmatprep.subr.bf16.mxu0 %v2419
    %2451 = vmatpush1.bf16.msra.mxu0 %v2418
    %2452 = vmatprep.subr.bf16.mxu0 %v2421
    %2453 = vmatpush1.bf16.msra.mxu0 %v2420
    %2454 = vmatprep.subr.bf16.mxu0 %v2423
    %2455 = vmatpush1.bf16.msra.mxu0 %v2422
    %2456 = vmatprep.subr.bf16.mxu0 %v2425
    %2457 = vmatpush1.bf16.msra.mxu0 %v2424
    %2458 = vmatprep.subr.bf16.mxu0 %v2427
    %2459 = vmatpush1.bf16.msra.mxu0 %v2426
    %2460 = vmatprep.subr.bf16.mxu0 %v2429
    %2461 = vmatpush1.bf16.msra.mxu0 %v2428
    %2462 = vmatprep.subr.bf16.mxu0 %v2431
    %2463 = vmatpush1.bf16.msra.mxu0 %v2430
    %2464 = vmatprep.subr.bf16.mxu0 %v2433
    %2465 = vmatpush1.bf16.msra.mxu0 %v2432
    %2466 = vmatprep.subr.bf16.mxu0 0
    %2467 = vmatpush1.bf16.msra.mxu0 0
    %2468 = vmatprep.subr.bf16.mxu0 0
    %2469 = vmatpush1.bf16.msra.mxu0 0
    %2470 = vmatprep.subr.bf16.mxu0 0
    %2471 = vmatpush1.bf16.msra.mxu0 0
    %2472 = vmatprep.subr.bf16.mxu0 0
    %2473 = vmatpush1.bf16.msra.mxu0 0
    %2474 = vmatprep.subr.bf16.mxu0 0
    %2475 = vmatpush1.bf16.msra.mxu0 0
    %2476 = vmatprep.subr.bf16.mxu0 0
    %2477 = vmatpush1.bf16.msra.mxu0 0
    %2478 = vmatprep.subr.bf16.mxu0 0
    %2479 = vmatpush1.bf16.msra.mxu0 0
    %2480 = vmatprep.subr.bf16.mxu0 0
    %2481 = vmatpush1.bf16.msra.mxu0 0
    %2482 = vmatprep.mubr.bf16.mxu0 0
    %2483 = vmatmul.mubr.bf16.gmra.mrb[0].mxu0 %v2356
    %v2484 = vpop.f32.mrb[0].mxu0
    %v2485 = vadd.f32 %v2363, %v2484
    %v2486 = vpop.f32.mrb[0].mxu0
    %v2487 = vadd.f32 %v2367, %v2486
    %v2488 = vpop.f32.mrb[0].mxu0
    %v2489 = vpop.f32.mrb[0].mxu0
    %2490 = vdwg.mxu0
    %v2491 = vmax.f32 %v2485, 0.0
    %v2492 = vmax.f32 %v2487, 0.0
    %v2493 = vld [vmem:[#allocation5 + $0xc] sm:$0xff]
    %v2494 = vld [vmem:[#allocation5 + $0x14] sm:$0xf]
    %v2495 = vld [vmem:[#allocation5 + $0x38] sm:$0xff]
    %v2496 = vld [vmem:[#allocation5 + $0x40] sm:$0xf]
    %v2497 = vld [vmem:[#allocation5 + $0x64] sm:$0xff]
    %v2498 = vld [vmem:[#allocation5 + $0x6c] sm:$0xf]
    %v2499 = vld [vmem:[#allocation5 + $0x90] sm:$0xff]
    %v2500 = vld [vmem:[#allocation5 + $0x98] sm:$0xf]
    %v2501 = vld [vmem:[#allocation5 + $0xbc] sm:$0xff]
    %v2502 = vld [vmem:[#allocation5 + $0xc4] sm:$0xf]
    %v2503 = vld [vmem:[#allocation5 + $0xe8] sm:$0xff]
    %v2504 = vld [vmem:[#allocation5 + $0xf0] sm:$0xf]
    %v2505 = vld [vmem:[#allocation5 + $0x114] sm:$0xff]
    %v2506 = vld [vmem:[#allocation5 + $0x11c] sm:$0xf]
    %v2507 = vld [vmem:[#allocation5 + $0x140] sm:$0xff]
    %v2508 = vld [vmem:[#allocation5 + $0x148] sm:$0xf]
    %v2509 = vld [vmem:[#allocation5 + $0x16c] sm:$0xff]
    %v2510 = vld [vmem:[#allocation5 + $0x174] sm:$0xf]
    %v2511 = vld [vmem:[#allocation5 + $0x198] sm:$0xff]
    %v2512 = vld [vmem:[#allocation5 + $0x1a0] sm:$0xf]
    %v2513 = vld [vmem:[#allocation5 + $0x1c4] sm:$0xff]
    %v2514 = vld [vmem:[#allocation5 + $0x1cc] sm:$0xf]
    %v2515 = vld [vmem:[#allocation5 + $0x1f0] sm:$0xff]
    %v2516 = vld [vmem:[#allocation5 + $0x1f8] sm:$0xf]
    %v2517 = vld [vmem:[#allocation5 + $0x21c] sm:$0xff]
    %v2518 = vld [vmem:[#allocation5 + $0x224] sm:$0xf]
    %v2519 = vld [vmem:[#allocation5 + $0x248] sm:$0xff]
    %v2520 = vld [vmem:[#allocation5 + $0x250] sm:$0xf]
    %v2521 = vld [vmem:[#allocation5 + $0x274] sm:$0xff]
    %v2522 = vld [vmem:[#allocation5 + $0x27c] sm:$0xf]
    %v2523 = vld [vmem:[#allocation5 + $0x2a0] sm:$0xff]
    %v2524 = vld [vmem:[#allocation5 + $0x2a8] sm:$0xf]
    %v2525 = vld [vmem:[#allocation5 + $0x2cc] sm:$0xff]
    %v2526 = vld [vmem:[#allocation5 + $0x2d4] sm:$0xf]
    %v2527 = vld [vmem:[#allocation5 + $0x2f8] sm:$0xff]
    %v2528 = vld [vmem:[#allocation5 + $0x300] sm:$0xf]
    %v2529 = vld [vmem:[#allocation5 + $0x324] sm:$0xff]
    %v2530 = vld [vmem:[#allocation5 + $0x32c] sm:$0xf]
    %v2531 = vld [vmem:[#allocation5 + $0x350] sm:$0xff]
    %v2532 = vld [vmem:[#allocation5 + $0x358] sm:$0xf]
    %v2533 = vld [vmem:[#allocation5 + $0x37c] sm:$0xff]
    %v2534 = vld [vmem:[#allocation5 + $0x384] sm:$0xf]
    %v2535 = vld [vmem:[#allocation5 + $0x3a8] sm:$0xff]
    %v2536 = vld [vmem:[#allocation5 + $0x3b0] sm:$0xf]
    %v2537 = vld [vmem:[#allocation5 + $0x3d4] sm:$0xff]
    %v2538 = vld [vmem:[#allocation5 + $0x3dc] sm:$0xf]
    %v2539 = vld [vmem:[#allocation5 + $0x400] sm:$0xff]
    %v2540 = vld [vmem:[#allocation5 + $0x408] sm:$0xf]
    %v2541 = vld [vmem:[#allocation5 + $0x42c] sm:$0xff]
    %v2542 = vld [vmem:[#allocation5 + $0x434] sm:$0xf]
    %v2543 = vld [vmem:[#allocation5 + $0x458] sm:$0xff]
    %v2544 = vld [vmem:[#allocation5 + $0x460] sm:$0xf]
    %v2545 = vld [vmem:[#allocation5 + $0x484] sm:$0xff]
    %v2546 = vld [vmem:[#allocation5 + $0x48c] sm:$0xf]
    %v2547 = vld [vmem:[#allocation5 + $0x4b0] sm:$0xff]
    %v2548 = vld [vmem:[#allocation5 + $0x4b8] sm:$0xf]
    %v2549 = vld [vmem:[#allocation5 + $0x4dc] sm:$0xff]
    %v2550 = vld [vmem:[#allocation5 + $0x4e4] sm:$0xf]
    %v2551 = vld [vmem:[#allocation5 + $0x508] sm:$0xff]
    %v2552 = vld [vmem:[#allocation5 + $0x510] sm:$0xf]
    %v2553 = vld [vmem:[#allocation5 + $0x534] sm:$0xff]
    %v2554 = vld [vmem:[#allocation5 + $0x53c] sm:$0xf]
    %v2555 = vld [vmem:[#allocation5 + $0x560] sm:$0xff]
    %v2556 = vld [vmem:[#allocation5 + $0x568] sm:$0xf]
    %v2557 = vpack.c.bf16 %v2491, %v2491
    %v2558 = vpack.c.bf16 %v2492, %v2492
    %s2559 = scalar_lea.vmem [#allocation8], 26
    %v2560 = vld [vmem:[%s2559] ss:$8 sm:$0x7]
    %v2562 = vlaneseq
    %v2563 = vshrl.u32 %v2562, 7
    %v2564 = vsub.s32 0, %v2563
    %v2565 = vrot.slane %v2560, %v2564
    %v2566 = vlaneseq
    %v2567 = vshrl.u32 %v2566, 7
    %v2568 = vsub.s32 1, %v2567
    %v2569 = vrot.slane %v2560, %v2568
    %v2570 = vlaneseq
    %v2571 = vshrl.u32 %v2570, 7
    %v2572 = vsub.s32 2, %v2571
    %v2573 = vrot.slane %v2560, %v2572
    %v2641 = vunpack.c.l.b16 %v2493
    %v2642 = vunpack.c.h.b16 %v2493
    %v2643 = vunpack.c.l.b16 %v2494
    %v2644 = vunpack.c.l.b16 %v2495
    %v2645 = vunpack.c.h.b16 %v2495
    %v2646 = vunpack.c.l.b16 %v2496
    %v2647 = vunpack.c.l.b16 %v2497
    %v2648 = vunpack.c.h.b16 %v2497
    %v2649 = vunpack.c.l.b16 %v2498
    %v2650 = vunpack.c.l.b16 %v2499
    %v2651 = vunpack.c.h.b16 %v2499
    %v2652 = vunpack.c.l.b16 %v2500
    %v2653 = vunpack.c.l.b16 %v2501
    %v2654 = vunpack.c.h.b16 %v2501
    %v2655 = vunpack.c.l.b16 %v2502
    %v2656 = vunpack.c.l.b16 %v2503
    %v2657 = vunpack.c.h.b16 %v2503
    %v2658 = vunpack.c.l.b16 %v2504
    %v2659 = vunpack.c.l.b16 %v2505
    %v2660 = vunpack.c.h.b16 %v2505
    %v2661 = vunpack.c.l.b16 %v2506
    %v2662 = vunpack.c.l.b16 %v2507
    %v2663 = vunpack.c.h.b16 %v2507
    %v2664 = vunpack.c.l.b16 %v2508
    %v2665 = vunpack.c.l.b16 %v2509
    %v2666 = vunpack.c.h.b16 %v2509
    %v2667 = vunpack.c.l.b16 %v2510
    %v2668 = vunpack.c.l.b16 %v2511
    %v2669 = vunpack.c.h.b16 %v2511
    %v2670 = vunpack.c.l.b16 %v2512
    %v2671 = vunpack.c.l.b16 %v2513
    %v2672 = vunpack.c.h.b16 %v2513
    %v2673 = vunpack.c.l.b16 %v2514
    %v2674 = vunpack.c.l.b16 %v2515
    %v2675 = vunpack.c.h.b16 %v2515
    %v2676 = vunpack.c.l.b16 %v2516
    %v2677 = vunpack.c.l.b16 %v2517
    %v2678 = vunpack.c.h.b16 %v2517
    %v2679 = vunpack.c.l.b16 %v2518
    %v2680 = vunpack.c.l.b16 %v2519
    %v2681 = vunpack.c.h.b16 %v2519
    %v2682 = vunpack.c.l.b16 %v2520
    %v2683 = vunpack.c.l.b16 %v2521
    %v2684 = vunpack.c.h.b16 %v2521
    %v2685 = vunpack.c.l.b16 %v2522
    %v2686 = vunpack.c.l.b16 %v2523
    %v2687 = vunpack.c.h.b16 %v2523
    %v2688 = vunpack.c.l.b16 %v2524
    %v2689 = vunpack.c.l.b16 %v2525
    %v2690 = vunpack.c.h.b16 %v2525
    %v2691 = vunpack.c.l.b16 %v2526
    %v2692 = vunpack.c.l.b16 %v2527
    %v2693 = vunpack.c.h.b16 %v2527
    %v2694 = vunpack.c.l.b16 %v2528
    %v2695 = vunpack.c.l.b16 %v2529
    %v2696 = vunpack.c.h.b16 %v2529
    %v2697 = vunpack.c.l.b16 %v2530
    %v2698 = vunpack.c.l.b16 %v2531
    %v2699 = vunpack.c.h.b16 %v2531
    %v2700 = vunpack.c.l.b16 %v2532
    %v2701 = vunpack.c.l.b16 %v2533
    %v2702 = vunpack.c.h.b16 %v2533
    %v2703 = vunpack.c.l.b16 %v2534
    %v2704 = vunpack.c.l.b16 %v2535
    %v2705 = vunpack.c.h.b16 %v2535
    %v2706 = vunpack.c.l.b16 %v2536
    %v2707 = vunpack.c.l.b16 %v2537
    %v2708 = vunpack.c.h.b16 %v2537
    %v2709 = vunpack.c.l.b16 %v2538
    %v2710 = vunpack.c.l.b16 %v2539
    %v2711 = vunpack.c.h.b16 %v2539
    %v2712 = vunpack.c.l.b16 %v2540
    %v2713 = vunpack.c.l.b16 %v2541
    %v2714 = vunpack.c.h.b16 %v2541
    %v2715 = vunpack.c.l.b16 %v2542
    %v2716 = vunpack.c.l.b16 %v2543
    %v2717 = vunpack.c.h.b16 %v2543
    %v2718 = vunpack.c.l.b16 %v2544
    %v2719 = vunpack.c.l.b16 %v2545
    %v2720 = vunpack.c.h.b16 %v2545
    %v2721 = vunpack.c.l.b16 %v2546
    %v2722 = vunpack.c.l.b16 %v2547
    %v2723 = vunpack.c.h.b16 %v2547
    %v2724 = vunpack.c.l.b16 %v2548
    %v2725 = vunpack.c.l.b16 %v2549
    %v2726 = vunpack.c.h.b16 %v2549
    %v2727 = vunpack.c.l.b16 %v2550
    %v2728 = vunpack.c.l.b16 %v2551
    %v2729 = vunpack.c.h.b16 %v2551
    %v2730 = vunpack.c.l.b16 %v2552
    %v2731 = vunpack.c.l.b16 %v2553
    %v2732 = vunpack.c.h.b16 %v2553
    %v2733 = vunpack.c.l.b16 %v2554
    %v2734 = vunpack.c.l.b16 %v2555
    %v2735 = vunpack.c.h.b16 %v2555
    %v2736 = vunpack.c.l.b16 %v2556
    %v2737 = vpack.c.b16 %v2644, %v2641
    %v2738 = vpack.c.b16 %v2645, %v2642
    %v2739 = vpack.c.b16 %v2646, %v2643
    %v2740 = vpack.c.b16 %v2650, %v2647
    %v2741 = vpack.c.b16 %v2651, %v2648
    %v2742 = vpack.c.b16 %v2652, %v2649
    %v2743 = vpack.c.b16 %v2656, %v2653
    %v2744 = vpack.c.b16 %v2657, %v2654
    %v2745 = vpack.c.b16 %v2658, %v2655
    %v2746 = vpack.c.b16 %v2662, %v2659
    %v2747 = vpack.c.b16 %v2663, %v2660
    %v2748 = vpack.c.b16 %v2664, %v2661
    %v2749 = vpack.c.b16 %v2668, %v2665
    %v2750 = vpack.c.b16 %v2669, %v2666
    %v2751 = vpack.c.b16 %v2670, %v2667
    %v2752 = vpack.c.b16 %v2674, %v2671
    %v2753 = vpack.c.b16 %v2675, %v2672
    %v2754 = vpack.c.b16 %v2676, %v2673
    %v2755 = vpack.c.b16 %v2680, %v2677
    %v2756 = vpack.c.b16 %v2681, %v2678
    %v2757 = vpack.c.b16 %v2682, %v2679
    %v2758 = vpack.c.b16 %v2686, %v2683
    %v2759 = vpack.c.b16 %v2687, %v2684
    %v2760 = vpack.c.b16 %v2688, %v2685
    %v2761 = vpack.c.b16 %v2692, %v2689
    %v2762 = vpack.c.b16 %v2693, %v2690
    %v2763 = vpack.c.b16 %v2694, %v2691
    %v2764 = vpack.c.b16 %v2698, %v2695
    %v2765 = vpack.c.b16 %v2699, %v2696
    %v2766 = vpack.c.b16 %v2700, %v2697
    %v2767 = vpack.c.b16 %v2704, %v2701
    %v2768 = vpack.c.b16 %v2705, %v2702
    %v2769 = vpack.c.b16 %v2706, %v2703
    %v2770 = vpack.c.b16 %v2710, %v2707
    %v2771 = vpack.c.b16 %v2711, %v2708
    %v2772 = vpack.c.b16 %v2712, %v2709
    %v2773 = vpack.c.b16 %v2716, %v2713
    %v2774 = vpack.c.b16 %v2717, %v2714
    %v2775 = vpack.c.b16 %v2718, %v2715
    %v2776 = vpack.c.b16 %v2722, %v2719
    %v2777 = vpack.c.b16 %v2723, %v2720
    %v2778 = vpack.c.b16 %v2724, %v2721
    %v2779 = vpack.c.b16 %v2728, %v2725
    %v2780 = vpack.c.b16 %v2729, %v2726
    %v2781 = vpack.c.b16 %v2730, %v2727
    %v2782 = vpack.c.b16 %v2734, %v2731
    %v2783 = vpack.c.b16 %v2735, %v2732
    %v2784 = vpack.c.b16 %v2736, %v2733
    %2833 = vmatprep.subr.bf16.mxu0 %v2738
    %2834 = vmatpush1.bf16.msra.mxu0 %v2737
    %2835 = vmatprep.subr.bf16.mxu0 %v2741
    %2836 = vmatpush1.bf16.msra.mxu0 %v2740
    %2837 = vmatprep.subr.bf16.mxu0 %v2744
    %2838 = vmatpush1.bf16.msra.mxu0 %v2743
    %2839 = vmatprep.subr.bf16.mxu0 %v2747
    %2840 = vmatpush1.bf16.msra.mxu0 %v2746
    %2841 = vmatprep.subr.bf16.mxu0 %v2750
    %2842 = vmatpush1.bf16.msra.mxu0 %v2749
    %2843 = vmatprep.subr.bf16.mxu0 %v2753
    %2844 = vmatpush1.bf16.msra.mxu0 %v2752
    %2845 = vmatprep.subr.bf16.mxu0 %v2756
    %2846 = vmatpush1.bf16.msra.mxu0 %v2755
    %2847 = vmatprep.subr.bf16.mxu0 %v2759
    %2848 = vmatpush1.bf16.msra.mxu0 %v2758
    %2849 = vmatprep.subr.bf16.mxu0 %v2762
    %2850 = vmatpush1.bf16.msra.mxu0 %v2761
    %2851 = vmatprep.subr.bf16.mxu0 %v2765
    %2852 = vmatpush1.bf16.msra.mxu0 %v2764
    %2853 = vmatprep.subr.bf16.mxu0 %v2768
    %2854 = vmatpush1.bf16.msra.mxu0 %v2767
    %2855 = vmatprep.subr.bf16.mxu0 %v2771
    %2856 = vmatpush1.bf16.msra.mxu0 %v2770
    %2857 = vmatprep.subr.bf16.mxu0 %v2774
    %2858 = vmatpush1.bf16.msra.mxu0 %v2773
    %2859 = vmatprep.subr.bf16.mxu0 %v2777
    %2860 = vmatpush1.bf16.msra.mxu0 %v2776
    %2861 = vmatprep.subr.bf16.mxu0 %v2780
    %2862 = vmatpush1.bf16.msra.mxu0 %v2779
    %2863 = vmatprep.subr.bf16.mxu0 %v2783
    %2864 = vmatpush1.bf16.msra.mxu0 %v2782
    %2865 = vmatprep.mubr.bf16.mxu0 %v2558
    %2866 = vmatmul.mubr.bf16.gmra.mrb[0].mxu0 %v2557
    %v2867 = vpop.f32.mrb[0].mxu0
    %v2868 = vadd.f32 %v2565, %v2867
    %v2869 = vpop.f32.mrb[0].mxu0
    %v2870 = vadd.f32 %v2569, %v2869
    %v2871 = vpop.f32.mrb[0].mxu0
    %v2872 = vpop.f32.mrb[0].mxu0
    %2873 = vdwg.mxu0
    %2874 = vmatprep.subr.bf16.mxu0 0
    %2875 = vmatpush1.bf16.msra.mxu0 %v2739
    %2876 = vmatprep.subr.bf16.mxu0 0
    %2877 = vmatpush1.bf16.msra.mxu0 %v2742
    %2878 = vmatprep.subr.bf16.mxu0 0
    %2879 = vmatpush1.bf16.msra.mxu0 %v2745
    %2880 = vmatprep.subr.bf16.mxu0 0
    %2881 = vmatpush1.bf16.msra.mxu0 %v2748
    %2882 = vmatprep.subr.bf16.mxu0 0
    %2883 = vmatpush1.bf16.msra.mxu0 %v2751
    %2884 = vmatprep.subr.bf16.mxu0 0
    %2885 = vmatpush1.bf16.msra.mxu0 %v2754
    %2886 = vmatprep.subr.bf16.mxu0 0
    %2887 = vmatpush1.bf16.msra.mxu0 %v2757
    %2888 = vmatprep.subr.bf16.mxu0 0
    %2889 = vmatpush1.bf16.msra.mxu0 %v2760
    %2890 = vmatprep.subr.bf16.mxu0 0
    %2891 = vmatpush1.bf16.msra.mxu0 %v2763
    %2892 = vmatprep.subr.bf16.mxu0 0
    %2893 = vmatpush1.bf16.msra.mxu0 %v2766
    %2894 = vmatprep.subr.bf16.mxu0 0
    %2895 = vmatpush1.bf16.msra.mxu0 %v2769
    %2896 = vmatprep.subr.bf16.mxu0 0
    %2897 = vmatpush1.bf16.msra.mxu0 %v2772
    %2898 = vmatprep.subr.bf16.mxu0 0
    %2899 = vmatpush1.bf16.msra.mxu0 %v2775
    %2900 = vmatprep.subr.bf16.mxu0 0
    %2901 = vmatpush1.bf16.msra.mxu0 %v2778
    %2902 = vmatprep.subr.bf16.mxu0 0
    %2903 = vmatpush1.bf16.msra.mxu0 %v2781
    %2904 = vmatprep.subr.bf16.mxu0 0
    %2905 = vmatpush1.bf16.msra.mxu0 %v2784
    %2906 = vmatprep.mubr.bf16.mxu0 %v2558
    %2907 = vmatmul.mubr.bf16.gmra.mrb[0].mxu0 %v2557
    %v2908 = vpop.f32.mrb[0].mxu0
    %v2909 = vadd.f32 %v2573, %v2908
    %v2910 = vpop.f32.mrb[0].mxu0
    %v2911 = vpop.f32.mrb[0].mxu0
    %v2912 = vpop.f32.mrb[0].mxu0
    %2913 = vdwg.mxu0
    %v2914 = vmax.f32 %v2868, 0.0
    %v2915 = vmax.f32 %v2870, 0.0
    %v2916 = vmax.f32 %v2909, 0.0
    %v2917 = vld [vmem:[#allocation7 + $0x8] sm:$0xff]
    %v2918 = vld [vmem:[#allocation7 + $0x18] sm:$0xff]
    %v2919 = vld [vmem:[#allocation7 + $0x28] sm:$0xff]
    %v2920 = vld [vmem:[#allocation7 + $0x38] sm:$0xff]
    %v2921 = vld [vmem:[#allocation7 + $0x48] sm:$0xff]
    %v2922 = vld [vmem:[#allocation7 + $0x58] sm:$0xff]
    %v2923 = vld [vmem:[#allocation7 + $0x68] sm:$0xff]
    %v2924 = vld [vmem:[#allocation7 + $0x78] sm:$0xff]
    %v2925 = vld [vmem:[#allocation7 + $0x88] sm:$0xff]
    %v2926 = vld [vmem:[#allocation7 + $0x98] sm:$0xff]
    %v2927 = vld [vmem:[#allocation7 + $0xa8] sm:$0xff]
    %v2928 = vld [vmem:[#allocation7 + $0xb8] sm:$0xff]
    %v2929 = vld [vmem:[#allocation7 + $0xc8] sm:$0xff]
    %v2930 = vld [vmem:[#allocation7 + $0xd8] sm:$0xff]
    %v2931 = vld [vmem:[#allocation7 + $0xe8] sm:$0xff]
    %v2932 = vld [vmem:[#allocation7 + $0xf8] sm:$0xff]
    %v2933 = vld [vmem:[#allocation7 + $0x108] sm:$0xff]
    %v2934 = vld [vmem:[#allocation7 + $0x118] sm:$0xff]
    %v2935 = vld [vmem:[#allocation7 + $0x128] sm:$0xff]
    %v2936 = vld [vmem:[#allocation7 + $0x138] sm:$0xff]
    %v2937 = vld [vmem:[#allocation7 + $0x148] sm:$0xff]
    %v2938 = vld [vmem:[#allocation7 + $0x158] sm:$0xff]
    %v2939 = vld [vmem:[#allocation7 + $0x168] sm:$0xff]
    %v2940 = vld [vmem:[#allocation7 + $0x178] sm:$0xff]
    %v2941 = vld [vmem:[#allocation7 + $0x188] sm:$0xff]
    %v2942 = vld [vmem:[#allocation7 + $0x198] sm:$0xff]
    %v2943 = vld [vmem:[#allocation7 + $0x1a8] sm:$0xff]
    %v2944 = vld [vmem:[#allocation7 + $0x1b8] sm:$0xff]
    %v2945 = vld [vmem:[#allocation7 + $0x1c8] sm:$0xff]
    %v2946 = vld [vmem:[#allocation7 + $0x1d8] sm:$0xff]
    %v2947 = vld [vmem:[#allocation7 + $0x1e8] sm:$0xff]
    %v2948 = vld [vmem:[#allocation7 + $0x1f8] sm:$0xff]
    %v2949 = vld [vmem:[#allocation7 + $0x208] sm:$0xff]
    %v2950 = vld [vmem:[#allocation7 + $0x218] sm:$0xff]
    %v2951 = vld [vmem:[#allocation7 + $0x228] sm:$0xff]
    %v2952 = vld [vmem:[#allocation7 + $0x238] sm:$0xff]
    %v2953 = vld [vmem:[#allocation7 + $0x248] sm:$0xff]
    %v2954 = vld [vmem:[#allocation7 + $0x258] sm:$0xff]
    %v2955 = vld [vmem:[#allocation7 + $0x268] sm:$0xff]
    %v2956 = vld [vmem:[#allocation7 + $0x278] sm:$0xff]
    %v2957 = vld [vmem:[#allocation7 + $0x288] sm:$0xff]
    %v2958 = vld [vmem:[#allocation7 + $0x298] sm:$0xff]
    %v2959 = vld [vmem:[#allocation7 + $0x2a8] sm:$0xff]
    %v2960 = vld [vmem:[#allocation7 + $0x2b8] sm:$0xff]
    %v2961 = vld [vmem:[#allocation7 + $0x2c8] sm:$0xff]
    %v2962 = vld [vmem:[#allocation7 + $0x2d8] sm:$0xff]
    %v2963 = vld [vmem:[#allocation7 + $0x2e8] sm:$0xff]
    %v2964 = vld [vmem:[#allocation7 + $0x2f8] sm:$0xff]
    %v2965 = vpack.c.bf16 %v2914, %v2914
    %v2966 = vpack.c.bf16 %v2915, %v2915
    %v2967 = vpack.c.bf16 %v2916, %v2916
    %s2968 = scalar_lea.vmem [#allocation8], 27
    %v2969 = vld [vmem:[%s2968] ss:$8 sm:$0x3]
    %v2971 = vlaneseq
    %v2972 = vshrl.u32 %v2971, 7
    %v2973 = vsub.s32 0, %v2972
    %v2974 = vrot.slane %v2969, %v2973
    %v2975 = vlaneseq
    %v2976 = vshrl.u32 %v2975, 7
    %v2977 = vsub.s32 1, %v2976
    %v2978 = vrot.slane %v2969, %v2977
    %v3029 = vunpack.c.l.b16 %v2917
    %v3030 = vunpack.c.h.b16 %v2917
    %v3031 = vunpack.c.l.b16 %v2918
    %v3032 = vunpack.c.h.b16 %v2918
    %v3033 = vunpack.c.l.b16 %v2919
    %v3034 = vunpack.c.h.b16 %v2919
    %v3035 = vunpack.c.l.b16 %v2920
    %v3036 = vunpack.c.h.b16 %v2920
    %v3037 = vunpack.c.l.b16 %v2921
    %v3038 = vunpack.c.h.b16 %v2921
    %v3039 = vunpack.c.l.b16 %v2922
    %v3040 = vunpack.c.h.b16 %v2922
    %v3041 = vunpack.c.l.b16 %v2923
    %v3042 = vunpack.c.h.b16 %v2923
    %v3043 = vunpack.c.l.b16 %v2924
    %v3044 = vunpack.c.h.b16 %v2924
    %v3045 = vunpack.c.l.b16 %v2925
    %v3046 = vunpack.c.h.b16 %v2925
    %v3047 = vunpack.c.l.b16 %v2926
    %v3048 = vunpack.c.h.b16 %v2926
    %v3049 = vunpack.c.l.b16 %v2927
    %v3050 = vunpack.c.h.b16 %v2927
    %v3051 = vunpack.c.l.b16 %v2928
    %v3052 = vunpack.c.h.b16 %v2928
    %v3053 = vunpack.c.l.b16 %v2929
    %v3054 = vunpack.c.h.b16 %v2929
    %v3055 = vunpack.c.l.b16 %v2930
    %v3056 = vunpack.c.h.b16 %v2930
    %v3057 = vunpack.c.l.b16 %v2931
    %v3058 = vunpack.c.h.b16 %v2931
    %v3059 = vunpack.c.l.b16 %v2932
    %v3060 = vunpack.c.h.b16 %v2932
    %v3061 = vunpack.c.l.b16 %v2933
    %v3062 = vunpack.c.h.b16 %v2933
    %v3063 = vunpack.c.l.b16 %v2934
    %v3064 = vunpack.c.h.b16 %v2934
    %v3065 = vunpack.c.l.b16 %v2935
    %v3066 = vunpack.c.h.b16 %v2935
    %v3067 = vunpack.c.l.b16 %v2936
    %v3068 = vunpack.c.h.b16 %v2936
    %v3069 = vunpack.c.l.b16 %v2937
    %v3070 = vunpack.c.h.b16 %v2937
    %v3071 = vunpack.c.l.b16 %v2938
    %v3072 = vunpack.c.h.b16 %v2938
    %v3073 = vunpack.c.l.b16 %v2939
    %v3074 = vunpack.c.h.b16 %v2939
    %v3075 = vunpack.c.l.b16 %v2940
    %v3076 = vunpack.c.h.b16 %v2940
    %v3077 = vunpack.c.l.b16 %v2941
    %v3078 = vunpack.c.h.b16 %v2941
    %v3079 = vunpack.c.l.b16 %v2942
    %v3080 = vunpack.c.h.b16 %v2942
    %v3081 = vunpack.c.l.b16 %v2943
    %v3082 = vunpack.c.h.b16 %v2943
    %v3083 = vunpack.c.l.b16 %v2944
    %v3084 = vunpack.c.h.b16 %v2944
    %v3085 = vunpack.c.l.b16 %v2945
    %v3086 = vunpack.c.h.b16 %v2945
    %v3087 = vunpack.c.l.b16 %v2946
    %v3088 = vunpack.c.h.b16 %v2946
    %v3089 = vunpack.c.l.b16 %v2947
    %v3090 = vunpack.c.h.b16 %v2947
    %v3091 = vunpack.c.l.b16 %v2948
    %v3092 = vunpack.c.h.b16 %v2948
    %v3093 = vunpack.c.l.b16 %v2949
    %v3094 = vunpack.c.h.b16 %v2949
    %v3095 = vunpack.c.l.b16 %v2950
    %v3096 = vunpack.c.h.b16 %v2950
    %v3097 = vunpack.c.l.b16 %v2951
    %v3098 = vunpack.c.h.b16 %v2951
    %v3099 = vunpack.c.l.b16 %v2952
    %v3100 = vunpack.c.h.b16 %v2952
    %v3101 = vunpack.c.l.b16 %v2953
    %v3102 = vunpack.c.h.b16 %v2953
    %v3103 = vunpack.c.l.b16 %v2954
    %v3104 = vunpack.c.h.b16 %v2954
    %v3105 = vunpack.c.l.b16 %v2955
    %v3106 = vunpack.c.h.b16 %v2955
    %v3107 = vunpack.c.l.b16 %v2956
    %v3108 = vunpack.c.h.b16 %v2956
    %v3109 = vunpack.c.l.b16 %v2957
    %v3110 = vunpack.c.h.b16 %v2957
    %v3111 = vunpack.c.l.b16 %v2958
    %v3112 = vunpack.c.h.b16 %v2958
    %v3113 = vunpack.c.l.b16 %v2959
    %v3114 = vunpack.c.h.b16 %v2959
    %v3115 = vunpack.c.l.b16 %v2960
    %v3116 = vunpack.c.h.b16 %v2960
    %v3117 = vunpack.c.l.b16 %v2961
    %v3118 = vunpack.c.h.b16 %v2961
    %v3119 = vunpack.c.l.b16 %v2962
    %v3120 = vunpack.c.h.b16 %v2962
    %v3121 = vunpack.c.l.b16 %v2963
    %v3122 = vunpack.c.h.b16 %v2963
    %v3123 = vunpack.c.l.b16 %v2964
    %v3124 = vunpack.c.h.b16 %v2964
    %v3125 = vpack.c.b16 %v3031, %v3029
    %v3126 = vpack.c.b16 %v3032, %v3030
    %v3127 = vpack.c.b16 %v3035, %v3033
    %v3128 = vpack.c.b16 %v3036, %v3034
    %v3129 = vpack.c.b16 %v3039, %v3037
    %v3130 = vpack.c.b16 %v3040, %v3038
    %v3131 = vpack.c.b16 %v3043, %v3041
    %v3132 = vpack.c.b16 %v3044, %v3042
    %v3133 = vpack.c.b16 %v3047, %v3045
    %v3134 = vpack.c.b16 %v3048, %v3046
    %v3135 = vpack.c.b16 %v3051, %v3049
    %v3136 = vpack.c.b16 %v3052, %v3050
    %v3137 = vpack.c.b16 %v3055, %v3053
    %v3138 = vpack.c.b16 %v3056, %v3054
    %v3139 = vpack.c.b16 %v3059, %v3057
    %v3140 = vpack.c.b16 %v3060, %v3058
    %v3141 = vpack.c.b16 %v3063, %v3061
    %v3142 = vpack.c.b16 %v3064, %v3062
    %v3143 = vpack.c.b16 %v3067, %v3065
    %v3144 = vpack.c.b16 %v3068, %v3066
    %v3145 = vpack.c.b16 %v3071, %v3069
    %v3146 = vpack.c.b16 %v3072, %v3070
    %v3147 = vpack.c.b16 %v3075, %v3073
    %v3148 = vpack.c.b16 %v3076, %v3074
    %v3149 = vpack.c.b16 %v3079, %v3077
    %v3150 = vpack.c.b16 %v3080, %v3078
    %v3151 = vpack.c.b16 %v3083, %v3081
    %v3152 = vpack.c.b16 %v3084, %v3082
    %v3153 = vpack.c.b16 %v3087, %v3085
    %v3154 = vpack.c.b16 %v3088, %v3086
    %v3155 = vpack.c.b16 %v3091, %v3089
    %v3156 = vpack.c.b16 %v3092, %v3090
    %v3157 = vpack.c.b16 %v3095, %v3093
    %v3158 = vpack.c.b16 %v3096, %v3094
    %v3159 = vpack.c.b16 %v3099, %v3097
    %v3160 = vpack.c.b16 %v3100, %v3098
    %v3161 = vpack.c.b16 %v3103, %v3101
    %v3162 = vpack.c.b16 %v3104, %v3102
    %v3163 = vpack.c.b16 %v3107, %v3105
    %v3164 = vpack.c.b16 %v3108, %v3106
    %v3165 = vpack.c.b16 %v3111, %v3109
    %v3166 = vpack.c.b16 %v3112, %v3110
    %v3167 = vpack.c.b16 %v3115, %v3113
    %v3168 = vpack.c.b16 %v3116, %v3114
    %v3169 = vpack.c.b16 %v3119, %v3117
    %v3170 = vpack.c.b16 %v3120, %v3118
    %v3171 = vpack.c.b16 %v3123, %v3121
    %v3172 = vpack.c.b16 %v3124, %v3122
    %3221 = vmatprep.subr.bf16.mxu0 %v3126
    %3222 = vmatpush1.bf16.msra.mxu0 %v3125
    %3223 = vmatprep.subr.bf16.mxu0 %v3128
    %3224 = vmatpush1.bf16.msra.mxu0 %v3127
    %3225 = vmatprep.subr.bf16.mxu0 %v3130
    %3226 = vmatpush1.bf16.msra.mxu0 %v3129
    %3227 = vmatprep.subr.bf16.mxu0 %v3132
    %3228 = vmatpush1.bf16.msra.mxu0 %v3131
    %3229 = vmatprep.subr.bf16.mxu0 %v3134
    %3230 = vmatpush1.bf16.msra.mxu0 %v3133
    %3231 = vmatprep.subr.bf16.mxu0 %v3136
    %3232 = vmatpush1.bf16.msra.mxu0 %v3135
    %3233 = vmatprep.subr.bf16.mxu0 %v3138
    %3234 = vmatpush1.bf16.msra.mxu0 %v3137
    %3235 = vmatprep.subr.bf16.mxu0 %v3140
    %3236 = vmatpush1.bf16.msra.mxu0 %v3139
    %3237 = vmatprep.subr.bf16.mxu0 %v3142
    %3238 = vmatpush1.bf16.msra.mxu0 %v3141
    %3239 = vmatprep.subr.bf16.mxu0 %v3144
    %3240 = vmatpush1.bf16.msra.mxu0 %v3143
    %3241 = vmatprep.subr.bf16.mxu0 %v3146
    %3242 = vmatpush1.bf16.msra.mxu0 %v3145
    %3243 = vmatprep.subr.bf16.mxu0 %v3148
    %3244 = vmatpush1.bf16.msra.mxu0 %v3147
    %3245 = vmatprep.subr.bf16.mxu0 %v3150
    %3246 = vmatpush1.bf16.msra.mxu0 %v3149
    %3247 = vmatprep.subr.bf16.mxu0 %v3152
    %3248 = vmatpush1.bf16.msra.mxu0 %v3151
    %3249 = vmatprep.subr.bf16.mxu0 %v3154
    %3250 = vmatpush1.bf16.msra.mxu0 %v3153
    %3251 = vmatprep.subr.bf16.mxu0 %v3156
    %3252 = vmatpush1.bf16.msra.mxu0 %v3155
    %3253 = vmatprep.mubr.bf16.mxu0 %v2966
    %3254 = vmatmul.mubr.bf16.gmra.mrb[0].mxu0 %v2965
    %v3255 = vpop.f32.mrb[0].mxu0
    %v3256 = vadd.f32 %v2974, %v3255
    %v3257 = vpop.f32.mrb[0].mxu0
    %v3258 = vadd.f32 %v2978, %v3257
    %v3259 = vpop.f32.mrb[0].mxu0
    %v3260 = vpop.f32.mrb[0].mxu0
    %3261 = vdwg.mxu0
    %3262 = vmatprep.subr.bf16.mxu0 %v3158
    %3263 = vmatpush1.bf16.msra.mxu0 %v3157
    %3264 = vmatprep.subr.bf16.mxu0 %v3160
    %3265 = vmatpush1.bf16.msra.mxu0 %v3159
    %3266 = vmatprep.subr.bf16.mxu0 %v3162
    %3267 = vmatpush1.bf16.msra.mxu0 %v3161
    %3268 = vmatprep.subr.bf16.mxu0 %v3164
    %3269 = vmatpush1.bf16.msra.mxu0 %v3163
    %3270 = vmatprep.subr.bf16.mxu0 %v3166
    %3271 = vmatpush1.bf16.msra.mxu0 %v3165
    %3272 = vmatprep.subr.bf16.mxu0 %v3168
    %3273 = vmatpush1.bf16.msra.mxu0 %v3167
    %3274 = vmatprep.subr.bf16.mxu0 %v3170
    %3275 = vmatpush1.bf16.msra.mxu0 %v3169
    %3276 = vmatprep.subr.bf16.mxu0 %v3172
    %3277 = vmatpush1.bf16.msra.mxu0 %v3171
    %3278 = vmatprep.subr.bf16.mxu0 0
    %3279 = vmatpush1.bf16.msra.mxu0 0
    %3280 = vmatprep.subr.bf16.mxu0 0
    %3281 = vmatpush1.bf16.msra.mxu0 0
    %3282 = vmatprep.subr.bf16.mxu0 0
    %3283 = vmatpush1.bf16.msra.mxu0 0
    %3284 = vmatprep.subr.bf16.mxu0 0
    %3285 = vmatpush1.bf16.msra.mxu0 0
    %3286 = vmatprep.subr.bf16.mxu0 0
    %3287 = vmatpush1.bf16.msra.mxu0 0
    %3288 = vmatprep.subr.bf16.mxu0 0
    %3289 = vmatpush1.bf16.msra.mxu0 0
    %3290 = vmatprep.subr.bf16.mxu0 0
    %3291 = vmatpush1.bf16.msra.mxu0 0
    %3292 = vmatprep.subr.bf16.mxu0 0
    %3293 = vmatpush1.bf16.msra.mxu0 0
    %3294 = vmatprep.mubr.bf16.mxu0 0
    %3295 = vmatmul.mubr.bf16.gmra.mrb[0].mxu0 %v2967
    %v3296 = vpop.f32.mrb[0].mxu0
    %v3297 = vadd.f32 %v3256, %v3296
    %v3298 = vpop.f32.mrb[0].mxu0
    %v3299 = vadd.f32 %v3258, %v3298
    %v3300 = vpop.f32.mrb[0].mxu0
    %v3301 = vpop.f32.mrb[0].mxu0
    %3302 = vdwg.mxu0
    %v3303 = vmax.f32 %v3297, 0.0
    %v3304 = vmax.f32 %v3299, 0.0
    %v3305 = vld [vmem:[#allocation5 + $0x18] sm:$0xf]
    %v3306 = vld [vmem:[#allocation5 + $0x44] sm:$0xf]
    %v3307 = vld [vmem:[#allocation5 + $0x70] sm:$0xf]
    %v3308 = vld [vmem:[#allocation5 + $0x9c] sm:$0xf]
    %v3309 = vld [vmem:[#allocation5 + $0xc8] sm:$0xf]
    %v3310 = vld [vmem:[#allocation5 + $0xf4] sm:$0xf]
    %v3311 = vld [vmem:[#allocation5 + $0x120] sm:$0xf]
    %v3312 = vld [vmem:[#allocation5 + $0x14c] sm:$0xf]
    %v3313 = vld [vmem:[#allocation5 + $0x178] sm:$0xf]
    %v3314 = vld [vmem:[#allocation5 + $0x1a4] sm:$0xf]
    %v3315 = vld [vmem:[#allocation5 + $0x1d0] sm:$0xf]
    %v3316 = vld [vmem:[#allocation5 + $0x1fc] sm:$0xf]
    %v3317 = vld [vmem:[#allocation5 + $0x228] sm:$0xf]
    %v3318 = vld [vmem:[#allocation5 + $0x254] sm:$0xf]
    %v3319 = vld [vmem:[#allocation5 + $0x280] sm:$0xf]
    %v3320 = vld [vmem:[#allocation5 + $0x2ac] sm:$0xf]
    %v3321 = vld [vmem:[#allocation5 + $0x2d8] sm:$0xf]
    %v3322 = vld [vmem:[#allocation5 + $0x304] sm:$0xf]
    %v3323 = vld [vmem:[#allocation5 + $0x330] sm:$0xf]
    %v3324 = vld [vmem:[#allocation5 + $0x35c] sm:$0xf]
    %v3325 = vld [vmem:[#allocation5 + $0x388] sm:$0xf]
    %v3326 = vld [vmem:[#allocation5 + $0x3b4] sm:$0xf]
    %v3327 = vld [vmem:[#allocation5 + $0x3e0] sm:$0xf]
    %v3328 = vld [vmem:[#allocation5 + $0x40c] sm:$0xf]
    %v3329 = vld [vmem:[#allocation5 + $0x438] sm:$0xf]
    %v3330 = vld [vmem:[#allocation5 + $0x464] sm:$0xf]
    %v3331 = vld [vmem:[#allocation5 + $0x490] sm:$0xf]
    %v3332 = vld [vmem:[#allocation5 + $0x4bc] sm:$0xf]
    %v3333 = vld [vmem:[#allocation5 + $0x4e8] sm:$0xf]
    %v3334 = vld [vmem:[#allocation5 + $0x514] sm:$0xf]
    %v3335 = vld [vmem:[#allocation5 + $0x540] sm:$0xf]
    %v3336 = vld [vmem:[#allocation5 + $0x56c] sm:$0xf]
    %v3337 = vpack.c.bf16 %v3303, %v3303
    %v3338 = vpack.c.bf16 %v3304, %v3304
    %v3339 = vld [vmem:[#allocation8 + $0x1c] ss:$0 sm:$0xff]
    %v3372 = vunpack.c.l.b16 %v3305
    %v3373 = vunpack.c.l.b16 %v3306
    %v3374 = vunpack.c.l.b16 %v3307
    %v3375 = vunpack.c.l.b16 %v3308
    %v3376 = vunpack.c.l.b16 %v3309
    %v3377 = vunpack.c.l.b16 %v3310
    %v3378 = vunpack.c.l.b16 %v3311
    %v3379 = vunpack.c.l.b16 %v3312
    %v3380 = vunpack.c.l.b16 %v3313
    %v3381 = vunpack.c.l.b16 %v3314
    %v3382 = vunpack.c.l.b16 %v3315
    %v3383 = vunpack.c.l.b16 %v3316
    %v3384 = vunpack.c.l.b16 %v3317
    %v3385 = vunpack.c.l.b16 %v3318
    %v3386 = vunpack.c.l.b16 %v3319
    %v3387 = vunpack.c.l.b16 %v3320
    %v3388 = vunpack.c.l.b16 %v3321
    %v3389 = vunpack.c.l.b16 %v3322
    %v3390 = vunpack.c.l.b16 %v3323
    %v3391 = vunpack.c.l.b16 %v3324
    %v3392 = vunpack.c.l.b16 %v3325
    %v3393 = vunpack.c.l.b16 %v3326
    %v3394 = vunpack.c.l.b16 %v3327
    %v3395 = vunpack.c.l.b16 %v3328
    %v3396 = vunpack.c.l.b16 %v3329
    %v3397 = vunpack.c.l.b16 %v3330
    %v3398 = vunpack.c.l.b16 %v3331
    %v3399 = vunpack.c.l.b16 %v3332
    %v3400 = vunpack.c.l.b16 %v3333
    %v3401 = vunpack.c.l.b16 %v3334
    %v3402 = vunpack.c.l.b16 %v3335
    %v3403 = vunpack.c.l.b16 %v3336
    %v3404 = vpack.c.b16 %v3373, %v3372
    %v3405 = vpack.c.b16 %v3375, %v3374
    %v3406 = vpack.c.b16 %v3377, %v3376
    %v3407 = vpack.c.b16 %v3379, %v3378
    %v3408 = vpack.c.b16 %v3381, %v3380
    %v3409 = vpack.c.b16 %v3383, %v3382
    %v3410 = vpack.c.b16 %v3385, %v3384
    %v3411 = vpack.c.b16 %v3387, %v3386
    %v3412 = vpack.c.b16 %v3389, %v3388
    %v3413 = vpack.c.b16 %v3391, %v3390
    %v3414 = vpack.c.b16 %v3393, %v3392
    %v3415 = vpack.c.b16 %v3395, %v3394
    %v3416 = vpack.c.b16 %v3397, %v3396
    %v3417 = vpack.c.b16 %v3399, %v3398
    %v3418 = vpack.c.b16 %v3401, %v3400
    %v3419 = vpack.c.b16 %v3403, %v3402
    %3436 = vmatprep.subr.bf16.mxu0 0
    %3437 = vmatpush1.bf16.msra.mxu0 %v3404
    %3438 = vmatprep.subr.bf16.mxu0 0
    %3439 = vmatpush1.bf16.msra.mxu0 %v3405
    %3440 = vmatprep.subr.bf16.mxu0 0
    %3441 = vmatpush1.bf16.msra.mxu0 %v3406
    %3442 = vmatprep.subr.bf16.mxu0 0
    %3443 = vmatpush1.bf16.msra.mxu0 %v3407
    %3444 = vmatprep.subr.bf16.mxu0 0
    %3445 = vmatpush1.bf16.msra.mxu0 %v3408
    %3446 = vmatprep.subr.bf16.mxu0 0
    %3447 = vmatpush1.bf16.msra.mxu0 %v3409
    %3448 = vmatprep.subr.bf16.mxu0 0
    %3449 = vmatpush1.bf16.msra.mxu0 %v3410
    %3450 = vmatprep.subr.bf16.mxu0 0
    %3451 = vmatpush1.bf16.msra.mxu0 %v3411
    %3452 = vmatprep.subr.bf16.mxu0 0
    %3453 = vmatpush1.bf16.msra.mxu0 %v3412
    %3454 = vmatprep.subr.bf16.mxu0 0
    %3455 = vmatpush1.bf16.msra.mxu0 %v3413
    %3456 = vmatprep.subr.bf16.mxu0 0
    %3457 = vmatpush1.bf16.msra.mxu0 %v3414
    %3458 = vmatprep.subr.bf16.mxu0 0
    %3459 = vmatpush1.bf16.msra.mxu0 %v3415
    %3460 = vmatprep.subr.bf16.mxu0 0
    %3461 = vmatpush1.bf16.msra.mxu0 %v3416
    %3462 = vmatprep.subr.bf16.mxu0 0
    %3463 = vmatpush1.bf16.msra.mxu0 %v3417
    %3464 = vmatprep.subr.bf16.mxu0 0
    %3465 = vmatpush1.bf16.msra.mxu0 %v3418
    %3466 = vmatprep.subr.bf16.mxu0 0
    %3467 = vmatpush1.bf16.msra.mxu0 %v3419
    %3468 = vmatprep.mubr.bf16.mxu0 %v3338
    %3469 = vmatmul.mubr.bf16.gmra.mrb[0].mxu0 %v3337
    %v3470 = vpop.f32.mrb[0].mxu0
    %v3471 = vadd.f32 %v3339, %v3470
    %v3472 = vpop.f32.mrb[0].mxu0
    %v3473 = vpop.f32.mrb[0].mxu0
    %v3474 = vpop.f32.mrb[0].mxu0
    %3475 = vdwg.mxu0
    %v3476 = vld [vmem:[#allocation2 + $0x3c] sm:$0xf]
    %v3477 = vld [vmem:[#allocation2 + $0xa4] sm:$0xf]
    %v3478 = vld [vmem:[#allocation2 + $0x10c] sm:$0xf]
    %v3479 = vld [vmem:[#allocation2 + $0x174] sm:$0xf]
    %v3480 = vld [vmem:[#allocation2 + $0x1dc] sm:$0xf]
    %v3481 = vld [vmem:[#allocation2 + $0x244] sm:$0xf]
    %v3482 = vld [vmem:[#allocation2 + $0x2ac] sm:$0xf]
    %v3483 = vld [vmem:[#allocation2 + $0x314] sm:$0xf]
    %v3484 = vld [vmem:[#allocation2 + $0x37c] sm:$0xf]
    %v3485 = vld [vmem:[#allocation2 + $0x3e4] sm:$0xf]
    %v3486 = vld [vmem:[#allocation2 + $0x44c] sm:$0xf]
    %v3487 = vld [vmem:[#allocation2 + $0x4b4] sm:$0xf]
    %v3488 = vld [vmem:[#allocation2 + $0x51c] sm:$0xf]
    %v3489 = vld [vmem:[#allocation2 + $0x584] sm:$0xf]
    %v3490 = vld [vmem:[#allocation2 + $0x5ec] sm:$0xf]
    %v3491 = vld [vmem:[#allocation2 + $0x654] sm:$0xf]
    %v3492 = vpack.c.bf16 %v3471, %v3471
    %v3509 = vunpack.c.l.b16 %v3476
    %v3510 = vunpack.c.l.b16 %v3477
    %v3511 = vunpack.c.l.b16 %v3478
    %v3512 = vunpack.c.l.b16 %v3479
    %v3513 = vunpack.c.l.b16 %v3480
    %v3514 = vunpack.c.l.b16 %v3481
    %v3515 = vunpack.c.l.b16 %v3482
    %v3516 = vunpack.c.l.b16 %v3483
    %v3517 = vunpack.c.l.b16 %v3484
    %v3518 = vunpack.c.l.b16 %v3485
    %v3519 = vunpack.c.l.b16 %v3486
    %v3520 = vunpack.c.l.b16 %v3487
    %v3521 = vunpack.c.l.b16 %v3488
    %v3522 = vunpack.c.l.b16 %v3489
    %v3523 = vunpack.c.l.b16 %v3490
    %v3524 = vunpack.c.l.b16 %v3491
    %v3525 = vpack.c.b16 %v3510, %v3509
    %v3526 = vpack.c.b16 %v3512, %v3511
    %v3527 = vpack.c.b16 %v3514, %v3513
    %v3528 = vpack.c.b16 %v3516, %v3515
    %v3529 = vpack.c.b16 %v3518, %v3517
    %v3530 = vpack.c.b16 %v3520, %v3519
    %v3531 = vpack.c.b16 %v3522, %v3521
    %v3532 = vpack.c.b16 %v3524, %v3523
    %3541 = vmatprep.subr.bf16.mxu0 0
    %3542 = vmatpush1.bf16.msra.mxu0 %v3525
    %3543 = vmatprep.subr.bf16.mxu0 0
    %3544 = vmatpush1.bf16.msra.mxu0 %v3526
    %3545 = vmatprep.subr.bf16.mxu0 0
    %3546 = vmatpush1.bf16.msra.mxu0 %v3527
    %3547 = vmatprep.subr.bf16.mxu0 0
    %3548 = vmatpush1.bf16.msra.mxu0 %v3528
    %3549 = vmatprep.subr.bf16.mxu0 0
    %3550 = vmatpush1.bf16.msra.mxu0 %v3529
    %3551 = vmatprep.subr.bf16.mxu0 0
    %3552 = vmatpush1.bf16.msra.mxu0 %v3530
    %3553 = vmatprep.subr.bf16.mxu0 0
    %3554 = vmatpush1.bf16.msra.mxu0 %v3531
    %3555 = vmatprep.subr.bf16.mxu0 0
    %3556 = vmatpush1.bf16.msra.mxu0 %v3532
    %3557 = vmatprep.subr.bf16.mxu0 0
    %3558 = vmatpush1.bf16.msra.mxu0 0
    %3559 = vmatprep.subr.bf16.mxu0 0
    %3560 = vmatpush1.bf16.msra.mxu0 0
    %3561 = vmatprep.subr.bf16.mxu0 0
    %3562 = vmatpush1.bf16.msra.mxu0 0
    %3563 = vmatprep.subr.bf16.mxu0 0
    %3564 = vmatpush1.bf16.msra.mxu0 0
    %3565 = vmatprep.subr.bf16.mxu0 0
    %3566 = vmatpush1.bf16.msra.mxu0 0
    %3567 = vmatprep.subr.bf16.mxu0 0
    %3568 = vmatpush1.bf16.msra.mxu0 0
    %3569 = vmatprep.subr.bf16.mxu0 0
    %3570 = vmatpush1.bf16.msra.mxu0 0
    %3571 = vmatprep.subr.bf16.mxu0 0
    %3572 = vmatpush1.bf16.msra.mxu0 0
    %3573 = vmatprep.mubr.bf16.mxu0 0
    %3574 = vmatmul.mubr.bf16.gmra.mrb[0].mxu0 %v3492
    %v3575 = vpop.f32.mrb[0].mxu0
    %v3576 = vadd.f32 0.0, %v3575
    %v3577 = vpop.f32.mrb[0].mxu0
    %v3578 = vpop.f32.mrb[0].mxu0
    %v3579 = vpop.f32.mrb[0].mxu0
    %3580 = vdwg.mxu0
    %v3581 = vmax.f32 %v3576, 0.0
    %v3582 = vld [vmem:[#allocation2 + $0x40] sm:$0xf]
    %v3583 = vld [vmem:[#allocation2 + $0xa8] sm:$0xf]
    %v3584 = vld [vmem:[#allocation2 + $0x110] sm:$0xf]
    %v3585 = vld [vmem:[#allocation2 + $0x178] sm:$0xf]
    %v3586 = vld [vmem:[#allocation2 + $0x1e0] sm:$0xf]
    %v3587 = vld [vmem:[#allocation2 + $0x248] sm:$0xf]
    %v3588 = vld [vmem:[#allocation2 + $0x2b0] sm:$0xf]
    %v3589 = vld [vmem:[#allocation2 + $0x318] sm:$0xf]
    %v3590 = vld [vmem:[#allocation2 + $0x380] sm:$0xf]
    %v3591 = vld [vmem:[#allocation2 + $0x3e8] sm:$0xf]
    %v3592 = vld [vmem:[#allocation2 + $0x450] sm:$0xf]
    %v3593 = vld [vmem:[#allocation2 + $0x4b8] sm:$0xf]
    %v3594 = vld [vmem:[#allocation2 + $0x520] sm:$0xf]
    %v3595 = vld [vmem:[#allocation2 + $0x588] sm:$0xf]
    %v3596 = vld [vmem:[#allocation2 + $0x5f0] sm:$0xf]
    %v3597 = vld [vmem:[#allocation2 + $0x658] sm:$0xf]
    %v3598 = vpack.c.bf16 %v3581, %v3581
    %v3615 = vunpack.c.l.b16 %v3582
    %v3616 = vunpack.c.l.b16 %v3583
    %v3617 = vunpack.c.l.b16 %v3584
    %v3618 = vunpack.c.l.b16 %v3585
    %v3619 = vunpack.c.l.b16 %v3586
    %v3620 = vunpack.c.l.b16 %v3587
    %v3621 = vunpack.c.l.b16 %v3588
    %v3622 = vunpack.c.l.b16 %v3589
    %v3623 = vunpack.c.l.b16 %v3590
    %v3624 = vunpack.c.l.b16 %v3591
    %v3625 = vunpack.c.l.b16 %v3592
    %v3626 = vunpack.c.l.b16 %v3593
    %v3627 = vunpack.c.l.b16 %v3594
    %v3628 = vunpack.c.l.b16 %v3595
    %v3629 = vunpack.c.l.b16 %v3596
    %v3630 = vunpack.c.l.b16 %v3597
    %v3631 = vpack.c.b16 %v3616, %v3615
    %v3632 = vpack.c.b16 %v3618, %v3617
    %v3633 = vpack.c.b16 %v3620, %v3619
    %v3634 = vpack.c.b16 %v3622, %v3621
    %v3635 = vpack.c.b16 %v3624, %v3623
    %v3636 = vpack.c.b16 %v3626, %v3625
    %v3637 = vpack.c.b16 %v3628, %v3627
    %v3638 = vpack.c.b16 %v3630, %v3629
    %3647 = vmatprep.subr.bf16.mxu0 0
    %3648 = vmatpush1.bf16.msra.mxu0 %v3631
    %3649 = vmatprep.subr.bf16.mxu0 0
    %3650 = vmatpush1.bf16.msra.mxu0 %v3632
    %3651 = vmatprep.subr.bf16.mxu0 0
    %3652 = vmatpush1.bf16.msra.mxu0 %v3633
    %3653 = vmatprep.subr.bf16.mxu0 0
    %3654 = vmatpush1.bf16.msra.mxu0 %v3634
    %3655 = vmatprep.subr.bf16.mxu0 0
    %3656 = vmatpush1.bf16.msra.mxu0 %v3635
    %3657 = vmatprep.subr.bf16.mxu0 0
    %3658 = vmatpush1.bf16.msra.mxu0 %v3636
    %3659 = vmatprep.subr.bf16.mxu0 0
    %3660 = vmatpush1.bf16.msra.mxu0 %v3637
    %3661 = vmatprep.subr.bf16.mxu0 0
    %3662 = vmatpush1.bf16.msra.mxu0 %v3638
    %3663 = vmatprep.subr.bf16.mxu0 0
    %3664 = vmatpush1.bf16.msra.mxu0 0
    %3665 = vmatprep.subr.bf16.mxu0 0
    %3666 = vmatpush1.bf16.msra.mxu0 0
    %3667 = vmatprep.subr.bf16.mxu0 0
    %3668 = vmatpush1.bf16.msra.mxu0 0
    %3669 = vmatprep.subr.bf16.mxu0 0
    %3670 = vmatpush1.bf16.msra.mxu0 0
    %3671 = vmatprep.subr.bf16.mxu0 0
    %3672 = vmatpush1.bf16.msra.mxu0 0
    %3673 = vmatprep.subr.bf16.mxu0 0
    %3674 = vmatpush1.bf16.msra.mxu0 0
    %3675 = vmatprep.subr.bf16.mxu0 0
    %3676 = vmatpush1.bf16.msra.mxu0 0
    %3677 = vmatprep.subr.bf16.mxu0 0
    %3678 = vmatpush1.bf16.msra.mxu0 0
    %3679 = vmatprep.mubr.bf16.mxu0 0
    %3680 = vmatmul.mubr.bf16.gmra.mrb[0].mxu0 %v3598
    %v3681 = vpop.f32.mrb[0].mxu0
    %v3682 = vadd.f32 0.0, %v3681
    %v3683 = vpop.f32.mrb[0].mxu0
    %v3684 = vpop.f32.mrb[0].mxu0
    %v3685 = vpop.f32.mrb[0].mxu0
    %3686 = vdwg.mxu0
    %v3687 = vxor.u32 %v3682, 2147483648
    %v3688 = vmul.f32 %v3687, 1.442695
    %v3689 = vpow.pop %v3688
    %v3690 = vadd.f32 %v3689, 1.0
    %v3691 = vrcp.pop %v3690
    %v3692 = vmul.f32 1.0, %v3691
    %v3693 = vmul.f32 %v3471, %v3692
    %v3694 = vadd.f32 %v3693, %v2338
    %v3695 = vadd.f32 %v2338, %v3694
    %v3696 = vmax.f32 %v3694, 0.0
    %v3697 = vld [vmem:[#allocation2 + $0x44] sm:$0xf]
    %v3698 = vld [vmem:[#allocation2 + $0xac] sm:$0xf]
    %v3699 = vld [vmem:[#allocation2 + $0x114] sm:$0xf]
    %v3700 = vld [vmem:[#allocation2 + $0x17c] sm:$0xf]
    %v3701 = vld [vmem:[#allocation2 + $0x1e4] sm:$0xf]
    %v3702 = vld [vmem:[#allocation2 + $0x24c] sm:$0xf]
    %v3703 = vld [vmem:[#allocation2 + $0x2b4] sm:$0xf]
    %v3704 = vld [vmem:[#allocation2 + $0x31c] sm:$0xf]
    %v3705 = vld [vmem:[#allocation2 + $0x384] sm:$0xf]
    %v3706 = vld [vmem:[#allocation2 + $0x3ec] sm:$0xf]
    %v3707 = vld [vmem:[#allocation2 + $0x454] sm:$0xf]
    %v3708 = vld [vmem:[#allocation2 + $0x4bc] sm:$0xf]
    %v3709 = vld [vmem:[#allocation2 + $0x524] sm:$0xf]
    %v3710 = vld [vmem:[#allocation2 + $0x58c] sm:$0xf]
    %v3711 = vld [vmem:[#allocation2 + $0x5f4] sm:$0xf]
    %v3712 = vld [vmem:[#allocation2 + $0x65c] sm:$0xf]
    %v3713 = vpack.c.bf16 %v3696, %v3696
    %v3714 = vld [vmem:[#allocation8 + $0x1d] ss:$0 sm:$0xff]
    %v3731 = vunpack.c.l.b16 %v3697
    %v3732 = vunpack.c.l.b16 %v3698
    %v3733 = vunpack.c.l.b16 %v3699
    %v3734 = vunpack.c.l.b16 %v3700
    %v3735 = vunpack.c.l.b16 %v3701
    %v3736 = vunpack.c.l.b16 %v3702
    %v3737 = vunpack.c.l.b16 %v3703
    %v3738 = vunpack.c.l.b16 %v3704
    %v3739 = vunpack.c.l.b16 %v3705
    %v3740 = vunpack.c.l.b16 %v3706
    %v3741 = vunpack.c.l.b16 %v3707
    %v3742 = vunpack.c.l.b16 %v3708
    %v3743 = vunpack.c.l.b16 %v3709
    %v3744 = vunpack.c.l.b16 %v3710
    %v3745 = vunpack.c.l.b16 %v3711
    %v3746 = vunpack.c.l.b16 %v3712
    %v3747 = vpack.c.b16 %v3732, %v3731
    %v3748 = vpack.c.b16 %v3734, %v3733
    %v3749 = vpack.c.b16 %v3736, %v3735
    %v3750 = vpack.c.b16 %v3738, %v3737
    %v3751 = vpack.c.b16 %v3740, %v3739
    %v3752 = vpack.c.b16 %v3742, %v3741
    %v3753 = vpack.c.b16 %v3744, %v3743
    %v3754 = vpack.c.b16 %v3746, %v3745
    %3763 = vmatprep.subr.bf16.mxu0 0
    %3764 = vmatpush1.bf16.msra.mxu0 %v3747
    %3765 = vmatprep.subr.bf16.mxu0 0
    %3766 = vmatpush1.bf16.msra.mxu0 %v3748
    %3767 = vmatprep.subr.bf16.mxu0 0
    %3768 = vmatpush1.bf16.msra.mxu0 %v3749
    %3769 = vmatprep.subr.bf16.mxu0 0
    %3770 = vmatpush1.bf16.msra.mxu0 %v3750
    %3771 = vmatprep.subr.bf16.mxu0 0
    %3772 = vmatpush1.bf16.msra.mxu0 %v3751
    %3773 = vmatprep.subr.bf16.mxu0 0
    %3774 = vmatpush1.bf16.msra.mxu0 %v3752
    %3775 = vmatprep.subr.bf16.mxu0 0
    %3776 = vmatpush1.bf16.msra.mxu0 %v3753
    %3777 = vmatprep.subr.bf16.mxu0 0
    %3778 = vmatpush1.bf16.msra.mxu0 %v3754
    %3779 = vmatprep.subr.bf16.mxu0 0
    %3780 = vmatpush1.bf16.msra.mxu0 0
    %3781 = vmatprep.subr.bf16.mxu0 0
    %3782 = vmatpush1.bf16.msra.mxu0 0
    %3783 = vmatprep.subr.bf16.mxu0 0
    %3784 = vmatpush1.bf16.msra.mxu0 0
    %3785 = vmatprep.subr.bf16.mxu0 0
    %3786 = vmatpush1.bf16.msra.mxu0 0
    %3787 = vmatprep.subr.bf16.mxu0 0
    %3788 = vmatpush1.bf16.msra.mxu0 0
    %3789 = vmatprep.subr.bf16.mxu0 0
    %3790 = vmatpush1.bf16.msra.mxu0 0
    %3791 = vmatprep.subr.bf16.mxu0 0
    %3792 = vmatpush1.bf16.msra.mxu0 0
    %3793 = vmatprep.subr.bf16.mxu0 0
    %3794 = vmatpush1.bf16.msra.mxu0 0
    %3795 = vmatprep.mubr.bf16.mxu0 0
    %3796 = vmatmul.mubr.bf16.gmra.mrb[0].mxu0 %v3713
    %v3797 = vpop.f32.mrb[0].mxu0
    %v3798 = vadd.f32 %v3714, %v3797
    %v3799 = vpop.f32.mrb[0].mxu0
    %v3800 = vpop.f32.mrb[0].mxu0
    %v3801 = vpop.f32.mrb[0].mxu0
    %3802 = vdwg.mxu0
    %v3803 = vmax.f32 %v3798, 0.0
    %v3804 = vld [vmem:[#allocation2 + $0x48] sm:$0xff]
    %v3805 = vld [vmem:[#allocation2 + $0xb0] sm:$0xff]
    %v3806 = vld [vmem:[#allocation2 + $0x118] sm:$0xff]
    %v3807 = vld [vmem:[#allocation2 + $0x180] sm:$0xff]
    %v3808 = vld [vmem:[#allocation2 + $0x1e8] sm:$0xff]
    %v3809 = vld [vmem:[#allocation2 + $0x250] sm:$0xff]
    %v3810 = vld [vmem:[#allocation2 + $0x2b8] sm:$0xff]
    %v3811 = vld [vmem:[#allocation2 + $0x320] sm:$0xff]
    %v3812 = vld [vmem:[#allocation2 + $0x388] sm:$0xff]
    %v3813 = vld [vmem:[#allocation2 + $0x3f0] sm:$0xff]
    %v3814 = vld [vmem:[#allocation2 + $0x458] sm:$0xff]
    %v3815 = vld [vmem:[#allocation2 + $0x4c0] sm:$0xff]
    %v3816 = vld [vmem:[#allocation2 + $0x528] sm:$0xff]
    %v3817 = vld [vmem:[#allocation2 + $0x590] sm:$0xff]
    %v3818 = vld [vmem:[#allocation2 + $0x5f8] sm:$0xff]
    %v3819 = vld [vmem:[#allocation2 + $0x660] sm:$0xff]
    %v3820 = vpack.c.bf16 %v3803, %v3803
    %s3821 = scalar_lea.vmem [#allocation8], 30
    %v3822 = vld [vmem:[%s3821] ss:$8 sm:$0x3]
    %v3824 = vlaneseq
    %v3825 = vshrl.u32 %v3824, 7
    %v3826 = vsub.s32 0, %v3825
    %v3827 = vrot.slane %v3822, %v3826
    %v3828 = vlaneseq
    %v3829 = vshrl.u32 %v3828, 7
    %v3830 = vsub.s32 1, %v3829
    %v3831 = vrot.slane %v3822, %v3830
    %v3850 = vunpack.c.l.b16 %v3804
    %v3851 = vunpack.c.h.b16 %v3804
    %v3852 = vunpack.c.l.b16 %v3805
    %v3853 = vunpack.c.h.b16 %v3805
    %v3854 = vunpack.c.l.b16 %v3806
    %v3855 = vunpack.c.h.b16 %v3806
    %v3856 = vunpack.c.l.b16 %v3807
    %v3857 = vunpack.c.h.b16 %v3807
    %v3858 = vunpack.c.l.b16 %v3808
    %v3859 = vunpack.c.h.b16 %v3808
    %v3860 = vunpack.c.l.b16 %v3809
    %v3861 = vunpack.c.h.b16 %v3809
    %v3862 = vunpack.c.l.b16 %v3810
    %v3863 = vunpack.c.h.b16 %v3810
    %v3864 = vunpack.c.l.b16 %v3811
    %v3865 = vunpack.c.h.b16 %v3811
    %v3866 = vunpack.c.l.b16 %v3812
    %v3867 = vunpack.c.h.b16 %v3812
    %v3868 = vunpack.c.l.b16 %v3813
    %v3869 = vunpack.c.h.b16 %v3813
    %v3870 = vunpack.c.l.b16 %v3814
    %v3871 = vunpack.c.h.b16 %v3814
    %v3872 = vunpack.c.l.b16 %v3815
    %v3873 = vunpack.c.h.b16 %v3815
    %v3874 = vunpack.c.l.b16 %v3816
    %v3875 = vunpack.c.h.b16 %v3816
    %v3876 = vunpack.c.l.b16 %v3817
    %v3877 = vunpack.c.h.b16 %v3817
    %v3878 = vunpack.c.l.b16 %v3818
    %v3879 = vunpack.c.h.b16 %v3818
    %v3880 = vunpack.c.l.b16 %v3819
    %v3881 = vunpack.c.h.b16 %v3819
    %v3882 = vpack.c.b16 %v3852, %v3850
    %v3883 = vpack.c.b16 %v3853, %v3851
    %v3884 = vpack.c.b16 %v3856, %v3854
    %v3885 = vpack.c.b16 %v3857, %v3855
    %v3886 = vpack.c.b16 %v3860, %v3858
    %v3887 = vpack.c.b16 %v3861, %v3859
    %v3888 = vpack.c.b16 %v3864, %v3862
    %v3889 = vpack.c.b16 %v3865, %v3863
    %v3890 = vpack.c.b16 %v3868, %v3866
    %v3891 = vpack.c.b16 %v3869, %v3867
    %v3892 = vpack.c.b16 %v3872, %v3870
    %v3893 = vpack.c.b16 %v3873, %v3871
    %v3894 = vpack.c.b16 %v3876, %v3874
    %v3895 = vpack.c.b16 %v3877, %v3875
    %v3896 = vpack.c.b16 %v3880, %v3878
    %v3897 = vpack.c.b16 %v3881, %v3879
    %3914 = vmatprep.subr.bf16.mxu0 %v3883
    %3915 = vmatpush1.bf16.msra.mxu0 %v3882
    %3916 = vmatprep.subr.bf16.mxu0 %v3885
    %3917 = vmatpush1.bf16.msra.mxu0 %v3884
    %3918 = vmatprep.subr.bf16.mxu0 %v3887
    %3919 = vmatpush1.bf16.msra.mxu0 %v3886
    %3920 = vmatprep.subr.bf16.mxu0 %v3889
    %3921 = vmatpush1.bf16.msra.mxu0 %v3888
    %3922 = vmatprep.subr.bf16.mxu0 %v3891
    %3923 = vmatpush1.bf16.msra.mxu0 %v3890
    %3924 = vmatprep.subr.bf16.mxu0 %v3893
    %3925 = vmatpush1.bf16.msra.mxu0 %v3892
    %3926 = vmatprep.subr.bf16.mxu0 %v3895
    %3927 = vmatpush1.bf16.msra.mxu0 %v3894
    %3928 = vmatprep.subr.bf16.mxu0 %v3897
    %3929 = vmatpush1.bf16.msra.mxu0 %v3896
    %3930 = vmatprep.subr.bf16.mxu0 0
    %3931 = vmatpush1.bf16.msra.mxu0 0
    %3932 = vmatprep.subr.bf16.mxu0 0
    %3933 = vmatpush1.bf16.msra.mxu0 0
    %3934 = vmatprep.subr.bf16.mxu0 0
    %3935 = vmatpush1.bf16.msra.mxu0 0
    %3936 = vmatprep.subr.bf16.mxu0 0
    %3937 = vmatpush1.bf16.msra.mxu0 0
    %3938 = vmatprep.subr.bf16.mxu0 0
    %3939 = vmatpush1.bf16.msra.mxu0 0
    %3940 = vmatprep.subr.bf16.mxu0 0
    %3941 = vmatpush1.bf16.msra.mxu0 0
    %3942 = vmatprep.subr.bf16.mxu0 0
    %3943 = vmatpush1.bf16.msra.mxu0 0
    %3944 = vmatprep.subr.bf16.mxu0 0
    %3945 = vmatpush1.bf16.msra.mxu0 0
    %3946 = vmatprep.mubr.bf16.mxu0 0
    %3947 = vmatmul.mubr.bf16.gmra.mrb[0].mxu0 %v3820
    %v3948 = vpop.f32.mrb[0].mxu0
    %v3949 = vadd.f32 %v3827, %v3948
    %v3950 = vpop.f32.mrb[0].mxu0
    %v3951 = vadd.f32 %v3831, %v3950
    %v3952 = vpop.f32.mrb[0].mxu0
    %v3953 = vpop.f32.mrb[0].mxu0
    %3954 = vdwg.mxu0
    %v3955 = vmax.f32 %v3949, 0.0
    %v3956 = vmax.f32 %v3951, 0.0
    %v3957 = vld [vmem:[#allocation5 + $0x1c] sm:$0xf]
    %v3958 = vld [vmem:[#allocation5 + $0x48] sm:$0xf]
    %v3959 = vld [vmem:[#allocation5 + $0x74] sm:$0xf]
    %v3960 = vld [vmem:[#allocation5 + $0xa0] sm:$0xf]
    %v3961 = vld [vmem:[#allocation5 + $0xcc] sm:$0xf]
    %v3962 = vld [vmem:[#allocation5 + $0xf8] sm:$0xf]
    %v3963 = vld [vmem:[#allocation5 + $0x124] sm:$0xf]
    %v3964 = vld [vmem:[#allocation5 + $0x150] sm:$0xf]
    %v3965 = vld [vmem:[#allocation5 + $0x17c] sm:$0xf]
    %v3966 = vld [vmem:[#allocation5 + $0x1a8] sm:$0xf]
    %v3967 = vld [vmem:[#allocation5 + $0x1d4] sm:$0xf]
    %v3968 = vld [vmem:[#allocation5 + $0x200] sm:$0xf]
    %v3969 = vld [vmem:[#allocation5 + $0x22c] sm:$0xf]
    %v3970 = vld [vmem:[#allocation5 + $0x258] sm:$0xf]
    %v3971 = vld [vmem:[#allocation5 + $0x284] sm:$0xf]
    %v3972 = vld [vmem:[#allocation5 + $0x2b0] sm:$0xf]
    %v3973 = vld [vmem:[#allocation5 + $0x2dc] sm:$0xf]
    %v3974 = vld [vmem:[#allocation5 + $0x308] sm:$0xf]
    %v3975 = vld [vmem:[#allocation5 + $0x334] sm:$0xf]
    %v3976 = vld [vmem:[#allocation5 + $0x360] sm:$0xf]
    %v3977 = vld [vmem:[#allocation5 + $0x38c] sm:$0xf]
    %v3978 = vld [vmem:[#allocation5 + $0x3b8] sm:$0xf]
    %v3979 = vld [vmem:[#allocation5 + $0x3e4] sm:$0xf]
    %v3980 = vld [vmem:[#allocation5 + $0x410] sm:$0xf]
    %v3981 = vld [vmem:[#allocation5 + $0x43c] sm:$0xf]
    %v3982 = vld [vmem:[#allocation5 + $0x468] sm:$0xf]
    %v3983 = vld [vmem:[#allocation5 + $0x494] sm:$0xf]
    %v3984 = vld [vmem:[#allocation5 + $0x4c0] sm:$0xf]
    %v3985 = vld [vmem:[#allocation5 + $0x4ec] sm:$0xf]
    %v3986 = vld [vmem:[#allocation5 + $0x518] sm:$0xf]
    %v3987 = vld [vmem:[#allocation5 + $0x544] sm:$0xf]
    %v3988 = vld [vmem:[#allocation5 + $0x570] sm:$0xf]
    %v3989 = vpack.c.bf16 %v3955, %v3955
    %v3990 = vpack.c.bf16 %v3956, %v3956
    %v3991 = vld [vmem:[#allocation8 + $0x1f] ss:$0 sm:$0xff]
    %v4024 = vunpack.c.l.b16 %v3957
    %v4025 = vunpack.c.l.b16 %v3958
    %v4026 = vunpack.c.l.b16 %v3959
    %v4027 = vunpack.c.l.b16 %v3960
    %v4028 = vunpack.c.l.b16 %v3961
    %v4029 = vunpack.c.l.b16 %v3962
    %v4030 = vunpack.c.l.b16 %v3963
    %v4031 = vunpack.c.l.b16 %v3964
    %v4032 = vunpack.c.l.b16 %v3965
    %v4033 = vunpack.c.l.b16 %v3966
    %v4034 = vunpack.c.l.b16 %v3967
    %v4035 = vunpack.c.l.b16 %v3968
    %v4036 = vunpack.c.l.b16 %v3969
    %v4037 = vunpack.c.l.b16 %v3970
    %v4038 = vunpack.c.l.b16 %v3971
    %v4039 = vunpack.c.l.b16 %v3972
    %v4040 = vunpack.c.l.b16 %v3973
    %v4041 = vunpack.c.l.b16 %v3974
    %v4042 = vunpack.c.l.b16 %v3975
    %v4043 = vunpack.c.l.b16 %v3976
    %v4044 = vunpack.c.l.b16 %v3977
    %v4045 = vunpack.c.l.b16 %v3978
    %v4046 = vunpack.c.l.b16 %v3979
    %v4047 = vunpack.c.l.b16 %v3980
    %v4048 = vunpack.c.l.b16 %v3981
    %v4049 = vunpack.c.l.b16 %v3982
    %v4050 = vunpack.c.l.b16 %v3983
    %v4051 = vunpack.c.l.b16 %v3984
    %v4052 = vunpack.c.l.b16 %v3985
    %v4053 = vunpack.c.l.b16 %v3986
    %v4054 = vunpack.c.l.b16 %v3987
    %v4055 = vunpack.c.l.b16 %v3988
    %v4056 = vpack.c.b16 %v4025, %v4024
    %v4057 = vpack.c.b16 %v4027, %v4026
    %v4058 = vpack.c.b16 %v4029, %v4028
    %v4059 = vpack.c.b16 %v4031, %v4030
    %v4060 = vpack.c.b16 %v4033, %v4032
    %v4061 = vpack.c.b16 %v4035, %v4034
    %v4062 = vpack.c.b16 %v4037, %v4036
    %v4063 = vpack.c.b16 %v4039, %v4038
    %v4064 = vpack.c.b16 %v4041, %v4040
    %v4065 = vpack.c.b16 %v4043, %v4042
    %v4066 = vpack.c.b16 %v4045, %v4044
    %v4067 = vpack.c.b16 %v4047, %v4046
    %v4068 = vpack.c.b16 %v4049, %v4048
    %v4069 = vpack.c.b16 %v4051, %v4050
    %v4070 = vpack.c.b16 %v4053, %v4052
    %v4071 = vpack.c.b16 %v4055, %v4054
    %4088 = vmatprep.subr.bf16.mxu0 0
    %4089 = vmatpush1.bf16.msra.mxu0 %v4056
    %4090 = vmatprep.subr.bf16.mxu0 0
    %4091 = vmatpush1.bf16.msra.mxu0 %v4057
    %4092 = vmatprep.subr.bf16.mxu0 0
    %4093 = vmatpush1.bf16.msra.mxu0 %v4058
    %4094 = vmatprep.subr.bf16.mxu0 0
    %4095 = vmatpush1.bf16.msra.mxu0 %v4059
    %4096 = vmatprep.subr.bf16.mxu0 0
    %4097 = vmatpush1.bf16.msra.mxu0 %v4060
    %4098 = vmatprep.subr.bf16.mxu0 0
    %4099 = vmatpush1.bf16.msra.mxu0 %v4061
    %4100 = vmatprep.subr.bf16.mxu0 0
    %4101 = vmatpush1.bf16.msra.mxu0 %v4062
    %4102 = vmatprep.subr.bf16.mxu0 0
    %4103 = vmatpush1.bf16.msra.mxu0 %v4063
    %4104 = vmatprep.subr.bf16.mxu0 0
    %4105 = vmatpush1.bf16.msra.mxu0 %v4064
    %4106 = vmatprep.subr.bf16.mxu0 0
    %4107 = vmatpush1.bf16.msra.mxu0 %v4065
    %4108 = vmatprep.subr.bf16.mxu0 0
    %4109 = vmatpush1.bf16.msra.mxu0 %v4066
    %4110 = vmatprep.subr.bf16.mxu0 0
    %4111 = vmatpush1.bf16.msra.mxu0 %v4067
    %4112 = vmatprep.subr.bf16.mxu0 0
    %4113 = vmatpush1.bf16.msra.mxu0 %v4068
    %4114 = vmatprep.subr.bf16.mxu0 0
    %4115 = vmatpush1.bf16.msra.mxu0 %v4069
    %4116 = vmatprep.subr.bf16.mxu0 0
    %4117 = vmatpush1.bf16.msra.mxu0 %v4070
    %4118 = vmatprep.subr.bf16.mxu0 0
    %4119 = vmatpush1.bf16.msra.mxu0 %v4071
    %4120 = vmatprep.mubr.bf16.mxu0 %v3990
    %4121 = vmatmul.mubr.bf16.gmra.mrb[0].mxu0 %v3989
    %v4122 = vpop.f32.mrb[0].mxu0
    %v4123 = vadd.f32 %v3991, %v4122
    %v4124 = vpop.f32.mrb[0].mxu0
    %v4125 = vpop.f32.mrb[0].mxu0
    %v4126 = vpop.f32.mrb[0].mxu0
    %4127 = vdwg.mxu0
    %v4128 = vmax.f32 %v4123, 0.0
    %v4129 = vld [vmem:[#allocation2 + $0x50] sm:$0xf]
    %v4130 = vld [vmem:[#allocation2 + $0xb8] sm:$0xf]
    %v4131 = vld [vmem:[#allocation2 + $0x120] sm:$0xf]
    %v4132 = vld [vmem:[#allocation2 + $0x188] sm:$0xf]
    %v4133 = vld [vmem:[#allocation2 + $0x1f0] sm:$0xf]
    %v4134 = vld [vmem:[#allocation2 + $0x258] sm:$0xf]
    %v4135 = vld [vmem:[#allocation2 + $0x2c0] sm:$0xf]
    %v4136 = vld [vmem:[#allocation2 + $0x328] sm:$0xf]
    %v4137 = vld [vmem:[#allocation2 + $0x390] sm:$0xf]
    %v4138 = vld [vmem:[#allocation2 + $0x3f8] sm:$0xf]
    %v4139 = vld [vmem:[#allocation2 + $0x460] sm:$0xf]
    %v4140 = vld [vmem:[#allocation2 + $0x4c8] sm:$0xf]
    %v4141 = vld [vmem:[#allocation2 + $0x530] sm:$0xf]
    %v4142 = vld [vmem:[#allocation2 + $0x598] sm:$0xf]
    %v4143 = vld [vmem:[#allocation2 + $0x600] sm:$0xf]
    %v4144 = vld [vmem:[#allocation2 + $0x668] sm:$0xf]
    %v4145 = vpack.c.bf16 %v4128, %v4128
    %v4146 = vld [vmem:[#allocation8 + $0x30] ss:$0 sm:$0xff]
    %v4163 = vunpack.c.l.b16 %v4129
    %v4164 = vunpack.c.l.b16 %v4130
    %v4165 = vunpack.c.l.b16 %v4131
    %v4166 = vunpack.c.l.b16 %v4132
    %v4167 = vunpack.c.l.b16 %v4133
    %v4168 = vunpack.c.l.b16 %v4134
    %v4169 = vunpack.c.l.b16 %v4135
    %v4170 = vunpack.c.l.b16 %v4136
    %v4171 = vunpack.c.l.b16 %v4137
    %v4172 = vunpack.c.l.b16 %v4138
    %v4173 = vunpack.c.l.b16 %v4139
    %v4174 = vunpack.c.l.b16 %v4140
    %v4175 = vunpack.c.l.b16 %v4141
    %v4176 = vunpack.c.l.b16 %v4142
    %v4177 = vunpack.c.l.b16 %v4143
    %v4178 = vunpack.c.l.b16 %v4144
    %v4179 = vpack.c.b16 %v4164, %v4163
    %v4180 = vpack.c.b16 %v4166, %v4165
    %v4181 = vpack.c.b16 %v4168, %v4167
    %v4182 = vpack.c.b16 %v4170, %v4169
    %v4183 = vpack.c.b16 %v4172, %v4171
    %v4184 = vpack.c.b16 %v4174, %v4173
    %v4185 = vpack.c.b16 %v4176, %v4175
    %v4186 = vpack.c.b16 %v4178, %v4177
    %4195 = vmatprep.subr.bf16.mxu0 0
    %4196 = vmatpush1.bf16.msra.mxu0 %v4179
    %4197 = vmatprep.subr.bf16.mxu0 0
    %4198 = vmatpush1.bf16.msra.mxu0 %v4180
    %4199 = vmatprep.subr.bf16.mxu0 0
    %4200 = vmatpush1.bf16.msra.mxu0 %v4181
    %4201 = vmatprep.subr.bf16.mxu0 0
    %4202 = vmatpush1.bf16.msra.mxu0 %v4182
    %4203 = vmatprep.subr.bf16.mxu0 0
    %4204 = vmatpush1.bf16.msra.mxu0 %v4183
    %4205 = vmatprep.subr.bf16.mxu0 0
    %4206 = vmatpush1.bf16.msra.mxu0 %v4184
    %4207 = vmatprep.subr.bf16.mxu0 0
    %4208 = vmatpush1.bf16.msra.mxu0 %v4185
    %4209 = vmatprep.subr.bf16.mxu0 0
    %4210 = vmatpush1.bf16.msra.mxu0 %v4186
    %4211 = vmatprep.subr.bf16.mxu0 0
    %4212 = vmatpush1.bf16.msra.mxu0 0
    %4213 = vmatprep.subr.bf16.mxu0 0
    %4214 = vmatpush1.bf16.msra.mxu0 0
    %4215 = vmatprep.subr.bf16.mxu0 0
    %4216 = vmatpush1.bf16.msra.mxu0 0
    %4217 = vmatprep.subr.bf16.mxu0 0
    %4218 = vmatpush1.bf16.msra.mxu0 0
    %4219 = vmatprep.subr.bf16.mxu0 0
    %4220 = vmatpush1.bf16.msra.mxu0 0
    %4221 = vmatprep.subr.bf16.mxu0 0
    %4222 = vmatpush1.bf16.msra.mxu0 0
    %4223 = vmatprep.subr.bf16.mxu0 0
    %4224 = vmatpush1.bf16.msra.mxu0 0
    %4225 = vmatprep.subr.bf16.mxu0 0
    %4226 = vmatpush1.bf16.msra.mxu0 0
    %4227 = vmatprep.mubr.bf16.mxu0 0
    %4228 = vmatmul.mubr.bf16.gmra.mrb[0].mxu0 %v4145
    %v4229 = vpop.f32.mrb[0].mxu0
    %v4230 = vadd.f32 %v4146, %v4229
    %v4231 = vpop.f32.mrb[0].mxu0
    %v4232 = vpop.f32.mrb[0].mxu0
    %v4233 = vpop.f32.mrb[0].mxu0
    %4234 = vdwg.mxu0
    %v4235 = vld [vmem:[#allocation2 + $0x54] sm:$0xf]
    %v4236 = vld [vmem:[#allocation2 + $0xbc] sm:$0xf]
    %v4237 = vld [vmem:[#allocation2 + $0x124] sm:$0xf]
    %v4238 = vld [vmem:[#allocation2 + $0x18c] sm:$0xf]
    %v4239 = vld [vmem:[#allocation2 + $0x1f4] sm:$0xf]
    %v4240 = vld [vmem:[#allocation2 + $0x25c] sm:$0xf]
    %v4241 = vld [vmem:[#allocation2 + $0x2c4] sm:$0xf]
    %v4242 = vld [vmem:[#allocation2 + $0x32c] sm:$0xf]
    %v4243 = vld [vmem:[#allocation2 + $0x394] sm:$0xf]
    %v4244 = vld [vmem:[#allocation2 + $0x3fc] sm:$0xf]
    %v4245 = vld [vmem:[#allocation2 + $0x464] sm:$0xf]
    %v4246 = vld [vmem:[#allocation2 + $0x4cc] sm:$0xf]
    %v4247 = vld [vmem:[#allocation2 + $0x534] sm:$0xf]
    %v4248 = vld [vmem:[#allocation2 + $0x59c] sm:$0xf]
    %v4249 = vld [vmem:[#allocation2 + $0x604] sm:$0xf]
    %v4250 = vld [vmem:[#allocation2 + $0x66c] sm:$0xf]
    %v4251 = vpack.c.bf16 %v4230, %v4230
    %v4268 = vunpack.c.l.b16 %v4235
    %v4269 = vunpack.c.l.b16 %v4236
    %v4270 = vunpack.c.l.b16 %v4237
    %v4271 = vunpack.c.l.b16 %v4238
    %v4272 = vunpack.c.l.b16 %v4239
    %v4273 = vunpack.c.l.b16 %v4240
    %v4274 = vunpack.c.l.b16 %v4241
    %v4275 = vunpack.c.l.b16 %v4242
    %v4276 = vunpack.c.l.b16 %v4243
    %v4277 = vunpack.c.l.b16 %v4244
    %v4278 = vunpack.c.l.b16 %v4245
    %v4279 = vunpack.c.l.b16 %v4246
    %v4280 = vunpack.c.l.b16 %v4247
    %v4281 = vunpack.c.l.b16 %v4248
    %v4282 = vunpack.c.l.b16 %v4249
    %v4283 = vunpack.c.l.b16 %v4250
    %v4284 = vpack.c.b16 %v4269, %v4268
    %v4285 = vpack.c.b16 %v4271, %v4270
    %v4286 = vpack.c.b16 %v4273, %v4272
    %v4287 = vpack.c.b16 %v4275, %v4274
    %v4288 = vpack.c.b16 %v4277, %v4276
    %v4289 = vpack.c.b16 %v4279, %v4278
    %v4290 = vpack.c.b16 %v4281, %v4280
    %v4291 = vpack.c.b16 %v4283, %v4282
    %4300 = vmatprep.subr.bf16.mxu0 0
    %4301 = vmatpush1.bf16.msra.mxu0 %v4284
    %4302 = vmatprep.subr.bf16.mxu0 0
    %4303 = vmatpush1.bf16.msra.mxu0 %v4285
    %4304 = vmatprep.subr.bf16.mxu0 0
    %4305 = vmatpush1.bf16.msra.mxu0 %v4286
    %4306 = vmatprep.subr.bf16.mxu0 0
    %4307 = vmatpush1.bf16.msra.mxu0 %v4287
    %4308 = vmatprep.subr.bf16.mxu0 0
    %4309 = vmatpush1.bf16.msra.mxu0 %v4288
    %4310 = vmatprep.subr.bf16.mxu0 0
    %4311 = vmatpush1.bf16.msra.mxu0 %v4289
    %4312 = vmatprep.subr.bf16.mxu0 0
    %4313 = vmatpush1.bf16.msra.mxu0 %v4290
    %4314 = vmatprep.subr.bf16.mxu0 0
    %4315 = vmatpush1.bf16.msra.mxu0 %v4291
    %4316 = vmatprep.subr.bf16.mxu0 0
    %4317 = vmatpush1.bf16.msra.mxu0 0
    %4318 = vmatprep.subr.bf16.mxu0 0
    %4319 = vmatpush1.bf16.msra.mxu0 0
    %4320 = vmatprep.subr.bf16.mxu0 0
    %4321 = vmatpush1.bf16.msra.mxu0 0
    %4322 = vmatprep.subr.bf16.mxu0 0
    %4323 = vmatpush1.bf16.msra.mxu0 0
    %4324 = vmatprep.subr.bf16.mxu0 0
    %4325 = vmatpush1.bf16.msra.mxu0 0
    %4326 = vmatprep.subr.bf16.mxu0 0
    %4327 = vmatpush1.bf16.msra.mxu0 0
    %4328 = vmatprep.subr.bf16.mxu0 0
    %4329 = vmatpush1.bf16.msra.mxu0 0
    %4330 = vmatprep.subr.bf16.mxu0 0
    %4331 = vmatpush1.bf16.msra.mxu0 0
    %4332 = vmatprep.mubr.bf16.mxu0 0
    %4333 = vmatmul.mubr.bf16.gmra.mrb[0].mxu0 %v4251
    %v4334 = vpop.f32.mrb[0].mxu0
    %v4335 = vadd.f32 0.0, %v4334
    %v4336 = vpop.f32.mrb[0].mxu0
    %v4337 = vpop.f32.mrb[0].mxu0
    %v4338 = vpop.f32.mrb[0].mxu0
    %4339 = vdwg.mxu0
    %v4340 = vmax.f32 %v4335, 0.0
    %v4341 = vld [vmem:[#allocation2 + $0x58] sm:$0xf]
    %v4342 = vld [vmem:[#allocation2 + $0xc0] sm:$0xf]
    %v4343 = vld [vmem:[#allocation2 + $0x128] sm:$0xf]
    %v4344 = vld [vmem:[#allocation2 + $0x190] sm:$0xf]
    %v4345 = vld [vmem:[#allocation2 + $0x1f8] sm:$0xf]
    %v4346 = vld [vmem:[#allocation2 + $0x260] sm:$0xf]
    %v4347 = vld [vmem:[#allocation2 + $0x2c8] sm:$0xf]
    %v4348 = vld [vmem:[#allocation2 + $0x330] sm:$0xf]
    %v4349 = vld [vmem:[#allocation2 + $0x398] sm:$0xf]
    %v4350 = vld [vmem:[#allocation2 + $0x400] sm:$0xf]
    %v4351 = vld [vmem:[#allocation2 + $0x468] sm:$0xf]
    %v4352 = vld [vmem:[#allocation2 + $0x4d0] sm:$0xf]
    %v4353 = vld [vmem:[#allocation2 + $0x538] sm:$0xf]
    %v4354 = vld [vmem:[#allocation2 + $0x5a0] sm:$0xf]
    %v4355 = vld [vmem:[#allocation2 + $0x608] sm:$0xf]
    %v4356 = vld [vmem:[#allocation2 + $0x670] sm:$0xf]
    %v4357 = vpack.c.bf16 %v4340, %v4340
    %v4374 = vunpack.c.l.b16 %v4341
    %v4375 = vunpack.c.l.b16 %v4342
    %v4376 = vunpack.c.l.b16 %v4343
    %v4377 = vunpack.c.l.b16 %v4344
    %v4378 = vunpack.c.l.b16 %v4345
    %v4379 = vunpack.c.l.b16 %v4346
    %v4380 = vunpack.c.l.b16 %v4347
    %v4381 = vunpack.c.l.b16 %v4348
    %v4382 = vunpack.c.l.b16 %v4349
    %v4383 = vunpack.c.l.b16 %v4350
    %v4384 = vunpack.c.l.b16 %v4351
    %v4385 = vunpack.c.l.b16 %v4352
    %v4386 = vunpack.c.l.b16 %v4353
    %v4387 = vunpack.c.l.b16 %v4354
    %v4388 = vunpack.c.l.b16 %v4355
    %v4389 = vunpack.c.l.b16 %v4356
    %v4390 = vpack.c.b16 %v4375, %v4374
    %v4391 = vpack.c.b16 %v4377, %v4376
    %v4392 = vpack.c.b16 %v4379, %v4378
    %v4393 = vpack.c.b16 %v4381, %v4380
    %v4394 = vpack.c.b16 %v4383, %v4382
    %v4395 = vpack.c.b16 %v4385, %v4384
    %v4396 = vpack.c.b16 %v4387, %v4386
    %v4397 = vpack.c.b16 %v4389, %v4388
    %4406 = vmatprep.subr.bf16.mxu0 0
    %4407 = vmatpush1.bf16.msra.mxu0 %v4390
    %4408 = vmatprep.subr.bf16.mxu0 0
    %4409 = vmatpush1.bf16.msra.mxu0 %v4391
    %4410 = vmatprep.subr.bf16.mxu0 0
    %4411 = vmatpush1.bf16.msra.mxu0 %v4392
    %4412 = vmatprep.subr.bf16.mxu0 0
    %4413 = vmatpush1.bf16.msra.mxu0 %v4393
    %4414 = vmatprep.subr.bf16.mxu0 0
    %4415 = vmatpush1.bf16.msra.mxu0 %v4394
    %4416 = vmatprep.subr.bf16.mxu0 0
    %4417 = vmatpush1.bf16.msra.mxu0 %v4395
    %4418 = vmatprep.subr.bf16.mxu0 0
    %4419 = vmatpush1.bf16.msra.mxu0 %v4396
    %4420 = vmatprep.subr.bf16.mxu0 0
    %4421 = vmatpush1.bf16.msra.mxu0 %v4397
    %4422 = vmatprep.subr.bf16.mxu0 0
    %4423 = vmatpush1.bf16.msra.mxu0 0
    %4424 = vmatprep.subr.bf16.mxu0 0
    %4425 = vmatpush1.bf16.msra.mxu0 0
    %4426 = vmatprep.subr.bf16.mxu0 0
    %4427 = vmatpush1.bf16.msra.mxu0 0
    %4428 = vmatprep.subr.bf16.mxu0 0
    %4429 = vmatpush1.bf16.msra.mxu0 0
    %4430 = vmatprep.subr.bf16.mxu0 0
    %4431 = vmatpush1.bf16.msra.mxu0 0
    %4432 = vmatprep.subr.bf16.mxu0 0
    %4433 = vmatpush1.bf16.msra.mxu0 0
    %4434 = vmatprep.subr.bf16.mxu0 0
    %4435 = vmatpush1.bf16.msra.mxu0 0
    %4436 = vmatprep.subr.bf16.mxu0 0
    %4437 = vmatpush1.bf16.msra.mxu0 0
    %4438 = vmatprep.mubr.bf16.mxu0 0
    %4439 = vmatmul.mubr.bf16.gmra.mrb[0].mxu0 %v4357
    %v4440 = vpop.f32.mrb[0].mxu0
    %v4441 = vadd.f32 0.0, %v4440
    %v4442 = vpop.f32.mrb[0].mxu0
    %v4443 = vpop.f32.mrb[0].mxu0
    %v4444 = vpop.f32.mrb[0].mxu0
    %4445 = vdwg.mxu0
    %v4446 = vxor.u32 %v4441, 2147483648
    %v4447 = vmul.f32 %v4446, 1.442695
    %v4448 = vpow.pop %v4447
    %v4449 = vadd.f32 %v4448, 1.0
    %v4450 = vrcp.pop %v4449
    %v4451 = vmul.f32 1.0, %v4450
    %v4452 = vmul.f32 %v4230, %v4451
    %v4453 = vadd.f32 %v4452, %v3695
    %v4454 = vmax.f32 %v4453, 0.0
    %v4455 = vld [vmem:[#allocation2 + $0x5c] sm:$0xf]
    %v4456 = vld [vmem:[#allocation2 + $0xc4] sm:$0xf]
    %v4457 = vld [vmem:[#allocation2 + $0x12c] sm:$0xf]
    %v4458 = vld [vmem:[#allocation2 + $0x194] sm:$0xf]
    %v4459 = vld [vmem:[#allocation2 + $0x1fc] sm:$0xf]
    %v4460 = vld [vmem:[#allocation2 + $0x264] sm:$0xf]
    %v4461 = vld [vmem:[#allocation2 + $0x2cc] sm:$0xf]
    %v4462 = vld [vmem:[#allocation2 + $0x334] sm:$0xf]
    %v4463 = vld [vmem:[#allocation2 + $0x39c] sm:$0xf]
    %v4464 = vld [vmem:[#allocation2 + $0x404] sm:$0xf]
    %v4465 = vld [vmem:[#allocation2 + $0x46c] sm:$0xf]
    %v4466 = vld [vmem:[#allocation2 + $0x4d4] sm:$0xf]
    %v4467 = vld [vmem:[#allocation2 + $0x53c] sm:$0xf]
    %v4468 = vld [vmem:[#allocation2 + $0x5a4] sm:$0xf]
    %v4469 = vld [vmem:[#allocation2 + $0x60c] sm:$0xf]
    %v4470 = vld [vmem:[#allocation2 + $0x674] sm:$0xf]
    %v4471 = vpack.c.bf16 %v4454, %v4454
    %v4472 = vld [vmem:[#allocation8 + $0x31] ss:$0 sm:$0xff]
    %v4489 = vunpack.c.l.b16 %v4455
    %v4490 = vunpack.c.l.b16 %v4456
    %v4491 = vunpack.c.l.b16 %v4457
    %v4492 = vunpack.c.l.b16 %v4458
    %v4493 = vunpack.c.l.b16 %v4459
    %v4494 = vunpack.c.l.b16 %v4460
    %v4495 = vunpack.c.l.b16 %v4461
    %v4496 = vunpack.c.l.b16 %v4462
    %v4497 = vunpack.c.l.b16 %v4463
    %v4498 = vunpack.c.l.b16 %v4464
    %v4499 = vunpack.c.l.b16 %v4465
    %v4500 = vunpack.c.l.b16 %v4466
    %v4501 = vunpack.c.l.b16 %v4467
    %v4502 = vunpack.c.l.b16 %v4468
    %v4503 = vunpack.c.l.b16 %v4469
    %v4504 = vunpack.c.l.b16 %v4470
    %v4505 = vpack.c.b16 %v4490, %v4489
    %v4506 = vpack.c.b16 %v4492, %v4491
    %v4507 = vpack.c.b16 %v4494, %v4493
    %v4508 = vpack.c.b16 %v4496, %v4495
    %v4509 = vpack.c.b16 %v4498, %v4497
    %v4510 = vpack.c.b16 %v4500, %v4499
    %v4511 = vpack.c.b16 %v4502, %v4501
    %v4512 = vpack.c.b16 %v4504, %v4503
    %4521 = vmatprep.subr.bf16.mxu0 0
    %4522 = vmatpush1.bf16.msra.mxu0 %v4505
    %4523 = vmatprep.subr.bf16.mxu0 0
    %4524 = vmatpush1.bf16.msra.mxu0 %v4506
    %4525 = vmatprep.subr.bf16.mxu0 0
    %4526 = vmatpush1.bf16.msra.mxu0 %v4507
    %4527 = vmatprep.subr.bf16.mxu0 0
    %4528 = vmatpush1.bf16.msra.mxu0 %v4508
    %4529 = vmatprep.subr.bf16.mxu0 0
    %4530 = vmatpush1.bf16.msra.mxu0 %v4509
    %4531 = vmatprep.subr.bf16.mxu0 0
    %4532 = vmatpush1.bf16.msra.mxu0 %v4510
    %4533 = vmatprep.subr.bf16.mxu0 0
    %4534 = vmatpush1.bf16.msra.mxu0 %v4511
    %4535 = vmatprep.subr.bf16.mxu0 0
    %4536 = vmatpush1.bf16.msra.mxu0 %v4512
    %4537 = vmatprep.subr.bf16.mxu0 0
    %4538 = vmatpush1.bf16.msra.mxu0 0
    %4539 = vmatprep.subr.bf16.mxu0 0
    %4540 = vmatpush1.bf16.msra.mxu0 0
    %4541 = vmatprep.subr.bf16.mxu0 0
    %4542 = vmatpush1.bf16.msra.mxu0 0
    %4543 = vmatprep.subr.bf16.mxu0 0
    %4544 = vmatpush1.bf16.msra.mxu0 0
    %4545 = vmatprep.subr.bf16.mxu0 0
    %4546 = vmatpush1.bf16.msra.mxu0 0
    %4547 = vmatprep.subr.bf16.mxu0 0
    %4548 = vmatpush1.bf16.msra.mxu0 0
    %4549 = vmatprep.subr.bf16.mxu0 0
    %4550 = vmatpush1.bf16.msra.mxu0 0
    %4551 = vmatprep.subr.bf16.mxu0 0
    %4552 = vmatpush1.bf16.msra.mxu0 0
    %4553 = vmatprep.mubr.bf16.mxu0 0
    %4554 = vmatmul.mubr.bf16.gmra.mrb[0].mxu0 %v4471
    %v4555 = vpop.f32.mrb[0].mxu0
    %v4556 = vadd.f32 %v4472, %v4555
    %v4557 = vpop.f32.mrb[0].mxu0
    %v4558 = vpop.f32.mrb[0].mxu0
    %v4559 = vpop.f32.mrb[0].mxu0
    %4560 = vdwg.mxu0
    %v4561 = vmax.f32 %v4556, 0.0
    %v4562 = vld [vmem:[#allocation2 + $0x60] sm:$0xff]
    %v4563 = vld [vmem:[#allocation2 + $0xc8] sm:$0xff]
    %v4564 = vld [vmem:[#allocation2 + $0x130] sm:$0xff]
    %v4565 = vld [vmem:[#allocation2 + $0x198] sm:$0xff]
    %v4566 = vld [vmem:[#allocation2 + $0x200] sm:$0xff]
    %v4567 = vld [vmem:[#allocation2 + $0x268] sm:$0xff]
    %v4568 = vld [vmem:[#allocation2 + $0x2d0] sm:$0xff]
    %v4569 = vld [vmem:[#allocation2 + $0x338] sm:$0xff]
    %v4570 = vld [vmem:[#allocation2 + $0x3a0] sm:$0xff]
    %v4571 = vld [vmem:[#allocation2 + $0x408] sm:$0xff]
    %v4572 = vld [vmem:[#allocation2 + $0x470] sm:$0xff]
    %v4573 = vld [vmem:[#allocation2 + $0x4d8] sm:$0xff]
    %v4574 = vld [vmem:[#allocation2 + $0x540] sm:$0xff]
    %v4575 = vld [vmem:[#allocation2 + $0x5a8] sm:$0xff]
    %v4576 = vld [vmem:[#allocation2 + $0x610] sm:$0xff]
    %v4577 = vld [vmem:[#allocation2 + $0x678] sm:$0xff]
    %v4578 = vpack.c.bf16 %v4561, %v4561
    %s4579 = scalar_lea.vmem [#allocation8], 50
    %v4580 = vld [vmem:[%s4579] ss:$8 sm:$0x3]
    %v4582 = vlaneseq
    %v4583 = vshrl.u32 %v4582, 7
    %v4584 = vsub.s32 0, %v4583
    %v4585 = vrot.slane %v4580, %v4584
    %v4586 = vlaneseq
    %v4587 = vshrl.u32 %v4586, 7
    %v4588 = vsub.s32 1, %v4587
    %v4589 = vrot.slane %v4580, %v4588
    %v4608 = vunpack.c.l.b16 %v4562
    %v4609 = vunpack.c.h.b16 %v4562
    %v4610 = vunpack.c.l.b16 %v4563
    %v4611 = vunpack.c.h.b16 %v4563
    %v4612 = vunpack.c.l.b16 %v4564
    %v4613 = vunpack.c.h.b16 %v4564
    %v4614 = vunpack.c.l.b16 %v4565
    %v4615 = vunpack.c.h.b16 %v4565
    %v4616 = vunpack.c.l.b16 %v4566
    %v4617 = vunpack.c.h.b16 %v4566
    %v4618 = vunpack.c.l.b16 %v4567
    %v4619 = vunpack.c.h.b16 %v4567
    %v4620 = vunpack.c.l.b16 %v4568
    %v4621 = vunpack.c.h.b16 %v4568
    %v4622 = vunpack.c.l.b16 %v4569
    %v4623 = vunpack.c.h.b16 %v4569
    %v4624 = vunpack.c.l.b16 %v4570
    %v4625 = vunpack.c.h.b16 %v4570
    %v4626 = vunpack.c.l.b16 %v4571
    %v4627 = vunpack.c.h.b16 %v4571
    %v4628 = vunpack.c.l.b16 %v4572
    %v4629 = vunpack.c.h.b16 %v4572
    %v4630 = vunpack.c.l.b16 %v4573
    %v4631 = vunpack.c.h.b16 %v4573
    %v4632 = vunpack.c.l.b16 %v4574
    %v4633 = vunpack.c.h.b16 %v4574
    %v4634 = vunpack.c.l.b16 %v4575
    %v4635 = vunpack.c.h.b16 %v4575
    %v4636 = vunpack.c.l.b16 %v4576
    %v4637 = vunpack.c.h.b16 %v4576
    %v4638 = vunpack.c.l.b16 %v4577
    %v4639 = vunpack.c.h.b16 %v4577
    %v4640 = vpack.c.b16 %v4610, %v4608
    %v4641 = vpack.c.b16 %v4611, %v4609
    %v4642 = vpack.c.b16 %v4614, %v4612
    %v4643 = vpack.c.b16 %v4615, %v4613
    %v4644 = vpack.c.b16 %v4618, %v4616
    %v4645 = vpack.c.b16 %v4619, %v4617
    %v4646 = vpack.c.b16 %v4622, %v4620
    %v4647 = vpack.c.b16 %v4623, %v4621
    %v4648 = vpack.c.b16 %v4626, %v4624
    %v4649 = vpack.c.b16 %v4627, %v4625
    %v4650 = vpack.c.b16 %v4630, %v4628
    %v4651 = vpack.c.b16 %v4631, %v4629
    %v4652 = vpack.c.b16 %v4634, %v4632
    %v4653 = vpack.c.b16 %v4635, %v4633
    %v4654 = vpack.c.b16 %v4638, %v4636
    %v4655 = vpack.c.b16 %v4639, %v4637
    %4672 = vmatprep.subr.bf16.mxu0 %v4641
    %4673 = vmatpush1.bf16.msra.mxu0 %v4640
    %4674 = vmatprep.subr.bf16.mxu0 %v4643
    %4675 = vmatpush1.bf16.msra.mxu0 %v4642
    %4676 = vmatprep.subr.bf16.mxu0 %v4645
    %4677 = vmatpush1.bf16.msra.mxu0 %v4644
    %4678 = vmatprep.subr.bf16.mxu0 %v4647
    %4679 = vmatpush1.bf16.msra.mxu0 %v4646
    %4680 = vmatprep.subr.bf16.mxu0 %v4649
    %4681 = vmatpush1.bf16.msra.mxu0 %v4648
    %4682 = vmatprep.subr.bf16.mxu0 %v4651
    %4683 = vmatpush1.bf16.msra.mxu0 %v4650
    %4684 = vmatprep.subr.bf16.mxu0 %v4653
    %4685 = vmatpush1.bf16.msra.mxu0 %v4652
    %4686 = vmatprep.subr.bf16.mxu0 %v4655
    %4687 = vmatpush1.bf16.msra.mxu0 %v4654
    %4688 = vmatprep.subr.bf16.mxu0 0
    %4689 = vmatpush1.bf16.msra.mxu0 0
    %4690 = vmatprep.subr.bf16.mxu0 0
    %4691 = vmatpush1.bf16.msra.mxu0 0
    %4692 = vmatprep.subr.bf16.mxu0 0
    %4693 = vmatpush1.bf16.msra.mxu0 0
    %4694 = vmatprep.subr.bf16.mxu0 0
    %4695 = vmatpush1.bf16.msra.mxu0 0
    %4696 = vmatprep.subr.bf16.mxu0 0
    %4697 = vmatpush1.bf16.msra.mxu0 0
    %4698 = vmatprep.subr.bf16.mxu0 0
    %4699 = vmatpush1.bf16.msra.mxu0 0
    %4700 = vmatprep.subr.bf16.mxu0 0
    %4701 = vmatpush1.bf16.msra.mxu0 0
    %4702 = vmatprep.subr.bf16.mxu0 0
    %4703 = vmatpush1.bf16.msra.mxu0 0
    %4704 = vmatprep.mubr.bf16.mxu0 0
    %4705 = vmatmul.mubr.bf16.gmra.mrb[0].mxu0 %v4578
    %v4706 = vpop.f32.mrb[0].mxu0
    %v4707 = vadd.f32 %v4585, %v4706
    %v4708 = vpop.f32.mrb[0].mxu0
    %v4709 = vadd.f32 %v4589, %v4708
    %v4710 = vpop.f32.mrb[0].mxu0
    %v4711 = vpop.f32.mrb[0].mxu0
    %4712 = vdwg.mxu0
    %v4713 = vmax.f32 %v4707, 0.0
    %v4714 = vmax.f32 %v4709, 0.0
    %v4715 = vld [vmem:[#allocation5 + $0x20] sm:$0xff]
    %v4716 = vld [vmem:[#allocation5 + $0x4c] sm:$0xff]
    %v4717 = vld [vmem:[#allocation5 + $0x78] sm:$0xff]
    %v4718 = vld [vmem:[#allocation5 + $0xa4] sm:$0xff]
    %v4719 = vld [vmem:[#allocation5 + $0xd0] sm:$0xff]
    %v4720 = vld [vmem:[#allocation5 + $0xfc] sm:$0xff]
    %v4721 = vld [vmem:[#allocation5 + $0x128] sm:$0xff]
    %v4722 = vld [vmem:[#allocation5 + $0x154] sm:$0xff]
    %v4723 = vld [vmem:[#allocation5 + $0x180] sm:$0xff]
    %v4724 = vld [vmem:[#allocation5 + $0x1ac] sm:$0xff]
    %v4725 = vld [vmem:[#allocation5 + $0x1d8] sm:$0xff]
    %v4726 = vld [vmem:[#allocation5 + $0x204] sm:$0xff]
    %v4727 = vld [vmem:[#allocation5 + $0x230] sm:$0xff]
    %v4728 = vld [vmem:[#allocation5 + $0x25c] sm:$0xff]
    %v4729 = vld [vmem:[#allocation5 + $0x288] sm:$0xff]
    %v4730 = vld [vmem:[#allocation5 + $0x2b4] sm:$0xff]
    %v4731 = vld [vmem:[#allocation5 + $0x2e0] sm:$0xff]
    %v4732 = vld [vmem:[#allocation5 + $0x30c] sm:$0xff]
    %v4733 = vld [vmem:[#allocation5 + $0x338] sm:$0xff]
    %v4734 = vld [vmem:[#allocation5 + $0x364] sm:$0xff]
    %v4735 = vld [vmem:[#allocation5 + $0x390] sm:$0xff]
    %v4736 = vld [vmem:[#allocation5 + $0x3bc] sm:$0xff]
    %v4737 = vld [vmem:[#allocation5 + $0x3e8] sm:$0xff]
    %v4738 = vld [vmem:[#allocation5 + $0x414] sm:$0xff]
    %v4739 = vld [vmem:[#allocation5 + $0x440] sm:$0xff]
    %v4740 = vld [vmem:[#allocation5 + $0x46c] sm:$0xff]
    %v4741 = vld [vmem:[#allocation5 + $0x498] sm:$0xff]
    %v4742 = vld [vmem:[#allocation5 + $0x4c4] sm:$0xff]
    %v4743 = vld [vmem:[#allocation5 + $0x4f0] sm:$0xff]
    %v4744 = vld [vmem:[#allocation5 + $0x51c] sm:$0xff]
    %v4745 = vld [vmem:[#allocation5 + $0x548] sm:$0xff]
    %v4746 = vld [vmem:[#allocation5 + $0x574] sm:$0xff]
    %v4747 = vpack.c.bf16 %v4713, %v4713
    %v4748 = vpack.c.bf16 %v4714, %v4714
    %s4749 = scalar_lea.vmem [#allocation8], 51
    %v4750 = vld [vmem:[%s4749] ss:$8 sm:$0x3]
    %v4752 = vlaneseq
    %v4753 = vshrl.u32 %v4752, 7
    %v4754 = vsub.s32 0, %v4753
    %v4755 = vrot.slane %v4750, %v4754
    %v4756 = vlaneseq
    %v4757 = vshrl.u32 %v4756, 7
    %v4758 = vsub.s32 1, %v4757
    %v4759 = vrot.slane %v4750, %v4758
    %v4794 = vunpack.c.l.b16 %v4715
    %v4795 = vunpack.c.h.b16 %v4715
    %v4796 = vunpack.c.l.b16 %v4716
    %v4797 = vunpack.c.h.b16 %v4716
    %v4798 = vunpack.c.l.b16 %v4717
    %v4799 = vunpack.c.h.b16 %v4717
    %v4800 = vunpack.c.l.b16 %v4718
    %v4801 = vunpack.c.h.b16 %v4718
    %v4802 = vunpack.c.l.b16 %v4719
    %v4803 = vunpack.c.h.b16 %v4719
    %v4804 = vunpack.c.l.b16 %v4720
    %v4805 = vunpack.c.h.b16 %v4720
    %v4806 = vunpack.c.l.b16 %v4721
    %v4807 = vunpack.c.h.b16 %v4721
    %v4808 = vunpack.c.l.b16 %v4722
    %v4809 = vunpack.c.h.b16 %v4722
    %v4810 = vunpack.c.l.b16 %v4723
    %v4811 = vunpack.c.h.b16 %v4723
    %v4812 = vunpack.c.l.b16 %v4724
    %v4813 = vunpack.c.h.b16 %v4724
    %v4814 = vunpack.c.l.b16 %v4725
    %v4815 = vunpack.c.h.b16 %v4725
    %v4816 = vunpack.c.l.b16 %v4726
    %v4817 = vunpack.c.h.b16 %v4726
    %v4818 = vunpack.c.l.b16 %v4727
    %v4819 = vunpack.c.h.b16 %v4727
    %v4820 = vunpack.c.l.b16 %v4728
    %v4821 = vunpack.c.h.b16 %v4728
    %v4822 = vunpack.c.l.b16 %v4729
    %v4823 = vunpack.c.h.b16 %v4729
    %v4824 = vunpack.c.l.b16 %v4730
    %v4825 = vunpack.c.h.b16 %v4730
    %v4826 = vunpack.c.l.b16 %v4731
    %v4827 = vunpack.c.h.b16 %v4731
    %v4828 = vunpack.c.l.b16 %v4732
    %v4829 = vunpack.c.h.b16 %v4732
    %v4830 = vunpack.c.l.b16 %v4733
    %v4831 = vunpack.c.h.b16 %v4733
    %v4832 = vunpack.c.l.b16 %v4734
    %v4833 = vunpack.c.h.b16 %v4734
    %v4834 = vunpack.c.l.b16 %v4735
    %v4835 = vunpack.c.h.b16 %v4735
    %v4836 = vunpack.c.l.b16 %v4736
    %v4837 = vunpack.c.h.b16 %v4736
    %v4838 = vunpack.c.l.b16 %v4737
    %v4839 = vunpack.c.h.b16 %v4737
    %v4840 = vunpack.c.l.b16 %v4738
    %v4841 = vunpack.c.h.b16 %v4738
    %v4842 = vunpack.c.l.b16 %v4739
    %v4843 = vunpack.c.h.b16 %v4739
    %v4844 = vunpack.c.l.b16 %v4740
    %v4845 = vunpack.c.h.b16 %v4740
    %v4846 = vunpack.c.l.b16 %v4741
    %v4847 = vunpack.c.h.b16 %v4741
    %v4848 = vunpack.c.l.b16 %v4742
    %v4849 = vunpack.c.h.b16 %v4742
    %v4850 = vunpack.c.l.b16 %v4743
    %v4851 = vunpack.c.h.b16 %v4743
    %v4852 = vunpack.c.l.b16 %v4744
    %v4853 = vunpack.c.h.b16 %v4744
    %v4854 = vunpack.c.l.b16 %v4745
    %v4855 = vunpack.c.h.b16 %v4745
    %v4856 = vunpack.c.l.b16 %v4746
    %v4857 = vunpack.c.h.b16 %v4746
    %v4858 = vpack.c.b16 %v4796, %v4794
    %v4859 = vpack.c.b16 %v4797, %v4795
    %v4860 = vpack.c.b16 %v4800, %v4798
    %v4861 = vpack.c.b16 %v4801, %v4799
    %v4862 = vpack.c.b16 %v4804, %v4802
    %v4863 = vpack.c.b16 %v4805, %v4803
    %v4864 = vpack.c.b16 %v4808, %v4806
    %v4865 = vpack.c.b16 %v4809, %v4807
    %v4866 = vpack.c.b16 %v4812, %v4810
    %v4867 = vpack.c.b16 %v4813, %v4811
    %v4868 = vpack.c.b16 %v4816, %v4814
    %v4869 = vpack.c.b16 %v4817, %v4815
    %v4870 = vpack.c.b16 %v4820, %v4818
    %v4871 = vpack.c.b16 %v4821, %v4819
    %v4872 = vpack.c.b16 %v4824, %v4822
    %v4873 = vpack.c.b16 %v4825, %v4823
    %v4874 = vpack.c.b16 %v4828, %v4826
    %v4875 = vpack.c.b16 %v4829, %v4827
    %v4876 = vpack.c.b16 %v4832, %v4830
    %v4877 = vpack.c.b16 %v4833, %v4831
    %v4878 = vpack.c.b16 %v4836, %v4834
    %v4879 = vpack.c.b16 %v4837, %v4835
    %v4880 = vpack.c.b16 %v4840, %v4838
    %v4881 = vpack.c.b16 %v4841, %v4839
    %v4882 = vpack.c.b16 %v4844, %v4842
    %v4883 = vpack.c.b16 %v4845, %v4843
    %v4884 = vpack.c.b16 %v4848, %v4846
    %v4885 = vpack.c.b16 %v4849, %v4847
    %v4886 = vpack.c.b16 %v4852, %v4850
    %v4887 = vpack.c.b16 %v4853, %v4851
    %v4888 = vpack.c.b16 %v4856, %v4854
    %v4889 = vpack.c.b16 %v4857, %v4855
    %4922 = vmatprep.subr.bf16.mxu0 %v4859
    %4923 = vmatpush1.bf16.msra.mxu0 %v4858
    %4924 = vmatprep.subr.bf16.mxu0 %v4861
    %4925 = vmatpush1.bf16.msra.mxu0 %v4860
    %4926 = vmatprep.subr.bf16.mxu0 %v4863
    %4927 = vmatpush1.bf16.msra.mxu0 %v4862
    %4928 = vmatprep.subr.bf16.mxu0 %v4865
    %4929 = vmatpush1.bf16.msra.mxu0 %v4864
    %4930 = vmatprep.subr.bf16.mxu0 %v4867
    %4931 = vmatpush1.bf16.msra.mxu0 %v4866
    %4932 = vmatprep.subr.bf16.mxu0 %v4869
    %4933 = vmatpush1.bf16.msra.mxu0 %v4868
    %4934 = vmatprep.subr.bf16.mxu0 %v4871
    %4935 = vmatpush1.bf16.msra.mxu0 %v4870
    %4936 = vmatprep.subr.bf16.mxu0 %v4873
    %4937 = vmatpush1.bf16.msra.mxu0 %v4872
    %4938 = vmatprep.subr.bf16.mxu0 %v4875
    %4939 = vmatpush1.bf16.msra.mxu0 %v4874
    %4940 = vmatprep.subr.bf16.mxu0 %v4877
    %4941 = vmatpush1.bf16.msra.mxu0 %v4876
    %4942 = vmatprep.subr.bf16.mxu0 %v4879
    %4943 = vmatpush1.bf16.msra.mxu0 %v4878
    %4944 = vmatprep.subr.bf16.mxu0 %v4881
    %4945 = vmatpush1.bf16.msra.mxu0 %v4880
    %4946 = vmatprep.subr.bf16.mxu0 %v4883
    %4947 = vmatpush1.bf16.msra.mxu0 %v4882
    %4948 = vmatprep.subr.bf16.mxu0 %v4885
    %4949 = vmatpush1.bf16.msra.mxu0 %v4884
    %4950 = vmatprep.subr.bf16.mxu0 %v4887
    %4951 = vmatpush1.bf16.msra.mxu0 %v4886
    %4952 = vmatprep.subr.bf16.mxu0 %v4889
    %4953 = vmatpush1.bf16.msra.mxu0 %v4888
    %4954 = vmatprep.mubr.bf16.mxu0 %v4748
    %4955 = vmatmul.mubr.bf16.gmra.mrb[0].mxu0 %v4747
    %v4956 = vpop.f32.mrb[0].mxu0
    %v4957 = vadd.f32 %v4755, %v4956
    %v4958 = vpop.f32.mrb[0].mxu0
    %v4959 = vadd.f32 %v4759, %v4958
    %v4960 = vpop.f32.mrb[0].mxu0
    %v4961 = vpop.f32.mrb[0].mxu0
    %4962 = vdwg.mxu0
    %v4963 = vmax.f32 %v4957, 0.0
    %v4964 = vmax.f32 %v4959, 0.0
    %v4965 = vld [vmem:[#allocation5 + $0x28] sm:$0xf]
    %v4966 = vld [vmem:[#allocation5 + $0x54] sm:$0xf]
    %v4967 = vld [vmem:[#allocation5 + $0x80] sm:$0xf]
    %v4968 = vld [vmem:[#allocation5 + $0xac] sm:$0xf]
    %v4969 = vld [vmem:[#allocation5 + $0xd8] sm:$0xf]
    %v4970 = vld [vmem:[#allocation5 + $0x104] sm:$0xf]
    %v4971 = vld [vmem:[#allocation5 + $0x130] sm:$0xf]
    %v4972 = vld [vmem:[#allocation5 + $0x15c] sm:$0xf]
    %v4973 = vld [vmem:[#allocation5 + $0x188] sm:$0xf]
    %v4974 = vld [vmem:[#allocation5 + $0x1b4] sm:$0xf]
    %v4975 = vld [vmem:[#allocation5 + $0x1e0] sm:$0xf]
    %v4976 = vld [vmem:[#allocation5 + $0x20c] sm:$0xf]
    %v4977 = vld [vmem:[#allocation5 + $0x238] sm:$0xf]
    %v4978 = vld [vmem:[#allocation5 + $0x264] sm:$0xf]
    %v4979 = vld [vmem:[#allocation5 + $0x290] sm:$0xf]
    %v4980 = vld [vmem:[#allocation5 + $0x2bc] sm:$0xf]
    %v4981 = vld [vmem:[#allocation5 + $0x2e8] sm:$0xf]
    %v4982 = vld [vmem:[#allocation5 + $0x314] sm:$0xf]
    %v4983 = vld [vmem:[#allocation5 + $0x340] sm:$0xf]
    %v4984 = vld [vmem:[#allocation5 + $0x36c] sm:$0xf]
    %v4985 = vld [vmem:[#allocation5 + $0x398] sm:$0xf]
    %v4986 = vld [vmem:[#allocation5 + $0x3c4] sm:$0xf]
    %v4987 = vld [vmem:[#allocation5 + $0x3f0] sm:$0xf]
    %v4988 = vld [vmem:[#allocation5 + $0x41c] sm:$0xf]
    %v4989 = vld [vmem:[#allocation5 + $0x448] sm:$0xf]
    %v4990 = vld [vmem:[#allocation5 + $0x474] sm:$0xf]
    %v4991 = vld [vmem:[#allocation5 + $0x4a0] sm:$0xf]
    %v4992 = vld [vmem:[#allocation5 + $0x4cc] sm:$0xf]
    %v4993 = vld [vmem:[#allocation5 + $0x4f8] sm:$0xf]
    %v4994 = vld [vmem:[#allocation5 + $0x524] sm:$0xf]
    %v4995 = vld [vmem:[#allocation5 + $0x550] sm:$0xf]
    %v4996 = vld [vmem:[#allocation5 + $0x57c] sm:$0xf]
    %v4997 = vpack.c.bf16 %v4963, %v4963
    %v4998 = vpack.c.bf16 %v4964, %v4964
    %v4999 = vld [vmem:[#allocation8 + $0x34] ss:$0 sm:$0xff]
    %v5032 = vunpack.c.l.b16 %v4965
    %v5033 = vunpack.c.l.b16 %v4966
    %v5034 = vunpack.c.l.b16 %v4967
    %v5035 = vunpack.c.l.b16 %v4968
    %v5036 = vunpack.c.l.b16 %v4969
    %v5037 = vunpack.c.l.b16 %v4970
    %v5038 = vunpack.c.l.b16 %v4971
    %v5039 = vunpack.c.l.b16 %v4972
    %v5040 = vunpack.c.l.b16 %v4973
    %v5041 = vunpack.c.l.b16 %v4974
    %v5042 = vunpack.c.l.b16 %v4975
    %v5043 = vunpack.c.l.b16 %v4976
    %v5044 = vunpack.c.l.b16 %v4977
    %v5045 = vunpack.c.l.b16 %v4978
    %v5046 = vunpack.c.l.b16 %v4979
    %v5047 = vunpack.c.l.b16 %v4980
    %v5048 = vunpack.c.l.b16 %v4981
    %v5049 = vunpack.c.l.b16 %v4982
    %v5050 = vunpack.c.l.b16 %v4983
    %v5051 = vunpack.c.l.b16 %v4984
    %v5052 = vunpack.c.l.b16 %v4985
    %v5053 = vunpack.c.l.b16 %v4986
    %v5054 = vunpack.c.l.b16 %v4987
    %v5055 = vunpack.c.l.b16 %v4988
    %v5056 = vunpack.c.l.b16 %v4989
    %v5057 = vunpack.c.l.b16 %v4990
    %v5058 = vunpack.c.l.b16 %v4991
    %v5059 = vunpack.c.l.b16 %v4992
    %v5060 = vunpack.c.l.b16 %v4993
    %v5061 = vunpack.c.l.b16 %v4994
    %v5062 = vunpack.c.l.b16 %v4995
    %v5063 = vunpack.c.l.b16 %v4996
    %v5064 = vpack.c.b16 %v5033, %v5032
    %v5065 = vpack.c.b16 %v5035, %v5034
    %v5066 = vpack.c.b16 %v5037, %v5036
    %v5067 = vpack.c.b16 %v5039, %v5038
    %v5068 = vpack.c.b16 %v5041, %v5040
    %v5069 = vpack.c.b16 %v5043, %v5042
    %v5070 = vpack.c.b16 %v5045, %v5044
    %v5071 = vpack.c.b16 %v5047, %v5046
    %v5072 = vpack.c.b16 %v5049, %v5048
    %v5073 = vpack.c.b16 %v5051, %v5050
    %v5074 = vpack.c.b16 %v5053, %v5052
    %v5075 = vpack.c.b16 %v5055, %v5054
    %v5076 = vpack.c.b16 %v5057, %v5056
    %v5077 = vpack.c.b16 %v5059, %v5058
    %v5078 = vpack.c.b16 %v5061, %v5060
    %v5079 = vpack.c.b16 %v5063, %v5062
    %5096 = vmatprep.subr.bf16.mxu0 0
    %5097 = vmatpush1.bf16.msra.mxu0 %v5064
    %5098 = vmatprep.subr.bf16.mxu0 0
    %5099 = vmatpush1.bf16.msra.mxu0 %v5065
    %5100 = vmatprep.subr.bf16.mxu0 0
    %5101 = vmatpush1.bf16.msra.mxu0 %v5066
    %5102 = vmatprep.subr.bf16.mxu0 0
    %5103 = vmatpush1.bf16.msra.mxu0 %v5067
    %5104 = vmatprep.subr.bf16.mxu0 0
    %5105 = vmatpush1.bf16.msra.mxu0 %v5068
    %5106 = vmatprep.subr.bf16.mxu0 0
    %5107 = vmatpush1.bf16.msra.mxu0 %v5069
    %5108 = vmatprep.subr.bf16.mxu0 0
    %5109 = vmatpush1.bf16.msra.mxu0 %v5070
    %5110 = vmatprep.subr.bf16.mxu0 0
    %5111 = vmatpush1.bf16.msra.mxu0 %v5071
    %5112 = vmatprep.subr.bf16.mxu0 0
    %5113 = vmatpush1.bf16.msra.mxu0 %v5072
    %5114 = vmatprep.subr.bf16.mxu0 0
    %5115 = vmatpush1.bf16.msra.mxu0 %v5073
    %5116 = vmatprep.subr.bf16.mxu0 0
    %5117 = vmatpush1.bf16.msra.mxu0 %v5074
    %5118 = vmatprep.subr.bf16.mxu0 0
    %5119 = vmatpush1.bf16.msra.mxu0 %v5075
    %5120 = vmatprep.subr.bf16.mxu0 0
    %5121 = vmatpush1.bf16.msra.mxu0 %v5076
    %5122 = vmatprep.subr.bf16.mxu0 0
    %5123 = vmatpush1.bf16.msra.mxu0 %v5077
    %5124 = vmatprep.subr.bf16.mxu0 0
    %5125 = vmatpush1.bf16.msra.mxu0 %v5078
    %5126 = vmatprep.subr.bf16.mxu0 0
    %5127 = vmatpush1.bf16.msra.mxu0 %v5079
    %5128 = vmatprep.mubr.bf16.mxu0 %v4998
    %5129 = vmatmul.mubr.bf16.gmra.mrb[0].mxu0 %v4997
    %v5130 = vpop.f32.mrb[0].mxu0
    %v5131 = vadd.f32 %v4999, %v5130
    %v5132 = vpop.f32.mrb[0].mxu0
    %v5133 = vpop.f32.mrb[0].mxu0
    %v5134 = vpop.f32.mrb[0].mxu0
    %5135 = vdwg.mxu0
    %v5136 = vlaneseq
    %v5137 = vand.u32 %v5136, 127
    %vm5138 = vcmp.lt.s32.totalorder %v5137, 10
    %v5139 = vsel %vm5138, %v5131, -1e+30
    %5140 = vmax.xlane.f32.xlu0 %v5139
    %v5141 = vpop.xlane.xlu0 %5140
    %v5142 = vsub.f32 %v5139, %v5141
    %v5143 = vmul.f32 %v5142, 1.442695
    %v5144 = vpow.pop %v5143
    %5145 = vadd.xlane.f32.xlu0 %v5144
    %v5146 = vpop.xlane.xlu0 %5145
    %v5147 = vrcp.pop %v5146
    %v5148 = vmul.f32 %v5146, %v5147
    %v5149 = vsub.f32 2.0, %v5148
    %v5150 = vmul.f32 %v5147, %v5149
    %v5151 = vmul.f32 %v5144, %v5150
    %5152 = vst [vmem:[#allocation10] sm:$0xff] %v5151
    %v5153 = vld [vmem:[#allocation2] sm:$0xf]
    %v5154 = vld [vmem:[#allocation2 + $0x68] sm:$0xf]
    %v5155 = vld [vmem:[#allocation2 + $0xd0] sm:$0xf]
    %v5156 = vld [vmem:[#allocation2 + $0x138] sm:$0xf]
    %v5157 = vld [vmem:[#allocation2 + $0x1a0] sm:$0xf]
    %v5158 = vld [vmem:[#allocation2 + $0x208] sm:$0xf]
    %v5159 = vld [vmem:[#allocation2 + $0x270] sm:$0xf]
    %v5160 = vld [vmem:[#allocation2 + $0x2d8] sm:$0xf]
    %v5161 = vld [vmem:[#allocation2 + $0x340] sm:$0xf]
    %v5162 = vld [vmem:[#allocation2 + $0x3a8] sm:$0xf]
    %v5163 = vld [vmem:[#allocation2 + $0x410] sm:$0xf]
    %v5164 = vld [vmem:[#allocation2 + $0x478] sm:$0xf]
    %v5165 = vld [vmem:[#allocation2 + $0x4e0] sm:$0xf]
    %v5166 = vld [vmem:[#allocation2 + $0x548] sm:$0xf]
    %v5167 = vld [vmem:[#allocation2 + $0x5b0] sm:$0xf]
    %v5168 = vld [vmem:[#allocation2 + $0x618] sm:$0xf]
    %v5169 = vld [vmem:[#allocation8] ss:$0 sm:$0xff]
    %v5186 = vunpack.c.l.b16 %v5153
    %v5187 = vunpack.c.l.b16 %v5154
    %v5188 = vunpack.c.l.b16 %v5155
    %v5189 = vunpack.c.l.b16 %v5156
    %v5190 = vunpack.c.l.b16 %v5157
    %v5191 = vunpack.c.l.b16 %v5158
    %v5192 = vunpack.c.l.b16 %v5159
    %v5193 = vunpack.c.l.b16 %v5160
    %v5194 = vunpack.c.l.b16 %v5161
    %v5195 = vunpack.c.l.b16 %v5162
    %v5196 = vunpack.c.l.b16 %v5163
    %v5197 = vunpack.c.l.b16 %v5164
    %v5198 = vunpack.c.l.b16 %v5165
    %v5199 = vunpack.c.l.b16 %v5166
    %v5200 = vunpack.c.l.b16 %v5167
    %v5201 = vunpack.c.l.b16 %v5168
    %v5202 = vpack.c.b16 %v5187, %v5186
    %v5203 = vpack.c.b16 %v5189, %v5188
    %v5204 = vpack.c.b16 %v5191, %v5190
    %v5205 = vpack.c.b16 %v5193, %v5192
    %v5206 = vpack.c.b16 %v5195, %v5194
    %v5207 = vpack.c.b16 %v5197, %v5196
    %v5208 = vpack.c.b16 %v5199, %v5198
    %v5209 = vpack.c.b16 %v5201, %v5200
    %5218 = vmatprep.subr.bf16.mxu0 0
    %5219 = vmatpush1.bf16.msra.mxu0 %v5202
    %5220 = vmatprep.subr.bf16.mxu0 0
    %5221 = vmatpush1.bf16.msra.mxu0 %v5203
    %5222 = vmatprep.subr.bf16.mxu0 0
    %5223 = vmatpush1.bf16.msra.mxu0 %v5204
    %5224 = vmatprep.subr.bf16.mxu0 0
    %5225 = vmatpush1.bf16.msra.mxu0 %v5205
    %5226 = vmatprep.subr.bf16.mxu0 0
    %5227 = vmatpush1.bf16.msra.mxu0 %v5206
    %5228 = vmatprep.subr.bf16.mxu0 0
    %5229 = vmatpush1.bf16.msra.mxu0 %v5207
    %5230 = vmatprep.subr.bf16.mxu0 0
    %5231 = vmatpush1.bf16.msra.mxu0 %v5208
    %5232 = vmatprep.subr.bf16.mxu0 0
    %5233 = vmatpush1.bf16.msra.mxu0 %v5209
    %5234 = vmatprep.subr.bf16.mxu0 0
    %5235 = vmatpush1.bf16.msra.mxu0 0
    %5236 = vmatprep.subr.bf16.mxu0 0
    %5237 = vmatpush1.bf16.msra.mxu0 0
    %5238 = vmatprep.subr.bf16.mxu0 0
    %5239 = vmatpush1.bf16.msra.mxu0 0
    %5240 = vmatprep.subr.bf16.mxu0 0
    %5241 = vmatpush1.bf16.msra.mxu0 0
    %5242 = vmatprep.subr.bf16.mxu0 0
    %5243 = vmatpush1.bf16.msra.mxu0 0
    %5244 = vmatprep.subr.bf16.mxu0 0
    %5245 = vmatpush1.bf16.msra.mxu0 0
    %5246 = vmatprep.subr.bf16.mxu0 0
    %5247 = vmatpush1.bf16.msra.mxu0 0
    %5248 = vmatprep.subr.bf16.mxu0 0
    %5249 = vmatpush1.bf16.msra.mxu0 0
    %5250 = vmatprep.mubr.bf16.mxu0 0
    %5251 = vmatmul.mubr.bf16.gmra.mrb[0].mxu0 %v78
    %v5252 = vpop.f32.mrb[0].mxu0
    %v5253 = vadd.f32 %v5169, %v5252
    %v5254 = vpop.f32.mrb[0].mxu0
    %v5255 = vpop.f32.mrb[0].mxu0
    %v5256 = vpop.f32.mrb[0].mxu0
    %5257 = vdwg.mxu0
    %v5258 = vmax.f32 %v5253, 0.0
    %v5259 = vld [vmem:[#allocation2 + $0x4] sm:$0xf]
    %v5260 = vld [vmem:[#allocation2 + $0x6c] sm:$0xf]
    %v5261 = vld [vmem:[#allocation2 + $0xd4] sm:$0xf]
    %v5262 = vld [vmem:[#allocation2 + $0x13c] sm:$0xf]
    %v5263 = vld [vmem:[#allocation2 + $0x1a4] sm:$0xf]
    %v5264 = vld [vmem:[#allocation2 + $0x20c] sm:$0xf]
    %v5265 = vld [vmem:[#allocation2 + $0x274] sm:$0xf]
    %v5266 = vld [vmem:[#allocation2 + $0x2dc] sm:$0xf]
    %v5267 = vld [vmem:[#allocation2 + $0x344] sm:$0xf]
    %v5268 = vld [vmem:[#allocation2 + $0x3ac] sm:$0xf]
    %v5269 = vld [vmem:[#allocation2 + $0x414] sm:$0xf]
    %v5270 = vld [vmem:[#allocation2 + $0x47c] sm:$0xf]
    %v5271 = vld [vmem:[#allocation2 + $0x4e4] sm:$0xf]
    %v5272 = vld [vmem:[#allocation2 + $0x54c] sm:$0xf]
    %v5273 = vld [vmem:[#allocation2 + $0x5b4] sm:$0xf]
    %v5274 = vld [vmem:[#allocation2 + $0x61c] sm:$0xf]
    %v5275 = vpack.c.bf16 %v5258, %v5258
    %v5276 = vld [vmem:[#allocation8 + $0x1] ss:$0 sm:$0xff]
    %v5293 = vunpack.c.l.b16 %v5259
    %v5294 = vunpack.c.l.b16 %v5260
    %v5295 = vunpack.c.l.b16 %v5261
    %v5296 = vunpack.c.l.b16 %v5262
    %v5297 = vunpack.c.l.b16 %v5263
    %v5298 = vunpack.c.l.b16 %v5264
    %v5299 = vunpack.c.l.b16 %v5265
    %v5300 = vunpack.c.l.b16 %v5266
    %v5301 = vunpack.c.l.b16 %v5267
    %v5302 = vunpack.c.l.b16 %v5268
    %v5303 = vunpack.c.l.b16 %v5269
    %v5304 = vunpack.c.l.b16 %v5270
    %v5305 = vunpack.c.l.b16 %v5271
    %v5306 = vunpack.c.l.b16 %v5272
    %v5307 = vunpack.c.l.b16 %v5273
    %v5308 = vunpack.c.l.b16 %v5274
    %v5309 = vpack.c.b16 %v5294, %v5293
    %v5310 = vpack.c.b16 %v5296, %v5295
    %v5311 = vpack.c.b16 %v5298, %v5297
    %v5312 = vpack.c.b16 %v5300, %v5299
    %v5313 = vpack.c.b16 %v5302, %v5301
    %v5314 = vpack.c.b16 %v5304, %v5303
    %v5315 = vpack.c.b16 %v5306, %v5305
    %v5316 = vpack.c.b16 %v5308, %v5307
    %5325 = vmatprep.subr.bf16.mxu0 0
    %5326 = vmatpush1.bf16.msra.mxu0 %v5309
    %5327 = vmatprep.subr.bf16.mxu0 0
    %5328 = vmatpush1.bf16.msra.mxu0 %v5310
    %5329 = vmatprep.subr.bf16.mxu0 0
    %5330 = vmatpush1.bf16.msra.mxu0 %v5311
    %5331 = vmatprep.subr.bf16.mxu0 0
    %5332 = vmatpush1.bf16.msra.mxu0 %v5312
    %5333 = vmatprep.subr.bf16.mxu0 0
    %5334 = vmatpush1.bf16.msra.mxu0 %v5313
    %5335 = vmatprep.subr.bf16.mxu0 0
    %5336 = vmatpush1.bf16.msra.mxu0 %v5314
    %5337 = vmatprep.subr.bf16.mxu0 0
    %5338 = vmatpush1.bf16.msra.mxu0 %v5315
    %5339 = vmatprep.subr.bf16.mxu0 0
    %5340 = vmatpush1.bf16.msra.mxu0 %v5316
    %5341 = vmatprep.subr.bf16.mxu0 0
    %5342 = vmatpush1.bf16.msra.mxu0 0
    %5343 = vmatprep.subr.bf16.mxu0 0
    %5344 = vmatpush1.bf16.msra.mxu0 0
    %5345 = vmatprep.subr.bf16.mxu0 0
    %5346 = vmatpush1.bf16.msra.mxu0 0
    %5347 = vmatprep.subr.bf16.mxu0 0
    %5348 = vmatpush1.bf16.msra.mxu0 0
    %5349 = vmatprep.subr.bf16.mxu0 0
    %5350 = vmatpush1.bf16.msra.mxu0 0
    %5351 = vmatprep.subr.bf16.mxu0 0
    %5352 = vmatpush1.bf16.msra.mxu0 0
    %5353 = vmatprep.subr.bf16.mxu0 0
    %5354 = vmatpush1.bf16.msra.mxu0 0
    %5355 = vmatprep.subr.bf16.mxu0 0
    %5356 = vmatpush1.bf16.msra.mxu0 0
    %5357 = vmatprep.mubr.bf16.mxu0 0
    %5358 = vmatmul.mubr.bf16.gmra.mrb[0].mxu0 %v5275
    %v5359 = vpop.f32.mrb[0].mxu0
    %v5360 = vadd.f32 %v5276, %v5359
    %v5361 = vpop.f32.mrb[0].mxu0
    %v5362 = vpop.f32.mrb[0].mxu0
    %v5363 = vpop.f32.mrb[0].mxu0
    %5364 = vdwg.mxu0
    %v5365 = vmax.f32 %v5360, 0.0
    %v5366 = vld [vmem:[#allocation2 + $0x8] sm:$0xff]
    %v5367 = vld [vmem:[#allocation2 + $0x10] sm:$0xf]
    %v5368 = vld [vmem:[#allocation2 + $0x70] sm:$0xff]
    %v5369 = vld [vmem:[#allocation2 + $0x78] sm:$0xf]
    %v5370 = vld [vmem:[#allocation2 + $0xd8] sm:$0xff]
    %v5371 = vld [vmem:[#allocation2 + $0xe0] sm:$0xf]
    %v5372 = vld [vmem:[#allocation2 + $0x140] sm:$0xff]
    %v5373 = vld [vmem:[#allocation2 + $0x148] sm:$0xf]
    %v5374 = vld [vmem:[#allocation2 + $0x1a8] sm:$0xff]
    %v5375 = vld [vmem:[#allocation2 + $0x1b0] sm:$0xf]
    %v5376 = vld [vmem:[#allocation2 + $0x210] sm:$0xff]
    %v5377 = vld [vmem:[#allocation2 + $0x218] sm:$0xf]
    %v5378 = vld [vmem:[#allocation2 + $0x278] sm:$0xff]
    %v5379 = vld [vmem:[#allocation2 + $0x280] sm:$0xf]
    %v5380 = vld [vmem:[#allocation2 + $0x2e0] sm:$0xff]
    %v5381 = vld [vmem:[#allocation2 + $0x2e8] sm:$0xf]
    %v5382 = vld [vmem:[#allocation2 + $0x348] sm:$0xff]
    %v5383 = vld [vmem:[#allocation2 + $0x350] sm:$0xf]
    %v5384 = vld [vmem:[#allocation2 + $0x3b0] sm:$0xff]
    %v5385 = vld [vmem:[#allocation2 + $0x3b8] sm:$0xf]
    %v5386 = vld [vmem:[#allocation2 + $0x418] sm:$0xff]
    %v5387 = vld [vmem:[#allocation2 + $0x420] sm:$0xf]
    %v5388 = vld [vmem:[#allocation2 + $0x480] sm:$0xff]
    %v5389 = vld [vmem:[#allocation2 + $0x488] sm:$0xf]
    %v5390 = vld [vmem:[#allocation2 + $0x4e8] sm:$0xff]
    %v5391 = vld [vmem:[#allocation2 + $0x4f0] sm:$0xf]
    %v5392 = vld [vmem:[#allocation2 + $0x550] sm:$0xff]
    %v5393 = vld [vmem:[#allocation2 + $0x558] sm:$0xf]
    %v5394 = vld [vmem:[#allocation2 + $0x5b8] sm:$0xff]
    %v5395 = vld [vmem:[#allocation2 + $0x5c0] sm:$0xf]
    %v5396 = vld [vmem:[#allocation2 + $0x620] sm:$0xff]
    %v5397 = vld [vmem:[#allocation2 + $0x628] sm:$0xf]
    %v5398 = vpack.c.bf16 %v5365, %v5365
    %v5399 = vld [vmem:[%s325] ss:$8 sm:$0x7]
    %v5401 = vlaneseq
    %v5402 = vshrl.u32 %v5401, 7
    %v5403 = vsub.s32 0, %v5402
    %v5404 = vrot.slane %v5399, %v5403
    %v5405 = vlaneseq
    %v5406 = vshrl.u32 %v5405, 7
    %v5407 = vsub.s32 1, %v5406
    %v5408 = vrot.slane %v5399, %v5407
    %v5409 = vlaneseq
    %v5410 = vshrl.u32 %v5409, 7
    %v5411 = vsub.s32 2, %v5410
    %v5412 = vrot.slane %v5399, %v5411
    %v5448 = vunpack.c.l.b16 %v5366
    %v5449 = vunpack.c.h.b16 %v5366
    %v5450 = vunpack.c.l.b16 %v5367
    %v5451 = vunpack.c.l.b16 %v5368
    %v5452 = vunpack.c.h.b16 %v5368
    %v5453 = vunpack.c.l.b16 %v5369
    %v5454 = vunpack.c.l.b16 %v5370
    %v5455 = vunpack.c.h.b16 %v5370
    %v5456 = vunpack.c.l.b16 %v5371
    %v5457 = vunpack.c.l.b16 %v5372
    %v5458 = vunpack.c.h.b16 %v5372
    %v5459 = vunpack.c.l.b16 %v5373
    %v5460 = vunpack.c.l.b16 %v5374
    %v5461 = vunpack.c.h.b16 %v5374
    %v5462 = vunpack.c.l.b16 %v5375
    %v5463 = vunpack.c.l.b16 %v5376
    %v5464 = vunpack.c.h.b16 %v5376
    %v5465 = vunpack.c.l.b16 %v5377
    %v5466 = vunpack.c.l.b16 %v5378
    %v5467 = vunpack.c.h.b16 %v5378
    %v5468 = vunpack.c.l.b16 %v5379
    %v5469 = vunpack.c.l.b16 %v5380
    %v5470 = vunpack.c.h.b16 %v5380
    %v5471 = vunpack.c.l.b16 %v5381
    %v5472 = vunpack.c.l.b16 %v5382
    %v5473 = vunpack.c.h.b16 %v5382
    %v5474 = vunpack.c.l.b16 %v5383
    %v5475 = vunpack.c.l.b16 %v5384
    %v5476 = vunpack.c.h.b16 %v5384
    %v5477 = vunpack.c.l.b16 %v5385
    %v5478 = vunpack.c.l.b16 %v5386
    %v5479 = vunpack.c.h.b16 %v5386
    %v5480 = vunpack.c.l.b16 %v5387
    %v5481 = vunpack.c.l.b16 %v5388
    %v5482 = vunpack.c.h.b16 %v5388
    %v5483 = vunpack.c.l.b16 %v5389
    %v5484 = vunpack.c.l.b16 %v5390
    %v5485 = vunpack.c.h.b16 %v5390
    %v5486 = vunpack.c.l.b16 %v5391
    %v5487 = vunpack.c.l.b16 %v5392
    %v5488 = vunpack.c.h.b16 %v5392
    %v5489 = vunpack.c.l.b16 %v5393
    %v5490 = vunpack.c.l.b16 %v5394
    %v5491 = vunpack.c.h.b16 %v5394
    %v5492 = vunpack.c.l.b16 %v5395
    %v5493 = vunpack.c.l.b16 %v5396
    %v5494 = vunpack.c.h.b16 %v5396
    %v5495 = vunpack.c.l.b16 %v5397
    %v5496 = vpack.c.b16 %v5451, %v5448
    %v5497 = vpack.c.b16 %v5452, %v5449
    %v5498 = vpack.c.b16 %v5453, %v5450
    %v5499 = vpack.c.b16 %v5457, %v5454
    %v5500 = vpack.c.b16 %v5458, %v5455
    %v5501 = vpack.c.b16 %v5459, %v5456
    %v5502 = vpack.c.b16 %v5463, %v5460
    %v5503 = vpack.c.b16 %v5464, %v5461
    %v5504 = vpack.c.b16 %v5465, %v5462
    %v5505 = vpack.c.b16 %v5469, %v5466
    %v5506 = vpack.c.b16 %v5470, %v5467
    %v5507 = vpack.c.b16 %v5471, %v5468
    %v5508 = vpack.c.b16 %v5475, %v5472
    %v5509 = vpack.c.b16 %v5476, %v5473
    %v5510 = vpack.c.b16 %v5477, %v5474
    %v5511 = vpack.c.b16 %v5481, %v5478
    %v5512 = vpack.c.b16 %v5482, %v5479
    %v5513 = vpack.c.b16 %v5483, %v5480
    %v5514 = vpack.c.b16 %v5487, %v5484
    %v5515 = vpack.c.b16 %v5488, %v5485
    %v5516 = vpack.c.b16 %v5489, %v5486
    %v5517 = vpack.c.b16 %v5493, %v5490
    %v5518 = vpack.c.b16 %v5494, %v5491
    %v5519 = vpack.c.b16 %v5495, %v5492
    %5544 = vmatprep.subr.bf16.mxu0 %v5497
    %5545 = vmatpush1.bf16.msra.mxu0 %v5496
    %5546 = vmatprep.subr.bf16.mxu0 %v5500
    %5547 = vmatpush1.bf16.msra.mxu0 %v5499
    %5548 = vmatprep.subr.bf16.mxu0 %v5503
    %5549 = vmatpush1.bf16.msra.mxu0 %v5502
    %5550 = vmatprep.subr.bf16.mxu0 %v5506
    %5551 = vmatpush1.bf16.msra.mxu0 %v5505
    %5552 = vmatprep.subr.bf16.mxu0 %v5509
    %5553 = vmatpush1.bf16.msra.mxu0 %v5508
    %5554 = vmatprep.subr.bf16.mxu0 %v5512
    %5555 = vmatpush1.bf16.msra.mxu0 %v5511
    %5556 = vmatprep.subr.bf16.mxu0 %v5515
    %5557 = vmatpush1.bf16.msra.mxu0 %v5514
    %5558 = vmatprep.subr.bf16.mxu0 %v5518
    %5559 = vmatpush1.bf16.msra.mxu0 %v5517
    %5560 = vmatprep.subr.bf16.mxu0 0
    %5561 = vmatpush1.bf16.msra.mxu0 0
    %5562 = vmatprep.subr.bf16.mxu0 0
    %5563 = vmatpush1.bf16.msra.mxu0 0
    %5564 = vmatprep.subr.bf16.mxu0 0
    %5565 = vmatpush1.bf16.msra.mxu0 0
    %5566 = vmatprep.subr.bf16.mxu0 0
    %5567 = vmatpush1.bf16.msra.mxu0 0
    %5568 = vmatprep.subr.bf16.mxu0 0
    %5569 = vmatpush1.bf16.msra.mxu0 0
    %5570 = vmatprep.subr.bf16.mxu0 0
    %5571 = vmatpush1.bf16.msra.mxu0 0
    %5572 = vmatprep.subr.bf16.mxu0 0
    %5573 = vmatpush1.bf16.msra.mxu0 0
    %5574 = vmatprep.subr.bf16.mxu0 0
    %5575 = vmatpush1.bf16.msra.mxu0 0
    %5576 = vmatprep.mubr.bf16.mxu0 0
    %5577 = vmatmul.mubr.bf16.gmra.mrb[0].mxu0 %v5398
    %v5578 = vpop.f32.mrb[0].mxu0
    %v5579 = vadd.f32 %v5404, %v5578
    %v5580 = vpop.f32.mrb[0].mxu0
    %v5581 = vadd.f32 %v5408, %v5580
    %v5582 = vpop.f32.mrb[0].mxu0
    %v5583 = vpop.f32.mrb[0].mxu0
    %5584 = vdwg.mxu0
    %5585 = vmatprep.subr.bf16.mxu0 0
    %5586 = vmatpush1.bf16.msra.mxu0 %v5498
    %5587 = vmatprep.subr.bf16.mxu0 0
    %5588 = vmatpush1.bf16.msra.mxu0 %v5501
    %5589 = vmatprep.subr.bf16.mxu0 0
    %5590 = vmatpush1.bf16.msra.mxu0 %v5504
    %5591 = vmatprep.subr.bf16.mxu0 0
    %5592 = vmatpush1.bf16.msra.mxu0 %v5507
    %5593 = vmatprep.subr.bf16.mxu0 0
    %5594 = vmatpush1.bf16.msra.mxu0 %v5510
    %5595 = vmatprep.subr.bf16.mxu0 0
    %5596 = vmatpush1.bf16.msra.mxu0 %v5513
    %5597 = vmatprep.subr.bf16.mxu0 0
    %5598 = vmatpush1.bf16.msra.mxu0 %v5516
    %5599 = vmatprep.subr.bf16.mxu0 0
    %5600 = vmatpush1.bf16.msra.mxu0 %v5519
    %5601 = vmatprep.subr.bf16.mxu0 0
    %5602 = vmatpush1.bf16.msra.mxu0 0
    %5603 = vmatprep.subr.bf16.mxu0 0
    %5604 = vmatpush1.bf16.msra.mxu0 0
    %5605 = vmatprep.subr.bf16.mxu0 0
    %5606 = vmatpush1.bf16.msra.mxu0 0
    %5607 = vmatprep.subr.bf16.mxu0 0
    %5608 = vmatpush1.bf16.msra.mxu0 0
    %5609 = vmatprep.subr.bf16.mxu0 0
    %5610 = vmatpush1.bf16.msra.mxu0 0
    %5611 = vmatprep.subr.bf16.mxu0 0
    %5612 = vmatpush1.bf16.msra.mxu0 0
    %5613 = vmatprep.subr.bf16.mxu0 0
    %5614 = vmatpush1.bf16.msra.mxu0 0
    %5615 = vmatprep.subr.bf16.mxu0 0
    %5616 = vmatpush1.bf16.msra.mxu0 0
    %5617 = vmatprep.mubr.bf16.mxu0 0
    %5618 = vmatmul.mubr.bf16.gmra.mrb[0].mxu0 %v5398
    %v5619 = vpop.f32.mrb[0].mxu0
    %v5620 = vadd.f32 %v5412, %v5619
    %v5621 = vpop.f32.mrb[0].mxu0
    %v5622 = vpop.f32.mrb[0].mxu0
    %v5623 = vpop.f32.mrb[0].mxu0
    %5624 = vdwg.mxu0
    %v5625 = vmax.f32 %v5579, 0.0
    %v5626 = vmax.f32 %v5581, 0.0
    %v5627 = vmax.f32 %v5620, 0.0
    %v5628 = vld [vmem:[#allocation7] sm:$0xf]
    %v5629 = vld [vmem:[#allocation7 + $0x10] sm:$0xf]
    %v5630 = vld [vmem:[#allocation7 + $0x20] sm:$0xf]
    %v5631 = vld [vmem:[#allocation7 + $0x30] sm:$0xf]
    %v5632 = vld [vmem:[#allocation7 + $0x40] sm:$0xf]
    %v5633 = vld [vmem:[#allocation7 + $0x50] sm:$0xf]
    %v5634 = vld [vmem:[#allocation7 + $0x60] sm:$0xf]
    %v5635 = vld [vmem:[#allocation7 + $0x70] sm:$0xf]
    %v5636 = vld [vmem:[#allocation7 + $0x80] sm:$0xf]
    %v5637 = vld [vmem:[#allocation7 + $0x90] sm:$0xf]
    %v5638 = vld [vmem:[#allocation7 + $0xa0] sm:$0xf]
    %v5639 = vld [vmem:[#allocation7 + $0xb0] sm:$0xf]
    %v5640 = vld [vmem:[#allocation7 + $0xc0] sm:$0xf]
    %v5641 = vld [vmem:[#allocation7 + $0xd0] sm:$0xf]
    %v5642 = vld [vmem:[#allocation7 + $0xe0] sm:$0xf]
    %v5643 = vld [vmem:[#allocation7 + $0xf0] sm:$0xf]
    %v5644 = vld [vmem:[#allocation7 + $0x100] sm:$0xf]
    %v5645 = vld [vmem:[#allocation7 + $0x110] sm:$0xf]
    %v5646 = vld [vmem:[#allocation7 + $0x120] sm:$0xf]
    %v5647 = vld [vmem:[#allocation7 + $0x130] sm:$0xf]
    %v5648 = vld [vmem:[#allocation7 + $0x140] sm:$0xf]
    %v5649 = vld [vmem:[#allocation7 + $0x150] sm:$0xf]
    %v5650 = vld [vmem:[#allocation7 + $0x160] sm:$0xf]
    %v5651 = vld [vmem:[#allocation7 + $0x170] sm:$0xf]
    %v5652 = vld [vmem:[#allocation7 + $0x180] sm:$0xf]
    %v5653 = vld [vmem:[#allocation7 + $0x190] sm:$0xf]
    %v5654 = vld [vmem:[#allocation7 + $0x1a0] sm:$0xf]
    %v5655 = vld [vmem:[#allocation7 + $0x1b0] sm:$0xf]
    %v5656 = vld [vmem:[#allocation7 + $0x1c0] sm:$0xf]
    %v5657 = vld [vmem:[#allocation7 + $0x1d0] sm:$0xf]
    %v5658 = vld [vmem:[#allocation7 + $0x1e0] sm:$0xf]
    %v5659 = vld [vmem:[#allocation7 + $0x1f0] sm:$0xf]
    %v5660 = vld [vmem:[#allocation7 + $0x200] sm:$0xf]
    %v5661 = vld [vmem:[#allocation7 + $0x210] sm:$0xf]
    %v5662 = vld [vmem:[#allocation7 + $0x220] sm:$0xf]
    %v5663 = vld [vmem:[#allocation7 + $0x230] sm:$0xf]
    %v5664 = vld [vmem:[#allocation7 + $0x240] sm:$0xf]
    %v5665 = vld [vmem:[#allocation7 + $0x250] sm:$0xf]
    %v5666 = vld [vmem:[#allocation7 + $0x260] sm:$0xf]
    %v5667 = vld [vmem:[#allocation7 + $0x270] sm:$0xf]
    %v5668 = vld [vmem:[#allocation7 + $0x280] sm:$0xf]
    %v5669 = vld [vmem:[#allocation7 + $0x290] sm:$0xf]
    %v5670 = vld [vmem:[#allocation7 + $0x2a0] sm:$0xf]
    %v5671 = vld [vmem:[#allocation7 + $0x2b0] sm:$0xf]
    %v5672 = vld [vmem:[#allocation7 + $0x2c0] sm:$0xf]
    %v5673 = vld [vmem:[#allocation7 + $0x2d0] sm:$0xf]
    %v5674 = vld [vmem:[#allocation7 + $0x2e0] sm:$0xf]
    %v5675 = vld [vmem:[#allocation7 + $0x2f0] sm:$0xf]
    %v5676 = vpack.c.bf16 %v5625, %v5625
    %v5677 = vpack.c.bf16 %v5626, %v5626
    %v5678 = vpack.c.bf16 %v5627, %v5627
    %v5679 = vld [vmem:[#allocation8 + $0x3] ss:$0 sm:$0xff]
    %v5728 = vunpack.c.l.b16 %v5628
    %v5729 = vunpack.c.l.b16 %v5629
    %v5730 = vunpack.c.l.b16 %v5630
    %v5731 = vunpack.c.l.b16 %v5631
    %v5732 = vunpack.c.l.b16 %v5632
    %v5733 = vunpack.c.l.b16 %v5633
    %v5734 = vunpack.c.l.b16 %v5634
    %v5735 = vunpack.c.l.b16 %v5635
    %v5736 = vunpack.c.l.b16 %v5636
    %v5737 = vunpack.c.l.b16 %v5637
    %v5738 = vunpack.c.l.b16 %v5638
    %v5739 = vunpack.c.l.b16 %v5639
    %v5740 = vunpack.c.l.b16 %v5640
    %v5741 = vunpack.c.l.b16 %v5641
    %v5742 = vunpack.c.l.b16 %v5642
    %v5743 = vunpack.c.l.b16 %v5643
    %v5744 = vunpack.c.l.b16 %v5644
    %v5745 = vunpack.c.l.b16 %v5645
    %v5746 = vunpack.c.l.b16 %v5646
    %v5747 = vunpack.c.l.b16 %v5647
    %v5748 = vunpack.c.l.b16 %v5648
    %v5749 = vunpack.c.l.b16 %v5649
    %v5750 = vunpack.c.l.b16 %v5650
    %v5751 = vunpack.c.l.b16 %v5651
    %v5752 = vunpack.c.l.b16 %v5652
    %v5753 = vunpack.c.l.b16 %v5653
    %v5754 = vunpack.c.l.b16 %v5654
    %v5755 = vunpack.c.l.b16 %v5655
    %v5756 = vunpack.c.l.b16 %v5656
    %v5757 = vunpack.c.l.b16 %v5657
    %v5758 = vunpack.c.l.b16 %v5658
    %v5759 = vunpack.c.l.b16 %v5659
    %v5760 = vunpack.c.l.b16 %v5660
    %v5761 = vunpack.c.l.b16 %v5661
    %v5762 = vunpack.c.l.b16 %v5662
    %v5763 = vunpack.c.l.b16 %v5663
    %v5764 = vunpack.c.l.b16 %v5664
    %v5765 = vunpack.c.l.b16 %v5665
    %v5766 = vunpack.c.l.b16 %v5666
    %v5767 = vunpack.c.l.b16 %v5667
    %v5768 = vunpack.c.l.b16 %v5668
    %v5769 = vunpack.c.l.b16 %v5669
    %v5770 = vunpack.c.l.b16 %v5670
    %v5771 = vunpack.c.l.b16 %v5671
    %v5772 = vunpack.c.l.b16 %v5672
    %v5773 = vunpack.c.l.b16 %v5673
    %v5774 = vunpack.c.l.b16 %v5674
    %v5775 = vunpack.c.l.b16 %v5675
    %v5776 = vpack.c.b16 %v5729, %v5728
    %v5777 = vpack.c.b16 %v5731, %v5730
    %v5778 = vpack.c.b16 %v5733, %v5732
    %v5779 = vpack.c.b16 %v5735, %v5734
    %v5780 = vpack.c.b16 %v5737, %v5736
    %v5781 = vpack.c.b16 %v5739, %v5738
    %v5782 = vpack.c.b16 %v5741, %v5740
    %v5783 = vpack.c.b16 %v5743, %v5742
    %v5784 = vpack.c.b16 %v5745, %v5744
    %v5785 = vpack.c.b16 %v5747, %v5746
    %v5786 = vpack.c.b16 %v5749, %v5748
    %v5787 = vpack.c.b16 %v5751, %v5750
    %v5788 = vpack.c.b16 %v5753, %v5752
    %v5789 = vpack.c.b16 %v5755, %v5754
    %v5790 = vpack.c.b16 %v5757, %v5756
    %v5791 = vpack.c.b16 %v5759, %v5758
    %v5792 = vpack.c.b16 %v5761, %v5760
    %v5793 = vpack.c.b16 %v5763, %v5762
    %v5794 = vpack.c.b16 %v5765, %v5764
    %v5795 = vpack.c.b16 %v5767, %v5766
    %v5796 = vpack.c.b16 %v5769, %v5768
    %v5797 = vpack.c.b16 %v5771, %v5770
    %v5798 = vpack.c.b16 %v5773, %v5772
    %v5799 = vpack.c.b16 %v5775, %v5774
    %5824 = vmatprep.subr.bf16.mxu0 0
    %5825 = vmatpush1.bf16.msra.mxu0 %v5776
    %5826 = vmatprep.subr.bf16.mxu0 0
    %5827 = vmatpush1.bf16.msra.mxu0 %v5777
    %5828 = vmatprep.subr.bf16.mxu0 0
    %5829 = vmatpush1.bf16.msra.mxu0 %v5778
    %5830 = vmatprep.subr.bf16.mxu0 0
    %5831 = vmatpush1.bf16.msra.mxu0 %v5779
    %5832 = vmatprep.subr.bf16.mxu0 0
    %5833 = vmatpush1.bf16.msra.mxu0 %v5780
    %5834 = vmatprep.subr.bf16.mxu0 0
    %5835 = vmatpush1.bf16.msra.mxu0 %v5781
    %5836 = vmatprep.subr.bf16.mxu0 0
    %5837 = vmatpush1.bf16.msra.mxu0 %v5782
    %5838 = vmatprep.subr.bf16.mxu0 0
    %5839 = vmatpush1.bf16.msra.mxu0 %v5783
    %5840 = vmatprep.subr.bf16.mxu0 0
    %5841 = vmatpush1.bf16.msra.mxu0 %v5784
    %5842 = vmatprep.subr.bf16.mxu0 0
    %5843 = vmatpush1.bf16.msra.mxu0 %v5785
    %5844 = vmatprep.subr.bf16.mxu0 0
    %5845 = vmatpush1.bf16.msra.mxu0 %v5786
    %5846 = vmatprep.subr.bf16.mxu0 0
    %5847 = vmatpush1.bf16.msra.mxu0 %v5787
    %5848 = vmatprep.subr.bf16.mxu0 0
    %5849 = vmatpush1.bf16.msra.mxu0 %v5788
    %5850 = vmatprep.subr.bf16.mxu0 0
    %5851 = vmatpush1.bf16.msra.mxu0 %v5789
    %5852 = vmatprep.subr.bf16.mxu0 0
    %5853 = vmatpush1.bf16.msra.mxu0 %v5790
    %5854 = vmatprep.subr.bf16.mxu0 0
    %5855 = vmatpush1.bf16.msra.mxu0 %v5791
    %5856 = vmatprep.mubr.bf16.mxu0 %v5677
    %5857 = vmatmul.mubr.bf16.gmra.mrb[0].mxu0 %v5676
    %v5858 = vpop.f32.mrb[0].mxu0
    %v5859 = vadd.f32 %v5679, %v5858
    %v5860 = vpop.f32.mrb[0].mxu0
    %v5861 = vpop.f32.mrb[0].mxu0
    %v5862 = vpop.f32.mrb[0].mxu0
    %5863 = vdwg.mxu0
    %5864 = vmatprep.subr.bf16.mxu0 0
    %5865 = vmatpush1.bf16.msra.mxu0 %v5792
    %5866 = vmatprep.subr.bf16.mxu0 0
    %5867 = vmatpush1.bf16.msra.mxu0 %v5793
    %5868 = vmatprep.subr.bf16.mxu0 0
    %5869 = vmatpush1.bf16.msra.mxu0 %v5794
    %5870 = vmatprep.subr.bf16.mxu0 0
    %5871 = vmatpush1.bf16.msra.mxu0 %v5795
    %5872 = vmatprep.subr.bf16.mxu0 0
    %5873 = vmatpush1.bf16.msra.mxu0 %v5796
    %5874 = vmatprep.subr.bf16.mxu0 0
    %5875 = vmatpush1.bf16.msra.mxu0 %v5797
    %5876 = vmatprep.subr.bf16.mxu0 0
    %5877 = vmatpush1.bf16.msra.mxu0 %v5798
    %5878 = vmatprep.subr.bf16.mxu0 0
    %5879 = vmatpush1.bf16.msra.mxu0 %v5799
    %5880 = vmatprep.subr.bf16.mxu0 0
    %5881 = vmatpush1.bf16.msra.mxu0 0
    %5882 = vmatprep.subr.bf16.mxu0 0
    %5883 = vmatpush1.bf16.msra.mxu0 0
    %5884 = vmatprep.subr.bf16.mxu0 0
    %5885 = vmatpush1.bf16.msra.mxu0 0
    %5886 = vmatprep.subr.bf16.mxu0 0
    %5887 = vmatpush1.bf16.msra.mxu0 0
    %5888 = vmatprep.subr.bf16.mxu0 0
    %5889 = vmatpush1.bf16.msra.mxu0 0
    %5890 = vmatprep.subr.bf16.mxu0 0
    %5891 = vmatpush1.bf16.msra.mxu0 0
    %5892 = vmatprep.subr.bf16.mxu0 0
    %5893 = vmatpush1.bf16.msra.mxu0 0
    %5894 = vmatprep.subr.bf16.mxu0 0
    %5895 = vmatpush1.bf16.msra.mxu0 0
    %5896 = vmatprep.mubr.bf16.mxu0 0
    %5897 = vmatmul.mubr.bf16.gmra.mrb[0].mxu0 %v5678
    %v5898 = vpop.f32.mrb[0].mxu0
    %v5899 = vadd.f32 %v5859, %v5898
    %v5900 = vpop.f32.mrb[0].mxu0
    %v5901 = vpop.f32.mrb[0].mxu0
    %v5902 = vpop.f32.mrb[0].mxu0
    %5903 = vdwg.mxu0
    %v5904 = vmax.f32 %v5899, 0.0
    %v5905 = vld [vmem:[#allocation2 + $0x14] sm:$0xf]
    %v5906 = vld [vmem:[#allocation2 + $0x7c] sm:$0xf]
    %v5907 = vld [vmem:[#allocation2 + $0xe4] sm:$0xf]
    %v5908 = vld [vmem:[#allocation2 + $0x14c] sm:$0xf]
    %v5909 = vld [vmem:[#allocation2 + $0x1b4] sm:$0xf]
    %v5910 = vld [vmem:[#allocation2 + $0x21c] sm:$0xf]
    %v5911 = vld [vmem:[#allocation2 + $0x284] sm:$0xf]
    %v5912 = vld [vmem:[#allocation2 + $0x2ec] sm:$0xf]
    %v5913 = vld [vmem:[#allocation2 + $0x354] sm:$0xf]
    %v5914 = vld [vmem:[#allocation2 + $0x3bc] sm:$0xf]
    %v5915 = vld [vmem:[#allocation2 + $0x424] sm:$0xf]
    %v5916 = vld [vmem:[#allocation2 + $0x48c] sm:$0xf]
    %v5917 = vld [vmem:[#allocation2 + $0x4f4] sm:$0xf]
    %v5918 = vld [vmem:[#allocation2 + $0x55c] sm:$0xf]
    %v5919 = vld [vmem:[#allocation2 + $0x5c4] sm:$0xf]
    %v5920 = vld [vmem:[#allocation2 + $0x62c] sm:$0xf]
    %v5921 = vpack.c.bf16 %v5904, %v5904
    %v5922 = vld [vmem:[#allocation8 + $0x4] ss:$0 sm:$0xff]
    %v5939 = vunpack.c.l.b16 %v5905
    %v5940 = vunpack.c.l.b16 %v5906
    %v5941 = vunpack.c.l.b16 %v5907
    %v5942 = vunpack.c.l.b16 %v5908
    %v5943 = vunpack.c.l.b16 %v5909
    %v5944 = vunpack.c.l.b16 %v5910
    %v5945 = vunpack.c.l.b16 %v5911
    %v5946 = vunpack.c.l.b16 %v5912
    %v5947 = vunpack.c.l.b16 %v5913
    %v5948 = vunpack.c.l.b16 %v5914
    %v5949 = vunpack.c.l.b16 %v5915
    %v5950 = vunpack.c.l.b16 %v5916
    %v5951 = vunpack.c.l.b16 %v5917
    %v5952 = vunpack.c.l.b16 %v5918
    %v5953 = vunpack.c.l.b16 %v5919
    %v5954 = vunpack.c.l.b16 %v5920
    %v5955 = vpack.c.b16 %v5940, %v5939
    %v5956 = vpack.c.b16 %v5942, %v5941
    %v5957 = vpack.c.b16 %v5944, %v5943
    %v5958 = vpack.c.b16 %v5946, %v5945
    %v5959 = vpack.c.b16 %v5948, %v5947
    %v5960 = vpack.c.b16 %v5950, %v5949
    %v5961 = vpack.c.b16 %v5952, %v5951
    %v5962 = vpack.c.b16 %v5954, %v5953
    %5971 = vmatprep.subr.bf16.mxu0 0
    %5972 = vmatpush1.bf16.msra.mxu0 %v5955
    %5973 = vmatprep.subr.bf16.mxu0 0
    %5974 = vmatpush1.bf16.msra.mxu0 %v5956
    %5975 = vmatprep.subr.bf16.mxu0 0
    %5976 = vmatpush1.bf16.msra.mxu0 %v5957
    %5977 = vmatprep.subr.bf16.mxu0 0
    %5978 = vmatpush1.bf16.msra.mxu0 %v5958
    %5979 = vmatprep.subr.bf16.mxu0 0
    %5980 = vmatpush1.bf16.msra.mxu0 %v5959
    %5981 = vmatprep.subr.bf16.mxu0 0
    %5982 = vmatpush1.bf16.msra.mxu0 %v5960
    %5983 = vmatprep.subr.bf16.mxu0 0
    %5984 = vmatpush1.bf16.msra.mxu0 %v5961
    %5985 = vmatprep.subr.bf16.mxu0 0
    %5986 = vmatpush1.bf16.msra.mxu0 %v5962
    %5987 = vmatprep.subr.bf16.mxu0 0
    %5988 = vmatpush1.bf16.msra.mxu0 0
    %5989 = vmatprep.subr.bf16.mxu0 0
    %5990 = vmatpush1.bf16.msra.mxu0 0
    %5991 = vmatprep.subr.bf16.mxu0 0
    %5992 = vmatpush1.bf16.msra.mxu0 0
    %5993 = vmatprep.subr.bf16.mxu0 0
    %5994 = vmatpush1.bf16.msra.mxu0 0
    %5995 = vmatprep.subr.bf16.mxu0 0
    %5996 = vmatpush1.bf16.msra.mxu0 0
    %5997 = vmatprep.subr.bf16.mxu0 0
    %5998 = vmatpush1.bf16.msra.mxu0 0
    %5999 = vmatprep.subr.bf16.mxu0 0
    %6000 = vmatpush1.bf16.msra.mxu0 0
    %6001 = vmatprep.subr.bf16.mxu0 0
    %6002 = vmatpush1.bf16.msra.mxu0 0
    %6003 = vmatprep.mubr.bf16.mxu0 0
    %6004 = vmatmul.mubr.bf16.gmra.mrb[0].mxu0 %v5921
    %v6005 = vpop.f32.mrb[0].mxu0
    %v6006 = vadd.f32 %v5922, %v6005
    %v6007 = vpop.f32.mrb[0].mxu0
    %v6008 = vpop.f32.mrb[0].mxu0
    %v6009 = vpop.f32.mrb[0].mxu0
    %6010 = vdwg.mxu0
    %v6011 = vld [vmem:[#allocation2 + $0x18] sm:$0xf]
    %v6012 = vld [vmem:[#allocation2 + $0x80] sm:$0xf]
    %v6013 = vld [vmem:[#allocation2 + $0xe8] sm:$0xf]
    %v6014 = vld [vmem:[#allocation2 + $0x150] sm:$0xf]
    %v6015 = vld [vmem:[#allocation2 + $0x1b8] sm:$0xf]
    %v6016 = vld [vmem:[#allocation2 + $0x220] sm:$0xf]
    %v6017 = vld [vmem:[#allocation2 + $0x288] sm:$0xf]
    %v6018 = vld [vmem:[#allocation2 + $0x2f0] sm:$0xf]
    %v6019 = vld [vmem:[#allocation2 + $0x358] sm:$0xf]
    %v6020 = vld [vmem:[#allocation2 + $0x3c0] sm:$0xf]
    %v6021 = vld [vmem:[#allocation2 + $0x428] sm:$0xf]
    %v6022 = vld [vmem:[#allocation2 + $0x490] sm:$0xf]
    %v6023 = vld [vmem:[#allocation2 + $0x4f8] sm:$0xf]
    %v6024 = vld [vmem:[#allocation2 + $0x560] sm:$0xf]
    %v6025 = vld [vmem:[#allocation2 + $0x5c8] sm:$0xf]
    %v6026 = vld [vmem:[#allocation2 + $0x630] sm:$0xf]
    %v6027 = vpack.c.bf16 %v6006, %v6006
    %v6044 = vunpack.c.l.b16 %v6011
    %v6045 = vunpack.c.l.b16 %v6012
    %v6046 = vunpack.c.l.b16 %v6013
    %v6047 = vunpack.c.l.b16 %v6014
    %v6048 = vunpack.c.l.b16 %v6015
    %v6049 = vunpack.c.l.b16 %v6016
    %v6050 = vunpack.c.l.b16 %v6017
    %v6051 = vunpack.c.l.b16 %v6018
    %v6052 = vunpack.c.l.b16 %v6019
    %v6053 = vunpack.c.l.b16 %v6020
    %v6054 = vunpack.c.l.b16 %v6021
    %v6055 = vunpack.c.l.b16 %v6022
    %v6056 = vunpack.c.l.b16 %v6023
    %v6057 = vunpack.c.l.b16 %v6024
    %v6058 = vunpack.c.l.b16 %v6025
    %v6059 = vunpack.c.l.b16 %v6026
    %v6060 = vpack.c.b16 %v6045, %v6044
    %v6061 = vpack.c.b16 %v6047, %v6046
    %v6062 = vpack.c.b16 %v6049, %v6048
    %v6063 = vpack.c.b16 %v6051, %v6050
    %v6064 = vpack.c.b16 %v6053, %v6052
    %v6065 = vpack.c.b16 %v6055, %v6054
    %v6066 = vpack.c.b16 %v6057, %v6056
    %v6067 = vpack.c.b16 %v6059, %v6058
    %6076 = vmatprep.subr.bf16.mxu0 0
    %6077 = vmatpush1.bf16.msra.mxu0 %v6060
    %6078 = vmatprep.subr.bf16.mxu0 0
    %6079 = vmatpush1.bf16.msra.mxu0 %v6061
    %6080 = vmatprep.subr.bf16.mxu0 0
    %6081 = vmatpush1.bf16.msra.mxu0 %v6062
    %6082 = vmatprep.subr.bf16.mxu0 0
    %6083 = vmatpush1.bf16.msra.mxu0 %v6063
    %6084 = vmatprep.subr.bf16.mxu0 0
    %6085 = vmatpush1.bf16.msra.mxu0 %v6064
    %6086 = vmatprep.subr.bf16.mxu0 0
    %6087 = vmatpush1.bf16.msra.mxu0 %v6065
    %6088 = vmatprep.subr.bf16.mxu0 0
    %6089 = vmatpush1.bf16.msra.mxu0 %v6066
    %6090 = vmatprep.subr.bf16.mxu0 0
    %6091 = vmatpush1.bf16.msra.mxu0 %v6067
    %6092 = vmatprep.subr.bf16.mxu0 0
    %6093 = vmatpush1.bf16.msra.mxu0 0
    %6094 = vmatprep.subr.bf16.mxu0 0
    %6095 = vmatpush1.bf16.msra.mxu0 0
    %6096 = vmatprep.subr.bf16.mxu0 0
    %6097 = vmatpush1.bf16.msra.mxu0 0
    %6098 = vmatprep.subr.bf16.mxu0 0
    %6099 = vmatpush1.bf16.msra.mxu0 0
    %6100 = vmatprep.subr.bf16.mxu0 0
    %6101 = vmatpush1.bf16.msra.mxu0 0
    %6102 = vmatprep.subr.bf16.mxu0 0
    %6103 = vmatpush1.bf16.msra.mxu0 0
    %6104 = vmatprep.subr.bf16.mxu0 0
    %6105 = vmatpush1.bf16.msra.mxu0 0
    %6106 = vmatprep.subr.bf16.mxu0 0
    %6107 = vmatpush1.bf16.msra.mxu0 0
    %6108 = vmatprep.mubr.bf16.mxu0 0
    %6109 = vmatmul.mubr.bf16.gmra.mrb[0].mxu0 %v6027
    %v6110 = vpop.f32.mrb[0].mxu0
    %v6111 = vadd.f32 0.0, %v6110
    %v6112 = vpop.f32.mrb[0].mxu0
    %v6113 = vpop.f32.mrb[0].mxu0
    %v6114 = vpop.f32.mrb[0].mxu0
    %6115 = vdwg.mxu0
    %v6116 = vmax.f32 %v6111, 0.0
    %v6117 = vld [vmem:[#allocation2 + $0x1c] sm:$0xf]
    %v6118 = vld [vmem:[#allocation2 + $0x84] sm:$0xf]
    %v6119 = vld [vmem:[#allocation2 + $0xec] sm:$0xf]
    %v6120 = vld [vmem:[#allocation2 + $0x154] sm:$0xf]
    %v6121 = vld [vmem:[#allocation2 + $0x1bc] sm:$0xf]
    %v6122 = vld [vmem:[#allocation2 + $0x224] sm:$0xf]
    %v6123 = vld [vmem:[#allocation2 + $0x28c] sm:$0xf]
    %v6124 = vld [vmem:[#allocation2 + $0x2f4] sm:$0xf]
    %v6125 = vld [vmem:[#allocation2 + $0x35c] sm:$0xf]
    %v6126 = vld [vmem:[#allocation2 + $0x3c4] sm:$0xf]
    %v6127 = vld [vmem:[#allocation2 + $0x42c] sm:$0xf]
    %v6128 = vld [vmem:[#allocation2 + $0x494] sm:$0xf]
    %v6129 = vld [vmem:[#allocation2 + $0x4fc] sm:$0xf]
    %v6130 = vld [vmem:[#allocation2 + $0x564] sm:$0xf]
    %v6131 = vld [vmem:[#allocation2 + $0x5cc] sm:$0xf]
    %v6132 = vld [vmem:[#allocation2 + $0x634] sm:$0xf]
    %v6133 = vpack.c.bf16 %v6116, %v6116
    %v6150 = vunpack.c.l.b16 %v6117
    %v6151 = vunpack.c.l.b16 %v6118
    %v6152 = vunpack.c.l.b16 %v6119
    %v6153 = vunpack.c.l.b16 %v6120
    %v6154 = vunpack.c.l.b16 %v6121
    %v6155 = vunpack.c.l.b16 %v6122
    %v6156 = vunpack.c.l.b16 %v6123
    %v6157 = vunpack.c.l.b16 %v6124
    %v6158 = vunpack.c.l.b16 %v6125
    %v6159 = vunpack.c.l.b16 %v6126
    %v6160 = vunpack.c.l.b16 %v6127
    %v6161 = vunpack.c.l.b16 %v6128
    %v6162 = vunpack.c.l.b16 %v6129
    %v6163 = vunpack.c.l.b16 %v6130
    %v6164 = vunpack.c.l.b16 %v6131
    %v6165 = vunpack.c.l.b16 %v6132
    %v6166 = vpack.c.b16 %v6151, %v6150
    %v6167 = vpack.c.b16 %v6153, %v6152
    %v6168 = vpack.c.b16 %v6155, %v6154
    %v6169 = vpack.c.b16 %v6157, %v6156
    %v6170 = vpack.c.b16 %v6159, %v6158
    %v6171 = vpack.c.b16 %v6161, %v6160
    %v6172 = vpack.c.b16 %v6163, %v6162
    %v6173 = vpack.c.b16 %v6165, %v6164
    %6182 = vmatprep.subr.bf16.mxu0 0
    %6183 = vmatpush1.bf16.msra.mxu0 %v6166
    %6184 = vmatprep.subr.bf16.mxu0 0
    %6185 = vmatpush1.bf16.msra.mxu0 %v6167
    %6186 = vmatprep.subr.bf16.mxu0 0
    %6187 = vmatpush1.bf16.msra.mxu0 %v6168
    %6188 = vmatprep.subr.bf16.mxu0 0
    %6189 = vmatpush1.bf16.msra.mxu0 %v6169
    %6190 = vmatprep.subr.bf16.mxu0 0
    %6191 = vmatpush1.bf16.msra.mxu0 %v6170
    %6192 = vmatprep.subr.bf16.mxu0 0
    %6193 = vmatpush1.bf16.msra.mxu0 %v6171
    %6194 = vmatprep.subr.bf16.mxu0 0
    %6195 = vmatpush1.bf16.msra.mxu0 %v6172
    %6196 = vmatprep.subr.bf16.mxu0 0
    %6197 = vmatpush1.bf16.msra.mxu0 %v6173
    %6198 = vmatprep.subr.bf16.mxu0 0
    %6199 = vmatpush1.bf16.msra.mxu0 0
    %6200 = vmatprep.subr.bf16.mxu0 0
    %6201 = vmatpush1.bf16.msra.mxu0 0
    %6202 = vmatprep.subr.bf16.mxu0 0
    %6203 = vmatpush1.bf16.msra.mxu0 0
    %6204 = vmatprep.subr.bf16.mxu0 0
    %6205 = vmatpush1.bf16.msra.mxu0 0
    %6206 = vmatprep.subr.bf16.mxu0 0
    %6207 = vmatpush1.bf16.msra.mxu0 0
    %6208 = vmatprep.subr.bf16.mxu0 0
    %6209 = vmatpush1.bf16.msra.mxu0 0
    %6210 = vmatprep.subr.bf16.mxu0 0
    %6211 = vmatpush1.bf16.msra.mxu0 0
    %6212 = vmatprep.subr.bf16.mxu0 0
    %6213 = vmatpush1.bf16.msra.mxu0 0
    %6214 = vmatprep.mubr.bf16.mxu0 0
    %6215 = vmatmul.mubr.bf16.gmra.mrb[0].mxu0 %v6133
    %v6216 = vpop.f32.mrb[0].mxu0
    %v6217 = vadd.f32 0.0, %v6216
    %v6218 = vpop.f32.mrb[0].mxu0
    %v6219 = vpop.f32.mrb[0].mxu0
    %v6220 = vpop.f32.mrb[0].mxu0
    %6221 = vdwg.mxu0
    %v6222 = vxor.u32 %v6217, 2147483648
    %v6223 = vmul.f32 %v6222, 1.442695
    %v6224 = vpow.pop %v6223
    %v6225 = vadd.f32 %v6224, 1.0
    %v6226 = vrcp.pop %v6225
    %v6227 = vmul.f32 1.0, %v6226
    %v6228 = vmul.f32 %v6006, %v6227
    %v6229 = vadd.f32 %v6228, %v5253
    %v6230 = vadd.f32 %v5253, %v6229
    %v6231 = vmax.f32 %v6229, 0.0
    %v6232 = vld [vmem:[#allocation2 + $0x20] sm:$0xff]
    %v6233 = vld [vmem:[#allocation2 + $0x88] sm:$0xff]
    %v6234 = vld [vmem:[#allocation2 + $0xf0] sm:$0xff]
    %v6235 = vld [vmem:[#allocation2 + $0x158] sm:$0xff]
    %v6236 = vld [vmem:[#allocation2 + $0x1c0] sm:$0xff]
    %v6237 = vld [vmem:[#allocation2 + $0x228] sm:$0xff]
    %v6238 = vld [vmem:[#allocation2 + $0x290] sm:$0xff]
    %v6239 = vld [vmem:[#allocation2 + $0x2f8] sm:$0xff]
    %v6240 = vld [vmem:[#allocation2 + $0x360] sm:$0xff]
    %v6241 = vld [vmem:[#allocation2 + $0x3c8] sm:$0xff]
    %v6242 = vld [vmem:[#allocation2 + $0x430] sm:$0xff]
    %v6243 = vld [vmem:[#allocation2 + $0x498] sm:$0xff]
    %v6244 = vld [vmem:[#allocation2 + $0x500] sm:$0xff]
    %v6245 = vld [vmem:[#allocation2 + $0x568] sm:$0xff]
    %v6246 = vld [vmem:[#allocation2 + $0x5d0] sm:$0xff]
    %v6247 = vld [vmem:[#allocation2 + $0x638] sm:$0xff]
    %v6248 = vpack.c.bf16 %v6231, %v6231
    %v6249 = vld [vmem:[%s1176] ss:$8 sm:$0x3]
    %v6251 = vlaneseq
    %v6252 = vshrl.u32 %v6251, 7
    %v6253 = vsub.s32 0, %v6252
    %v6254 = vrot.slane %v6249, %v6253
    %v6255 = vlaneseq
    %v6256 = vshrl.u32 %v6255, 7
    %v6257 = vsub.s32 1, %v6256
    %v6258 = vrot.slane %v6249, %v6257
    %v6277 = vunpack.c.l.b16 %v6232
    %v6278 = vunpack.c.h.b16 %v6232
    %v6279 = vunpack.c.l.b16 %v6233
    %v6280 = vunpack.c.h.b16 %v6233
    %v6281 = vunpack.c.l.b16 %v6234
    %v6282 = vunpack.c.h.b16 %v6234
    %v6283 = vunpack.c.l.b16 %v6235
    %v6284 = vunpack.c.h.b16 %v6235
    %v6285 = vunpack.c.l.b16 %v6236
    %v6286 = vunpack.c.h.b16 %v6236
    %v6287 = vunpack.c.l.b16 %v6237
    %v6288 = vunpack.c.h.b16 %v6237
    %v6289 = vunpack.c.l.b16 %v6238
    %v6290 = vunpack.c.h.b16 %v6238
    %v6291 = vunpack.c.l.b16 %v6239
    %v6292 = vunpack.c.h.b16 %v6239
    %v6293 = vunpack.c.l.b16 %v6240
    %v6294 = vunpack.c.h.b16 %v6240
    %v6295 = vunpack.c.l.b16 %v6241
    %v6296 = vunpack.c.h.b16 %v6241
    %v6297 = vunpack.c.l.b16 %v6242
    %v6298 = vunpack.c.h.b16 %v6242
    %v6299 = vunpack.c.l.b16 %v6243
    %v6300 = vunpack.c.h.b16 %v6243
    %v6301 = vunpack.c.l.b16 %v6244
    %v6302 = vunpack.c.h.b16 %v6244
    %v6303 = vunpack.c.l.b16 %v6245
    %v6304 = vunpack.c.h.b16 %v6245
    %v6305 = vunpack.c.l.b16 %v6246
    %v6306 = vunpack.c.h.b16 %v6246
    %v6307 = vunpack.c.l.b16 %v6247
    %v6308 = vunpack.c.h.b16 %v6247
    %v6309 = vpack.c.b16 %v6279, %v6277
    %v6310 = vpack.c.b16 %v6280, %v6278
    %v6311 = vpack.c.b16 %v6283, %v6281
    %v6312 = vpack.c.b16 %v6284, %v6282
    %v6313 = vpack.c.b16 %v6287, %v6285
    %v6314 = vpack.c.b16 %v6288, %v6286
    %v6315 = vpack.c.b16 %v6291, %v6289
    %v6316 = vpack.c.b16 %v6292, %v6290
    %v6317 = vpack.c.b16 %v6295, %v6293
    %v6318 = vpack.c.b16 %v6296, %v6294
    %v6319 = vpack.c.b16 %v6299, %v6297
    %v6320 = vpack.c.b16 %v6300, %v6298
    %v6321 = vpack.c.b16 %v6303, %v6301
    %v6322 = vpack.c.b16 %v6304, %v6302
    %v6323 = vpack.c.b16 %v6307, %v6305
    %v6324 = vpack.c.b16 %v6308, %v6306
    %6341 = vmatprep.subr.bf16.mxu0 %v6310
    %6342 = vmatpush1.bf16.msra.mxu0 %v6309
    %6343 = vmatprep.subr.bf16.mxu0 %v6312
    %6344 = vmatpush1.bf16.msra.mxu0 %v6311
    %6345 = vmatprep.subr.bf16.mxu0 %v6314
    %6346 = vmatpush1.bf16.msra.mxu0 %v6313
    %6347 = vmatprep.subr.bf16.mxu0 %v6316
    %6348 = vmatpush1.bf16.msra.mxu0 %v6315
    %6349 = vmatprep.subr.bf16.mxu0 %v6318
    %6350 = vmatpush1.bf16.msra.mxu0 %v6317
    %6351 = vmatprep.subr.bf16.mxu0 %v6320
    %6352 = vmatpush1.bf16.msra.mxu0 %v6319
    %6353 = vmatprep.subr.bf16.mxu0 %v6322
    %6354 = vmatpush1.bf16.msra.mxu0 %v6321
    %6355 = vmatprep.subr.bf16.mxu0 %v6324
    %6356 = vmatpush1.bf16.msra.mxu0 %v6323
    %6357 = vmatprep.subr.bf16.mxu0 0
    %6358 = vmatpush1.bf16.msra.mxu0 0
    %6359 = vmatprep.subr.bf16.mxu0 0
    %6360 = vmatpush1.bf16.msra.mxu0 0
    %6361 = vmatprep.subr.bf16.mxu0 0
    %6362 = vmatpush1.bf16.msra.mxu0 0
    %6363 = vmatprep.subr.bf16.mxu0 0
    %6364 = vmatpush1.bf16.msra.mxu0 0
    %6365 = vmatprep.subr.bf16.mxu0 0
    %6366 = vmatpush1.bf16.msra.mxu0 0
    %6367 = vmatprep.subr.bf16.mxu0 0
    %6368 = vmatpush1.bf16.msra.mxu0 0
    %6369 = vmatprep.subr.bf16.mxu0 0
    %6370 = vmatpush1.bf16.msra.mxu0 0
    %6371 = vmatprep.subr.bf16.mxu0 0
    %6372 = vmatpush1.bf16.msra.mxu0 0
    %6373 = vmatprep.mubr.bf16.mxu0 0
    %6374 = vmatmul.mubr.bf16.gmra.mrb[0].mxu0 %v6248
    %v6375 = vpop.f32.mrb[0].mxu0
    %v6376 = vadd.f32 %v6254, %v6375
    %v6377 = vpop.f32.mrb[0].mxu0
    %v6378 = vadd.f32 %v6258, %v6377
    %v6379 = vpop.f32.mrb[0].mxu0
    %v6380 = vpop.f32.mrb[0].mxu0
    %6381 = vdwg.mxu0
    %v6382 = vmax.f32 %v6376, 0.0
    %v6383 = vmax.f32 %v6378, 0.0
    %v6384 = vld [vmem:[#allocation5] sm:$0xff]
    %v6385 = vld [vmem:[#allocation5 + $0x8] sm:$0xf]
    %v6386 = vld [vmem:[#allocation5 + $0x2c] sm:$0xff]
    %v6387 = vld [vmem:[#allocation5 + $0x34] sm:$0xf]
    %v6388 = vld [vmem:[#allocation5 + $0x58] sm:$0xff]
    %v6389 = vld [vmem:[#allocation5 + $0x60] sm:$0xf]
    %v6390 = vld [vmem:[#allocation5 + $0x84] sm:$0xff]
    %v6391 = vld [vmem:[#allocation5 + $0x8c] sm:$0xf]
    %v6392 = vld [vmem:[#allocation5 + $0xb0] sm:$0xff]
    %v6393 = vld [vmem:[#allocation5 + $0xb8] sm:$0xf]
    %v6394 = vld [vmem:[#allocation5 + $0xdc] sm:$0xff]
    %v6395 = vld [vmem:[#allocation5 + $0xe4] sm:$0xf]
    %v6396 = vld [vmem:[#allocation5 + $0x108] sm:$0xff]
    %v6397 = vld [vmem:[#allocation5 + $0x110] sm:$0xf]
    %v6398 = vld [vmem:[#allocation5 + $0x134] sm:$0xff]
    %v6399 = vld [vmem:[#allocation5 + $0x13c] sm:$0xf]
    %v6400 = vld [vmem:[#allocation5 + $0x160] sm:$0xff]
    %v6401 = vld [vmem:[#allocation5 + $0x168] sm:$0xf]
    %v6402 = vld [vmem:[#allocation5 + $0x18c] sm:$0xff]
    %v6403 = vld [vmem:[#allocation5 + $0x194] sm:$0xf]
    %v6404 = vld [vmem:[#allocation5 + $0x1b8] sm:$0xff]
    %v6405 = vld [vmem:[#allocation5 + $0x1c0] sm:$0xf]
    %v6406 = vld [vmem:[#allocation5 + $0x1e4] sm:$0xff]
    %v6407 = vld [vmem:[#allocation5 + $0x1ec] sm:$0xf]
    %v6408 = vld [vmem:[#allocation5 + $0x210] sm:$0xff]
    %v6409 = vld [vmem:[#allocation5 + $0x218] sm:$0xf]
    %v6410 = vld [vmem:[#allocation5 + $0x23c] sm:$0xff]
    %v6411 = vld [vmem:[#allocation5 + $0x244] sm:$0xf]
    %v6412 = vld [vmem:[#allocation5 + $0x268] sm:$0xff]
    %v6413 = vld [vmem:[#allocation5 + $0x270] sm:$0xf]
    %v6414 = vld [vmem:[#allocation5 + $0x294] sm:$0xff]
    %v6415 = vld [vmem:[#allocation5 + $0x29c] sm:$0xf]
    %v6416 = vld [vmem:[#allocation5 + $0x2c0] sm:$0xff]
    %v6417 = vld [vmem:[#allocation5 + $0x2c8] sm:$0xf]
    %v6418 = vld [vmem:[#allocation5 + $0x2ec] sm:$0xff]
    %v6419 = vld [vmem:[#allocation5 + $0x2f4] sm:$0xf]
    %v6420 = vld [vmem:[#allocation5 + $0x318] sm:$0xff]
    %v6421 = vld [vmem:[#allocation5 + $0x320] sm:$0xf]
    %v6422 = vld [vmem:[#allocation5 + $0x344] sm:$0xff]
    %v6423 = vld [vmem:[#allocation5 + $0x34c] sm:$0xf]
    %v6424 = vld [vmem:[#allocation5 + $0x370] sm:$0xff]
    %v6425 = vld [vmem:[#allocation5 + $0x378] sm:$0xf]
    %v6426 = vld [vmem:[#allocation5 + $0x39c] sm:$0xff]
    %v6427 = vld [vmem:[#allocation5 + $0x3a4] sm:$0xf]
    %v6428 = vld [vmem:[#allocation5 + $0x3c8] sm:$0xff]
    %v6429 = vld [vmem:[#allocation5 + $0x3d0] sm:$0xf]
    %v6430 = vld [vmem:[#allocation5 + $0x3f4] sm:$0xff]
    %v6431 = vld [vmem:[#allocation5 + $0x3fc] sm:$0xf]
    %v6432 = vld [vmem:[#allocation5 + $0x420] sm:$0xff]
    %v6433 = vld [vmem:[#allocation5 + $0x428] sm:$0xf]
    %v6434 = vld [vmem:[#allocation5 + $0x44c] sm:$0xff]
    %v6435 = vld [vmem:[#allocation5 + $0x454] sm:$0xf]
    %v6436 = vld [vmem:[#allocation5 + $0x478] sm:$0xff]
    %v6437 = vld [vmem:[#allocation5 + $0x480] sm:$0xf]
    %v6438 = vld [vmem:[#allocation5 + $0x4a4] sm:$0xff]
    %v6439 = vld [vmem:[#allocation5 + $0x4ac] sm:$0xf]
    %v6440 = vld [vmem:[#allocation5 + $0x4d0] sm:$0xff]
    %v6441 = vld [vmem:[#allocation5 + $0x4d8] sm:$0xf]
    %v6442 = vld [vmem:[#allocation5 + $0x4fc] sm:$0xff]
    %v6443 = vld [vmem:[#allocation5 + $0x504] sm:$0xf]
    %v6444 = vld [vmem:[#allocation5 + $0x528] sm:$0xff]
    %v6445 = vld [vmem:[#allocation5 + $0x530] sm:$0xf]
    %v6446 = vld [vmem:[#allocation5 + $0x554] sm:$0xff]
    %v6447 = vld [vmem:[#allocation5 + $0x55c] sm:$0xf]
    %v6448 = vpack.c.bf16 %v6382, %v6382
    %v6449 = vpack.c.bf16 %v6383, %v6383
    %v6450 = vld [vmem:[%s1378] ss:$8 sm:$0x7]
    %v6452 = vlaneseq
    %v6453 = vshrl.u32 %v6452, 7
    %v6454 = vsub.s32 0, %v6453
    %v6455 = vrot.slane %v6450, %v6454
    %v6456 = vlaneseq
    %v6457 = vshrl.u32 %v6456, 7
    %v6458 = vsub.s32 1, %v6457
    %v6459 = vrot.slane %v6450, %v6458
    %v6460 = vlaneseq
    %v6461 = vshrl.u32 %v6460, 7
    %v6462 = vsub.s32 2, %v6461
    %v6463 = vrot.slane %v6450, %v6462
    %v6531 = vunpack.c.l.b16 %v6384
    %v6532 = vunpack.c.h.b16 %v6384
    %v6533 = vunpack.c.l.b16 %v6385
    %v6534 = vunpack.c.l.b16 %v6386
    %v6535 = vunpack.c.h.b16 %v6386
    %v6536 = vunpack.c.l.b16 %v6387
    %v6537 = vunpack.c.l.b16 %v6388
    %v6538 = vunpack.c.h.b16 %v6388
    %v6539 = vunpack.c.l.b16 %v6389
    %v6540 = vunpack.c.l.b16 %v6390
    %v6541 = vunpack.c.h.b16 %v6390
    %v6542 = vunpack.c.l.b16 %v6391
    %v6543 = vunpack.c.l.b16 %v6392
    %v6544 = vunpack.c.h.b16 %v6392
    %v6545 = vunpack.c.l.b16 %v6393
    %v6546 = vunpack.c.l.b16 %v6394
    %v6547 = vunpack.c.h.b16 %v6394
    %v6548 = vunpack.c.l.b16 %v6395
    %v6549 = vunpack.c.l.b16 %v6396
    %v6550 = vunpack.c.h.b16 %v6396
    %v6551 = vunpack.c.l.b16 %v6397
    %v6552 = vunpack.c.l.b16 %v6398
    %v6553 = vunpack.c.h.b16 %v6398
    %v6554 = vunpack.c.l.b16 %v6399
    %v6555 = vunpack.c.l.b16 %v6400
    %v6556 = vunpack.c.h.b16 %v6400
    %v6557 = vunpack.c.l.b16 %v6401
    %v6558 = vunpack.c.l.b16 %v6402
    %v6559 = vunpack.c.h.b16 %v6402
    %v6560 = vunpack.c.l.b16 %v6403
    %v6561 = vunpack.c.l.b16 %v6404
    %v6562 = vunpack.c.h.b16 %v6404
    %v6563 = vunpack.c.l.b16 %v6405
    %v6564 = vunpack.c.l.b16 %v6406
    %v6565 = vunpack.c.h.b16 %v6406
    %v6566 = vunpack.c.l.b16 %v6407
    %v6567 = vunpack.c.l.b16 %v6408
    %v6568 = vunpack.c.h.b16 %v6408
    %v6569 = vunpack.c.l.b16 %v6409
    %v6570 = vunpack.c.l.b16 %v6410
    %v6571 = vunpack.c.h.b16 %v6410
    %v6572 = vunpack.c.l.b16 %v6411
    %v6573 = vunpack.c.l.b16 %v6412
    %v6574 = vunpack.c.h.b16 %v6412
    %v6575 = vunpack.c.l.b16 %v6413
    %v6576 = vunpack.c.l.b16 %v6414
    %v6577 = vunpack.c.h.b16 %v6414
    %v6578 = vunpack.c.l.b16 %v6415
    %v6579 = vunpack.c.l.b16 %v6416
    %v6580 = vunpack.c.h.b16 %v6416
    %v6581 = vunpack.c.l.b16 %v6417
    %v6582 = vunpack.c.l.b16 %v6418
    %v6583 = vunpack.c.h.b16 %v6418
    %v6584 = vunpack.c.l.b16 %v6419
    %v6585 = vunpack.c.l.b16 %v6420
    %v6586 = vunpack.c.h.b16 %v6420
    %v6587 = vunpack.c.l.b16 %v6421
    %v6588 = vunpack.c.l.b16 %v6422
    %v6589 = vunpack.c.h.b16 %v6422
    %v6590 = vunpack.c.l.b16 %v6423
    %v6591 = vunpack.c.l.b16 %v6424
    %v6592 = vunpack.c.h.b16 %v6424
    %v6593 = vunpack.c.l.b16 %v6425
    %v6594 = vunpack.c.l.b16 %v6426
    %v6595 = vunpack.c.h.b16 %v6426
    %v6596 = vunpack.c.l.b16 %v6427
    %v6597 = vunpack.c.l.b16 %v6428
    %v6598 = vunpack.c.h.b16 %v6428
    %v6599 = vunpack.c.l.b16 %v6429
    %v6600 = vunpack.c.l.b16 %v6430
    %v6601 = vunpack.c.h.b16 %v6430
    %v6602 = vunpack.c.l.b16 %v6431
    %v6603 = vunpack.c.l.b16 %v6432
    %v6604 = vunpack.c.h.b16 %v6432
    %v6605 = vunpack.c.l.b16 %v6433
    %v6606 = vunpack.c.l.b16 %v6434
    %v6607 = vunpack.c.h.b16 %v6434
    %v6608 = vunpack.c.l.b16 %v6435
    %v6609 = vunpack.c.l.b16 %v6436
    %v6610 = vunpack.c.h.b16 %v6436
    %v6611 = vunpack.c.l.b16 %v6437
    %v6612 = vunpack.c.l.b16 %v6438
    %v6613 = vunpack.c.h.b16 %v6438
    %v6614 = vunpack.c.l.b16 %v6439
    %v6615 = vunpack.c.l.b16 %v6440
    %v6616 = vunpack.c.h.b16 %v6440
    %v6617 = vunpack.c.l.b16 %v6441
    %v6618 = vunpack.c.l.b16 %v6442
    %v6619 = vunpack.c.h.b16 %v6442
    %v6620 = vunpack.c.l.b16 %v6443
    %v6621 = vunpack.c.l.b16 %v6444
    %v6622 = vunpack.c.h.b16 %v6444
    %v6623 = vunpack.c.l.b16 %v6445
    %v6624 = vunpack.c.l.b16 %v6446
    %v6625 = vunpack.c.h.b16 %v6446
    %v6626 = vunpack.c.l.b16 %v6447
    %v6627 = vpack.c.b16 %v6534, %v6531
    %v6628 = vpack.c.b16 %v6535, %v6532
    %v6629 = vpack.c.b16 %v6536, %v6533
    %v6630 = vpack.c.b16 %v6540, %v6537
    %v6631 = vpack.c.b16 %v6541, %v6538
    %v6632 = vpack.c.b16 %v6542, %v6539
    %v6633 = vpack.c.b16 %v6546, %v6543
    %v6634 = vpack.c.b16 %v6547, %v6544
    %v6635 = vpack.c.b16 %v6548, %v6545
    %v6636 = vpack.c.b16 %v6552, %v6549
    %v6637 = vpack.c.b16 %v6553, %v6550
    %v6638 = vpack.c.b16 %v6554, %v6551
    %v6639 = vpack.c.b16 %v6558, %v6555
    %v6640 = vpack.c.b16 %v6559, %v6556
    %v6641 = vpack.c.b16 %v6560, %v6557
    %v6642 = vpack.c.b16 %v6564, %v6561
    %v6643 = vpack.c.b16 %v6565, %v6562
    %v6644 = vpack.c.b16 %v6566, %v6563
    %v6645 = vpack.c.b16 %v6570, %v6567
    %v6646 = vpack.c.b16 %v6571, %v6568
    %v6647 = vpack.c.b16 %v6572, %v6569
    %v6648 = vpack.c.b16 %v6576, %v6573
    %v6649 = vpack.c.b16 %v6577, %v6574
    %v6650 = vpack.c.b16 %v6578, %v6575
    %v6651 = vpack.c.b16 %v6582, %v6579
    %v6652 = vpack.c.b16 %v6583, %v6580
    %v6653 = vpack.c.b16 %v6584, %v6581
    %v6654 = vpack.c.b16 %v6588, %v6585
    %v6655 = vpack.c.b16 %v6589, %v6586
    %v6656 = vpack.c.b16 %v6590, %v6587
    %v6657 = vpack.c.b16 %v6594, %v6591
    %v6658 = vpack.c.b16 %v6595, %v6592
    %v6659 = vpack.c.b16 %v6596, %v6593
    %v6660 = vpack.c.b16 %v6600, %v6597
    %v6661 = vpack.c.b16 %v6601, %v6598
    %v6662 = vpack.c.b16 %v6602, %v6599
    %v6663 = vpack.c.b16 %v6606, %v6603
    %v6664 = vpack.c.b16 %v6607, %v6604
    %v6665 = vpack.c.b16 %v6608, %v6605
    %v6666 = vpack.c.b16 %v6612, %v6609
    %v6667 = vpack.c.b16 %v6613, %v6610
    %v6668 = vpack.c.b16 %v6614, %v6611
    %v6669 = vpack.c.b16 %v6618, %v6615
    %v6670 = vpack.c.b16 %v6619, %v6616
    %v6671 = vpack.c.b16 %v6620, %v6617
    %v6672 = vpack.c.b16 %v6624, %v6621
    %v6673 = vpack.c.b16 %v6625, %v6622
    %v6674 = vpack.c.b16 %v6626, %v6623
    %6723 = vmatprep.subr.bf16.mxu0 %v6628
    %6724 = vmatpush1.bf16.msra.mxu0 %v6627
    %6725 = vmatprep.subr.bf16.mxu0 %v6631
    %6726 = vmatpush1.bf16.msra.mxu0 %v6630
    %6727 = vmatprep.subr.bf16.mxu0 %v6634
    %6728 = vmatpush1.bf16.msra.mxu0 %v6633
    %6729 = vmatprep.subr.bf16.mxu0 %v6637
    %6730 = vmatpush1.bf16.msra.mxu0 %v6636
    %6731 = vmatprep.subr.bf16.mxu0 %v6640
    %6732 = vmatpush1.bf16.msra.mxu0 %v6639
    %6733 = vmatprep.subr.bf16.mxu0 %v6643
    %6734 = vmatpush1.bf16.msra.mxu0 %v6642
    %6735 = vmatprep.subr.bf16.mxu0 %v6646
    %6736 = vmatpush1.bf16.msra.mxu0 %v6645
    %6737 = vmatprep.subr.bf16.mxu0 %v6649
    %6738 = vmatpush1.bf16.msra.mxu0 %v6648
    %6739 = vmatprep.subr.bf16.mxu0 %v6652
    %6740 = vmatpush1.bf16.msra.mxu0 %v6651
    %6741 = vmatprep.subr.bf16.mxu0 %v6655
    %6742 = vmatpush1.bf16.msra.mxu0 %v6654
    %6743 = vmatprep.subr.bf16.mxu0 %v6658
    %6744 = vmatpush1.bf16.msra.mxu0 %v6657
    %6745 = vmatprep.subr.bf16.mxu0 %v6661
    %6746 = vmatpush1.bf16.msra.mxu0 %v6660
    %6747 = vmatprep.subr.bf16.mxu0 %v6664
    %6748 = vmatpush1.bf16.msra.mxu0 %v6663
    %6749 = vmatprep.subr.bf16.mxu0 %v6667
    %6750 = vmatpush1.bf16.msra.mxu0 %v6666
    %6751 = vmatprep.subr.bf16.mxu0 %v6670
    %6752 = vmatpush1.bf16.msra.mxu0 %v6669
    %6753 = vmatprep.subr.bf16.mxu0 %v6673
    %6754 = vmatpush1.bf16.msra.mxu0 %v6672
    %6755 = vmatprep.mubr.bf16.mxu0 %v6449
    %6756 = vmatmul.mubr.bf16.gmra.mrb[0].mxu0 %v6448
    %v6757 = vpop.f32.mrb[0].mxu0
    %v6758 = vadd.f32 %v6455, %v6757
    %v6759 = vpop.f32.mrb[0].mxu0
    %v6760 = vadd.f32 %v6459, %v6759
    %v6761 = vpop.f32.mrb[0].mxu0
    %v6762 = vpop.f32.mrb[0].mxu0
    %6763 = vdwg.mxu0
    %6764 = vmatprep.subr.bf16.mxu0 0
    %6765 = vmatpush1.bf16.msra.mxu0 %v6629
    %6766 = vmatprep.subr.bf16.mxu0 0
    %6767 = vmatpush1.bf16.msra.mxu0 %v6632
    %6768 = vmatprep.subr.bf16.mxu0 0
    %6769 = vmatpush1.bf16.msra.mxu0 %v6635
    %6770 = vmatprep.subr.bf16.mxu0 0
    %6771 = vmatpush1.bf16.msra.mxu0 %v6638
    %6772 = vmatprep.subr.bf16.mxu0 0
    %6773 = vmatpush1.bf16.msra.mxu0 %v6641
    %6774 = vmatprep.subr.bf16.mxu0 0
    %6775 = vmatpush1.bf16.msra.mxu0 %v6644
    %6776 = vmatprep.subr.bf16.mxu0 0
    %6777 = vmatpush1.bf16.msra.mxu0 %v6647
    %6778 = vmatprep.subr.bf16.mxu0 0
    %6779 = vmatpush1.bf16.msra.mxu0 %v6650
    %6780 = vmatprep.subr.bf16.mxu0 0
    %6781 = vmatpush1.bf16.msra.mxu0 %v6653
    %6782 = vmatprep.subr.bf16.mxu0 0
    %6783 = vmatpush1.bf16.msra.mxu0 %v6656
    %6784 = vmatprep.subr.bf16.mxu0 0
    %6785 = vmatpush1.bf16.msra.mxu0 %v6659
    %6786 = vmatprep.subr.bf16.mxu0 0
    %6787 = vmatpush1.bf16.msra.mxu0 %v6662
    %6788 = vmatprep.subr.bf16.mxu0 0
    %6789 = vmatpush1.bf16.msra.mxu0 %v6665
    %6790 = vmatprep.subr.bf16.mxu0 0
    %6791 = vmatpush1.bf16.msra.mxu0 %v6668
    %6792 = vmatprep.subr.bf16.mxu0 0
    %6793 = vmatpush1.bf16.msra.mxu0 %v6671
    %6794 = vmatprep.subr.bf16.mxu0 0
    %6795 = vmatpush1.bf16.msra.mxu0 %v6674
    %6796 = vmatprep.mubr.bf16.mxu0 %v6449
    %6797 = vmatmul.mubr.bf16.gmra.mrb[0].mxu0 %v6448
    %v6798 = vpop.f32.mrb[0].mxu0
    %v6799 = vadd.f32 %v6463, %v6798
    %v6800 = vpop.f32.mrb[0].mxu0
    %v6801 = vpop.f32.mrb[0].mxu0
    %v6802 = vpop.f32.mrb[0].mxu0
    %6803 = vdwg.mxu0
    %v6804 = vmax.f32 %v6758, 0.0
    %v6805 = vmax.f32 %v6760, 0.0
    %v6806 = vmax.f32 %v6799, 0.0
    %v6807 = vld [vmem:[#allocation7 + $0x4] sm:$0xf]
    %v6808 = vld [vmem:[#allocation7 + $0x14] sm:$0xf]
    %v6809 = vld [vmem:[#allocation7 + $0x24] sm:$0xf]
    %v6810 = vld [vmem:[#allocation7 + $0x34] sm:$0xf]
    %v6811 = vld [vmem:[#allocation7 + $0x44] sm:$0xf]
    %v6812 = vld [vmem:[#allocation7 + $0x54] sm:$0xf]
    %v6813 = vld [vmem:[#allocation7 + $0x64] sm:$0xf]
    %v6814 = vld [vmem:[#allocation7 + $0x74] sm:$0xf]
    %v6815 = vld [vmem:[#allocation7 + $0x84] sm:$0xf]
    %v6816 = vld [vmem:[#allocation7 + $0x94] sm:$0xf]
    %v6817 = vld [vmem:[#allocation7 + $0xa4] sm:$0xf]
    %v6818 = vld [vmem:[#allocation7 + $0xb4] sm:$0xf]
    %v6819 = vld [vmem:[#allocation7 + $0xc4] sm:$0xf]
    %v6820 = vld [vmem:[#allocation7 + $0xd4] sm:$0xf]
    %v6821 = vld [vmem:[#allocation7 + $0xe4] sm:$0xf]
    %v6822 = vld [vmem:[#allocation7 + $0xf4] sm:$0xf]
    %v6823 = vld [vmem:[#allocation7 + $0x104] sm:$0xf]
    %v6824 = vld [vmem:[#allocation7 + $0x114] sm:$0xf]
    %v6825 = vld [vmem:[#allocation7 + $0x124] sm:$0xf]
    %v6826 = vld [vmem:[#allocation7 + $0x134] sm:$0xf]
    %v6827 = vld [vmem:[#allocation7 + $0x144] sm:$0xf]
    %v6828 = vld [vmem:[#allocation7 + $0x154] sm:$0xf]
    %v6829 = vld [vmem:[#allocation7 + $0x164] sm:$0xf]
    %v6830 = vld [vmem:[#allocation7 + $0x174] sm:$0xf]
    %v6831 = vld [vmem:[#allocation7 + $0x184] sm:$0xf]
    %v6832 = vld [vmem:[#allocation7 + $0x194] sm:$0xf]
    %v6833 = vld [vmem:[#allocation7 + $0x1a4] sm:$0xf]
    %v6834 = vld [vmem:[#allocation7 + $0x1b4] sm:$0xf]
    %v6835 = vld [vmem:[#allocation7 + $0x1c4] sm:$0xf]
    %v6836 = vld [vmem:[#allocation7 + $0x1d4] sm:$0xf]
    %v6837 = vld [vmem:[#allocation7 + $0x1e4] sm:$0xf]
    %v6838 = vld [vmem:[#allocation7 + $0x1f4] sm:$0xf]
    %v6839 = vld [vmem:[#allocation7 + $0x204] sm:$0xf]
    %v6840 = vld [vmem:[#allocation7 + $0x214] sm:$0xf]
    %v6841 = vld [vmem:[#allocation7 + $0x224] sm:$0xf]
    %v6842 = vld [vmem:[#allocation7 + $0x234] sm:$0xf]
    %v6843 = vld [vmem:[#allocation7 + $0x244] sm:$0xf]
    %v6844 = vld [vmem:[#allocation7 + $0x254] sm:$0xf]
    %v6845 = vld [vmem:[#allocation7 + $0x264] sm:$0xf]
    %v6846 = vld [vmem:[#allocation7 + $0x274] sm:$0xf]
    %v6847 = vld [vmem:[#allocation7 + $0x284] sm:$0xf]
    %v6848 = vld [vmem:[#allocation7 + $0x294] sm:$0xf]
    %v6849 = vld [vmem:[#allocation7 + $0x2a4] sm:$0xf]
    %v6850 = vld [vmem:[#allocation7 + $0x2b4] sm:$0xf]
    %v6851 = vld [vmem:[#allocation7 + $0x2c4] sm:$0xf]
    %v6852 = vld [vmem:[#allocation7 + $0x2d4] sm:$0xf]
    %v6853 = vld [vmem:[#allocation7 + $0x2e4] sm:$0xf]
    %v6854 = vld [vmem:[#allocation7 + $0x2f4] sm:$0xf]
    %v6855 = vpack.c.bf16 %v6804, %v6804
    %v6856 = vpack.c.bf16 %v6805, %v6805
    %v6857 = vpack.c.bf16 %v6806, %v6806
    %v6858 = vld [vmem:[#allocation8 + $0x7] ss:$0 sm:$0xff]
    %v6907 = vunpack.c.l.b16 %v6807
    %v6908 = vunpack.c.l.b16 %v6808
    %v6909 = vunpack.c.l.b16 %v6809
    %v6910 = vunpack.c.l.b16 %v6810
    %v6911 = vunpack.c.l.b16 %v6811
    %v6912 = vunpack.c.l.b16 %v6812
    %v6913 = vunpack.c.l.b16 %v6813
    %v6914 = vunpack.c.l.b16 %v6814
    %v6915 = vunpack.c.l.b16 %v6815
    %v6916 = vunpack.c.l.b16 %v6816
    %v6917 = vunpack.c.l.b16 %v6817
    %v6918 = vunpack.c.l.b16 %v6818
    %v6919 = vunpack.c.l.b16 %v6819
    %v6920 = vunpack.c.l.b16 %v6820
    %v6921 = vunpack.c.l.b16 %v6821
    %v6922 = vunpack.c.l.b16 %v6822
    %v6923 = vunpack.c.l.b16 %v6823
    %v6924 = vunpack.c.l.b16 %v6824
    %v6925 = vunpack.c.l.b16 %v6825
    %v6926 = vunpack.c.l.b16 %v6826
    %v6927 = vunpack.c.l.b16 %v6827
    %v6928 = vunpack.c.l.b16 %v6828
    %v6929 = vunpack.c.l.b16 %v6829
    %v6930 = vunpack.c.l.b16 %v6830
    %v6931 = vunpack.c.l.b16 %v6831
    %v6932 = vunpack.c.l.b16 %v6832
    %v6933 = vunpack.c.l.b16 %v6833
    %v6934 = vunpack.c.l.b16 %v6834
    %v6935 = vunpack.c.l.b16 %v6835
    %v6936 = vunpack.c.l.b16 %v6836
    %v6937 = vunpack.c.l.b16 %v6837
    %v6938 = vunpack.c.l.b16 %v6838
    %v6939 = vunpack.c.l.b16 %v6839
    %v6940 = vunpack.c.l.b16 %v6840
    %v6941 = vunpack.c.l.b16 %v6841
    %v6942 = vunpack.c.l.b16 %v6842
    %v6943 = vunpack.c.l.b16 %v6843
    %v6944 = vunpack.c.l.b16 %v6844
    %v6945 = vunpack.c.l.b16 %v6845
    %v6946 = vunpack.c.l.b16 %v6846
    %v6947 = vunpack.c.l.b16 %v6847
    %v6948 = vunpack.c.l.b16 %v6848
    %v6949 = vunpack.c.l.b16 %v6849
    %v6950 = vunpack.c.l.b16 %v6850
    %v6951 = vunpack.c.l.b16 %v6851
    %v6952 = vunpack.c.l.b16 %v6852
    %v6953 = vunpack.c.l.b16 %v6853
    %v6954 = vunpack.c.l.b16 %v6854
    %v6955 = vpack.c.b16 %v6908, %v6907
    %v6956 = vpack.c.b16 %v6910, %v6909
    %v6957 = vpack.c.b16 %v6912, %v6911
    %v6958 = vpack.c.b16 %v6914, %v6913
    %v6959 = vpack.c.b16 %v6916, %v6915
    %v6960 = vpack.c.b16 %v6918, %v6917
    %v6961 = vpack.c.b16 %v6920, %v6919
    %v6962 = vpack.c.b16 %v6922, %v6921
    %v6963 = vpack.c.b16 %v6924, %v6923
    %v6964 = vpack.c.b16 %v6926, %v6925
    %v6965 = vpack.c.b16 %v6928, %v6927
    %v6966 = vpack.c.b16 %v6930, %v6929
    %v6967 = vpack.c.b16 %v6932, %v6931
    %v6968 = vpack.c.b16 %v6934, %v6933
    %v6969 = vpack.c.b16 %v6936, %v6935
    %v6970 = vpack.c.b16 %v6938, %v6937
    %v6971 = vpack.c.b16 %v6940, %v6939
    %v6972 = vpack.c.b16 %v6942, %v6941
    %v6973 = vpack.c.b16 %v6944, %v6943
    %v6974 = vpack.c.b16 %v6946, %v6945
    %v6975 = vpack.c.b16 %v6948, %v6947
    %v6976 = vpack.c.b16 %v6950, %v6949
    %v6977 = vpack.c.b16 %v6952, %v6951
    %v6978 = vpack.c.b16 %v6954, %v6953
    %7003 = vmatprep.subr.bf16.mxu0 0
    %7004 = vmatpush1.bf16.msra.mxu0 %v6955
    %7005 = vmatprep.subr.bf16.mxu0 0
    %7006 = vmatpush1.bf16.msra.mxu0 %v6956
    %7007 = vmatprep.subr.bf16.mxu0 0
    %7008 = vmatpush1.bf16.msra.mxu0 %v6957
    %7009 = vmatprep.subr.bf16.mxu0 0
    %7010 = vmatpush1.bf16.msra.mxu0 %v6958
    %7011 = vmatprep.subr.bf16.mxu0 0
    %7012 = vmatpush1.bf16.msra.mxu0 %v6959
    %7013 = vmatprep.subr.bf16.mxu0 0
    %7014 = vmatpush1.bf16.msra.mxu0 %v6960
    %7015 = vmatprep.subr.bf16.mxu0 0
    %7016 = vmatpush1.bf16.msra.mxu0 %v6961
    %7017 = vmatprep.subr.bf16.mxu0 0
    %7018 = vmatpush1.bf16.msra.mxu0 %v6962
    %7019 = vmatprep.subr.bf16.mxu0 0
    %7020 = vmatpush1.bf16.msra.mxu0 %v6963
    %7021 = vmatprep.subr.bf16.mxu0 0
    %7022 = vmatpush1.bf16.msra.mxu0 %v6964
    %7023 = vmatprep.subr.bf16.mxu0 0
    %7024 = vmatpush1.bf16.msra.mxu0 %v6965
    %7025 = vmatprep.subr.bf16.mxu0 0
    %7026 = vmatpush1.bf16.msra.mxu0 %v6966
    %7027 = vmatprep.subr.bf16.mxu0 0
    %7028 = vmatpush1.bf16.msra.mxu0 %v6967
    %7029 = vmatprep.subr.bf16.mxu0 0
    %7030 = vmatpush1.bf16.msra.mxu0 %v6968
    %7031 = vmatprep.subr.bf16.mxu0 0
    %7032 = vmatpush1.bf16.msra.mxu0 %v6969
    %7033 = vmatprep.subr.bf16.mxu0 0
    %7034 = vmatpush1.bf16.msra.mxu0 %v6970
    %7035 = vmatprep.mubr.bf16.mxu0 %v6856
    %7036 = vmatmul.mubr.bf16.gmra.mrb[0].mxu0 %v6855
    %v7037 = vpop.f32.mrb[0].mxu0
    %v7038 = vadd.f32 %v6858, %v7037
    %v7039 = vpop.f32.mrb[0].mxu0
    %v7040 = vpop.f32.mrb[0].mxu0
    %v7041 = vpop.f32.mrb[0].mxu0
    %7042 = vdwg.mxu0
    %7043 = vmatprep.subr.bf16.mxu0 0
    %7044 = vmatpush1.bf16.msra.mxu0 %v6971
    %7045 = vmatprep.subr.bf16.mxu0 0
    %7046 = vmatpush1.bf16.msra.mxu0 %v6972
    %7047 = vmatprep.subr.bf16.mxu0 0
    %7048 = vmatpush1.bf16.msra.mxu0 %v6973
    %7049 = vmatprep.subr.bf16.mxu0 0
    %7050 = vmatpush1.bf16.msra.mxu0 %v6974
    %7051 = vmatprep.subr.bf16.mxu0 0
    %7052 = vmatpush1.bf16.msra.mxu0 %v6975
    %7053 = vmatprep.subr.bf16.mxu0 0
    %7054 = vmatpush1.bf16.msra.mxu0 %v6976
    %7055 = vmatprep.subr.bf16.mxu0 0
    %7056 = vmatpush1.bf16.msra.mxu0 %v6977
    %7057 = vmatprep.subr.bf16.mxu0 0
    %7058 = vmatpush1.bf16.msra.mxu0 %v6978
    %7059 = vmatprep.subr.bf16.mxu0 0
    %7060 = vmatpush1.bf16.msra.mxu0 0
    %7061 = vmatprep.subr.bf16.mxu0 0
    %7062 = vmatpush1.bf16.msra.mxu0 0
    %7063 = vmatprep.subr.bf16.mxu0 0
    %7064 = vmatpush1.bf16.msra.mxu0 0
    %7065 = vmatprep.subr.bf16.mxu0 0
    %7066 = vmatpush1.bf16.msra.mxu0 0
    %7067 = vmatprep.subr.bf16.mxu0 0
    %7068 = vmatpush1.bf16.msra.mxu0 0
    %7069 = vmatprep.subr.bf16.mxu0 0
    %7070 = vmatpush1.bf16.msra.mxu0 0
    %7071 = vmatprep.subr.bf16.mxu0 0
    %7072 = vmatpush1.bf16.msra.mxu0 0
    %7073 = vmatprep.subr.bf16.mxu0 0
    %7074 = vmatpush1.bf16.msra.mxu0 0
    %7075 = vmatprep.mubr.bf16.mxu0 0
    %7076 = vmatmul.mubr.bf16.gmra.mrb[0].mxu0 %v6857
    %v7077 = vpop.f32.mrb[0].mxu0
    %v7078 = vadd.f32 %v7038, %v7077
    %v7079 = vpop.f32.mrb[0].mxu0
    %v7080 = vpop.f32.mrb[0].mxu0
    %v7081 = vpop.f32.mrb[0].mxu0
    %7082 = vdwg.mxu0
    %v7083 = vmax.f32 %v7078, 0.0
    %v7084 = vld [vmem:[#allocation2 + $0x28] sm:$0xf]
    %v7085 = vld [vmem:[#allocation2 + $0x90] sm:$0xf]
    %v7086 = vld [vmem:[#allocation2 + $0xf8] sm:$0xf]
    %v7087 = vld [vmem:[#allocation2 + $0x160] sm:$0xf]
    %v7088 = vld [vmem:[#allocation2 + $0x1c8] sm:$0xf]
    %v7089 = vld [vmem:[#allocation2 + $0x230] sm:$0xf]
    %v7090 = vld [vmem:[#allocation2 + $0x298] sm:$0xf]
    %v7091 = vld [vmem:[#allocation2 + $0x300] sm:$0xf]
    %v7092 = vld [vmem:[#allocation2 + $0x368] sm:$0xf]
    %v7093 = vld [vmem:[#allocation2 + $0x3d0] sm:$0xf]
    %v7094 = vld [vmem:[#allocation2 + $0x438] sm:$0xf]
    %v7095 = vld [vmem:[#allocation2 + $0x4a0] sm:$0xf]
    %v7096 = vld [vmem:[#allocation2 + $0x508] sm:$0xf]
    %v7097 = vld [vmem:[#allocation2 + $0x570] sm:$0xf]
    %v7098 = vld [vmem:[#allocation2 + $0x5d8] sm:$0xf]
    %v7099 = vld [vmem:[#allocation2 + $0x640] sm:$0xf]
    %v7100 = vpack.c.bf16 %v7083, %v7083
    %v7101 = vld [vmem:[#allocation8 + $0x18] ss:$0 sm:$0xff]
    %v7118 = vunpack.c.l.b16 %v7084
    %v7119 = vunpack.c.l.b16 %v7085
    %v7120 = vunpack.c.l.b16 %v7086
    %v7121 = vunpack.c.l.b16 %v7087
    %v7122 = vunpack.c.l.b16 %v7088
    %v7123 = vunpack.c.l.b16 %v7089
    %v7124 = vunpack.c.l.b16 %v7090
    %v7125 = vunpack.c.l.b16 %v7091
    %v7126 = vunpack.c.l.b16 %v7092
    %v7127 = vunpack.c.l.b16 %v7093
    %v7128 = vunpack.c.l.b16 %v7094
    %v7129 = vunpack.c.l.b16 %v7095
    %v7130 = vunpack.c.l.b16 %v7096
    %v7131 = vunpack.c.l.b16 %v7097
    %v7132 = vunpack.c.l.b16 %v7098
    %v7133 = vunpack.c.l.b16 %v7099
    %v7134 = vpack.c.b16 %v7119, %v7118
    %v7135 = vpack.c.b16 %v7121, %v7120
    %v7136 = vpack.c.b16 %v7123, %v7122
    %v7137 = vpack.c.b16 %v7125, %v7124
    %v7138 = vpack.c.b16 %v7127, %v7126
    %v7139 = vpack.c.b16 %v7129, %v7128
    %v7140 = vpack.c.b16 %v7131, %v7130
    %v7141 = vpack.c.b16 %v7133, %v7132
    %7150 = vmatprep.subr.bf16.mxu0 0
    %7151 = vmatpush1.bf16.msra.mxu0 %v7134
    %7152 = vmatprep.subr.bf16.mxu0 0
    %7153 = vmatpush1.bf16.msra.mxu0 %v7135
    %7154 = vmatprep.subr.bf16.mxu0 0
    %7155 = vmatpush1.bf16.msra.mxu0 %v7136
    %7156 = vmatprep.subr.bf16.mxu0 0
    %7157 = vmatpush1.bf16.msra.mxu0 %v7137
    %7158 = vmatprep.subr.bf16.mxu0 0
    %7159 = vmatpush1.bf16.msra.mxu0 %v7138
    %7160 = vmatprep.subr.bf16.mxu0 0
    %7161 = vmatpush1.bf16.msra.mxu0 %v7139
    %7162 = vmatprep.subr.bf16.mxu0 0
    %7163 = vmatpush1.bf16.msra.mxu0 %v7140
    %7164 = vmatprep.subr.bf16.mxu0 0
    %7165 = vmatpush1.bf16.msra.mxu0 %v7141
    %7166 = vmatprep.subr.bf16.mxu0 0
    %7167 = vmatpush1.bf16.msra.mxu0 0
    %7168 = vmatprep.subr.bf16.mxu0 0
    %7169 = vmatpush1.bf16.msra.mxu0 0
    %7170 = vmatprep.subr.bf16.mxu0 0
    %7171 = vmatpush1.bf16.msra.mxu0 0
    %7172 = vmatprep.subr.bf16.mxu0 0
    %7173 = vmatpush1.bf16.msra.mxu0 0
    %7174 = vmatprep.subr.bf16.mxu0 0
    %7175 = vmatpush1.bf16.msra.mxu0 0
    %7176 = vmatprep.subr.bf16.mxu0 0
    %7177 = vmatpush1.bf16.msra.mxu0 0
    %7178 = vmatprep.subr.bf16.mxu0 0
    %7179 = vmatpush1.bf16.msra.mxu0 0
    %7180 = vmatprep.subr.bf16.mxu0 0
    %7181 = vmatpush1.bf16.msra.mxu0 0
    %7182 = vmatprep.mubr.bf16.mxu0 0
    %7183 = vmatmul.mubr.bf16.gmra.mrb[0].mxu0 %v7100
    %v7184 = vpop.f32.mrb[0].mxu0
    %v7185 = vadd.f32 %v7101, %v7184
    %v7186 = vpop.f32.mrb[0].mxu0
    %v7187 = vpop.f32.mrb[0].mxu0
    %v7188 = vpop.f32.mrb[0].mxu0
    %7189 = vdwg.mxu0
    %v7190 = vld [vmem:[#allocation2 + $0x2c] sm:$0xf]
    %v7191 = vld [vmem:[#allocation2 + $0x94] sm:$0xf]
    %v7192 = vld [vmem:[#allocation2 + $0xfc] sm:$0xf]
    %v7193 = vld [vmem:[#allocation2 + $0x164] sm:$0xf]
    %v7194 = vld [vmem:[#allocation2 + $0x1cc] sm:$0xf]
    %v7195 = vld [vmem:[#allocation2 + $0x234] sm:$0xf]
    %v7196 = vld [vmem:[#allocation2 + $0x29c] sm:$0xf]
    %v7197 = vld [vmem:[#allocation2 + $0x304] sm:$0xf]
    %v7198 = vld [vmem:[#allocation2 + $0x36c] sm:$0xf]
    %v7199 = vld [vmem:[#allocation2 + $0x3d4] sm:$0xf]
    %v7200 = vld [vmem:[#allocation2 + $0x43c] sm:$0xf]
    %v7201 = vld [vmem:[#allocation2 + $0x4a4] sm:$0xf]
    %v7202 = vld [vmem:[#allocation2 + $0x50c] sm:$0xf]
    %v7203 = vld [vmem:[#allocation2 + $0x574] sm:$0xf]
    %v7204 = vld [vmem:[#allocation2 + $0x5dc] sm:$0xf]
    %v7205 = vld [vmem:[#allocation2 + $0x644] sm:$0xf]
    %v7206 = vpack.c.bf16 %v7185, %v7185
    %v7223 = vunpack.c.l.b16 %v7190
    %v7224 = vunpack.c.l.b16 %v7191
    %v7225 = vunpack.c.l.b16 %v7192
    %v7226 = vunpack.c.l.b16 %v7193
    %v7227 = vunpack.c.l.b16 %v7194
    %v7228 = vunpack.c.l.b16 %v7195
    %v7229 = vunpack.c.l.b16 %v7196
    %v7230 = vunpack.c.l.b16 %v7197
    %v7231 = vunpack.c.l.b16 %v7198
    %v7232 = vunpack.c.l.b16 %v7199
    %v7233 = vunpack.c.l.b16 %v7200
    %v7234 = vunpack.c.l.b16 %v7201
    %v7235 = vunpack.c.l.b16 %v7202
    %v7236 = vunpack.c.l.b16 %v7203
    %v7237 = vunpack.c.l.b16 %v7204
    %v7238 = vunpack.c.l.b16 %v7205
    %v7239 = vpack.c.b16 %v7224, %v7223
    %v7240 = vpack.c.b16 %v7226, %v7225
    %v7241 = vpack.c.b16 %v7228, %v7227
    %v7242 = vpack.c.b16 %v7230, %v7229
    %v7243 = vpack.c.b16 %v7232, %v7231
    %v7244 = vpack.c.b16 %v7234, %v7233
    %v7245 = vpack.c.b16 %v7236, %v7235
    %v7246 = vpack.c.b16 %v7238, %v7237
    %7255 = vmatprep.subr.bf16.mxu0 0
    %7256 = vmatpush1.bf16.msra.mxu0 %v7239
    %7257 = vmatprep.subr.bf16.mxu0 0
    %7258 = vmatpush1.bf16.msra.mxu0 %v7240
    %7259 = vmatprep.subr.bf16.mxu0 0
    %7260 = vmatpush1.bf16.msra.mxu0 %v7241
    %7261 = vmatprep.subr.bf16.mxu0 0
    %7262 = vmatpush1.bf16.msra.mxu0 %v7242
    %7263 = vmatprep.subr.bf16.mxu0 0
    %7264 = vmatpush1.bf16.msra.mxu0 %v7243
    %7265 = vmatprep.subr.bf16.mxu0 0
    %7266 = vmatpush1.bf16.msra.mxu0 %v7244
    %7267 = vmatprep.subr.bf16.mxu0 0
    %7268 = vmatpush1.bf16.msra.mxu0 %v7245
    %7269 = vmatprep.subr.bf16.mxu0 0
    %7270 = vmatpush1.bf16.msra.mxu0 %v7246
    %7271 = vmatprep.subr.bf16.mxu0 0
    %7272 = vmatpush1.bf16.msra.mxu0 0
    %7273 = vmatprep.subr.bf16.mxu0 0
    %7274 = vmatpush1.bf16.msra.mxu0 0
    %7275 = vmatprep.subr.bf16.mxu0 0
    %7276 = vmatpush1.bf16.msra.mxu0 0
    %7277 = vmatprep.subr.bf16.mxu0 0
    %7278 = vmatpush1.bf16.msra.mxu0 0
    %7279 = vmatprep.subr.bf16.mxu0 0
    %7280 = vmatpush1.bf16.msra.mxu0 0
    %7281 = vmatprep.subr.bf16.mxu0 0
    %7282 = vmatpush1.bf16.msra.mxu0 0
    %7283 = vmatprep.subr.bf16.mxu0 0
    %7284 = vmatpush1.bf16.msra.mxu0 0
    %7285 = vmatprep.subr.bf16.mxu0 0
    %7286 = vmatpush1.bf16.msra.mxu0 0
    %7287 = vmatprep.mubr.bf16.mxu0 0
    %7288 = vmatmul.mubr.bf16.gmra.mrb[0].mxu0 %v7206
    %v7289 = vpop.f32.mrb[0].mxu0
    %v7290 = vadd.f32 0.0, %v7289
    %v7291 = vpop.f32.mrb[0].mxu0
    %v7292 = vpop.f32.mrb[0].mxu0
    %v7293 = vpop.f32.mrb[0].mxu0
    %7294 = vdwg.mxu0
    %v7295 = vmax.f32 %v7290, 0.0
    %v7296 = vld [vmem:[#allocation2 + $0x30] sm:$0xf]
    %v7297 = vld [vmem:[#allocation2 + $0x98] sm:$0xf]
    %v7298 = vld [vmem:[#allocation2 + $0x100] sm:$0xf]
    %v7299 = vld [vmem:[#allocation2 + $0x168] sm:$0xf]
    %v7300 = vld [vmem:[#allocation2 + $0x1d0] sm:$0xf]
    %v7301 = vld [vmem:[#allocation2 + $0x238] sm:$0xf]
    %v7302 = vld [vmem:[#allocation2 + $0x2a0] sm:$0xf]
    %v7303 = vld [vmem:[#allocation2 + $0x308] sm:$0xf]
    %v7304 = vld [vmem:[#allocation2 + $0x370] sm:$0xf]
    %v7305 = vld [vmem:[#allocation2 + $0x3d8] sm:$0xf]
    %v7306 = vld [vmem:[#allocation2 + $0x440] sm:$0xf]
    %v7307 = vld [vmem:[#allocation2 + $0x4a8] sm:$0xf]
    %v7308 = vld [vmem:[#allocation2 + $0x510] sm:$0xf]
    %v7309 = vld [vmem:[#allocation2 + $0x578] sm:$0xf]
    %v7310 = vld [vmem:[#allocation2 + $0x5e0] sm:$0xf]
    %v7311 = vld [vmem:[#allocation2 + $0x648] sm:$0xf]
    %v7312 = vpack.c.bf16 %v7295, %v7295
    %v7329 = vunpack.c.l.b16 %v7296
    %v7330 = vunpack.c.l.b16 %v7297
    %v7331 = vunpack.c.l.b16 %v7298
    %v7332 = vunpack.c.l.b16 %v7299
    %v7333 = vunpack.c.l.b16 %v7300
    %v7334 = vunpack.c.l.b16 %v7301
    %v7335 = vunpack.c.l.b16 %v7302
    %v7336 = vunpack.c.l.b16 %v7303
    %v7337 = vunpack.c.l.b16 %v7304
    %v7338 = vunpack.c.l.b16 %v7305
    %v7339 = vunpack.c.l.b16 %v7306
    %v7340 = vunpack.c.l.b16 %v7307
    %v7341 = vunpack.c.l.b16 %v7308
    %v7342 = vunpack.c.l.b16 %v7309
    %v7343 = vunpack.c.l.b16 %v7310
    %v7344 = vunpack.c.l.b16 %v7311
    %v7345 = vpack.c.b16 %v7330, %v7329
    %v7346 = vpack.c.b16 %v7332, %v7331
    %v7347 = vpack.c.b16 %v7334, %v7333
    %v7348 = vpack.c.b16 %v7336, %v7335
    %v7349 = vpack.c.b16 %v7338, %v7337
    %v7350 = vpack.c.b16 %v7340, %v7339
    %v7351 = vpack.c.b16 %v7342, %v7341
    %v7352 = vpack.c.b16 %v7344, %v7343
    %7361 = vmatprep.subr.bf16.mxu0 0
    %7362 = vmatpush1.bf16.msra.mxu0 %v7345
    %7363 = vmatprep.subr.bf16.mxu0 0
    %7364 = vmatpush1.bf16.msra.mxu0 %v7346
    %7365 = vmatprep.subr.bf16.mxu0 0
    %7366 = vmatpush1.bf16.msra.mxu0 %v7347
    %7367 = vmatprep.subr.bf16.mxu0 0
    %7368 = vmatpush1.bf16.msra.mxu0 %v7348
    %7369 = vmatprep.subr.bf16.mxu0 0
    %7370 = vmatpush1.bf16.msra.mxu0 %v7349
    %7371 = vmatprep.subr.bf16.mxu0 0
    %7372 = vmatpush1.bf16.msra.mxu0 %v7350
    %7373 = vmatprep.subr.bf16.mxu0 0
    %7374 = vmatpush1.bf16.msra.mxu0 %v7351
    %7375 = vmatprep.subr.bf16.mxu0 0
    %7376 = vmatpush1.bf16.msra.mxu0 %v7352
    %7377 = vmatprep.subr.bf16.mxu0 0
    %7378 = vmatpush1.bf16.msra.mxu0 0
    %7379 = vmatprep.subr.bf16.mxu0 0
    %7380 = vmatpush1.bf16.msra.mxu0 0
    %7381 = vmatprep.subr.bf16.mxu0 0
    %7382 = vmatpush1.bf16.msra.mxu0 0
    %7383 = vmatprep.subr.bf16.mxu0 0
    %7384 = vmatpush1.bf16.msra.mxu0 0
    %7385 = vmatprep.subr.bf16.mxu0 0
    %7386 = vmatpush1.bf16.msra.mxu0 0
    %7387 = vmatprep.subr.bf16.mxu0 0
    %7388 = vmatpush1.bf16.msra.mxu0 0
    %7389 = vmatprep.subr.bf16.mxu0 0
    %7390 = vmatpush1.bf16.msra.mxu0 0
    %7391 = vmatprep.subr.bf16.mxu0 0
    %7392 = vmatpush1.bf16.msra.mxu0 0
    %7393 = vmatprep.mubr.bf16.mxu0 0
    %7394 = vmatmul.mubr.bf16.gmra.mrb[0].mxu0 %v7312
    %v7395 = vpop.f32.mrb[0].mxu0
    %v7396 = vadd.f32 0.0, %v7395
    %v7397 = vpop.f32.mrb[0].mxu0
    %v7398 = vpop.f32.mrb[0].mxu0
    %v7399 = vpop.f32.mrb[0].mxu0
    %7400 = vdwg.mxu0
    %v7401 = vxor.u32 %v7396, 2147483648
    %v7402 = vmul.f32 %v7401, 1.442695
    %v7403 = vpow.pop %v7402
    %v7404 = vadd.f32 %v7403, 1.0
    %v7405 = vrcp.pop %v7404
    %v7406 = vmul.f32 1.0, %v7405
    %v7407 = vmul.f32 %v7185, %v7406
    %v7408 = vadd.f32 %v7407, %v6230
    %v7409 = vadd.f32 %v6230, %v7408
    %v7410 = vmax.f32 %v7408, 0.0
    %v7411 = vld [vmem:[#allocation2 + $0x34] sm:$0xff]
    %v7412 = vld [vmem:[#allocation2 + $0x9c] sm:$0xff]
    %v7413 = vld [vmem:[#allocation2 + $0x104] sm:$0xff]
    %v7414 = vld [vmem:[#allocation2 + $0x16c] sm:$0xff]
    %v7415 = vld [vmem:[#allocation2 + $0x1d4] sm:$0xff]
    %v7416 = vld [vmem:[#allocation2 + $0x23c] sm:$0xff]
    %v7417 = vld [vmem:[#allocation2 + $0x2a4] sm:$0xff]
    %v7418 = vld [vmem:[#allocation2 + $0x30c] sm:$0xff]
    %v7419 = vld [vmem:[#allocation2 + $0x374] sm:$0xff]
    %v7420 = vld [vmem:[#allocation2 + $0x3dc] sm:$0xff]
    %v7421 = vld [vmem:[#allocation2 + $0x444] sm:$0xff]
    %v7422 = vld [vmem:[#allocation2 + $0x4ac] sm:$0xff]
    %v7423 = vld [vmem:[#allocation2 + $0x514] sm:$0xff]
    %v7424 = vld [vmem:[#allocation2 + $0x57c] sm:$0xff]
    %v7425 = vld [vmem:[#allocation2 + $0x5e4] sm:$0xff]
    %v7426 = vld [vmem:[#allocation2 + $0x64c] sm:$0xff]
    %v7427 = vpack.c.bf16 %v7410, %v7410
    %v7428 = vld [vmem:[%s2357] ss:$8 sm:$0x3]
    %v7430 = vlaneseq
    %v7431 = vshrl.u32 %v7430, 7
    %v7432 = vsub.s32 0, %v7431
    %v7433 = vrot.slane %v7428, %v7432
    %v7434 = vlaneseq
    %v7435 = vshrl.u32 %v7434, 7
    %v7436 = vsub.s32 1, %v7435
    %v7437 = vrot.slane %v7428, %v7436
    %v7456 = vunpack.c.l.b16 %v7411
    %v7457 = vunpack.c.h.b16 %v7411
    %v7458 = vunpack.c.l.b16 %v7412
    %v7459 = vunpack.c.h.b16 %v7412
    %v7460 = vunpack.c.l.b16 %v7413
    %v7461 = vunpack.c.h.b16 %v7413
    %v7462 = vunpack.c.l.b16 %v7414
    %v7463 = vunpack.c.h.b16 %v7414
    %v7464 = vunpack.c.l.b16 %v7415
    %v7465 = vunpack.c.h.b16 %v7415
    %v7466 = vunpack.c.l.b16 %v7416
    %v7467 = vunpack.c.h.b16 %v7416
    %v7468 = vunpack.c.l.b16 %v7417
    %v7469 = vunpack.c.h.b16 %v7417
    %v7470 = vunpack.c.l.b16 %v7418
    %v7471 = vunpack.c.h.b16 %v7418
    %v7472 = vunpack.c.l.b16 %v7419
    %v7473 = vunpack.c.h.b16 %v7419
    %v7474 = vunpack.c.l.b16 %v7420
    %v7475 = vunpack.c.h.b16 %v7420
    %v7476 = vunpack.c.l.b16 %v7421
    %v7477 = vunpack.c.h.b16 %v7421
    %v7478 = vunpack.c.l.b16 %v7422
    %v7479 = vunpack.c.h.b16 %v7422
    %v7480 = vunpack.c.l.b16 %v7423
    %v7481 = vunpack.c.h.b16 %v7423
    %v7482 = vunpack.c.l.b16 %v7424
    %v7483 = vunpack.c.h.b16 %v7424
    %v7484 = vunpack.c.l.b16 %v7425
    %v7485 = vunpack.c.h.b16 %v7425
    %v7486 = vunpack.c.l.b16 %v7426
    %v7487 = vunpack.c.h.b16 %v7426
    %v7488 = vpack.c.b16 %v7458, %v7456
    %v7489 = vpack.c.b16 %v7459, %v7457
    %v7490 = vpack.c.b16 %v7462, %v7460
    %v7491 = vpack.c.b16 %v7463, %v7461
    %v7492 = vpack.c.b16 %v7466, %v7464
    %v7493 = vpack.c.b16 %v7467, %v7465
    %v7494 = vpack.c.b16 %v7470, %v7468
    %v7495 = vpack.c.b16 %v7471, %v7469
    %v7496 = vpack.c.b16 %v7474, %v7472
    %v7497 = vpack.c.b16 %v7475, %v7473
    %v7498 = vpack.c.b16 %v7478, %v7476
    %v7499 = vpack.c.b16 %v7479, %v7477
    %v7500 = vpack.c.b16 %v7482, %v7480
    %v7501 = vpack.c.b16 %v7483, %v7481
    %v7502 = vpack.c.b16 %v7486, %v7484
    %v7503 = vpack.c.b16 %v7487, %v7485
    %7520 = vmatprep.subr.bf16.mxu0 %v7489
    %7521 = vmatpush1.bf16.msra.mxu0 %v7488
    %7522 = vmatprep.subr.bf16.mxu0 %v7491
    %7523 = vmatpush1.bf16.msra.mxu0 %v7490
    %7524 = vmatprep.subr.bf16.mxu0 %v7493
    %7525 = vmatpush1.bf16.msra.mxu0 %v7492
    %7526 = vmatprep.subr.bf16.mxu0 %v7495
    %7527 = vmatpush1.bf16.msra.mxu0 %v7494
    %7528 = vmatprep.subr.bf16.mxu0 %v7497
    %7529 = vmatpush1.bf16.msra.mxu0 %v7496
    %7530 = vmatprep.subr.bf16.mxu0 %v7499
    %7531 = vmatpush1.bf16.msra.mxu0 %v7498
    %7532 = vmatprep.subr.bf16.mxu0 %v7501
    %7533 = vmatpush1.bf16.msra.mxu0 %v7500
    %7534 = vmatprep.subr.bf16.mxu0 %v7503
    %7535 = vmatpush1.bf16.msra.mxu0 %v7502
    %7536 = vmatprep.subr.bf16.mxu0 0
    %7537 = vmatpush1.bf16.msra.mxu0 0
    %7538 = vmatprep.subr.bf16.mxu0 0
    %7539 = vmatpush1.bf16.msra.mxu0 0
    %7540 = vmatprep.subr.bf16.mxu0 0
    %7541 = vmatpush1.bf16.msra.mxu0 0
    %7542 = vmatprep.subr.bf16.mxu0 0
    %7543 = vmatpush1.bf16.msra.mxu0 0
    %7544 = vmatprep.subr.bf16.mxu0 0
    %7545 = vmatpush1.bf16.msra.mxu0 0
    %7546 = vmatprep.subr.bf16.mxu0 0
    %7547 = vmatpush1.bf16.msra.mxu0 0
    %7548 = vmatprep.subr.bf16.mxu0 0
    %7549 = vmatpush1.bf16.msra.mxu0 0
    %7550 = vmatprep.subr.bf16.mxu0 0
    %7551 = vmatpush1.bf16.msra.mxu0 0
    %7552 = vmatprep.mubr.bf16.mxu0 0
    %7553 = vmatmul.mubr.bf16.gmra.mrb[0].mxu0 %v7427
    %v7554 = vpop.f32.mrb[0].mxu0
    %v7555 = vadd.f32 %v7433, %v7554
    %v7556 = vpop.f32.mrb[0].mxu0
    %v7557 = vadd.f32 %v7437, %v7556
    %v7558 = vpop.f32.mrb[0].mxu0
    %v7559 = vpop.f32.mrb[0].mxu0
    %7560 = vdwg.mxu0
    %v7561 = vmax.f32 %v7555, 0.0
    %v7562 = vmax.f32 %v7557, 0.0
    %v7563 = vld [vmem:[#allocation5 + $0xc] sm:$0xff]
    %v7564 = vld [vmem:[#allocation5 + $0x14] sm:$0xf]
    %v7565 = vld [vmem:[#allocation5 + $0x38] sm:$0xff]
    %v7566 = vld [vmem:[#allocation5 + $0x40] sm:$0xf]
    %v7567 = vld [vmem:[#allocation5 + $0x64] sm:$0xff]
    %v7568 = vld [vmem:[#allocation5 + $0x6c] sm:$0xf]
    %v7569 = vld [vmem:[#allocation5 + $0x90] sm:$0xff]
    %v7570 = vld [vmem:[#allocation5 + $0x98] sm:$0xf]
    %v7571 = vld [vmem:[#allocation5 + $0xbc] sm:$0xff]
    %v7572 = vld [vmem:[#allocation5 + $0xc4] sm:$0xf]
    %v7573 = vld [vmem:[#allocation5 + $0xe8] sm:$0xff]
    %v7574 = vld [vmem:[#allocation5 + $0xf0] sm:$0xf]
    %v7575 = vld [vmem:[#allocation5 + $0x114] sm:$0xff]
    %v7576 = vld [vmem:[#allocation5 + $0x11c] sm:$0xf]
    %v7577 = vld [vmem:[#allocation5 + $0x140] sm:$0xff]
    %v7578 = vld [vmem:[#allocation5 + $0x148] sm:$0xf]
    %v7579 = vld [vmem:[#allocation5 + $0x16c] sm:$0xff]
    %v7580 = vld [vmem:[#allocation5 + $0x174] sm:$0xf]
    %v7581 = vld [vmem:[#allocation5 + $0x198] sm:$0xff]
    %v7582 = vld [vmem:[#allocation5 + $0x1a0] sm:$0xf]
    %v7583 = vld [vmem:[#allocation5 + $0x1c4] sm:$0xff]
    %v7584 = vld [vmem:[#allocation5 + $0x1cc] sm:$0xf]
    %v7585 = vld [vmem:[#allocation5 + $0x1f0] sm:$0xff]
    %v7586 = vld [vmem:[#allocation5 + $0x1f8] sm:$0xf]
    %v7587 = vld [vmem:[#allocation5 + $0x21c] sm:$0xff]
    %v7588 = vld [vmem:[#allocation5 + $0x224] sm:$0xf]
    %v7589 = vld [vmem:[#allocation5 + $0x248] sm:$0xff]
    %v7590 = vld [vmem:[#allocation5 + $0x250] sm:$0xf]
    %v7591 = vld [vmem:[#allocation5 + $0x274] sm:$0xff]
    %v7592 = vld [vmem:[#allocation5 + $0x27c] sm:$0xf]
    %v7593 = vld [vmem:[#allocation5 + $0x2a0] sm:$0xff]
    %v7594 = vld [vmem:[#allocation5 + $0x2a8] sm:$0xf]
    %v7595 = vld [vmem:[#allocation5 + $0x2cc] sm:$0xff]
    %v7596 = vld [vmem:[#allocation5 + $0x2d4] sm:$0xf]
    %v7597 = vld [vmem:[#allocation5 + $0x2f8] sm:$0xff]
    %v7598 = vld [vmem:[#allocation5 + $0x300] sm:$0xf]
    %v7599 = vld [vmem:[#allocation5 + $0x324] sm:$0xff]
    %v7600 = vld [vmem:[#allocation5 + $0x32c] sm:$0xf]
    %v7601 = vld [vmem:[#allocation5 + $0x350] sm:$0xff]
    %v7602 = vld [vmem:[#allocation5 + $0x358] sm:$0xf]
    %v7603 = vld [vmem:[#allocation5 + $0x37c] sm:$0xff]
    %v7604 = vld [vmem:[#allocation5 + $0x384] sm:$0xf]
    %v7605 = vld [vmem:[#allocation5 + $0x3a8] sm:$0xff]
    %v7606 = vld [vmem:[#allocation5 + $0x3b0] sm:$0xf]
    %v7607 = vld [vmem:[#allocation5 + $0x3d4] sm:$0xff]
    %v7608 = vld [vmem:[#allocation5 + $0x3dc] sm:$0xf]
    %v7609 = vld [vmem:[#allocation5 + $0x400] sm:$0xff]
    %v7610 = vld [vmem:[#allocation5 + $0x408] sm:$0xf]
    %v7611 = vld [vmem:[#allocation5 + $0x42c] sm:$0xff]
    %v7612 = vld [vmem:[#allocation5 + $0x434] sm:$0xf]
    %v7613 = vld [vmem:[#allocation5 + $0x458] sm:$0xff]
    %v7614 = vld [vmem:[#allocation5 + $0x460] sm:$0xf]
    %v7615 = vld [vmem:[#allocation5 + $0x484] sm:$0xff]
    %v7616 = vld [vmem:[#allocation5 + $0x48c] sm:$0xf]
    %v7617 = vld [vmem:[#allocation5 + $0x4b0] sm:$0xff]
    %v7618 = vld [vmem:[#allocation5 + $0x4b8] sm:$0xf]
    %v7619 = vld [vmem:[#allocation5 + $0x4dc] sm:$0xff]
    %v7620 = vld [vmem:[#allocation5 + $0x4e4] sm:$0xf]
    %v7621 = vld [vmem:[#allocation5 + $0x508] sm:$0xff]
    %v7622 = vld [vmem:[#allocation5 + $0x510] sm:$0xf]
    %v7623 = vld [vmem:[#allocation5 + $0x534] sm:$0xff]
    %v7624 = vld [vmem:[#allocation5 + $0x53c] sm:$0xf]
    %v7625 = vld [vmem:[#allocation5 + $0x560] sm:$0xff]
    %v7626 = vld [vmem:[#allocation5 + $0x568] sm:$0xf]
    %v7627 = vpack.c.bf16 %v7561, %v7561
    %v7628 = vpack.c.bf16 %v7562, %v7562
    %v7629 = vld [vmem:[%s2559] ss:$8 sm:$0x7]
    %v7631 = vlaneseq
    %v7632 = vshrl.u32 %v7631, 7
    %v7633 = vsub.s32 0, %v7632
    %v7634 = vrot.slane %v7629, %v7633
    %v7635 = vlaneseq
    %v7636 = vshrl.u32 %v7635, 7
    %v7637 = vsub.s32 1, %v7636
    %v7638 = vrot.slane %v7629, %v7637
    %v7639 = vlaneseq
    %v7640 = vshrl.u32 %v7639, 7
    %v7641 = vsub.s32 2, %v7640
    %v7642 = vrot.slane %v7629, %v7641
    %v7710 = vunpack.c.l.b16 %v7563
    %v7711 = vunpack.c.h.b16 %v7563
    %v7712 = vunpack.c.l.b16 %v7564
    %v7713 = vunpack.c.l.b16 %v7565
    %v7714 = vunpack.c.h.b16 %v7565
    %v7715 = vunpack.c.l.b16 %v7566
    %v7716 = vunpack.c.l.b16 %v7567
    %v7717 = vunpack.c.h.b16 %v7567
    %v7718 = vunpack.c.l.b16 %v7568
    %v7719 = vunpack.c.l.b16 %v7569
    %v7720 = vunpack.c.h.b16 %v7569
    %v7721 = vunpack.c.l.b16 %v7570
    %v7722 = vunpack.c.l.b16 %v7571
    %v7723 = vunpack.c.h.b16 %v7571
    %v7724 = vunpack.c.l.b16 %v7572
    %v7725 = vunpack.c.l.b16 %v7573
    %v7726 = vunpack.c.h.b16 %v7573
    %v7727 = vunpack.c.l.b16 %v7574
    %v7728 = vunpack.c.l.b16 %v7575
    %v7729 = vunpack.c.h.b16 %v7575
    %v7730 = vunpack.c.l.b16 %v7576
    %v7731 = vunpack.c.l.b16 %v7577
    %v7732 = vunpack.c.h.b16 %v7577
    %v7733 = vunpack.c.l.b16 %v7578
    %v7734 = vunpack.c.l.b16 %v7579
    %v7735 = vunpack.c.h.b16 %v7579
    %v7736 = vunpack.c.l.b16 %v7580
    %v7737 = vunpack.c.l.b16 %v7581
    %v7738 = vunpack.c.h.b16 %v7581
    %v7739 = vunpack.c.l.b16 %v7582
    %v7740 = vunpack.c.l.b16 %v7583
    %v7741 = vunpack.c.h.b16 %v7583
    %v7742 = vunpack.c.l.b16 %v7584
    %v7743 = vunpack.c.l.b16 %v7585
    %v7744 = vunpack.c.h.b16 %v7585
    %v7745 = vunpack.c.l.b16 %v7586
    %v7746 = vunpack.c.l.b16 %v7587
    %v7747 = vunpack.c.h.b16 %v7587
    %v7748 = vunpack.c.l.b16 %v7588
    %v7749 = vunpack.c.l.b16 %v7589
    %v7750 = vunpack.c.h.b16 %v7589
    %v7751 = vunpack.c.l.b16 %v7590
    %v7752 = vunpack.c.l.b16 %v7591
    %v7753 = vunpack.c.h.b16 %v7591
    %v7754 = vunpack.c.l.b16 %v7592
    %v7755 = vunpack.c.l.b16 %v7593
    %v7756 = vunpack.c.h.b16 %v7593
    %v7757 = vunpack.c.l.b16 %v7594
    %v7758 = vunpack.c.l.b16 %v7595
    %v7759 = vunpack.c.h.b16 %v7595
    %v7760 = vunpack.c.l.b16 %v7596
    %v7761 = vunpack.c.l.b16 %v7597
    %v7762 = vunpack.c.h.b16 %v7597
    %v7763 = vunpack.c.l.b16 %v7598
    %v7764 = vunpack.c.l.b16 %v7599
    %v7765 = vunpack.c.h.b16 %v7599
    %v7766 = vunpack.c.l.b16 %v7600
    %v7767 = vunpack.c.l.b16 %v7601
    %v7768 = vunpack.c.h.b16 %v7601
    %v7769 = vunpack.c.l.b16 %v7602
    %v7770 = vunpack.c.l.b16 %v7603
    %v7771 = vunpack.c.h.b16 %v7603
    %v7772 = vunpack.c.l.b16 %v7604
    %v7773 = vunpack.c.l.b16 %v7605
    %v7774 = vunpack.c.h.b16 %v7605
    %v7775 = vunpack.c.l.b16 %v7606
    %v7776 = vunpack.c.l.b16 %v7607
    %v7777 = vunpack.c.h.b16 %v7607
    %v7778 = vunpack.c.l.b16 %v7608
    %v7779 = vunpack.c.l.b16 %v7609
    %v7780 = vunpack.c.h.b16 %v7609
    %v7781 = vunpack.c.l.b16 %v7610
    %v7782 = vunpack.c.l.b16 %v7611
    %v7783 = vunpack.c.h.b16 %v7611
    %v7784 = vunpack.c.l.b16 %v7612
    %v7785 = vunpack.c.l.b16 %v7613
    %v7786 = vunpack.c.h.b16 %v7613
    %v7787 = vunpack.c.l.b16 %v7614
    %v7788 = vunpack.c.l.b16 %v7615
    %v7789 = vunpack.c.h.b16 %v7615
    %v7790 = vunpack.c.l.b16 %v7616
    %v7791 = vunpack.c.l.b16 %v7617
    %v7792 = vunpack.c.h.b16 %v7617
    %v7793 = vunpack.c.l.b16 %v7618
    %v7794 = vunpack.c.l.b16 %v7619
    %v7795 = vunpack.c.h.b16 %v7619
    %v7796 = vunpack.c.l.b16 %v7620
    %v7797 = vunpack.c.l.b16 %v7621
    %v7798 = vunpack.c.h.b16 %v7621
    %v7799 = vunpack.c.l.b16 %v7622
    %v7800 = vunpack.c.l.b16 %v7623
    %v7801 = vunpack.c.h.b16 %v7623
    %v7802 = vunpack.c.l.b16 %v7624
    %v7803 = vunpack.c.l.b16 %v7625
    %v7804 = vunpack.c.h.b16 %v7625
    %v7805 = vunpack.c.l.b16 %v7626
    %v7806 = vpack.c.b16 %v7713, %v7710
    %v7807 = vpack.c.b16 %v7714, %v7711
    %v7808 = vpack.c.b16 %v7715, %v7712
    %v7809 = vpack.c.b16 %v7719, %v7716
    %v7810 = vpack.c.b16 %v7720, %v7717
    %v7811 = vpack.c.b16 %v7721, %v7718
    %v7812 = vpack.c.b16 %v7725, %v7722
    %v7813 = vpack.c.b16 %v7726, %v7723
    %v7814 = vpack.c.b16 %v7727, %v7724
    %v7815 = vpack.c.b16 %v7731, %v7728
    %v7816 = vpack.c.b16 %v7732, %v7729
    %v7817 = vpack.c.b16 %v7733, %v7730
    %v7818 = vpack.c.b16 %v7737, %v7734
    %v7819 = vpack.c.b16 %v7738, %v7735
    %v7820 = vpack.c.b16 %v7739, %v7736
    %v7821 = vpack.c.b16 %v7743, %v7740
    %v7822 = vpack.c.b16 %v7744, %v7741
    %v7823 = vpack.c.b16 %v7745, %v7742
    %v7824 = vpack.c.b16 %v7749, %v7746
    %v7825 = vpack.c.b16 %v7750, %v7747
    %v7826 = vpack.c.b16 %v7751, %v7748
    %v7827 = vpack.c.b16 %v7755, %v7752
    %v7828 = vpack.c.b16 %v7756, %v7753
    %v7829 = vpack.c.b16 %v7757, %v7754
    %v7830 = vpack.c.b16 %v7761, %v7758
    %v7831 = vpack.c.b16 %v7762, %v7759
    %v7832 = vpack.c.b16 %v7763, %v7760
    %v7833 = vpack.c.b16 %v7767, %v7764
    %v7834 = vpack.c.b16 %v7768, %v7765
    %v7835 = vpack.c.b16 %v7769, %v7766
    %v7836 = vpack.c.b16 %v7773, %v7770
    %v7837 = vpack.c.b16 %v7774, %v7771
    %v7838 = vpack.c.b16 %v7775, %v7772
    %v7839 = vpack.c.b16 %v7779, %v7776
    %v7840 = vpack.c.b16 %v7780, %v7777
    %v7841 = vpack.c.b16 %v7781, %v7778
    %v7842 = vpack.c.b16 %v7785, %v7782
    %v7843 = vpack.c.b16 %v7786, %v7783
    %v7844 = vpack.c.b16 %v7787, %v7784
    %v7845 = vpack.c.b16 %v7791, %v7788
    %v7846 = vpack.c.b16 %v7792, %v7789
    %v7847 = vpack.c.b16 %v7793, %v7790
    %v7848 = vpack.c.b16 %v7797, %v7794
    %v7849 = vpack.c.b16 %v7798, %v7795
    %v7850 = vpack.c.b16 %v7799, %v7796
    %v7851 = vpack.c.b16 %v7803, %v7800
    %v7852 = vpack.c.b16 %v7804, %v7801
    %v7853 = vpack.c.b16 %v7805, %v7802
    %7902 = vmatprep.subr.bf16.mxu0 %v7807
    %7903 = vmatpush1.bf16.msra.mxu0 %v7806
    %7904 = vmatprep.subr.bf16.mxu0 %v7810
    %7905 = vmatpush1.bf16.msra.mxu0 %v7809
    %7906 = vmatprep.subr.bf16.mxu0 %v7813
    %7907 = vmatpush1.bf16.msra.mxu0 %v7812
    %7908 = vmatprep.subr.bf16.mxu0 %v7816
    %7909 = vmatpush1.bf16.msra.mxu0 %v7815
    %7910 = vmatprep.subr.bf16.mxu0 %v7819
    %7911 = vmatpush1.bf16.msra.mxu0 %v7818
    %7912 = vmatprep.subr.bf16.mxu0 %v7822
    %7913 = vmatpush1.bf16.msra.mxu0 %v7821
    %7914 = vmatprep.subr.bf16.mxu0 %v7825
    %7915 = vmatpush1.bf16.msra.mxu0 %v7824
    %7916 = vmatprep.subr.bf16.mxu0 %v7828
    %7917 = vmatpush1.bf16.msra.mxu0 %v7827
    %7918 = vmatprep.subr.bf16.mxu0 %v7831
    %7919 = vmatpush1.bf16.msra.mxu0 %v7830
    %7920 = vmatprep.subr.bf16.mxu0 %v7834
    %7921 = vmatpush1.bf16.msra.mxu0 %v7833
    %7922 = vmatprep.subr.bf16.mxu0 %v7837
    %7923 = vmatpush1.bf16.msra.mxu0 %v7836
    %7924 = vmatprep.subr.bf16.mxu0 %v7840
    %7925 = vmatpush1.bf16.msra.mxu0 %v7839
    %7926 = vmatprep.subr.bf16.mxu0 %v7843
    %7927 = vmatpush1.bf16.msra.mxu0 %v7842
    %7928 = vmatprep.subr.bf16.mxu0 %v7846
    %7929 = vmatpush1.bf16.msra.mxu0 %v7845
    %7930 = vmatprep.subr.bf16.mxu0 %v7849
    %7931 = vmatpush1.bf16.msra.mxu0 %v7848
    %7932 = vmatprep.subr.bf16.mxu0 %v7852
    %7933 = vmatpush1.bf16.msra.mxu0 %v7851
    %7934 = vmatprep.mubr.bf16.mxu0 %v7628
    %7935 = vmatmul.mubr.bf16.gmra.mrb[0].mxu0 %v7627
    %v7936 = vpop.f32.mrb[0].mxu0
    %v7937 = vadd.f32 %v7634, %v7936
    %v7938 = vpop.f32.mrb[0].mxu0
    %v7939 = vadd.f32 %v7638, %v7938
    %v7940 = vpop.f32.mrb[0].mxu0
    %v7941 = vpop.f32.mrb[0].mxu0
    %7942 = vdwg.mxu0
    %7943 = vmatprep.subr.bf16.mxu0 0
    %7944 = vmatpush1.bf16.msra.mxu0 %v7808
    %7945 = vmatprep.subr.bf16.mxu0 0
    %7946 = vmatpush1.bf16.msra.mxu0 %v7811
    %7947 = vmatprep.subr.bf16.mxu0 0
    %7948 = vmatpush1.bf16.msra.mxu0 %v7814
    %7949 = vmatprep.subr.bf16.mxu0 0
    %7950 = vmatpush1.bf16.msra.mxu0 %v7817
    %7951 = vmatprep.subr.bf16.mxu0 0
    %7952 = vmatpush1.bf16.msra.mxu0 %v7820
    %7953 = vmatprep.subr.bf16.mxu0 0
    %7954 = vmatpush1.bf16.msra.mxu0 %v7823
    %7955 = vmatprep.subr.bf16.mxu0 0
    %7956 = vmatpush1.bf16.msra.mxu0 %v7826
    %7957 = vmatprep.subr.bf16.mxu0 0
    %7958 = vmatpush1.bf16.msra.mxu0 %v7829
    %7959 = vmatprep.subr.bf16.mxu0 0
    %7960 = vmatpush1.bf16.msra.mxu0 %v7832
    %7961 = vmatprep.subr.bf16.mxu0 0
    %7962 = vmatpush1.bf16.msra.mxu0 %v7835
    %7963 = vmatprep.subr.bf16.mxu0 0
    %7964 = vmatpush1.bf16.msra.mxu0 %v7838
    %7965 = vmatprep.subr.bf16.mxu0 0
    %7966 = vmatpush1.bf16.msra.mxu0 %v7841
    %7967 = vmatprep.subr.bf16.mxu0 0
    %7968 = vmatpush1.bf16.msra.mxu0 %v7844
    %7969 = vmatprep.subr.bf16.mxu0 0
    %7970 = vmatpush1.bf16.msra.mxu0 %v7847
    %7971 = vmatprep.subr.bf16.mxu0 0
    %7972 = vmatpush1.bf16.msra.mxu0 %v7850
    %7973 = vmatprep.subr.bf16.mxu0 0
    %7974 = vmatpush1.bf16.msra.mxu0 %v7853
    %7975 = vmatprep.mubr.bf16.mxu0 %v7628
    %7976 = vmatmul.mubr.bf16.gmra.mrb[0].mxu0 %v7627
    %v7977 = vpop.f32.mrb[0].mxu0
    %v7978 = vadd.f32 %v7642, %v7977
    %v7979 = vpop.f32.mrb[0].mxu0
    %v7980 = vpop.f32.mrb[0].mxu0
    %v7981 = vpop.f32.mrb[0].mxu0
    %7982 = vdwg.mxu0
    %v7983 = vmax.f32 %v7937, 0.0
    %v7984 = vmax.f32 %v7939, 0.0
    %v7985 = vmax.f32 %v7978, 0.0
    %v7986 = vld [vmem:[#allocation7 + $0x8] sm:$0xff]
    %v7987 = vld [vmem:[#allocation7 + $0x18] sm:$0xff]
    %v7988 = vld [vmem:[#allocation7 + $0x28] sm:$0xff]
    %v7989 = vld [vmem:[#allocation7 + $0x38] sm:$0xff]
    %v7990 = vld [vmem:[#allocation7 + $0x48] sm:$0xff]
    %v7991 = vld [vmem:[#allocation7 + $0x58] sm:$0xff]
    %v7992 = vld [vmem:[#allocation7 + $0x68] sm:$0xff]
    %v7993 = vld [vmem:[#allocation7 + $0x78] sm:$0xff]
    %v7994 = vld [vmem:[#allocation7 + $0x88] sm:$0xff]
    %v7995 = vld [vmem:[#allocation7 + $0x98] sm:$0xff]
    %v7996 = vld [vmem:[#allocation7 + $0xa8] sm:$0xff]
    %v7997 = vld [vmem:[#allocation7 + $0xb8] sm:$0xff]
    %v7998 = vld [vmem:[#allocation7 + $0xc8] sm:$0xff]
    %v7999 = vld [vmem:[#allocation7 + $0xd8] sm:$0xff]
    %v8000 = vld [vmem:[#allocation7 + $0xe8] sm:$0xff]
    %v8001 = vld [vmem:[#allocation7 + $0xf8] sm:$0xff]
    %v8002 = vld [vmem:[#allocation7 + $0x108] sm:$0xff]
    %v8003 = vld [vmem:[#allocation7 + $0x118] sm:$0xff]
    %v8004 = vld [vmem:[#allocation7 + $0x128] sm:$0xff]
    %v8005 = vld [vmem:[#allocation7 + $0x138] sm:$0xff]
    %v8006 = vld [vmem:[#allocation7 + $0x148] sm:$0xff]
    %v8007 = vld [vmem:[#allocation7 + $0x158] sm:$0xff]
    %v8008 = vld [vmem:[#allocation7 + $0x168] sm:$0xff]
    %v8009 = vld [vmem:[#allocation7 + $0x178] sm:$0xff]
    %v8010 = vld [vmem:[#allocation7 + $0x188] sm:$0xff]
    %v8011 = vld [vmem:[#allocation7 + $0x198] sm:$0xff]
    %v8012 = vld [vmem:[#allocation7 + $0x1a8] sm:$0xff]
    %v8013 = vld [vmem:[#allocation7 + $0x1b8] sm:$0xff]
    %v8014 = vld [vmem:[#allocation7 + $0x1c8] sm:$0xff]
    %v8015 = vld [vmem:[#allocation7 + $0x1d8] sm:$0xff]
    %v8016 = vld [vmem:[#allocation7 + $0x1e8] sm:$0xff]
    %v8017 = vld [vmem:[#allocation7 + $0x1f8] sm:$0xff]
    %v8018 = vld [vmem:[#allocation7 + $0x208] sm:$0xff]
    %v8019 = vld [vmem:[#allocation7 + $0x218] sm:$0xff]
    %v8020 = vld [vmem:[#allocation7 + $0x228] sm:$0xff]
    %v8021 = vld [vmem:[#allocation7 + $0x238] sm:$0xff]
    %v8022 = vld [vmem:[#allocation7 + $0x248] sm:$0xff]
    %v8023 = vld [vmem:[#allocation7 + $0x258] sm:$0xff]
    %v8024 = vld [vmem:[#allocation7 + $0x268] sm:$0xff]
    %v8025 = vld [vmem:[#allocation7 + $0x278] sm:$0xff]
    %v8026 = vld [vmem:[#allocation7 + $0x288] sm:$0xff]
    %v8027 = vld [vmem:[#allocation7 + $0x298] sm:$0xff]
    %v8028 = vld [vmem:[#allocation7 + $0x2a8] sm:$0xff]
    %v8029 = vld [vmem:[#allocation7 + $0x2b8] sm:$0xff]
    %v8030 = vld [vmem:[#allocation7 + $0x2c8] sm:$0xff]
    %v8031 = vld [vmem:[#allocation7 + $0x2d8] sm:$0xff]
    %v8032 = vld [vmem:[#allocation7 + $0x2e8] sm:$0xff]
    %v8033 = vld [vmem:[#allocation7 + $0x2f8] sm:$0xff]
    %v8034 = vpack.c.bf16 %v7983, %v7983
    %v8035 = vpack.c.bf16 %v7984, %v7984
    %v8036 = vpack.c.bf16 %v7985, %v7985
    %v8037 = vld [vmem:[%s2968] ss:$8 sm:$0x3]
    %v8039 = vlaneseq
    %v8040 = vshrl.u32 %v8039, 7
    %v8041 = vsub.s32 0, %v8040
    %v8042 = vrot.slane %v8037, %v8041
    %v8043 = vlaneseq
    %v8044 = vshrl.u32 %v8043, 7
    %v8045 = vsub.s32 1, %v8044
    %v8046 = vrot.slane %v8037, %v8045
    %v8097 = vunpack.c.l.b16 %v7986
    %v8098 = vunpack.c.h.b16 %v7986
    %v8099 = vunpack.c.l.b16 %v7987
    %v8100 = vunpack.c.h.b16 %v7987
    %v8101 = vunpack.c.l.b16 %v7988
    %v8102 = vunpack.c.h.b16 %v7988
    %v8103 = vunpack.c.l.b16 %v7989
    %v8104 = vunpack.c.h.b16 %v7989
    %v8105 = vunpack.c.l.b16 %v7990
    %v8106 = vunpack.c.h.b16 %v7990
    %v8107 = vunpack.c.l.b16 %v7991
    %v8108 = vunpack.c.h.b16 %v7991
    %v8109 = vunpack.c.l.b16 %v7992
    %v8110 = vunpack.c.h.b16 %v7992
    %v8111 = vunpack.c.l.b16 %v7993
    %v8112 = vunpack.c.h.b16 %v7993
    %v8113 = vunpack.c.l.b16 %v7994
    %v8114 = vunpack.c.h.b16 %v7994
    %v8115 = vunpack.c.l.b16 %v7995
    %v8116 = vunpack.c.h.b16 %v7995
    %v8117 = vunpack.c.l.b16 %v7996
    %v8118 = vunpack.c.h.b16 %v7996
    %v8119 = vunpack.c.l.b16 %v7997
    %v8120 = vunpack.c.h.b16 %v7997
    %v8121 = vunpack.c.l.b16 %v7998
    %v8122 = vunpack.c.h.b16 %v7998
    %v8123 = vunpack.c.l.b16 %v7999
    %v8124 = vunpack.c.h.b16 %v7999
    %v8125 = vunpack.c.l.b16 %v8000
    %v8126 = vunpack.c.h.b16 %v8000
    %v8127 = vunpack.c.l.b16 %v8001
    %v8128 = vunpack.c.h.b16 %v8001
    %v8129 = vunpack.c.l.b16 %v8002
    %v8130 = vunpack.c.h.b16 %v8002
    %v8131 = vunpack.c.l.b16 %v8003
    %v8132 = vunpack.c.h.b16 %v8003
    %v8133 = vunpack.c.l.b16 %v8004
    %v8134 = vunpack.c.h.b16 %v8004
    %v8135 = vunpack.c.l.b16 %v8005
    %v8136 = vunpack.c.h.b16 %v8005
    %v8137 = vunpack.c.l.b16 %v8006
    %v8138 = vunpack.c.h.b16 %v8006
    %v8139 = vunpack.c.l.b16 %v8007
    %v8140 = vunpack.c.h.b16 %v8007
    %v8141 = vunpack.c.l.b16 %v8008
    %v8142 = vunpack.c.h.b16 %v8008
    %v8143 = vunpack.c.l.b16 %v8009
    %v8144 = vunpack.c.h.b16 %v8009
    %v8145 = vunpack.c.l.b16 %v8010
    %v8146 = vunpack.c.h.b16 %v8010
    %v8147 = vunpack.c.l.b16 %v8011
    %v8148 = vunpack.c.h.b16 %v8011
    %v8149 = vunpack.c.l.b16 %v8012
    %v8150 = vunpack.c.h.b16 %v8012
    %v8151 = vunpack.c.l.b16 %v8013
    %v8152 = vunpack.c.h.b16 %v8013
    %v8153 = vunpack.c.l.b16 %v8014
    %v8154 = vunpack.c.h.b16 %v8014
    %v8155 = vunpack.c.l.b16 %v8015
    %v8156 = vunpack.c.h.b16 %v8015
    %v8157 = vunpack.c.l.b16 %v8016
    %v8158 = vunpack.c.h.b16 %v8016
    %v8159 = vunpack.c.l.b16 %v8017
    %v8160 = vunpack.c.h.b16 %v8017
    %v8161 = vunpack.c.l.b16 %v8018
    %v8162 = vunpack.c.h.b16 %v8018
    %v8163 = vunpack.c.l.b16 %v8019
    %v8164 = vunpack.c.h.b16 %v8019
    %v8165 = vunpack.c.l.b16 %v8020
    %v8166 = vunpack.c.h.b16 %v8020
    %v8167 = vunpack.c.l.b16 %v8021
    %v8168 = vunpack.c.h.b16 %v8021
    %v8169 = vunpack.c.l.b16 %v8022
    %v8170 = vunpack.c.h.b16 %v8022
    %v8171 = vunpack.c.l.b16 %v8023
    %v8172 = vunpack.c.h.b16 %v8023
    %v8173 = vunpack.c.l.b16 %v8024
    %v8174 = vunpack.c.h.b16 %v8024
    %v8175 = vunpack.c.l.b16 %v8025
    %v8176 = vunpack.c.h.b16 %v8025
    %v8177 = vunpack.c.l.b16 %v8026
    %v8178 = vunpack.c.h.b16 %v8026
    %v8179 = vunpack.c.l.b16 %v8027
    %v8180 = vunpack.c.h.b16 %v8027
    %v8181 = vunpack.c.l.b16 %v8028
    %v8182 = vunpack.c.h.b16 %v8028
    %v8183 = vunpack.c.l.b16 %v8029
    %v8184 = vunpack.c.h.b16 %v8029
    %v8185 = vunpack.c.l.b16 %v8030
    %v8186 = vunpack.c.h.b16 %v8030
    %v8187 = vunpack.c.l.b16 %v8031
    %v8188 = vunpack.c.h.b16 %v8031
    %v8189 = vunpack.c.l.b16 %v8032
    %v8190 = vunpack.c.h.b16 %v8032
    %v8191 = vunpack.c.l.b16 %v8033
    %v8192 = vunpack.c.h.b16 %v8033
    %v8193 = vpack.c.b16 %v8099, %v8097
    %v8194 = vpack.c.b16 %v8100, %v8098
    %v8195 = vpack.c.b16 %v8103, %v8101
    %v8196 = vpack.c.b16 %v8104, %v8102
    %v8197 = vpack.c.b16 %v8107, %v8105
    %v8198 = vpack.c.b16 %v8108, %v8106
    %v8199 = vpack.c.b16 %v8111, %v8109
    %v8200 = vpack.c.b16 %v8112, %v8110
    %v8201 = vpack.c.b16 %v8115, %v8113
    %v8202 = vpack.c.b16 %v8116, %v8114
    %v8203 = vpack.c.b16 %v8119, %v8117
    %v8204 = vpack.c.b16 %v8120, %v8118
    %v8205 = vpack.c.b16 %v8123, %v8121
    %v8206 = vpack.c.b16 %v8124, %v8122
    %v8207 = vpack.c.b16 %v8127, %v8125
    %v8208 = vpack.c.b16 %v8128, %v8126
    %v8209 = vpack.c.b16 %v8131, %v8129
    %v8210 = vpack.c.b16 %v8132, %v8130
    %v8211 = vpack.c.b16 %v8135, %v8133
    %v8212 = vpack.c.b16 %v8136, %v8134
    %v8213 = vpack.c.b16 %v8139, %v8137
    %v8214 = vpack.c.b16 %v8140, %v8138
    %v8215 = vpack.c.b16 %v8143, %v8141
    %v8216 = vpack.c.b16 %v8144, %v8142
    %v8217 = vpack.c.b16 %v8147, %v8145
    %v8218 = vpack.c.b16 %v8148, %v8146
    %v8219 = vpack.c.b16 %v8151, %v8149
    %v8220 = vpack.c.b16 %v8152, %v8150
    %v8221 = vpack.c.b16 %v8155, %v8153
    %v8222 = vpack.c.b16 %v8156, %v8154
    %v8223 = vpack.c.b16 %v8159, %v8157
    %v8224 = vpack.c.b16 %v8160, %v8158
    %v8225 = vpack.c.b16 %v8163, %v8161
    %v8226 = vpack.c.b16 %v8164, %v8162
    %v8227 = vpack.c.b16 %v8167, %v8165
    %v8228 = vpack.c.b16 %v8168, %v8166
    %v8229 = vpack.c.b16 %v8171, %v8169
    %v8230 = vpack.c.b16 %v8172, %v8170
    %v8231 = vpack.c.b16 %v8175, %v8173
    %v8232 = vpack.c.b16 %v8176, %v8174
    %v8233 = vpack.c.b16 %v8179, %v8177
    %v8234 = vpack.c.b16 %v8180, %v8178
    %v8235 = vpack.c.b16 %v8183, %v8181
    %v8236 = vpack.c.b16 %v8184, %v8182
    %v8237 = vpack.c.b16 %v8187, %v8185
    %v8238 = vpack.c.b16 %v8188, %v8186
    %v8239 = vpack.c.b16 %v8191, %v8189
    %v8240 = vpack.c.b16 %v8192, %v8190
    %8289 = vmatprep.subr.bf16.mxu0 %v8194
    %8290 = vmatpush1.bf16.msra.mxu0 %v8193
    %8291 = vmatprep.subr.bf16.mxu0 %v8196
    %8292 = vmatpush1.bf16.msra.mxu0 %v8195
    %8293 = vmatprep.subr.bf16.mxu0 %v8198
    %8294 = vmatpush1.bf16.msra.mxu0 %v8197
    %8295 = vmatprep.subr.bf16.mxu0 %v8200
    %8296 = vmatpush1.bf16.msra.mxu0 %v8199
    %8297 = vmatprep.subr.bf16.mxu0 %v8202
    %8298 = vmatpush1.bf16.msra.mxu0 %v8201
    %8299 = vmatprep.subr.bf16.mxu0 %v8204
    %8300 = vmatpush1.bf16.msra.mxu0 %v8203
    %8301 = vmatprep.subr.bf16.mxu0 %v8206
    %8302 = vmatpush1.bf16.msra.mxu0 %v8205
    %8303 = vmatprep.subr.bf16.mxu0 %v8208
    %8304 = vmatpush1.bf16.msra.mxu0 %v8207
    %8305 = vmatprep.subr.bf16.mxu0 %v8210
    %8306 = vmatpush1.bf16.msra.mxu0 %v8209
    %8307 = vmatprep.subr.bf16.mxu0 %v8212
    %8308 = vmatpush1.bf16.msra.mxu0 %v8211
    %8309 = vmatprep.subr.bf16.mxu0 %v8214
    %8310 = vmatpush1.bf16.msra.mxu0 %v8213
    %8311 = vmatprep.subr.bf16.mxu0 %v8216
    %8312 = vmatpush1.bf16.msra.mxu0 %v8215
    %8313 = vmatprep.subr.bf16.mxu0 %v8218
    %8314 = vmatpush1.bf16.msra.mxu0 %v8217
    %8315 = vmatprep.subr.bf16.mxu0 %v8220
    %8316 = vmatpush1.bf16.msra.mxu0 %v8219
    %8317 = vmatprep.subr.bf16.mxu0 %v8222
    %8318 = vmatpush1.bf16.msra.mxu0 %v8221
    %8319 = vmatprep.subr.bf16.mxu0 %v8224
    %8320 = vmatpush1.bf16.msra.mxu0 %v8223
    %8321 = vmatprep.mubr.bf16.mxu0 %v8035
    %8322 = vmatmul.mubr.bf16.gmra.mrb[0].mxu0 %v8034
    %v8323 = vpop.f32.mrb[0].mxu0
    %v8324 = vadd.f32 %v8042, %v8323
    %v8325 = vpop.f32.mrb[0].mxu0
    %v8326 = vadd.f32 %v8046, %v8325
    %v8327 = vpop.f32.mrb[0].mxu0
    %v8328 = vpop.f32.mrb[0].mxu0
    %8329 = vdwg.mxu0
    %8330 = vmatprep.subr.bf16.mxu0 %v8226
    %8331 = vmatpush1.bf16.msra.mxu0 %v8225
    %8332 = vmatprep.subr.bf16.mxu0 %v8228
    %8333 = vmatpush1.bf16.msra.mxu0 %v8227
    %8334 = vmatprep.subr.bf16.mxu0 %v8230
    %8335 = vmatpush1.bf16.msra.mxu0 %v8229
    %8336 = vmatprep.subr.bf16.mxu0 %v8232
    %8337 = vmatpush1.bf16.msra.mxu0 %v8231
    %8338 = vmatprep.subr.bf16.mxu0 %v8234
    %8339 = vmatpush1.bf16.msra.mxu0 %v8233
    %8340 = vmatprep.subr.bf16.mxu0 %v8236
    %8341 = vmatpush1.bf16.msra.mxu0 %v8235
    %8342 = vmatprep.subr.bf16.mxu0 %v8238
    %8343 = vmatpush1.bf16.msra.mxu0 %v8237
    %8344 = vmatprep.subr.bf16.mxu0 %v8240
    %8345 = vmatpush1.bf16.msra.mxu0 %v8239
    %8346 = vmatprep.subr.bf16.mxu0 0
    %8347 = vmatpush1.bf16.msra.mxu0 0
    %8348 = vmatprep.subr.bf16.mxu0 0
    %8349 = vmatpush1.bf16.msra.mxu0 0
    %8350 = vmatprep.subr.bf16.mxu0 0
    %8351 = vmatpush1.bf16.msra.mxu0 0
    %8352 = vmatprep.subr.bf16.mxu0 0
    %8353 = vmatpush1.bf16.msra.mxu0 0
    %8354 = vmatprep.subr.bf16.mxu0 0
    %8355 = vmatpush1.bf16.msra.mxu0 0
    %8356 = vmatprep.subr.bf16.mxu0 0
    %8357 = vmatpush1.bf16.msra.mxu0 0
    %8358 = vmatprep.subr.bf16.mxu0 0
    %8359 = vmatpush1.bf16.msra.mxu0 0
    %8360 = vmatprep.subr.bf16.mxu0 0
    %8361 = vmatpush1.bf16.msra.mxu0 0
    %8362 = vmatprep.mubr.bf16.mxu0 0
    %8363 = vmatmul.mubr.bf16.gmra.mrb[0].mxu0 %v8036
    %v8364 = vpop.f32.mrb[0].mxu0
    %v8365 = vadd.f32 %v8324, %v8364
    %v8366 = vpop.f32.mrb[0].mxu0
    %v8367 = vadd.f32 %v8326, %v8366
    %v8368 = vpop.f32.mrb[0].mxu0
    %v8369 = vpop.f32.mrb[0].mxu0
    %8370 = vdwg.mxu0
    %v8371 = vmax.f32 %v8365, 0.0
    %v8372 = vmax.f32 %v8367, 0.0
    %v8373 = vld [vmem:[#allocation5 + $0x18] sm:$0xf]
    %v8374 = vld [vmem:[#allocation5 + $0x44] sm:$0xf]
    %v8375 = vld [vmem:[#allocation5 + $0x70] sm:$0xf]
    %v8376 = vld [vmem:[#allocation5 + $0x9c] sm:$0xf]
    %v8377 = vld [vmem:[#allocation5 + $0xc8] sm:$0xf]
    %v8378 = vld [vmem:[#allocation5 + $0xf4] sm:$0xf]
    %v8379 = vld [vmem:[#allocation5 + $0x120] sm:$0xf]
    %v8380 = vld [vmem:[#allocation5 + $0x14c] sm:$0xf]
    %v8381 = vld [vmem:[#allocation5 + $0x178] sm:$0xf]
    %v8382 = vld [vmem:[#allocation5 + $0x1a4] sm:$0xf]
    %v8383 = vld [vmem:[#allocation5 + $0x1d0] sm:$0xf]
    %v8384 = vld [vmem:[#allocation5 + $0x1fc] sm:$0xf]
    %v8385 = vld [vmem:[#allocation5 + $0x228] sm:$0xf]
    %v8386 = vld [vmem:[#allocation5 + $0x254] sm:$0xf]
    %v8387 = vld [vmem:[#allocation5 + $0x280] sm:$0xf]
    %v8388 = vld [vmem:[#allocation5 + $0x2ac] sm:$0xf]
    %v8389 = vld [vmem:[#allocation5 + $0x2d8] sm:$0xf]
    %v8390 = vld [vmem:[#allocation5 + $0x304] sm:$0xf]
    %v8391 = vld [vmem:[#allocation5 + $0x330] sm:$0xf]
    %v8392 = vld [vmem:[#allocation5 + $0x35c] sm:$0xf]
    %v8393 = vld [vmem:[#allocation5 + $0x388] sm:$0xf]
    %v8394 = vld [vmem:[#allocation5 + $0x3b4] sm:$0xf]
    %v8395 = vld [vmem:[#allocation5 + $0x3e0] sm:$0xf]
    %v8396 = vld [vmem:[#allocation5 + $0x40c] sm:$0xf]
    %v8397 = vld [vmem:[#allocation5 + $0x438] sm:$0xf]
    %v8398 = vld [vmem:[#allocation5 + $0x464] sm:$0xf]
    %v8399 = vld [vmem:[#allocation5 + $0x490] sm:$0xf]
    %v8400 = vld [vmem:[#allocation5 + $0x4bc] sm:$0xf]
    %v8401 = vld [vmem:[#allocation5 + $0x4e8] sm:$0xf]
    %v8402 = vld [vmem:[#allocation5 + $0x514] sm:$0xf]
    %v8403 = vld [vmem:[#allocation5 + $0x540] sm:$0xf]
    %v8404 = vld [vmem:[#allocation5 + $0x56c] sm:$0xf]
    %v8405 = vpack.c.bf16 %v8371, %v8371
    %v8406 = vpack.c.bf16 %v8372, %v8372
    %v8407 = vld [vmem:[#allocation8 + $0x1c] ss:$0 sm:$0xff]
    %v8440 = vunpack.c.l.b16 %v8373
    %v8441 = vunpack.c.l.b16 %v8374
    %v8442 = vunpack.c.l.b16 %v8375
    %v8443 = vunpack.c.l.b16 %v8376
    %v8444 = vunpack.c.l.b16 %v8377
    %v8445 = vunpack.c.l.b16 %v8378
    %v8446 = vunpack.c.l.b16 %v8379
    %v8447 = vunpack.c.l.b16 %v8380
    %v8448 = vunpack.c.l.b16 %v8381
    %v8449 = vunpack.c.l.b16 %v8382
    %v8450 = vunpack.c.l.b16 %v8383
    %v8451 = vunpack.c.l.b16 %v8384
    %v8452 = vunpack.c.l.b16 %v8385
    %v8453 = vunpack.c.l.b16 %v8386
    %v8454 = vunpack.c.l.b16 %v8387
    %v8455 = vunpack.c.l.b16 %v8388
    %v8456 = vunpack.c.l.b16 %v8389
    %v8457 = vunpack.c.l.b16 %v8390
    %v8458 = vunpack.c.l.b16 %v8391
    %v8459 = vunpack.c.l.b16 %v8392
    %v8460 = vunpack.c.l.b16 %v8393
    %v8461 = vunpack.c.l.b16 %v8394
    %v8462 = vunpack.c.l.b16 %v8395
    %v8463 = vunpack.c.l.b16 %v8396
    %v8464 = vunpack.c.l.b16 %v8397
    %v8465 = vunpack.c.l.b16 %v8398
    %v8466 = vunpack.c.l.b16 %v8399
    %v8467 = vunpack.c.l.b16 %v8400
    %v8468 = vunpack.c.l.b16 %v8401
    %v8469 = vunpack.c.l.b16 %v8402
    %v8470 = vunpack.c.l.b16 %v8403
    %v8471 = vunpack.c.l.b16 %v8404
    %v8472 = vpack.c.b16 %v8441, %v8440
    %v8473 = vpack.c.b16 %v8443, %v8442
    %v8474 = vpack.c.b16 %v8445, %v8444
    %v8475 = vpack.c.b16 %v8447, %v8446
    %v8476 = vpack.c.b16 %v8449, %v8448
    %v8477 = vpack.c.b16 %v8451, %v8450
    %v8478 = vpack.c.b16 %v8453, %v8452
    %v8479 = vpack.c.b16 %v8455, %v8454
    %v8480 = vpack.c.b16 %v8457, %v8456
    %v8481 = vpack.c.b16 %v8459, %v8458
    %v8482 = vpack.c.b16 %v8461, %v8460
    %v8483 = vpack.c.b16 %v8463, %v8462
    %v8484 = vpack.c.b16 %v8465, %v8464
    %v8485 = vpack.c.b16 %v8467, %v8466
    %v8486 = vpack.c.b16 %v8469, %v8468
    %v8487 = vpack.c.b16 %v8471, %v8470
    %8504 = vmatprep.subr.bf16.mxu0 0
    %8505 = vmatpush1.bf16.msra.mxu0 %v8472
    %8506 = vmatprep.subr.bf16.mxu0 0
    %8507 = vmatpush1.bf16.msra.mxu0 %v8473
    %8508 = vmatprep.subr.bf16.mxu0 0
    %8509 = vmatpush1.bf16.msra.mxu0 %v8474
    %8510 = vmatprep.subr.bf16.mxu0 0
    %8511 = vmatpush1.bf16.msra.mxu0 %v8475
    %8512 = vmatprep.subr.bf16.mxu0 0
    %8513 = vmatpush1.bf16.msra.mxu0 %v8476
    %8514 = vmatprep.subr.bf16.mxu0 0
    %8515 = vmatpush1.bf16.msra.mxu0 %v8477
    %8516 = vmatprep.subr.bf16.mxu0 0
    %8517 = vmatpush1.bf16.msra.mxu0 %v8478
    %8518 = vmatprep.subr.bf16.mxu0 0
    %8519 = vmatpush1.bf16.msra.mxu0 %v8479
    %8520 = vmatprep.subr.bf16.mxu0 0
    %8521 = vmatpush1.bf16.msra.mxu0 %v8480
    %8522 = vmatprep.subr.bf16.mxu0 0
    %8523 = vmatpush1.bf16.msra.mxu0 %v8481
    %8524 = vmatprep.subr.bf16.mxu0 0
    %8525 = vmatpush1.bf16.msra.mxu0 %v8482
    %8526 = vmatprep.subr.bf16.mxu0 0
    %8527 = vmatpush1.bf16.msra.mxu0 %v8483
    %8528 = vmatprep.subr.bf16.mxu0 0
    %8529 = vmatpush1.bf16.msra.mxu0 %v8484
    %8530 = vmatprep.subr.bf16.mxu0 0
    %8531 = vmatpush1.bf16.msra.mxu0 %v8485
    %8532 = vmatprep.subr.bf16.mxu0 0
    %8533 = vmatpush1.bf16.msra.mxu0 %v8486
    %8534 = vmatprep.subr.bf16.mxu0 0
    %8535 = vmatpush1.bf16.msra.mxu0 %v8487
    %8536 = vmatprep.mubr.bf16.mxu0 %v8406
    %8537 = vmatmul.mubr.bf16.gmra.mrb[0].mxu0 %v8405
    %v8538 = vpop.f32.mrb[0].mxu0
    %v8539 = vadd.f32 %v8407, %v8538
    %v8540 = vpop.f32.mrb[0].mxu0
    %v8541 = vpop.f32.mrb[0].mxu0
    %v8542 = vpop.f32.mrb[0].mxu0
    %8543 = vdwg.mxu0
    %v8544 = vld [vmem:[#allocation2 + $0x3c] sm:$0xf]
    %v8545 = vld [vmem:[#allocation2 + $0xa4] sm:$0xf]
    %v8546 = vld [vmem:[#allocation2 + $0x10c] sm:$0xf]
    %v8547 = vld [vmem:[#allocation2 + $0x174] sm:$0xf]
    %v8548 = vld [vmem:[#allocation2 + $0x1dc] sm:$0xf]
    %v8549 = vld [vmem:[#allocation2 + $0x244] sm:$0xf]
    %v8550 = vld [vmem:[#allocation2 + $0x2ac] sm:$0xf]
    %v8551 = vld [vmem:[#allocation2 + $0x314] sm:$0xf]
    %v8552 = vld [vmem:[#allocation2 + $0x37c] sm:$0xf]
    %v8553 = vld [vmem:[#allocation2 + $0x3e4] sm:$0xf]
    %v8554 = vld [vmem:[#allocation2 + $0x44c] sm:$0xf]
    %v8555 = vld [vmem:[#allocation2 + $0x4b4] sm:$0xf]
    %v8556 = vld [vmem:[#allocation2 + $0x51c] sm:$0xf]
    %v8557 = vld [vmem:[#allocation2 + $0x584] sm:$0xf]
    %v8558 = vld [vmem:[#allocation2 + $0x5ec] sm:$0xf]
    %v8559 = vld [vmem:[#allocation2 + $0x654] sm:$0xf]
    %v8560 = vpack.c.bf16 %v8539, %v8539
    %v8577 = vunpack.c.l.b16 %v8544
    %v8578 = vunpack.c.l.b16 %v8545
    %v8579 = vunpack.c.l.b16 %v8546
    %v8580 = vunpack.c.l.b16 %v8547
    %v8581 = vunpack.c.l.b16 %v8548
    %v8582 = vunpack.c.l.b16 %v8549
    %v8583 = vunpack.c.l.b16 %v8550
    %v8584 = vunpack.c.l.b16 %v8551
    %v8585 = vunpack.c.l.b16 %v8552
    %v8586 = vunpack.c.l.b16 %v8553
    %v8587 = vunpack.c.l.b16 %v8554
    %v8588 = vunpack.c.l.b16 %v8555
    %v8589 = vunpack.c.l.b16 %v8556
    %v8590 = vunpack.c.l.b16 %v8557
    %v8591 = vunpack.c.l.b16 %v8558
    %v8592 = vunpack.c.l.b16 %v8559
    %v8593 = vpack.c.b16 %v8578, %v8577
    %v8594 = vpack.c.b16 %v8580, %v8579
    %v8595 = vpack.c.b16 %v8582, %v8581
    %v8596 = vpack.c.b16 %v8584, %v8583
    %v8597 = vpack.c.b16 %v8586, %v8585
    %v8598 = vpack.c.b16 %v8588, %v8587
    %v8599 = vpack.c.b16 %v8590, %v8589
    %v8600 = vpack.c.b16 %v8592, %v8591
    %8609 = vmatprep.subr.bf16.mxu0 0
    %8610 = vmatpush1.bf16.msra.mxu0 %v8593
    %8611 = vmatprep.subr.bf16.mxu0 0
    %8612 = vmatpush1.bf16.msra.mxu0 %v8594
    %8613 = vmatprep.subr.bf16.mxu0 0
    %8614 = vmatpush1.bf16.msra.mxu0 %v8595
    %8615 = vmatprep.subr.bf16.mxu0 0
    %8616 = vmatpush1.bf16.msra.mxu0 %v8596
    %8617 = vmatprep.subr.bf16.mxu0 0
    %8618 = vmatpush1.bf16.msra.mxu0 %v8597
    %8619 = vmatprep.subr.bf16.mxu0 0
    %8620 = vmatpush1.bf16.msra.mxu0 %v8598
    %8621 = vmatprep.subr.bf16.mxu0 0
    %8622 = vmatpush1.bf16.msra.mxu0 %v8599
    %8623 = vmatprep.subr.bf16.mxu0 0
    %8624 = vmatpush1.bf16.msra.mxu0 %v8600
    %8625 = vmatprep.subr.bf16.mxu0 0
    %8626 = vmatpush1.bf16.msra.mxu0 0
    %8627 = vmatprep.subr.bf16.mxu0 0
    %8628 = vmatpush1.bf16.msra.mxu0 0
    %8629 = vmatprep.subr.bf16.mxu0 0
    %8630 = vmatpush1.bf16.msra.mxu0 0
    %8631 = vmatprep.subr.bf16.mxu0 0
    %8632 = vmatpush1.bf16.msra.mxu0 0
    %8633 = vmatprep.subr.bf16.mxu0 0
    %8634 = vmatpush1.bf16.msra.mxu0 0
    %8635 = vmatprep.subr.bf16.mxu0 0
    %8636 = vmatpush1.bf16.msra.mxu0 0
    %8637 = vmatprep.subr.bf16.mxu0 0
    %8638 = vmatpush1.bf16.msra.mxu0 0
    %8639 = vmatprep.subr.bf16.mxu0 0
    %8640 = vmatpush1.bf16.msra.mxu0 0
    %8641 = vmatprep.mubr.bf16.mxu0 0
    %8642 = vmatmul.mubr.bf16.gmra.mrb[0].mxu0 %v8560
    %v8643 = vpop.f32.mrb[0].mxu0
    %v8644 = vadd.f32 0.0, %v8643
    %v8645 = vpop.f32.mrb[0].mxu0
    %v8646 = vpop.f32.mrb[0].mxu0
    %v8647 = vpop.f32.mrb[0].mxu0
    %8648 = vdwg.mxu0
    %v8649 = vmax.f32 %v8644, 0.0
    %v8650 = vld [vmem:[#allocation2 + $0x40] sm:$0xf]
    %v8651 = vld [vmem:[#allocation2 + $0xa8] sm:$0xf]
    %v8652 = vld [vmem:[#allocation2 + $0x110] sm:$0xf]
    %v8653 = vld [vmem:[#allocation2 + $0x178] sm:$0xf]
    %v8654 = vld [vmem:[#allocation2 + $0x1e0] sm:$0xf]
    %v8655 = vld [vmem:[#allocation2 + $0x248] sm:$0xf]
    %v8656 = vld [vmem:[#allocation2 + $0x2b0] sm:$0xf]
    %v8657 = vld [vmem:[#allocation2 + $0x318] sm:$0xf]
    %v8658 = vld [vmem:[#allocation2 + $0x380] sm:$0xf]
    %v8659 = vld [vmem:[#allocation2 + $0x3e8] sm:$0xf]
    %v8660 = vld [vmem:[#allocation2 + $0x450] sm:$0xf]
    %v8661 = vld [vmem:[#allocation2 + $0x4b8] sm:$0xf]
    %v8662 = vld [vmem:[#allocation2 + $0x520] sm:$0xf]
    %v8663 = vld [vmem:[#allocation2 + $0x588] sm:$0xf]
    %v8664 = vld [vmem:[#allocation2 + $0x5f0] sm:$0xf]
    %v8665 = vld [vmem:[#allocation2 + $0x658] sm:$0xf]
    %v8666 = vpack.c.bf16 %v8649, %v8649
    %v8683 = vunpack.c.l.b16 %v8650
    %v8684 = vunpack.c.l.b16 %v8651
    %v8685 = vunpack.c.l.b16 %v8652
    %v8686 = vunpack.c.l.b16 %v8653
    %v8687 = vunpack.c.l.b16 %v8654
    %v8688 = vunpack.c.l.b16 %v8655
    %v8689 = vunpack.c.l.b16 %v8656
    %v8690 = vunpack.c.l.b16 %v8657
    %v8691 = vunpack.c.l.b16 %v8658
    %v8692 = vunpack.c.l.b16 %v8659
    %v8693 = vunpack.c.l.b16 %v8660
    %v8694 = vunpack.c.l.b16 %v8661
    %v8695 = vunpack.c.l.b16 %v8662
    %v8696 = vunpack.c.l.b16 %v8663
    %v8697 = vunpack.c.l.b16 %v8664
    %v8698 = vunpack.c.l.b16 %v8665
    %v8699 = vpack.c.b16 %v8684, %v8683
    %v8700 = vpack.c.b16 %v8686, %v8685
    %v8701 = vpack.c.b16 %v8688, %v8687
    %v8702 = vpack.c.b16 %v8690, %v8689
    %v8703 = vpack.c.b16 %v8692, %v8691
    %v8704 = vpack.c.b16 %v8694, %v8693
    %v8705 = vpack.c.b16 %v8696, %v8695
    %v8706 = vpack.c.b16 %v8698, %v8697
    %8715 = vmatprep.subr.bf16.mxu0 0
    %8716 = vmatpush1.bf16.msra.mxu0 %v8699
    %8717 = vmatprep.subr.bf16.mxu0 0
    %8718 = vmatpush1.bf16.msra.mxu0 %v8700
    %8719 = vmatprep.subr.bf16.mxu0 0
    %8720 = vmatpush1.bf16.msra.mxu0 %v8701
    %8721 = vmatprep.subr.bf16.mxu0 0
    %8722 = vmatpush1.bf16.msra.mxu0 %v8702
    %8723 = vmatprep.subr.bf16.mxu0 0
    %8724 = vmatpush1.bf16.msra.mxu0 %v8703
    %8725 = vmatprep.subr.bf16.mxu0 0
    %8726 = vmatpush1.bf16.msra.mxu0 %v8704
    %8727 = vmatprep.subr.bf16.mxu0 0
    %8728 = vmatpush1.bf16.msra.mxu0 %v8705
    %8729 = vmatprep.subr.bf16.mxu0 0
    %8730 = vmatpush1.bf16.msra.mxu0 %v8706
    %8731 = vmatprep.subr.bf16.mxu0 0
    %8732 = vmatpush1.bf16.msra.mxu0 0
    %8733 = vmatprep.subr.bf16.mxu0 0
    %8734 = vmatpush1.bf16.msra.mxu0 0
    %8735 = vmatprep.subr.bf16.mxu0 0
    %8736 = vmatpush1.bf16.msra.mxu0 0
    %8737 = vmatprep.subr.bf16.mxu0 0
    %8738 = vmatpush1.bf16.msra.mxu0 0
    %8739 = vmatprep.subr.bf16.mxu0 0
    %8740 = vmatpush1.bf16.msra.mxu0 0
    %8741 = vmatprep.subr.bf16.mxu0 0
    %8742 = vmatpush1.bf16.msra.mxu0 0
    %8743 = vmatprep.subr.bf16.mxu0 0
    %8744 = vmatpush1.bf16.msra.mxu0 0
    %8745 = vmatprep.subr.bf16.mxu0 0
    %8746 = vmatpush1.bf16.msra.mxu0 0
    %8747 = vmatprep.mubr.bf16.mxu0 0
    %8748 = vmatmul.mubr.bf16.gmra.mrb[0].mxu0 %v8666
    %v8749 = vpop.f32.mrb[0].mxu0
    %v8750 = vadd.f32 0.0, %v8749
    %v8751 = vpop.f32.mrb[0].mxu0
    %v8752 = vpop.f32.mrb[0].mxu0
    %v8753 = vpop.f32.mrb[0].mxu0
    %8754 = vdwg.mxu0
    %v8755 = vxor.u32 %v8750, 2147483648
    %v8756 = vmul.f32 %v8755, 1.442695
    %v8757 = vpow.pop %v8756
    %v8758 = vadd.f32 %v8757, 1.0
    %v8759 = vrcp.pop %v8758
    %v8760 = vmul.f32 1.0, %v8759
    %v8761 = vmul.f32 %v8539, %v8760
    %v8762 = vadd.f32 %v8761, %v7409
    %v8763 = vadd.f32 %v7409, %v8762
    %v8764 = vmax.f32 %v8762, 0.0
    %v8765 = vld [vmem:[#allocation2 + $0x44] sm:$0xf]
    %v8766 = vld [vmem:[#allocation2 + $0xac] sm:$0xf]
    %v8767 = vld [vmem:[#allocation2 + $0x114] sm:$0xf]
    %v8768 = vld [vmem:[#allocation2 + $0x17c] sm:$0xf]
    %v8769 = vld [vmem:[#allocation2 + $0x1e4] sm:$0xf]
    %v8770 = vld [vmem:[#allocation2 + $0x24c] sm:$0xf]
    %v8771 = vld [vmem:[#allocation2 + $0x2b4] sm:$0xf]
    %v8772 = vld [vmem:[#allocation2 + $0x31c] sm:$0xf]
    %v8773 = vld [vmem:[#allocation2 + $0x384] sm:$0xf]
    %v8774 = vld [vmem:[#allocation2 + $0x3ec] sm:$0xf]
    %v8775 = vld [vmem:[#allocation2 + $0x454] sm:$0xf]
    %v8776 = vld [vmem:[#allocation2 + $0x4bc] sm:$0xf]
    %v8777 = vld [vmem:[#allocation2 + $0x524] sm:$0xf]
    %v8778 = vld [vmem:[#allocation2 + $0x58c] sm:$0xf]
    %v8779 = vld [vmem:[#allocation2 + $0x5f4] sm:$0xf]
    %v8780 = vld [vmem:[#allocation2 + $0x65c] sm:$0xf]
    %v8781 = vpack.c.bf16 %v8764, %v8764
    %v8782 = vld [vmem:[#allocation8 + $0x1d] ss:$0 sm:$0xff]
    %v8799 = vunpack.c.l.b16 %v8765
    %v8800 = vunpack.c.l.b16 %v8766
    %v8801 = vunpack.c.l.b16 %v8767
    %v8802 = vunpack.c.l.b16 %v8768
    %v8803 = vunpack.c.l.b16 %v8769
    %v8804 = vunpack.c.l.b16 %v8770
    %v8805 = vunpack.c.l.b16 %v8771
    %v8806 = vunpack.c.l.b16 %v8772
    %v8807 = vunpack.c.l.b16 %v8773
    %v8808 = vunpack.c.l.b16 %v8774
    %v8809 = vunpack.c.l.b16 %v8775
    %v8810 = vunpack.c.l.b16 %v8776
    %v8811 = vunpack.c.l.b16 %v8777
    %v8812 = vunpack.c.l.b16 %v8778
    %v8813 = vunpack.c.l.b16 %v8779
    %v8814 = vunpack.c.l.b16 %v8780
    %v8815 = vpack.c.b16 %v8800, %v8799
    %v8816 = vpack.c.b16 %v8802, %v8801
    %v8817 = vpack.c.b16 %v8804, %v8803
    %v8818 = vpack.c.b16 %v8806, %v8805
    %v8819 = vpack.c.b16 %v8808, %v8807
    %v8820 = vpack.c.b16 %v8810, %v8809
    %v8821 = vpack.c.b16 %v8812, %v8811
    %v8822 = vpack.c.b16 %v8814, %v8813
    %8831 = vmatprep.subr.bf16.mxu0 0
    %8832 = vmatpush1.bf16.msra.mxu0 %v8815
    %8833 = vmatprep.subr.bf16.mxu0 0
    %8834 = vmatpush1.bf16.msra.mxu0 %v8816
    %8835 = vmatprep.subr.bf16.mxu0 0
    %8836 = vmatpush1.bf16.msra.mxu0 %v8817
    %8837 = vmatprep.subr.bf16.mxu0 0
    %8838 = vmatpush1.bf16.msra.mxu0 %v8818
    %8839 = vmatprep.subr.bf16.mxu0 0
    %8840 = vmatpush1.bf16.msra.mxu0 %v8819
    %8841 = vmatprep.subr.bf16.mxu0 0
    %8842 = vmatpush1.bf16.msra.mxu0 %v8820
    %8843 = vmatprep.subr.bf16.mxu0 0
    %8844 = vmatpush1.bf16.msra.mxu0 %v8821
    %8845 = vmatprep.subr.bf16.mxu0 0
    %8846 = vmatpush1.bf16.msra.mxu0 %v8822
    %8847 = vmatprep.subr.bf16.mxu0 0
    %8848 = vmatpush1.bf16.msra.mxu0 0
    %8849 = vmatprep.subr.bf16.mxu0 0
    %8850 = vmatpush1.bf16.msra.mxu0 0
    %8851 = vmatprep.subr.bf16.mxu0 0
    %8852 = vmatpush1.bf16.msra.mxu0 0
    %8853 = vmatprep.subr.bf16.mxu0 0
    %8854 = vmatpush1.bf16.msra.mxu0 0
    %8855 = vmatprep.subr.bf16.mxu0 0
    %8856 = vmatpush1.bf16.msra.mxu0 0
    %8857 = vmatprep.subr.bf16.mxu0 0
    %8858 = vmatpush1.bf16.msra.mxu0 0
    %8859 = vmatprep.subr.bf16.mxu0 0
    %8860 = vmatpush1.bf16.msra.mxu0 0
    %8861 = vmatprep.subr.bf16.mxu0 0
    %8862 = vmatpush1.bf16.msra.mxu0 0
    %8863 = vmatprep.mubr.bf16.mxu0 0
    %8864 = vmatmul.mubr.bf16.gmra.mrb[0].mxu0 %v8781
    %v8865 = vpop.f32.mrb[0].mxu0
    %v8866 = vadd.f32 %v8782, %v8865
    %v8867 = vpop.f32.mrb[0].mxu0
    %v8868 = vpop.f32.mrb[0].mxu0
    %v8869 = vpop.f32.mrb[0].mxu0
    %8870 = vdwg.mxu0
    %v8871 = vmax.f32 %v8866, 0.0
    %v8872 = vld [vmem:[#allocation2 + $0x48] sm:$0xff]
    %v8873 = vld [vmem:[#allocation2 + $0xb0] sm:$0xff]
    %v8874 = vld [vmem:[#allocation2 + $0x118] sm:$0xff]
    %v8875 = vld [vmem:[#allocation2 + $0x180] sm:$0xff]
    %v8876 = vld [vmem:[#allocation2 + $0x1e8] sm:$0xff]
    %v8877 = vld [vmem:[#allocation2 + $0x250] sm:$0xff]
    %v8878 = vld [vmem:[#allocation2 + $0x2b8] sm:$0xff]
    %v8879 = vld [vmem:[#allocation2 + $0x320] sm:$0xff]
    %v8880 = vld [vmem:[#allocation2 + $0x388] sm:$0xff]
    %v8881 = vld [vmem:[#allocation2 + $0x3f0] sm:$0xff]
    %v8882 = vld [vmem:[#allocation2 + $0x458] sm:$0xff]
    %v8883 = vld [vmem:[#allocation2 + $0x4c0] sm:$0xff]
    %v8884 = vld [vmem:[#allocation2 + $0x528] sm:$0xff]
    %v8885 = vld [vmem:[#allocation2 + $0x590] sm:$0xff]
    %v8886 = vld [vmem:[#allocation2 + $0x5f8] sm:$0xff]
    %v8887 = vld [vmem:[#allocation2 + $0x660] sm:$0xff]
    %v8888 = vpack.c.bf16 %v8871, %v8871
    %v8889 = vld [vmem:[%s3821] ss:$8 sm:$0x3]
    %v8891 = vlaneseq
    %v8892 = vshrl.u32 %v8891, 7
    %v8893 = vsub.s32 0, %v8892
    %v8894 = vrot.slane %v8889, %v8893
    %v8895 = vlaneseq
    %v8896 = vshrl.u32 %v8895, 7
    %v8897 = vsub.s32 1, %v8896
    %v8898 = vrot.slane %v8889, %v8897
    %v8917 = vunpack.c.l.b16 %v8872
    %v8918 = vunpack.c.h.b16 %v8872
    %v8919 = vunpack.c.l.b16 %v8873
    %v8920 = vunpack.c.h.b16 %v8873
    %v8921 = vunpack.c.l.b16 %v8874
    %v8922 = vunpack.c.h.b16 %v8874
    %v8923 = vunpack.c.l.b16 %v8875
    %v8924 = vunpack.c.h.b16 %v8875
    %v8925 = vunpack.c.l.b16 %v8876
    %v8926 = vunpack.c.h.b16 %v8876
    %v8927 = vunpack.c.l.b16 %v8877
    %v8928 = vunpack.c.h.b16 %v8877
    %v8929 = vunpack.c.l.b16 %v8878
    %v8930 = vunpack.c.h.b16 %v8878
    %v8931 = vunpack.c.l.b16 %v8879
    %v8932 = vunpack.c.h.b16 %v8879
    %v8933 = vunpack.c.l.b16 %v8880
    %v8934 = vunpack.c.h.b16 %v8880
    %v8935 = vunpack.c.l.b16 %v8881
    %v8936 = vunpack.c.h.b16 %v8881
    %v8937 = vunpack.c.l.b16 %v8882
    %v8938 = vunpack.c.h.b16 %v8882
    %v8939 = vunpack.c.l.b16 %v8883
    %v8940 = vunpack.c.h.b16 %v8883
    %v8941 = vunpack.c.l.b16 %v8884
    %v8942 = vunpack.c.h.b16 %v8884
    %v8943 = vunpack.c.l.b16 %v8885
    %v8944 = vunpack.c.h.b16 %v8885
    %v8945 = vunpack.c.l.b16 %v8886
    %v8946 = vunpack.c.h.b16 %v8886
    %v8947 = vunpack.c.l.b16 %v8887
    %v8948 = vunpack.c.h.b16 %v8887
    %v8949 = vpack.c.b16 %v8919, %v8917
    %v8950 = vpack.c.b16 %v8920, %v8918
    %v8951 = vpack.c.b16 %v8923, %v8921
    %v8952 = vpack.c.b16 %v8924, %v8922
    %v8953 = vpack.c.b16 %v8927, %v8925
    %v8954 = vpack.c.b16 %v8928, %v8926
    %v8955 = vpack.c.b16 %v8931, %v8929
    %v8956 = vpack.c.b16 %v8932, %v8930
    %v8957 = vpack.c.b16 %v8935, %v8933
    %v8958 = vpack.c.b16 %v8936, %v8934
    %v8959 = vpack.c.b16 %v8939, %v8937
    %v8960 = vpack.c.b16 %v8940, %v8938
    %v8961 = vpack.c.b16 %v8943, %v8941
    %v8962 = vpack.c.b16 %v8944, %v8942
    %v8963 = vpack.c.b16 %v8947, %v8945
    %v8964 = vpack.c.b16 %v8948, %v8946
    %8981 = vmatprep.subr.bf16.mxu0 %v8950
    %8982 = vmatpush1.bf16.msra.mxu0 %v8949
    %8983 = vmatprep.subr.bf16.mxu0 %v8952
    %8984 = vmatpush1.bf16.msra.mxu0 %v8951
    %8985 = vmatprep.subr.bf16.mxu0 %v8954
    %8986 = vmatpush1.bf16.msra.mxu0 %v8953
    %8987 = vmatprep.subr.bf16.mxu0 %v8956
    %8988 = vmatpush1.bf16.msra.mxu0 %v8955
    %8989 = vmatprep.subr.bf16.mxu0 %v8958
    %8990 = vmatpush1.bf16.msra.mxu0 %v8957
    %8991 = vmatprep.subr.bf16.mxu0 %v8960
    %8992 = vmatpush1.bf16.msra.mxu0 %v8959
    %8993 = vmatprep.subr.bf16.mxu0 %v8962
    %8994 = vmatpush1.bf16.msra.mxu0 %v8961
    %8995 = vmatprep.subr.bf16.mxu0 %v8964
    %8996 = vmatpush1.bf16.msra.mxu0 %v8963
    %8997 = vmatprep.subr.bf16.mxu0 0
    %8998 = vmatpush1.bf16.msra.mxu0 0
    %8999 = vmatprep.subr.bf16.mxu0 0
    %9000 = vmatpush1.bf16.msra.mxu0 0
    %9001 = vmatprep.subr.bf16.mxu0 0
    %9002 = vmatpush1.bf16.msra.mxu0 0
    %9003 = vmatprep.subr.bf16.mxu0 0
    %9004 = vmatpush1.bf16.msra.mxu0 0
    %9005 = vmatprep.subr.bf16.mxu0 0
    %9006 = vmatpush1.bf16.msra.mxu0 0
    %9007 = vmatprep.subr.bf16.mxu0 0
    %9008 = vmatpush1.bf16.msra.mxu0 0
    %9009 = vmatprep.subr.bf16.mxu0 0
    %9010 = vmatpush1.bf16.msra.mxu0 0
    %9011 = vmatprep.subr.bf16.mxu0 0
    %9012 = vmatpush1.bf16.msra.mxu0 0
    %9013 = vmatprep.mubr.bf16.mxu0 0
    %9014 = vmatmul.mubr.bf16.gmra.mrb[0].mxu0 %v8888
    %v9015 = vpop.f32.mrb[0].mxu0
    %v9016 = vadd.f32 %v8894, %v9015
    %v9017 = vpop.f32.mrb[0].mxu0
    %v9018 = vadd.f32 %v8898, %v9017
    %v9019 = vpop.f32.mrb[0].mxu0
    %v9020 = vpop.f32.mrb[0].mxu0
    %9021 = vdwg.mxu0
    %v9022 = vmax.f32 %v9016, 0.0
    %v9023 = vmax.f32 %v9018, 0.0
    %v9024 = vld [vmem:[#allocation5 + $0x1c] sm:$0xf]
    %v9025 = vld [vmem:[#allocation5 + $0x48] sm:$0xf]
    %v9026 = vld [vmem:[#allocation5 + $0x74] sm:$0xf]
    %v9027 = vld [vmem:[#allocation5 + $0xa0] sm:$0xf]
    %v9028 = vld [vmem:[#allocation5 + $0xcc] sm:$0xf]
    %v9029 = vld [vmem:[#allocation5 + $0xf8] sm:$0xf]
    %v9030 = vld [vmem:[#allocation5 + $0x124] sm:$0xf]
    %v9031 = vld [vmem:[#allocation5 + $0x150] sm:$0xf]
    %v9032 = vld [vmem:[#allocation5 + $0x17c] sm:$0xf]
    %v9033 = vld [vmem:[#allocation5 + $0x1a8] sm:$0xf]
    %v9034 = vld [vmem:[#allocation5 + $0x1d4] sm:$0xf]
    %v9035 = vld [vmem:[#allocation5 + $0x200] sm:$0xf]
    %v9036 = vld [vmem:[#allocation5 + $0x22c] sm:$0xf]
    %v9037 = vld [vmem:[#allocation5 + $0x258] sm:$0xf]
    %v9038 = vld [vmem:[#allocation5 + $0x284] sm:$0xf]
    %v9039 = vld [vmem:[#allocation5 + $0x2b0] sm:$0xf]
    %v9040 = vld [vmem:[#allocation5 + $0x2dc] sm:$0xf]
    %v9041 = vld [vmem:[#allocation5 + $0x308] sm:$0xf]
    %v9042 = vld [vmem:[#allocation5 + $0x334] sm:$0xf]
    %v9043 = vld [vmem:[#allocation5 + $0x360] sm:$0xf]
    %v9044 = vld [vmem:[#allocation5 + $0x38c] sm:$0xf]
    %v9045 = vld [vmem:[#allocation5 + $0x3b8] sm:$0xf]
    %v9046 = vld [vmem:[#allocation5 + $0x3e4] sm:$0xf]
    %v9047 = vld [vmem:[#allocation5 + $0x410] sm:$0xf]
    %v9048 = vld [vmem:[#allocation5 + $0x43c] sm:$0xf]
    %v9049 = vld [vmem:[#allocation5 + $0x468] sm:$0xf]
    %v9050 = vld [vmem:[#allocation5 + $0x494] sm:$0xf]
    %v9051 = vld [vmem:[#allocation5 + $0x4c0] sm:$0xf]
    %v9052 = vld [vmem:[#allocation5 + $0x4ec] sm:$0xf]
    %v9053 = vld [vmem:[#allocation5 + $0x518] sm:$0xf]
    %v9054 = vld [vmem:[#allocation5 + $0x544] sm:$0xf]
    %v9055 = vld [vmem:[#allocation5 + $0x570] sm:$0xf]
    %v9056 = vpack.c.bf16 %v9022, %v9022
    %v9057 = vpack.c.bf16 %v9023, %v9023
    %v9058 = vld [vmem:[#allocation8 + $0x1f] ss:$0 sm:$0xff]
    %v9091 = vunpack.c.l.b16 %v9024
    %v9092 = vunpack.c.l.b16 %v9025
    %v9093 = vunpack.c.l.b16 %v9026
    %v9094 = vunpack.c.l.b16 %v9027
    %v9095 = vunpack.c.l.b16 %v9028
    %v9096 = vunpack.c.l.b16 %v9029
    %v9097 = vunpack.c.l.b16 %v9030
    %v9098 = vunpack.c.l.b16 %v9031
    %v9099 = vunpack.c.l.b16 %v9032
    %v9100 = vunpack.c.l.b16 %v9033
    %v9101 = vunpack.c.l.b16 %v9034
    %v9102 = vunpack.c.l.b16 %v9035
    %v9103 = vunpack.c.l.b16 %v9036
    %v9104 = vunpack.c.l.b16 %v9037
    %v9105 = vunpack.c.l.b16 %v9038
    %v9106 = vunpack.c.l.b16 %v9039
    %v9107 = vunpack.c.l.b16 %v9040
    %v9108 = vunpack.c.l.b16 %v9041
    %v9109 = vunpack.c.l.b16 %v9042
    %v9110 = vunpack.c.l.b16 %v9043
    %v9111 = vunpack.c.l.b16 %v9044
    %v9112 = vunpack.c.l.b16 %v9045
    %v9113 = vunpack.c.l.b16 %v9046
    %v9114 = vunpack.c.l.b16 %v9047
    %v9115 = vunpack.c.l.b16 %v9048
    %v9116 = vunpack.c.l.b16 %v9049
    %v9117 = vunpack.c.l.b16 %v9050
    %v9118 = vunpack.c.l.b16 %v9051
    %v9119 = vunpack.c.l.b16 %v9052
    %v9120 = vunpack.c.l.b16 %v9053
    %v9121 = vunpack.c.l.b16 %v9054
    %v9122 = vunpack.c.l.b16 %v9055
    %v9123 = vpack.c.b16 %v9092, %v9091
    %v9124 = vpack.c.b16 %v9094, %v9093
    %v9125 = vpack.c.b16 %v9096, %v9095
    %v9126 = vpack.c.b16 %v9098, %v9097
    %v9127 = vpack.c.b16 %v9100, %v9099
    %v9128 = vpack.c.b16 %v9102, %v9101
    %v9129 = vpack.c.b16 %v9104, %v9103
    %v9130 = vpack.c.b16 %v9106, %v9105
    %v9131 = vpack.c.b16 %v9108, %v9107
    %v9132 = vpack.c.b16 %v9110, %v9109
    %v9133 = vpack.c.b16 %v9112, %v9111
    %v9134 = vpack.c.b16 %v9114, %v9113
    %v9135 = vpack.c.b16 %v9116, %v9115
    %v9136 = vpack.c.b16 %v9118, %v9117
    %v9137 = vpack.c.b16 %v9120, %v9119
    %v9138 = vpack.c.b16 %v9122, %v9121
    %9155 = vmatprep.subr.bf16.mxu0 0
    %9156 = vmatpush1.bf16.msra.mxu0 %v9123
    %9157 = vmatprep.subr.bf16.mxu0 0
    %9158 = vmatpush1.bf16.msra.mxu0 %v9124
    %9159 = vmatprep.subr.bf16.mxu0 0
    %9160 = vmatpush1.bf16.msra.mxu0 %v9125
    %9161 = vmatprep.subr.bf16.mxu0 0
    %9162 = vmatpush1.bf16.msra.mxu0 %v9126
    %9163 = vmatprep.subr.bf16.mxu0 0
    %9164 = vmatpush1.bf16.msra.mxu0 %v9127
    %9165 = vmatprep.subr.bf16.mxu0 0
    %9166 = vmatpush1.bf16.msra.mxu0 %v9128
    %9167 = vmatprep.subr.bf16.mxu0 0
    %9168 = vmatpush1.bf16.msra.mxu0 %v9129
    %9169 = vmatprep.subr.bf16.mxu0 0
    %9170 = vmatpush1.bf16.msra.mxu0 %v9130
    %9171 = vmatprep.subr.bf16.mxu0 0
    %9172 = vmatpush1.bf16.msra.mxu0 %v9131
    %9173 = vmatprep.subr.bf16.mxu0 0
    %9174 = vmatpush1.bf16.msra.mxu0 %v9132
    %9175 = vmatprep.subr.bf16.mxu0 0
    %9176 = vmatpush1.bf16.msra.mxu0 %v9133
    %9177 = vmatprep.subr.bf16.mxu0 0
    %9178 = vmatpush1.bf16.msra.mxu0 %v9134
    %9179 = vmatprep.subr.bf16.mxu0 0
    %9180 = vmatpush1.bf16.msra.mxu0 %v9135
    %9181 = vmatprep.subr.bf16.mxu0 0
    %9182 = vmatpush1.bf16.msra.mxu0 %v9136
    %9183 = vmatprep.subr.bf16.mxu0 0
    %9184 = vmatpush1.bf16.msra.mxu0 %v9137
    %9185 = vmatprep.subr.bf16.mxu0 0
    %9186 = vmatpush1.bf16.msra.mxu0 %v9138
    %9187 = vmatprep.mubr.bf16.mxu0 %v9057
    %9188 = vmatmul.mubr.bf16.gmra.mrb[0].mxu0 %v9056
    %v9189 = vpop.f32.mrb[0].mxu0
    %v9190 = vadd.f32 %v9058, %v9189
    %v9191 = vpop.f32.mrb[0].mxu0
    %v9192 = vpop.f32.mrb[0].mxu0
    %v9193 = vpop.f32.mrb[0].mxu0
    %9194 = vdwg.mxu0
    %v9195 = vmax.f32 %v9190, 0.0
    %v9196 = vld [vmem:[#allocation2 + $0x50] sm:$0xf]
    %v9197 = vld [vmem:[#allocation2 + $0xb8] sm:$0xf]
    %v9198 = vld [vmem:[#allocation2 + $0x120] sm:$0xf]
    %v9199 = vld [vmem:[#allocation2 + $0x188] sm:$0xf]
    %v9200 = vld [vmem:[#allocation2 + $0x1f0] sm:$0xf]
    %v9201 = vld [vmem:[#allocation2 + $0x258] sm:$0xf]
    %v9202 = vld [vmem:[#allocation2 + $0x2c0] sm:$0xf]
    %v9203 = vld [vmem:[#allocation2 + $0x328] sm:$0xf]
    %v9204 = vld [vmem:[#allocation2 + $0x390] sm:$0xf]
    %v9205 = vld [vmem:[#allocation2 + $0x3f8] sm:$0xf]
    %v9206 = vld [vmem:[#allocation2 + $0x460] sm:$0xf]
    %v9207 = vld [vmem:[#allocation2 + $0x4c8] sm:$0xf]
    %v9208 = vld [vmem:[#allocation2 + $0x530] sm:$0xf]
    %v9209 = vld [vmem:[#allocation2 + $0x598] sm:$0xf]
    %v9210 = vld [vmem:[#allocation2 + $0x600] sm:$0xf]
    %v9211 = vld [vmem:[#allocation2 + $0x668] sm:$0xf]
    %v9212 = vpack.c.bf16 %v9195, %v9195
    %v9213 = vld [vmem:[#allocation8 + $0x30] ss:$0 sm:$0xff]
    %v9230 = vunpack.c.l.b16 %v9196
    %v9231 = vunpack.c.l.b16 %v9197
    %v9232 = vunpack.c.l.b16 %v9198
    %v9233 = vunpack.c.l.b16 %v9199
    %v9234 = vunpack.c.l.b16 %v9200
    %v9235 = vunpack.c.l.b16 %v9201
    %v9236 = vunpack.c.l.b16 %v9202
    %v9237 = vunpack.c.l.b16 %v9203
    %v9238 = vunpack.c.l.b16 %v9204
    %v9239 = vunpack.c.l.b16 %v9205
    %v9240 = vunpack.c.l.b16 %v9206
    %v9241 = vunpack.c.l.b16 %v9207
    %v9242 = vunpack.c.l.b16 %v9208
    %v9243 = vunpack.c.l.b16 %v9209
    %v9244 = vunpack.c.l.b16 %v9210
    %v9245 = vunpack.c.l.b16 %v9211
    %v9246 = vpack.c.b16 %v9231, %v9230
    %v9247 = vpack.c.b16 %v9233, %v9232
    %v9248 = vpack.c.b16 %v9235, %v9234
    %v9249 = vpack.c.b16 %v9237, %v9236
    %v9250 = vpack.c.b16 %v9239, %v9238
    %v9251 = vpack.c.b16 %v9241, %v9240
    %v9252 = vpack.c.b16 %v9243, %v9242
    %v9253 = vpack.c.b16 %v9245, %v9244
    %9262 = vmatprep.subr.bf16.mxu0 0
    %9263 = vmatpush1.bf16.msra.mxu0 %v9246
    %9264 = vmatprep.subr.bf16.mxu0 0
    %9265 = vmatpush1.bf16.msra.mxu0 %v9247
    %9266 = vmatprep.subr.bf16.mxu0 0
    %9267 = vmatpush1.bf16.msra.mxu0 %v9248
    %9268 = vmatprep.subr.bf16.mxu0 0
    %9269 = vmatpush1.bf16.msra.mxu0 %v9249
    %9270 = vmatprep.subr.bf16.mxu0 0
    %9271 = vmatpush1.bf16.msra.mxu0 %v9250
    %9272 = vmatprep.subr.bf16.mxu0 0
    %9273 = vmatpush1.bf16.msra.mxu0 %v9251
    %9274 = vmatprep.subr.bf16.mxu0 0
    %9275 = vmatpush1.bf16.msra.mxu0 %v9252
    %9276 = vmatprep.subr.bf16.mxu0 0
    %9277 = vmatpush1.bf16.msra.mxu0 %v9253
    %9278 = vmatprep.subr.bf16.mxu0 0
    %9279 = vmatpush1.bf16.msra.mxu0 0
    %9280 = vmatprep.subr.bf16.mxu0 0
    %9281 = vmatpush1.bf16.msra.mxu0 0
    %9282 = vmatprep.subr.bf16.mxu0 0
    %9283 = vmatpush1.bf16.msra.mxu0 0
    %9284 = vmatprep.subr.bf16.mxu0 0
    %9285 = vmatpush1.bf16.msra.mxu0 0
    %9286 = vmatprep.subr.bf16.mxu0 0
    %9287 = vmatpush1.bf16.msra.mxu0 0
    %9288 = vmatprep.subr.bf16.mxu0 0
    %9289 = vmatpush1.bf16.msra.mxu0 0
    %9290 = vmatprep.subr.bf16.mxu0 0
    %9291 = vmatpush1.bf16.msra.mxu0 0
    %9292 = vmatprep.subr.bf16.mxu0 0
    %9293 = vmatpush1.bf16.msra.mxu0 0
    %9294 = vmatprep.mubr.bf16.mxu0 0
    %9295 = vmatmul.mubr.bf16.gmra.mrb[0].mxu0 %v9212
    %v9296 = vpop.f32.mrb[0].mxu0
    %v9297 = vadd.f32 %v9213, %v9296
    %v9298 = vpop.f32.mrb[0].mxu0
    %v9299 = vpop.f32.mrb[0].mxu0
    %v9300 = vpop.f32.mrb[0].mxu0
    %9301 = vdwg.mxu0
    %v9302 = vld [vmem:[#allocation2 + $0x54] sm:$0xf]
    %v9303 = vld [vmem:[#allocation2 + $0xbc] sm:$0xf]
    %v9304 = vld [vmem:[#allocation2 + $0x124] sm:$0xf]
    %v9305 = vld [vmem:[#allocation2 + $0x18c] sm:$0xf]
    %v9306 = vld [vmem:[#allocation2 + $0x1f4] sm:$0xf]
    %v9307 = vld [vmem:[#allocation2 + $0x25c] sm:$0xf]
    %v9308 = vld [vmem:[#allocation2 + $0x2c4] sm:$0xf]
    %v9309 = vld [vmem:[#allocation2 + $0x32c] sm:$0xf]
    %v9310 = vld [vmem:[#allocation2 + $0x394] sm:$0xf]
    %v9311 = vld [vmem:[#allocation2 + $0x3fc] sm:$0xf]
    %v9312 = vld [vmem:[#allocation2 + $0x464] sm:$0xf]
    %v9313 = vld [vmem:[#allocation2 + $0x4cc] sm:$0xf]
    %v9314 = vld [vmem:[#allocation2 + $0x534] sm:$0xf]
    %v9315 = vld [vmem:[#allocation2 + $0x59c] sm:$0xf]
    %v9316 = vld [vmem:[#allocation2 + $0x604] sm:$0xf]
    %v9317 = vld [vmem:[#allocation2 + $0x66c] sm:$0xf]
    %v9318 = vpack.c.bf16 %v9297, %v9297
    %v9335 = vunpack.c.l.b16 %v9302
    %v9336 = vunpack.c.l.b16 %v9303
    %v9337 = vunpack.c.l.b16 %v9304
    %v9338 = vunpack.c.l.b16 %v9305
    %v9339 = vunpack.c.l.b16 %v9306
    %v9340 = vunpack.c.l.b16 %v9307
    %v9341 = vunpack.c.l.b16 %v9308
    %v9342 = vunpack.c.l.b16 %v9309
    %v9343 = vunpack.c.l.b16 %v9310
    %v9344 = vunpack.c.l.b16 %v9311
    %v9345 = vunpack.c.l.b16 %v9312
    %v9346 = vunpack.c.l.b16 %v9313
    %v9347 = vunpack.c.l.b16 %v9314
    %v9348 = vunpack.c.l.b16 %v9315
    %v9349 = vunpack.c.l.b16 %v9316
    %v9350 = vunpack.c.l.b16 %v9317
    %v9351 = vpack.c.b16 %v9336, %v9335
    %v9352 = vpack.c.b16 %v9338, %v9337
    %v9353 = vpack.c.b16 %v9340, %v9339
    %v9354 = vpack.c.b16 %v9342, %v9341
    %v9355 = vpack.c.b16 %v9344, %v9343
    %v9356 = vpack.c.b16 %v9346, %v9345
    %v9357 = vpack.c.b16 %v9348, %v9347
    %v9358 = vpack.c.b16 %v9350, %v9349
    %9367 = vmatprep.subr.bf16.mxu0 0
    %9368 = vmatpush1.bf16.msra.mxu0 %v9351
    %9369 = vmatprep.subr.bf16.mxu0 0
    %9370 = vmatpush1.bf16.msra.mxu0 %v9352
    %9371 = vmatprep.subr.bf16.mxu0 0
    %9372 = vmatpush1.bf16.msra.mxu0 %v9353
    %9373 = vmatprep.subr.bf16.mxu0 0
    %9374 = vmatpush1.bf16.msra.mxu0 %v9354
    %9375 = vmatprep.subr.bf16.mxu0 0
    %9376 = vmatpush1.bf16.msra.mxu0 %v9355
    %9377 = vmatprep.subr.bf16.mxu0 0
    %9378 = vmatpush1.bf16.msra.mxu0 %v9356
    %9379 = vmatprep.subr.bf16.mxu0 0
    %9380 = vmatpush1.bf16.msra.mxu0 %v9357
    %9381 = vmatprep.subr.bf16.mxu0 0
    %9382 = vmatpush1.bf16.msra.mxu0 %v9358
    %9383 = vmatprep.subr.bf16.mxu0 0
    %9384 = vmatpush1.bf16.msra.mxu0 0
    %9385 = vmatprep.subr.bf16.mxu0 0
    %9386 = vmatpush1.bf16.msra.mxu0 0
    %9387 = vmatprep.subr.bf16.mxu0 0
    %9388 = vmatpush1.bf16.msra.mxu0 0
    %9389 = vmatprep.subr.bf16.mxu0 0
    %9390 = vmatpush1.bf16.msra.mxu0 0
    %9391 = vmatprep.subr.bf16.mxu0 0
    %9392 = vmatpush1.bf16.msra.mxu0 0
    %9393 = vmatprep.subr.bf16.mxu0 0
    %9394 = vmatpush1.bf16.msra.mxu0 0
    %9395 = vmatprep.subr.bf16.mxu0 0
    %9396 = vmatpush1.bf16.msra.mxu0 0
    %9397 = vmatprep.subr.bf16.mxu0 0
    %9398 = vmatpush1.bf16.msra.mxu0 0
    %9399 = vmatprep.mubr.bf16.mxu0 0
    %9400 = vmatmul.mubr.bf16.gmra.mrb[0].mxu0 %v9318
    %v9401 = vpop.f32.mrb[0].mxu0
    %v9402 = vadd.f32 0.0, %v9401
    %v9403 = vpop.f32.mrb[0].mxu0
    %v9404 = vpop.f32.mrb[0].mxu0
    %v9405 = vpop.f32.mrb[0].mxu0
    %9406 = vdwg.mxu0
    %v9407 = vmax.f32 %v9402, 0.0
    %v9408 = vld [vmem:[#allocation2 + $0x58] sm:$0xf]
    %v9409 = vld [vmem:[#allocation2 + $0xc0] sm:$0xf]
    %v9410 = vld [vmem:[#allocation2 + $0x128] sm:$0xf]
    %v9411 = vld [vmem:[#allocation2 + $0x190] sm:$0xf]
    %v9412 = vld [vmem:[#allocation2 + $0x1f8] sm:$0xf]
    %v9413 = vld [vmem:[#allocation2 + $0x260] sm:$0xf]
    %v9414 = vld [vmem:[#allocation2 + $0x2c8] sm:$0xf]
    %v9415 = vld [vmem:[#allocation2 + $0x330] sm:$0xf]
    %v9416 = vld [vmem:[#allocation2 + $0x398] sm:$0xf]
    %v9417 = vld [vmem:[#allocation2 + $0x400] sm:$0xf]
    %v9418 = vld [vmem:[#allocation2 + $0x468] sm:$0xf]
    %v9419 = vld [vmem:[#allocation2 + $0x4d0] sm:$0xf]
    %v9420 = vld [vmem:[#allocation2 + $0x538] sm:$0xf]
    %v9421 = vld [vmem:[#allocation2 + $0x5a0] sm:$0xf]
    %v9422 = vld [vmem:[#allocation2 + $0x608] sm:$0xf]
    %v9423 = vld [vmem:[#allocation2 + $0x670] sm:$0xf]
    %v9424 = vpack.c.bf16 %v9407, %v9407
    %v9441 = vunpack.c.l.b16 %v9408
    %v9442 = vunpack.c.l.b16 %v9409
    %v9443 = vunpack.c.l.b16 %v9410
    %v9444 = vunpack.c.l.b16 %v9411
    %v9445 = vunpack.c.l.b16 %v9412
    %v9446 = vunpack.c.l.b16 %v9413
    %v9447 = vunpack.c.l.b16 %v9414
    %v9448 = vunpack.c.l.b16 %v9415
    %v9449 = vunpack.c.l.b16 %v9416
    %v9450 = vunpack.c.l.b16 %v9417
    %v9451 = vunpack.c.l.b16 %v9418
    %v9452 = vunpack.c.l.b16 %v9419
    %v9453 = vunpack.c.l.b16 %v9420
    %v9454 = vunpack.c.l.b16 %v9421
    %v9455 = vunpack.c.l.b16 %v9422
    %v9456 = vunpack.c.l.b16 %v9423
    %v9457 = vpack.c.b16 %v9442, %v9441
    %v9458 = vpack.c.b16 %v9444, %v9443
    %v9459 = vpack.c.b16 %v9446, %v9445
    %v9460 = vpack.c.b16 %v9448, %v9447
    %v9461 = vpack.c.b16 %v9450, %v9449
    %v9462 = vpack.c.b16 %v9452, %v9451
    %v9463 = vpack.c.b16 %v9454, %v9453
    %v9464 = vpack.c.b16 %v9456, %v9455
    %9473 = vmatprep.subr.bf16.mxu0 0
    %9474 = vmatpush1.bf16.msra.mxu0 %v9457
    %9475 = vmatprep.subr.bf16.mxu0 0
    %9476 = vmatpush1.bf16.msra.mxu0 %v9458
    %9477 = vmatprep.subr.bf16.mxu0 0
    %9478 = vmatpush1.bf16.msra.mxu0 %v9459
    %9479 = vmatprep.subr.bf16.mxu0 0
    %9480 = vmatpush1.bf16.msra.mxu0 %v9460
    %9481 = vmatprep.subr.bf16.mxu0 0
    %9482 = vmatpush1.bf16.msra.mxu0 %v9461
    %9483 = vmatprep.subr.bf16.mxu0 0
    %9484 = vmatpush1.bf16.msra.mxu0 %v9462
    %9485 = vmatprep.subr.bf16.mxu0 0
    %9486 = vmatpush1.bf16.msra.mxu0 %v9463
    %9487 = vmatprep.subr.bf16.mxu0 0
    %9488 = vmatpush1.bf16.msra.mxu0 %v9464
    %9489 = vmatprep.subr.bf16.mxu0 0
    %9490 = vmatpush1.bf16.msra.mxu0 0
    %9491 = vmatprep.subr.bf16.mxu0 0
    %9492 = vmatpush1.bf16.msra.mxu0 0
    %9493 = vmatprep.subr.bf16.mxu0 0
    %9494 = vmatpush1.bf16.msra.mxu0 0
    %9495 = vmatprep.subr.bf16.mxu0 0
    %9496 = vmatpush1.bf16.msra.mxu0 0
    %9497 = vmatprep.subr.bf16.mxu0 0
    %9498 = vmatpush1.bf16.msra.mxu0 0
    %9499 = vmatprep.subr.bf16.mxu0 0
    %9500 = vmatpush1.bf16.msra.mxu0 0
    %9501 = vmatprep.subr.bf16.mxu0 0
    %9502 = vmatpush1.bf16.msra.mxu0 0
    %9503 = vmatprep.subr.bf16.mxu0 0
    %9504 = vmatpush1.bf16.msra.mxu0 0
    %9505 = vmatprep.mubr.bf16.mxu0 0
    %9506 = vmatmul.mubr.bf16.gmra.mrb[0].mxu0 %v9424
    %v9507 = vpop.f32.mrb[0].mxu0
    %v9508 = vadd.f32 0.0, %v9507
    %v9509 = vpop.f32.mrb[0].mxu0
    %v9510 = vpop.f32.mrb[0].mxu0
    %v9511 = vpop.f32.mrb[0].mxu0
    %9512 = vdwg.mxu0
    %v9513 = vxor.u32 %v9508, 2147483648
    %v9514 = vmul.f32 %v9513, 1.442695
    %v9515 = vpow.pop %v9514
    %v9516 = vadd.f32 %v9515, 1.0
    %v9517 = vrcp.pop %v9516
    %v9518 = vmul.f32 1.0, %v9517
    %v9519 = vmul.f32 %v9297, %v9518
    %v9520 = vadd.f32 %v9519, %v8763
    %v9521 = vmax.f32 %v9520, 0.0
    %v9522 = vld [vmem:[#allocation2 + $0x5c] sm:$0xf]
    %v9523 = vld [vmem:[#allocation2 + $0xc4] sm:$0xf]
    %v9524 = vld [vmem:[#allocation2 + $0x12c] sm:$0xf]
    %v9525 = vld [vmem:[#allocation2 + $0x194] sm:$0xf]
    %v9526 = vld [vmem:[#allocation2 + $0x1fc] sm:$0xf]
    %v9527 = vld [vmem:[#allocation2 + $0x264] sm:$0xf]
    %v9528 = vld [vmem:[#allocation2 + $0x2cc] sm:$0xf]
    %v9529 = vld [vmem:[#allocation2 + $0x334] sm:$0xf]
    %v9530 = vld [vmem:[#allocation2 + $0x39c] sm:$0xf]
    %v9531 = vld [vmem:[#allocation2 + $0x404] sm:$0xf]
    %v9532 = vld [vmem:[#allocation2 + $0x46c] sm:$0xf]
    %v9533 = vld [vmem:[#allocation2 + $0x4d4] sm:$0xf]
    %v9534 = vld [vmem:[#allocation2 + $0x53c] sm:$0xf]
    %v9535 = vld [vmem:[#allocation2 + $0x5a4] sm:$0xf]
    %v9536 = vld [vmem:[#allocation2 + $0x60c] sm:$0xf]
    %v9537 = vld [vmem:[#allocation2 + $0x674] sm:$0xf]
    %v9538 = vpack.c.bf16 %v9521, %v9521
    %v9539 = vld [vmem:[#allocation8 + $0x31] ss:$0 sm:$0xff]
    %v9556 = vunpack.c.l.b16 %v9522
    %v9557 = vunpack.c.l.b16 %v9523
    %v9558 = vunpack.c.l.b16 %v9524
    %v9559 = vunpack.c.l.b16 %v9525
    %v9560 = vunpack.c.l.b16 %v9526
    %v9561 = vunpack.c.l.b16 %v9527
    %v9562 = vunpack.c.l.b16 %v9528
    %v9563 = vunpack.c.l.b16 %v9529
    %v9564 = vunpack.c.l.b16 %v9530
    %v9565 = vunpack.c.l.b16 %v9531
    %v9566 = vunpack.c.l.b16 %v9532
    %v9567 = vunpack.c.l.b16 %v9533
    %v9568 = vunpack.c.l.b16 %v9534
    %v9569 = vunpack.c.l.b16 %v9535
    %v9570 = vunpack.c.l.b16 %v9536
    %v9571 = vunpack.c.l.b16 %v9537
    %v9572 = vpack.c.b16 %v9557, %v9556
    %v9573 = vpack.c.b16 %v9559, %v9558
    %v9574 = vpack.c.b16 %v9561, %v9560
    %v9575 = vpack.c.b16 %v9563, %v9562
    %v9576 = vpack.c.b16 %v9565, %v9564
    %v9577 = vpack.c.b16 %v9567, %v9566
    %v9578 = vpack.c.b16 %v9569, %v9568
    %v9579 = vpack.c.b16 %v9571, %v9570
    %9588 = vmatprep.subr.bf16.mxu0 0
    %9589 = vmatpush1.bf16.msra.mxu0 %v9572
    %9590 = vmatprep.subr.bf16.mxu0 0
    %9591 = vmatpush1.bf16.msra.mxu0 %v9573
    %9592 = vmatprep.subr.bf16.mxu0 0
    %9593 = vmatpush1.bf16.msra.mxu0 %v9574
    %9594 = vmatprep.subr.bf16.mxu0 0
    %9595 = vmatpush1.bf16.msra.mxu0 %v9575
    %9596 = vmatprep.subr.bf16.mxu0 0
    %9597 = vmatpush1.bf16.msra.mxu0 %v9576
    %9598 = vmatprep.subr.bf16.mxu0 0
    %9599 = vmatpush1.bf16.msra.mxu0 %v9577
    %9600 = vmatprep.subr.bf16.mxu0 0
    %9601 = vmatpush1.bf16.msra.mxu0 %v9578
    %9602 = vmatprep.subr.bf16.mxu0 0
    %9603 = vmatpush1.bf16.msra.mxu0 %v9579
    %9604 = vmatprep.subr.bf16.mxu0 0
    %9605 = vmatpush1.bf16.msra.mxu0 0
    %9606 = vmatprep.subr.bf16.mxu0 0
    %9607 = vmatpush1.bf16.msra.mxu0 0
    %9608 = vmatprep.subr.bf16.mxu0 0
    %9609 = vmatpush1.bf16.msra.mxu0 0
    %9610 = vmatprep.subr.bf16.mxu0 0
    %9611 = vmatpush1.bf16.msra.mxu0 0
    %9612 = vmatprep.subr.bf16.mxu0 0
    %9613 = vmatpush1.bf16.msra.mxu0 0
    %9614 = vmatprep.subr.bf16.mxu0 0
    %9615 = vmatpush1.bf16.msra.mxu0 0
    %9616 = vmatprep.subr.bf16.mxu0 0
    %9617 = vmatpush1.bf16.msra.mxu0 0
    %9618 = vmatprep.subr.bf16.mxu0 0
    %9619 = vmatpush1.bf16.msra.mxu0 0
    %9620 = vmatprep.mubr.bf16.mxu0 0
    %9621 = vmatmul.mubr.bf16.gmra.mrb[0].mxu0 %v9538
    %v9622 = vpop.f32.mrb[0].mxu0
    %v9623 = vadd.f32 %v9539, %v9622
    %v9624 = vpop.f32.mrb[0].mxu0
    %v9625 = vpop.f32.mrb[0].mxu0
    %v9626 = vpop.f32.mrb[0].mxu0
    %9627 = vdwg.mxu0
    %v9628 = vmax.f32 %v9623, 0.0
    %v9629 = vld [vmem:[#allocation2 + $0x60] sm:$0xff]
    %v9630 = vld [vmem:[#allocation2 + $0xc8] sm:$0xff]
    %v9631 = vld [vmem:[#allocation2 + $0x130] sm:$0xff]
    %v9632 = vld [vmem:[#allocation2 + $0x198] sm:$0xff]
    %v9633 = vld [vmem:[#allocation2 + $0x200] sm:$0xff]
    %v9634 = vld [vmem:[#allocation2 + $0x268] sm:$0xff]
    %v9635 = vld [vmem:[#allocation2 + $0x2d0] sm:$0xff]
    %v9636 = vld [vmem:[#allocation2 + $0x338] sm:$0xff]
    %v9637 = vld [vmem:[#allocation2 + $0x3a0] sm:$0xff]
    %v9638 = vld [vmem:[#allocation2 + $0x408] sm:$0xff]
    %v9639 = vld [vmem:[#allocation2 + $0x470] sm:$0xff]
    %v9640 = vld [vmem:[#allocation2 + $0x4d8] sm:$0xff]
    %v9641 = vld [vmem:[#allocation2 + $0x540] sm:$0xff]
    %v9642 = vld [vmem:[#allocation2 + $0x5a8] sm:$0xff]
    %v9643 = vld [vmem:[#allocation2 + $0x610] sm:$0xff]
    %v9644 = vld [vmem:[#allocation2 + $0x678] sm:$0xff]
    %v9645 = vpack.c.bf16 %v9628, %v9628
    %v9646 = vld [vmem:[%s4579] ss:$8 sm:$0x3]
    %v9648 = vlaneseq
    %v9649 = vshrl.u32 %v9648, 7
    %v9650 = vsub.s32 0, %v9649
    %v9651 = vrot.slane %v9646, %v9650
    %v9652 = vlaneseq
    %v9653 = vshrl.u32 %v9652, 7
    %v9654 = vsub.s32 1, %v9653
    %v9655 = vrot.slane %v9646, %v9654
    %v9674 = vunpack.c.l.b16 %v9629
    %v9675 = vunpack.c.h.b16 %v9629
    %v9676 = vunpack.c.l.b16 %v9630
    %v9677 = vunpack.c.h.b16 %v9630
    %v9678 = vunpack.c.l.b16 %v9631
    %v9679 = vunpack.c.h.b16 %v9631
    %v9680 = vunpack.c.l.b16 %v9632
    %v9681 = vunpack.c.h.b16 %v9632
    %v9682 = vunpack.c.l.b16 %v9633
    %v9683 = vunpack.c.h.b16 %v9633
    %v9684 = vunpack.c.l.b16 %v9634
    %v9685 = vunpack.c.h.b16 %v9634
    %v9686 = vunpack.c.l.b16 %v9635
    %v9687 = vunpack.c.h.b16 %v9635
    %v9688 = vunpack.c.l.b16 %v9636
    %v9689 = vunpack.c.h.b16 %v9636
    %v9690 = vunpack.c.l.b16 %v9637
    %v9691 = vunpack.c.h.b16 %v9637
    %v9692 = vunpack.c.l.b16 %v9638
    %v9693 = vunpack.c.h.b16 %v9638
    %v9694 = vunpack.c.l.b16 %v9639
    %v9695 = vunpack.c.h.b16 %v9639
    %v9696 = vunpack.c.l.b16 %v9640
    %v9697 = vunpack.c.h.b16 %v9640
    %v9698 = vunpack.c.l.b16 %v9641
    %v9699 = vunpack.c.h.b16 %v9641
    %v9700 = vunpack.c.l.b16 %v9642
    %v9701 = vunpack.c.h.b16 %v9642
    %v9702 = vunpack.c.l.b16 %v9643
    %v9703 = vunpack.c.h.b16 %v9643
    %v9704 = vunpack.c.l.b16 %v9644
    %v9705 = vunpack.c.h.b16 %v9644
    %v9706 = vpack.c.b16 %v9676, %v9674
    %v9707 = vpack.c.b16 %v9677, %v9675
    %v9708 = vpack.c.b16 %v9680, %v9678
    %v9709 = vpack.c.b16 %v9681, %v9679
    %v9710 = vpack.c.b16 %v9684, %v9682
    %v9711 = vpack.c.b16 %v9685, %v9683
    %v9712 = vpack.c.b16 %v9688, %v9686
    %v9713 = vpack.c.b16 %v9689, %v9687
    %v9714 = vpack.c.b16 %v9692, %v9690
    %v9715 = vpack.c.b16 %v9693, %v9691
    %v9716 = vpack.c.b16 %v9696, %v9694
    %v9717 = vpack.c.b16 %v9697, %v9695
    %v9718 = vpack.c.b16 %v9700, %v9698
    %v9719 = vpack.c.b16 %v9701, %v9699
    %v9720 = vpack.c.b16 %v9704, %v9702
    %v9721 = vpack.c.b16 %v9705, %v9703
    %9738 = vmatprep.subr.bf16.mxu0 %v9707
    %9739 = vmatpush1.bf16.msra.mxu0 %v9706
    %9740 = vmatprep.subr.bf16.mxu0 %v9709
    %9741 = vmatpush1.bf16.msra.mxu0 %v9708
    %9742 = vmatprep.subr.bf16.mxu0 %v9711
    %9743 = vmatpush1.bf16.msra.mxu0 %v9710
    %9744 = vmatprep.subr.bf16.mxu0 %v9713
    %9745 = vmatpush1.bf16.msra.mxu0 %v9712
    %9746 = vmatprep.subr.bf16.mxu0 %v9715
    %9747 = vmatpush1.bf16.msra.mxu0 %v9714
    %9748 = vmatprep.subr.bf16.mxu0 %v9717
    %9749 = vmatpush1.bf16.msra.mxu0 %v9716
    %9750 = vmatprep.subr.bf16.mxu0 %v9719
    %9751 = vmatpush1.bf16.msra.mxu0 %v9718
    %9752 = vmatprep.subr.bf16.mxu0 %v9721
    %9753 = vmatpush1.bf16.msra.mxu0 %v9720
    %9754 = vmatprep.subr.bf16.mxu0 0
    %9755 = vmatpush1.bf16.msra.mxu0 0
    %9756 = vmatprep.subr.bf16.mxu0 0
    %9757 = vmatpush1.bf16.msra.mxu0 0
    %9758 = vmatprep.subr.bf16.mxu0 0
    %9759 = vmatpush1.bf16.msra.mxu0 0
    %9760 = vmatprep.subr.bf16.mxu0 0
    %9761 = vmatpush1.bf16.msra.mxu0 0
    %9762 = vmatprep.subr.bf16.mxu0 0
    %9763 = vmatpush1.bf16.msra.mxu0 0
    %9764 = vmatprep.subr.bf16.mxu0 0
    %9765 = vmatpush1.bf16.msra.mxu0 0
    %9766 = vmatprep.subr.bf16.mxu0 0
    %9767 = vmatpush1.bf16.msra.mxu0 0
    %9768 = vmatprep.subr.bf16.mxu0 0
    %9769 = vmatpush1.bf16.msra.mxu0 0
    %9770 = vmatprep.mubr.bf16.mxu0 0
    %9771 = vmatmul.mubr.bf16.gmra.mrb[0].mxu0 %v9645
    %v9772 = vpop.f32.mrb[0].mxu0
    %v9773 = vadd.f32 %v9651, %v9772
    %v9774 = vpop.f32.mrb[0].mxu0
    %v9775 = vadd.f32 %v9655, %v9774
    %v9776 = vpop.f32.mrb[0].mxu0
    %v9777 = vpop.f32.mrb[0].mxu0
    %9778 = vdwg.mxu0
    %v9779 = vmax.f32 %v9773, 0.0
    %v9780 = vmax.f32 %v9775, 0.0
    %v9781 = vld [vmem:[#allocation5 + $0x20] sm:$0xff]
    %v9782 = vld [vmem:[#allocation5 + $0x4c] sm:$0xff]
    %v9783 = vld [vmem:[#allocation5 + $0x78] sm:$0xff]
    %v9784 = vld [vmem:[#allocation5 + $0xa4] sm:$0xff]
    %v9785 = vld [vmem:[#allocation5 + $0xd0] sm:$0xff]
    %v9786 = vld [vmem:[#allocation5 + $0xfc] sm:$0xff]
    %v9787 = vld [vmem:[#allocation5 + $0x128] sm:$0xff]
    %v9788 = vld [vmem:[#allocation5 + $0x154] sm:$0xff]
    %v9789 = vld [vmem:[#allocation5 + $0x180] sm:$0xff]
    %v9790 = vld [vmem:[#allocation5 + $0x1ac] sm:$0xff]
    %v9791 = vld [vmem:[#allocation5 + $0x1d8] sm:$0xff]
    %v9792 = vld [vmem:[#allocation5 + $0x204] sm:$0xff]
    %v9793 = vld [vmem:[#allocation5 + $0x230] sm:$0xff]
    %v9794 = vld [vmem:[#allocation5 + $0x25c] sm:$0xff]
    %v9795 = vld [vmem:[#allocation5 + $0x288] sm:$0xff]
    %v9796 = vld [vmem:[#allocation5 + $0x2b4] sm:$0xff]
    %v9797 = vld [vmem:[#allocation5 + $0x2e0] sm:$0xff]
    %v9798 = vld [vmem:[#allocation5 + $0x30c] sm:$0xff]
    %v9799 = vld [vmem:[#allocation5 + $0x338] sm:$0xff]
    %v9800 = vld [vmem:[#allocation5 + $0x364] sm:$0xff]
    %v9801 = vld [vmem:[#allocation5 + $0x390] sm:$0xff]
    %v9802 = vld [vmem:[#allocation5 + $0x3bc] sm:$0xff]
    %v9803 = vld [vmem:[#allocation5 + $0x3e8] sm:$0xff]
    %v9804 = vld [vmem:[#allocation5 + $0x414] sm:$0xff]
    %v9805 = vld [vmem:[#allocation5 + $0x440] sm:$0xff]
    %v9806 = vld [vmem:[#allocation5 + $0x46c] sm:$0xff]
    %v9807 = vld [vmem:[#allocation5 + $0x498] sm:$0xff]
    %v9808 = vld [vmem:[#allocation5 + $0x4c4] sm:$0xff]
    %v9809 = vld [vmem:[#allocation5 + $0x4f0] sm:$0xff]
    %v9810 = vld [vmem:[#allocation5 + $0x51c] sm:$0xff]
    %v9811 = vld [vmem:[#allocation5 + $0x548] sm:$0xff]
    %v9812 = vld [vmem:[#allocation5 + $0x574] sm:$0xff]
    %v9813 = vpack.c.bf16 %v9779, %v9779
    %v9814 = vpack.c.bf16 %v9780, %v9780
    %v9815 = vld [vmem:[%s4749] ss:$8 sm:$0x3]
    %v9817 = vlaneseq
    %v9818 = vshrl.u32 %v9817, 7
    %v9819 = vsub.s32 0, %v9818
    %v9820 = vrot.slane %v9815, %v9819
    %v9821 = vlaneseq
    %v9822 = vshrl.u32 %v9821, 7
    %v9823 = vsub.s32 1, %v9822
    %v9824 = vrot.slane %v9815, %v9823
    %v9859 = vunpack.c.l.b16 %v9781
    %v9860 = vunpack.c.h.b16 %v9781
    %v9861 = vunpack.c.l.b16 %v9782
    %v9862 = vunpack.c.h.b16 %v9782
    %v9863 = vunpack.c.l.b16 %v9783
    %v9864 = vunpack.c.h.b16 %v9783
    %v9865 = vunpack.c.l.b16 %v9784
    %v9866 = vunpack.c.h.b16 %v9784
    %v9867 = vunpack.c.l.b16 %v9785
    %v9868 = vunpack.c.h.b16 %v9785
    %v9869 = vunpack.c.l.b16 %v9786
    %v9870 = vunpack.c.h.b16 %v9786
    %v9871 = vunpack.c.l.b16 %v9787
    %v9872 = vunpack.c.h.b16 %v9787
    %v9873 = vunpack.c.l.b16 %v9788
    %v9874 = vunpack.c.h.b16 %v9788
    %v9875 = vunpack.c.l.b16 %v9789
    %v9876 = vunpack.c.h.b16 %v9789
    %v9877 = vunpack.c.l.b16 %v9790
    %v9878 = vunpack.c.h.b16 %v9790
    %v9879 = vunpack.c.l.b16 %v9791
    %v9880 = vunpack.c.h.b16 %v9791
    %v9881 = vunpack.c.l.b16 %v9792
    %v9882 = vunpack.c.h.b16 %v9792
    %v9883 = vunpack.c.l.b16 %v9793
    %v9884 = vunpack.c.h.b16 %v9793
    %v9885 = vunpack.c.l.b16 %v9794
    %v9886 = vunpack.c.h.b16 %v9794
    %v9887 = vunpack.c.l.b16 %v9795
    %v9888 = vunpack.c.h.b16 %v9795
    %v9889 = vunpack.c.l.b16 %v9796
    %v9890 = vunpack.c.h.b16 %v9796
    %v9891 = vunpack.c.l.b16 %v9797
    %v9892 = vunpack.c.h.b16 %v9797
    %v9893 = vunpack.c.l.b16 %v9798
    %v9894 = vunpack.c.h.b16 %v9798
    %v9895 = vunpack.c.l.b16 %v9799
    %v9896 = vunpack.c.h.b16 %v9799
    %v9897 = vunpack.c.l.b16 %v9800
    %v9898 = vunpack.c.h.b16 %v9800
    %v9899 = vunpack.c.l.b16 %v9801
    %v9900 = vunpack.c.h.b16 %v9801
    %v9901 = vunpack.c.l.b16 %v9802
    %v9902 = vunpack.c.h.b16 %v9802
    %v9903 = vunpack.c.l.b16 %v9803
    %v9904 = vunpack.c.h.b16 %v9803
    %v9905 = vunpack.c.l.b16 %v9804
    %v9906 = vunpack.c.h.b16 %v9804
    %v9907 = vunpack.c.l.b16 %v9805
    %v9908 = vunpack.c.h.b16 %v9805
    %v9909 = vunpack.c.l.b16 %v9806
    %v9910 = vunpack.c.h.b16 %v9806
    %v9911 = vunpack.c.l.b16 %v9807
    %v9912 = vunpack.c.h.b16 %v9807
    %v9913 = vunpack.c.l.b16 %v9808
    %v9914 = vunpack.c.h.b16 %v9808
    %v9915 = vunpack.c.l.b16 %v9809
    %v9916 = vunpack.c.h.b16 %v9809
    %v9917 = vunpack.c.l.b16 %v9810
    %v9918 = vunpack.c.h.b16 %v9810
    %v9919 = vunpack.c.l.b16 %v9811
    %v9920 = vunpack.c.h.b16 %v9811
    %v9921 = vunpack.c.l.b16 %v9812
    %v9922 = vunpack.c.h.b16 %v9812
    %v9923 = vpack.c.b16 %v9861, %v9859
    %v9924 = vpack.c.b16 %v9862, %v9860
    %v9925 = vpack.c.b16 %v9865, %v9863
    %v9926 = vpack.c.b16 %v9866, %v9864
    %v9927 = vpack.c.b16 %v9869, %v9867
    %v9928 = vpack.c.b16 %v9870, %v9868
    %v9929 = vpack.c.b16 %v9873, %v9871
    %v9930 = vpack.c.b16 %v9874, %v9872
    %v9931 = vpack.c.b16 %v9877, %v9875
    %v9932 = vpack.c.b16 %v9878, %v9876
    %v9933 = vpack.c.b16 %v9881, %v9879
    %v9934 = vpack.c.b16 %v9882, %v9880
    %v9935 = vpack.c.b16 %v9885, %v9883
    %v9936 = vpack.c.b16 %v9886, %v9884
    %v9937 = vpack.c.b16 %v9889, %v9887
    %v9938 = vpack.c.b16 %v9890, %v9888
    %v9939 = vpack.c.b16 %v9893, %v9891
    %v9940 = vpack.c.b16 %v9894, %v9892
    %v9941 = vpack.c.b16 %v9897, %v9895
    %v9942 = vpack.c.b16 %v9898, %v9896
    %v9943 = vpack.c.b16 %v9901, %v9899
    %v9944 = vpack.c.b16 %v9902, %v9900
    %v9945 = vpack.c.b16 %v9905, %v9903
    %v9946 = vpack.c.b16 %v9906, %v9904
    %v9947 = vpack.c.b16 %v9909, %v9907
    %v9948 = vpack.c.b16 %v9910, %v9908
    %v9949 = vpack.c.b16 %v9913, %v9911
    %v9950 = vpack.c.b16 %v9914, %v9912
    %v9951 = vpack.c.b16 %v9917, %v9915
    %v9952 = vpack.c.b16 %v9918, %v9916
    %v9953 = vpack.c.b16 %v9921, %v9919
    %v9954 = vpack.c.b16 %v9922, %v9920
    %9987 = vmatprep.subr.bf16.mxu0 %v9924
    %9988 = vmatpush1.bf16.msra.mxu0 %v9923
    %9989 = vmatprep.subr.bf16.mxu0 %v9926
    %9990 = vmatpush1.bf16.msra.mxu0 %v9925
    %9991 = vmatprep.subr.bf16.mxu0 %v9928
    %9992 = vmatpush1.bf16.msra.mxu0 %v9927
    %9993 = vmatprep.subr.bf16.mxu0 %v9930
    %9994 = vmatpush1.bf16.msra.mxu0 %v9929
    %9995 = vmatprep.subr.bf16.mxu0 %v9932
    %9996 = vmatpush1.bf16.msra.mxu0 %v9931
    %9997 = vmatprep.subr.bf16.mxu0 %v9934
    %9998 = vmatpush1.bf16.msra.mxu0 %v9933
    %9999 = vmatprep.subr.bf16.mxu0 %v9936
    %10000 = vmatpush1.bf16.msra.mxu0 %v9935
    %10001 = vmatprep.subr.bf16.mxu0 %v9938
    %10002 = vmatpush1.bf16.msra.mxu0 %v9937
    %10003 = vmatprep.subr.bf16.mxu0 %v9940
    %10004 = vmatpush1.bf16.msra.mxu0 %v9939
    %10005 = vmatprep.subr.bf16.mxu0 %v9942
    %10006 = vmatpush1.bf16.msra.mxu0 %v9941
    %10007 = vmatprep.subr.bf16.mxu0 %v9944
    %10008 = vmatpush1.bf16.msra.mxu0 %v9943
    %10009 = vmatprep.subr.bf16.mxu0 %v9946
    %10010 = vmatpush1.bf16.msra.mxu0 %v9945
    %10011 = vmatprep.subr.bf16.mxu0 %v9948
    %10012 = vmatpush1.bf16.msra.mxu0 %v9947
    %10013 = vmatprep.subr.bf16.mxu0 %v9950
    %10014 = vmatpush1.bf16.msra.mxu0 %v9949
    %10015 = vmatprep.subr.bf16.mxu0 %v9952
    %10016 = vmatpush1.bf16.msra.mxu0 %v9951
    %10017 = vmatprep.subr.bf16.mxu0 %v9954
    %10018 = vmatpush1.bf16.msra.mxu0 %v9953
    %10019 = vmatprep.mubr.bf16.mxu0 %v9814
    %10020 = vmatmul.mubr.bf16.gmra.mrb[0].mxu0 %v9813
    %v10021 = vpop.f32.mrb[0].mxu0
    %v10022 = vadd.f32 %v9820, %v10021
    %v10023 = vpop.f32.mrb[0].mxu0
    %v10024 = vadd.f32 %v9824, %v10023
    %v10025 = vpop.f32.mrb[0].mxu0
    %v10026 = vpop.f32.mrb[0].mxu0
    %10027 = vdwg.mxu0
    %v10028 = vmax.f32 %v10022, 0.0
    %v10029 = vmax.f32 %v10024, 0.0
    %v10030 = vld [vmem:[#allocation5 + $0x28] sm:$0xf]
    %v10031 = vld [vmem:[#allocation5 + $0x54] sm:$0xf]
    %v10032 = vld [vmem:[#allocation5 + $0x80] sm:$0xf]
    %v10033 = vld [vmem:[#allocation5 + $0xac] sm:$0xf]
    %v10034 = vld [vmem:[#allocation5 + $0xd8] sm:$0xf]
    %v10035 = vld [vmem:[#allocation5 + $0x104] sm:$0xf]
    %v10036 = vld [vmem:[#allocation5 + $0x130] sm:$0xf]
    %v10037 = vld [vmem:[#allocation5 + $0x15c] sm:$0xf]
    %v10038 = vld [vmem:[#allocation5 + $0x188] sm:$0xf]
    %v10039 = vld [vmem:[#allocation5 + $0x1b4] sm:$0xf]
    %v10040 = vld [vmem:[#allocation5 + $0x1e0] sm:$0xf]
    %v10041 = vld [vmem:[#allocation5 + $0x20c] sm:$0xf]
    %v10042 = vld [vmem:[#allocation5 + $0x238] sm:$0xf]
    %v10043 = vld [vmem:[#allocation5 + $0x264] sm:$0xf]
    %v10044 = vld [vmem:[#allocation5 + $0x290] sm:$0xf]
    %v10045 = vld [vmem:[#allocation5 + $0x2bc] sm:$0xf]
    %v10046 = vld [vmem:[#allocation5 + $0x2e8] sm:$0xf]
    %v10047 = vld [vmem:[#allocation5 + $0x314] sm:$0xf]
    %v10048 = vld [vmem:[#allocation5 + $0x340] sm:$0xf]
    %v10049 = vld [vmem:[#allocation5 + $0x36c] sm:$0xf]
    %v10050 = vld [vmem:[#allocation5 + $0x398] sm:$0xf]
    %v10051 = vld [vmem:[#allocation5 + $0x3c4] sm:$0xf]
    %v10052 = vld [vmem:[#allocation5 + $0x3f0] sm:$0xf]
    %v10053 = vld [vmem:[#allocation5 + $0x41c] sm:$0xf]
    %v10054 = vld [vmem:[#allocation5 + $0x448] sm:$0xf]
    %v10055 = vld [vmem:[#allocation5 + $0x474] sm:$0xf]
    %v10056 = vld [vmem:[#allocation5 + $0x4a0] sm:$0xf]
    %v10057 = vld [vmem:[#allocation5 + $0x4cc] sm:$0xf]
    %v10058 = vld [vmem:[#allocation5 + $0x4f8] sm:$0xf]
    %v10059 = vld [vmem:[#allocation5 + $0x524] sm:$0xf]
    %v10060 = vld [vmem:[#allocation5 + $0x550] sm:$0xf]
    %v10061 = vld [vmem:[#allocation5 + $0x57c] sm:$0xf]
    %v10062 = vpack.c.bf16 %v10028, %v10028
    %v10063 = vpack.c.bf16 %v10029, %v10029
    %v10064 = vld [vmem:[#allocation8 + $0x34] ss:$0 sm:$0xff]
    %v10097 = vunpack.c.l.b16 %v10030
    %v10098 = vunpack.c.l.b16 %v10031
    %v10099 = vunpack.c.l.b16 %v10032
    %v10100 = vunpack.c.l.b16 %v10033
    %v10101 = vunpack.c.l.b16 %v10034
    %v10102 = vunpack.c.l.b16 %v10035
    %v10103 = vunpack.c.l.b16 %v10036
    %v10104 = vunpack.c.l.b16 %v10037
    %v10105 = vunpack.c.l.b16 %v10038
    %v10106 = vunpack.c.l.b16 %v10039
    %v10107 = vunpack.c.l.b16 %v10040
    %v10108 = vunpack.c.l.b16 %v10041
    %v10109 = vunpack.c.l.b16 %v10042
    %v10110 = vunpack.c.l.b16 %v10043
    %v10111 = vunpack.c.l.b16 %v10044
    %v10112 = vunpack.c.l.b16 %v10045
    %v10113 = vunpack.c.l.b16 %v10046
    %v10114 = vunpack.c.l.b16 %v10047
    %v10115 = vunpack.c.l.b16 %v10048
    %v10116 = vunpack.c.l.b16 %v10049
    %v10117 = vunpack.c.l.b16 %v10050
    %v10118 = vunpack.c.l.b16 %v10051
    %v10119 = vunpack.c.l.b16 %v10052
    %v10120 = vunpack.c.l.b16 %v10053
    %v10121 = vunpack.c.l.b16 %v10054
    %v10122 = vunpack.c.l.b16 %v10055
    %v10123 = vunpack.c.l.b16 %v10056
    %v10124 = vunpack.c.l.b16 %v10057
    %v10125 = vunpack.c.l.b16 %v10058
    %v10126 = vunpack.c.l.b16 %v10059
    %v10127 = vunpack.c.l.b16 %v10060
    %v10128 = vunpack.c.l.b16 %v10061
    %v10129 = vpack.c.b16 %v10098, %v10097
    %v10130 = vpack.c.b16 %v10100, %v10099
    %v10131 = vpack.c.b16 %v10102, %v10101
    %v10132 = vpack.c.b16 %v10104, %v10103
    %v10133 = vpack.c.b16 %v10106, %v10105
    %v10134 = vpack.c.b16 %v10108, %v10107
    %v10135 = vpack.c.b16 %v10110, %v10109
    %v10136 = vpack.c.b16 %v10112, %v10111
    %v10137 = vpack.c.b16 %v10114, %v10113
    %v10138 = vpack.c.b16 %v10116, %v10115
    %v10139 = vpack.c.b16 %v10118, %v10117
    %v10140 = vpack.c.b16 %v10120, %v10119
    %v10141 = vpack.c.b16 %v10122, %v10121
    %v10142 = vpack.c.b16 %v10124, %v10123
    %v10143 = vpack.c.b16 %v10126, %v10125
    %v10144 = vpack.c.b16 %v10128, %v10127
    %10161 = vmatprep.subr.bf16.mxu0 0
    %10162 = vmatpush1.bf16.msra.mxu0 %v10129
    %10163 = vmatprep.subr.bf16.mxu0 0
    %10164 = vmatpush1.bf16.msra.mxu0 %v10130
    %10165 = vmatprep.subr.bf16.mxu0 0
    %10166 = vmatpush1.bf16.msra.mxu0 %v10131
    %10167 = vmatprep.subr.bf16.mxu0 0
    %10168 = vmatpush1.bf16.msra.mxu0 %v10132
    %10169 = vmatprep.subr.bf16.mxu0 0
    %10170 = vmatpush1.bf16.msra.mxu0 %v10133
    %10171 = vmatprep.subr.bf16.mxu0 0
    %10172 = vmatpush1.bf16.msra.mxu0 %v10134
    %10173 = vmatprep.subr.bf16.mxu0 0
    %10174 = vmatpush1.bf16.msra.mxu0 %v10135
    %10175 = vmatprep.subr.bf16.mxu0 0
    %10176 = vmatpush1.bf16.msra.mxu0 %v10136
    %10177 = vmatprep.subr.bf16.mxu0 0
    %10178 = vmatpush1.bf16.msra.mxu0 %v10137
    %10179 = vmatprep.subr.bf16.mxu0 0
    %10180 = vmatpush1.bf16.msra.mxu0 %v10138
    %10181 = vmatprep.subr.bf16.mxu0 0
    %10182 = vmatpush1.bf16.msra.mxu0 %v10139
    %10183 = vmatprep.subr.bf16.mxu0 0
    %10184 = vmatpush1.bf16.msra.mxu0 %v10140
    %10185 = vmatprep.subr.bf16.mxu0 0
    %10186 = vmatpush1.bf16.msra.mxu0 %v10141
    %10187 = vmatprep.subr.bf16.mxu0 0
    %10188 = vmatpush1.bf16.msra.mxu0 %v10142
    %10189 = vmatprep.subr.bf16.mxu0 0
    %10190 = vmatpush1.bf16.msra.mxu0 %v10143
    %10191 = vmatprep.subr.bf16.mxu0 0
    %10192 = vmatpush1.bf16.msra.mxu0 %v10144
    %10193 = vmatprep.mubr.bf16.mxu0 %v10063
    %10194 = vmatmul.mubr.bf16.gmra.mrb[0].mxu0 %v10062
    %v10195 = vpop.f32.mrb[0].mxu0
    %v10196 = vadd.f32 %v10064, %v10195
    %v10197 = vpop.f32.mrb[0].mxu0
    %v10198 = vpop.f32.mrb[0].mxu0
    %v10199 = vpop.f32.mrb[0].mxu0
    %10200 = vdwg.mxu0
    %v10201 = vsel %vm5138, %v10196, -1e+30
    %10202 = vmax.xlane.f32.xlu0 %v10201
    %v10203 = vpop.xlane.xlu0 %10202
    %v10204 = vsub.f32 %v10201, %v10203
    %v10205 = vmul.f32 %v10204, 1.442695
    %v10206 = vpow.pop %v10205
    %10207 = vadd.xlane.f32.xlu0 %v10206
    %v10208 = vpop.xlane.xlu0 %10207
    %v10209 = vrcp.pop %v10208
    %v10210 = vmul.f32 %v10208, %v10209
    %v10211 = vsub.f32 2.0, %v10210
    %v10212 = vmul.f32 %v10209, %v10211
    %v10213 = vmul.f32 %v10206, %v10212
    %10214 = vst [vmem:[#allocation10 + $0x8] sm:$0xff] %v10213
    // Predicated region
    $region38: #{fwd.1} parent=1 // pred_check
      _
    $region39: #{fwd.1} parent=1 // pred_check_branch
      %10216 = sbr.rel (0) target = $region41
    $region40: #{fwd.1} parent=1 // pred_region
      %s10218 = ssub.s32 256, 256
      %10219 = vsyncadd [#allocation4], %s10218
      %s10220 = sshll.u32 [#allocation10], 4
      %s10221 = int_to_ptr.vmem [resolvable:$true] %s10220
      %10226 = dma.vmem_to_hbm [thread:$0]  %s10221, 256, %s5, [#allocation4], 128, 128, 8
    $region41: #{fwd.1} parent=1 // pred_fallthru
      _
    // Predicated region
    $region42: #{fwd.1} parent=1 // pred_check
      _
    $region43: #{fwd.1} parent=1 // pred_check_branch
      %10228 = sbr.rel (0) target = $region45
    $region44: #{fwd.1} parent=1 // pred_region
      %10229 = dma.done [#allocation4], 256
    $region45: #{fwd.1} parent=1 // pred_fallthru
      _
    %10230 = vsyncpa [#allocation3], 1
    %10231 = vsyncpa [#allocation6], 1
    %10232 = vsyncpa [#allocation9], 1
    %10233 = vsyncpa [#allocation4], 1

</llo_original>
